<compile_context>
chip_gen: v7x
topology: tpu7x:2x2x1
jax: 0.10.0
libtpu: 0.0.40
codegen_flags: <defaults>
</compile_context>

<pallas_src>
import functools

import numpy as np
import jax
import jax.numpy as jnp
from jax.experimental import pallas as pl
from jax.experimental.pallas import tpu as pltpu

# ---------------------------------------------------------------------------
# Canvas geometry (a 32x32 input is forced by fc1 = Linear(64*3*3, 10)).
# Activations live as channel-major (C, M) slabs: C on sublanes, M = flattened
# per-image canvas on lanes (row-major; row width padded just enough for the
# conv taps, flat length padded to a 128 multiple).
# ---------------------------------------------------------------------------
_WA, _NA, _SA = 34, 32, 1152     # conv1/conv2 canvas : 32x32 valid, 34-wide rows
_WB, _NB, _SB = 18, 17, 384      # conv3 canvas       : 17x17 valid
_WC, _NC, _SC = 10, 9, 128       # conv4/max-pool     : 9x9 in, 8x8 conv4 out
_EXT = 128                       # lane halo (covers every tap offset, |off|<=70)

_F32, _BF16 = jnp.float32, jnp.bfloat16


# ------------------------------ in-kernel helpers ---------------------------

def _extend(x, fill):
    # Add a 128-lane halo on both sides (all concat offsets are 128-aligned).
    halo = jnp.full((x.shape[0], _EXT), fill, x.dtype)
    return jnp.concatenate([halo, x, halo], axis=1)


def _win(ext, off, m):
    # window[:, p] == x[:, p + off]  (halo supplies the out-of-range fill)
    return ext[:, _EXT + off:_EXT + off + m]


def _conv_relu_bn(x, w_ref, b_ref, g_ref, h_ref, k, pad, wc):
    # x: (Cin, M) f32, valid data on the canvas, zeros elsewhere.
    # Partial im2col in VMEM: all k*k shifted bf16 windows stacked on sublanes
    # (Cin padded to 16/32 so every stack offset is tile aligned) and folded
    # into ONE MXU contraction of depth Cin*k*k.
    m = x.shape[1]
    ext = _extend(x.astype(_BF16), 0.0)
    wins = [_win(ext, (di - pad) * wc + (dj - pad), m)
            for di in range(k) for dj in range(k)]
    xstk = jnp.concatenate(wins, axis=0)                         # (Cin*k*k, M)
    acc = jnp.dot(w_ref[...], xstk, preferred_element_type=_F32)  # (Cout, M)
    y = jnp.maximum(acc + b_ref[...], 0.0)                        # conv bias + ReLU
    return y * g_ref[...] + h_ref[...]                            # eval BatchNorm2d


def _max_pool_map(y, mvalid, k, pad, wc):
    # Stride-1 windowed max over the canvas; invalid positions forced to a
    # large negative sentinel (plays the role of MaxPool2d's -inf padding).
    m = y.shape[1]
    neg = jnp.float32(-1e30)
    ext = _extend(jnp.where(mvalid > 0.0, y, neg), neg)
    acc = None
    for di in range(k):
        for dj in range(k):
            w = _win(ext, (di - pad) * wc + (dj - pad), m)
            acc = w if acc is None else jnp.maximum(acc, w)
    # Scrub sentinels before they can reach any matmul / dtype cast.
    return jnp.where(acc < -1e29, 0.0, acc)


# --------------------------------- kernel -----------------------------------

def fused_cnn_kernel(x_ref,
                     w1_ref, b1_ref, g1_ref, h1_ref,
                     w2_ref, b2_ref, g2_ref, h2_ref,
                     w3_ref, b3_ref, g3_ref, h3_ref,
                     w4_ref, b4_ref, g4_ref, h4_ref,
                     ma_ref, mc_ref, p1_ref, p2_ref, p3_ref,
                     wfc_ref, bfc_ref,
                     out_ref):
    x0 = x_ref[0]                                                    # (16, SA)

    # conv1 -> ReLU -> BN ; mask off canvas garbage before it feeds conv2.
    y1 = _conv_relu_bn(x0, w1_ref, b1_ref, g1_ref, h1_ref, 5, 2, _WA)
    y2 = _conv_relu_bn(y1 * ma_ref[...], w2_ref, b2_ref, g2_ref, h2_ref,
                       5, 2, _WA)

    # AvgPool2d(4,2,2) (count_include_pad) + stride-2 decimation + embedding on
    # canvas B: one matmul with a 1/16-valued select (its zero rows/columns
    # also mask out-of-range garbage, so no explicit mask multiply is needed).
    x3 = jnp.dot(y2.astype(_BF16), p1_ref[...], preferred_element_type=_F32)
    y3 = _conv_relu_bn(x3, w3_ref, b3_ref, g3_ref, h3_ref, 3, 1, _WB)

    x4 = jnp.dot(y3.astype(_BF16), p2_ref[...], preferred_element_type=_F32)
    y4 = _conv_relu_bn(x4, w4_ref, b4_ref, g4_ref, h4_ref, 4, 1, _WC)

    # MaxPool2d(4,3,2): stride-1 windowed max, then pick the 3x3 anchors.
    mm = _max_pool_map(y4, mc_ref[...], 4, 2, _WC)                   # (64, SC)
    xsel = jnp.dot(mm, p3_ref[...], preferred_element_type=_F32)     # (64, 9)

    # TODO(synk): Dropout(p=0.3) is identity in eval/inference mode.
    # fc1: logits[o] = sum_{c,s} Wfc[o, c, s] * patch[c, s]  (tiny -> VPU).
    prod = wfc_ref[...] * xsel[None, :, :]                           # (10,64,9)
    logits = (jnp.sum(jnp.sum(prod, axis=2), axis=1, keepdims=True)
              + bfc_ref[...])                                        # (10, 1)

    # LogSoftmax over classes.
    zmax = jnp.max(logits, axis=0, keepdims=True)
    z = logits - zmax
    lse = jnp.log(jnp.sum(jnp.exp(z), axis=0, keepdims=True))
    out_ref[0] = jnp.broadcast_to(z - lse, (10, 128))


# --------------------------- host-side constants ----------------------------

@functools.lru_cache(maxsize=None)
def _host_constants():
    # Built once (batch independent) - per-image, O(1) in batch.
    ma = np.zeros((1, _SA), np.float32)          # valid 32x32 mask, canvas A
    for i in range(_NA):
        ma[0, i * _WA:i * _WA + _NA] = 1.0
    mc = np.zeros((1, _SC), np.float32)          # valid 8x8 conv4-output mask
    for i in range(8):
        mc[0, i * _WC:i * _WC + 8] = 1.0

    def avg_select(s_in, w_in, n_in, s_out, w_out, n_out):
        # AvgPool2d(kernel=4, stride=2, padding=2, count_include_pad=True)
        # fused with the re-embedding of the pooled map onto the next canvas.
        p = np.zeros((s_in, s_out), np.float32)
        for oi in range(n_out):
            for oj in range(n_out):
                o = oi * w_out + oj
                for ti in range(4):
                    for tj in range(4):
                        ii, ij = 2 * oi - 2 + ti, 2 * oj - 2 + tj
                        if 0 <= ii < n_in and 0 <= ij < n_in:
                            p[ii * w_in + ij, o] += 1.0 / 16.0
        return p

    p1 = avg_select(_SA, _WA, _NA, _SB, _WB, _NB)      # 32x32 -> 17x17
    p2 = avg_select(_SB, _WB, _NB, _SC, _WC, _NC)      # 17x17 -> 9x9

    # MaxPool2d(4, stride=3, padding=2): decimate the stride-1 max map at
    # anchors {0,3,6}^2, columns in torch's (oh*3+ow) flatten order.
    p3 = np.zeros((_SC, 9), np.float32)
    for oi in range(3):
        for oj in range(3):
            p3[(3 * oi) * _WC + (3 * oj), oi * 3 + oj] = 1.0
    return ma, mc, p1, p2, p3


@functools.lru_cache(maxsize=None)
def _vmem_limit_bytes():
    # Per-step footprint is ~3 MiB; stay well under the per-core capacity on
    # every generation (v7x: 64 MiB) while leaving double-buffer headroom.
    try:
        cap = int(pltpu.get_tpu_info().vmem_capacity_bytes)
    except Exception:
        cap = 64 * 1024 * 1024
    return int(min(cap // 2, 32 * 1024 * 1024))


# ------------------------------- model --------------------------------------

def init_params(key):
    ks = jax.random.split(key, 26)
    it = iter(range(26))

    def conv_p(cout, cin, ksz):
        fan = cin * ksz * ksz
        w = jax.random.normal(ks[next(it)], (cout, cin, ksz, ksz), jnp.float32) / jnp.sqrt(fan)
        b = 0.1 * jax.random.normal(ks[next(it)], (cout,), jnp.float32)
        return w, b

    def bn_p(c):
        gamma = 1.0 + 0.1 * jax.random.normal(ks[next(it)], (c,), jnp.float32)
        beta = 0.1 * jax.random.normal(ks[next(it)], (c,), jnp.float32)
        r_mean = 0.1 * jax.random.normal(ks[next(it)], (c,), jnp.float32)
        r_var = 0.9 + 0.1 * jnp.abs(jax.random.normal(ks[next(it)], (c,), jnp.float32))
        eps = 1e-5
        scale = gamma / jnp.sqrt(r_var + eps)
        bias = beta - r_mean * scale
        return scale, bias

    p = {}
    for name, (cout, cin, ksz) in zip(
            ("c1", "c2", "c3", "c4"),
            ((10, 3, 5), (16, 10, 5), (32, 16, 3), (64, 32, 4))):
        w, b = conv_p(cout, cin, ksz)
        s, t = bn_p(cout)
        p[name] = (w, b, s, t)

    fan = 64 * 3 * 3
    p["fc_w"] = jax.random.normal(ks[next(it)], (10, fan), jnp.float32) / jnp.sqrt(fan)
    p["fc_b"] = 0.1 * jax.random.normal(ks[next(it)], (10,), jnp.float32)
    return p


def _prep_conv(w, b, g, h, cin_pad, cout_pad):
    # torch (Cout, Cin, k, k) -> stacked (Cout_pad, k*k*Cin_pad) bf16 with
    # W[co, (di*k+dj)*Cin_pad + ci] = w[co, ci, di, dj]; padded rows/cols are 0
    # so padded input/output channels contribute exactly zero.
    cout, cin, k, _ = w.shape
    wp = jnp.pad(w, ((0, cout_pad - cout), (0, cin_pad - cin), (0, 0), (0, 0)))
    wst = jnp.transpose(wp, (0, 2, 3, 1)).reshape(cout_pad, k * k * cin_pad)

    def col(v):
        return jnp.pad(v, (0, cout_pad - cout)).reshape(-1, 1).astype(_F32)

    return wst.astype(_BF16), col(b), col(g), col(h)


def cnn_forward(x_nchw, params):
    batch = x_nchw.shape[0]
    ma, mc, p1, p2, p3 = _host_constants()

    # Input -> per-image channel-major canvas A (16 channels: 3 real + 13 zero
    # so the conv window stacking stays tile aligned).
    x = jnp.pad(x_nchw.astype(_F32),
                ((0, 0), (0, 16 - 3), (0, 0), (0, _WA - 32)))      # (B,16,32,34)
    x = x.reshape(batch, 16, 32 * _WA)
    x = jnp.pad(x, ((0, 0), (0, 0), (0, _SA - 32 * _WA)))          # (B,16,SA)

    inputs, in_specs = [], []

    def add(arr, spec):
        inputs.append(arr)
        in_specs.append(spec)

    def add_const(arr):
        # Constant index_map -> fetched once, stays VMEM-resident across steps.
        nd = arr.ndim
        add(arr, pl.BlockSpec(arr.shape, lambda b, _n=nd: (0,) * _n))

    add(x, pl.BlockSpec((1, 16, _SA), lambda b: (b, 0, 0)))

    for name, cin_pad, cout_pad in (("c1", 16, 16), ("c2", 16, 16),
                                    ("c3", 16, 32), ("c4", 32, 64)):
        w, b, g, h = params[name]
        for a in _prep_conv(w, b, g, h, cin_pad, cout_pad):
            add_const(a)

    add_const(jnp.asarray(ma))
    add_const(jnp.asarray(mc))
    add_const(jnp.asarray(p1, dtype=_BF16))      # 1/16 entries are exact in bf16
    add_const(jnp.asarray(p2, dtype=_BF16))
    add_const(jnp.asarray(p3))                   # keep max-pool select exact (f32)
    add_const(params["fc_w"].reshape(10, 64, 9).astype(_F32))
    add_const(params["fc_b"].reshape(10, 1).astype(_F32))

    out3 = pl.pallas_call(
        fused_cnn_kernel,
        out_shape=jax.ShapeDtypeStruct((batch, 10, 128), _F32),
        grid=(batch,),
        in_specs=in_specs,
        out_specs=pl.BlockSpec((1, 10, 128), lambda b: (b, 0, 0)),
        compiler_params=pltpu.CompilerParams(
            dimension_semantics=("parallel",),
            vmem_limit_bytes=_vmem_limit_bytes()),
    )(*inputs)
    return out3[:, :, 0]                                           # (B, 10)


if __name__ == "__main__":
    key = jax.random.PRNGKey(0)
    k_param, k_data = jax.random.split(key)
    params = init_params(k_param)
    # fc1 = Linear(64*3*3, 10) forces a 32x32 spatial input (CIFAR-like).
    x = jax.random.normal(k_data, (2, 3, 32, 32), jnp.float32)
    logp = jax.jit(cnn_forward)(x, params)
    jax.block_until_ready(logp)
    assert logp.shape == (2, 10)
    assert bool(jnp.all(jnp.isfinite(logp)))
    np.testing.assert_allclose(np.asarray(jnp.exp(logp)).sum(axis=1), 1.0,
                               atol=1e-3)
    print("KERNEL_OK")
</pallas_src>

<mosaic_0001>
module attributes {stable_mosaic.version = 11 : i64} {
  func.func @fused_cnn_kernel(%arg0: i32, %arg1: memref<1x16x1152xf32, #tpu.memory_space<vmem>>, %arg2: memref<16x400xbf16, #tpu.memory_space<vmem>>, %arg3: memref<16x1xf32, #tpu.memory_space<vmem>>, %arg4: memref<16x1xf32, #tpu.memory_space<vmem>>, %arg5: memref<16x1xf32, #tpu.memory_space<vmem>>, %arg6: memref<16x400xbf16, #tpu.memory_space<vmem>>, %arg7: memref<16x1xf32, #tpu.memory_space<vmem>>, %arg8: memref<16x1xf32, #tpu.memory_space<vmem>>, %arg9: memref<16x1xf32, #tpu.memory_space<vmem>>, %arg10: memref<32x144xbf16, #tpu.memory_space<vmem>>, %arg11: memref<32x1xf32, #tpu.memory_space<vmem>>, %arg12: memref<32x1xf32, #tpu.memory_space<vmem>>, %arg13: memref<32x1xf32, #tpu.memory_space<vmem>>, %arg14: memref<64x512xbf16, #tpu.memory_space<vmem>>, %arg15: memref<64x1xf32, #tpu.memory_space<vmem>>, %arg16: memref<64x1xf32, #tpu.memory_space<vmem>>, %arg17: memref<64x1xf32, #tpu.memory_space<vmem>>, %arg18: memref<1x1152xf32, #tpu.memory_space<vmem>>, %arg19: memref<1x128xf32, #tpu.memory_space<vmem>>, %arg20: memref<1152x384xbf16, #tpu.memory_space<vmem>>, %arg21: memref<384x128xbf16, #tpu.memory_space<vmem>>, %arg22: memref<128x9xf32, #tpu.memory_space<vmem>>, %arg23: memref<10x64x9xf32, #tpu.memory_space<vmem>>, %arg24: memref<10x1xf32, #tpu.memory_space<vmem>>, %arg25: memref<1x10x128xf32, #tpu.memory_space<vmem>>) attributes {dimension_semantics = [#tpu.dimension_semantics<parallel>], iteration_bounds = array<i64: 2>, scalar_prefetch = 0 : i64, scratch_operands = 0 : i64, tpu.core_type = #tpu.core_type<tc>, window_params = [{transform_indices = @transform_0, window_bounds = array<i64: 1, 16, 1152>}, {pipeline_mode = #tpu.pipeline_mode<synchronous>, transform_indices = @transform_1, window_bounds = array<i64: 16, 400>}, {pipeline_mode = #tpu.pipeline_mode<synchronous>, transform_indices = @transform_2, window_bounds = array<i64: 16, 1>}, {pipeline_mode = #tpu.pipeline_mode<synchronous>, transform_indices = @transform_3, window_bounds = array<i64: 16, 1>}, {pipeline_mode = #tpu.pipeline_mode<synchronous>, transform_indices = @transform_4, window_bounds = array<i64: 16, 1>}, {pipeline_mode = #tpu.pipeline_mode<synchronous>, transform_indices = @transform_5, window_bounds = array<i64: 16, 400>}, {pipeline_mode = #tpu.pipeline_mode<synchronous>, transform_indices = @transform_6, window_bounds = array<i64: 16, 1>}, {pipeline_mode = #tpu.pipeline_mode<synchronous>, transform_indices = @transform_7, window_bounds = array<i64: 16, 1>}, {pipeline_mode = #tpu.pipeline_mode<synchronous>, transform_indices = @transform_8, window_bounds = array<i64: 16, 1>}, {pipeline_mode = #tpu.pipeline_mode<synchronous>, transform_indices = @transform_9, window_bounds = array<i64: 32, 144>}, {pipeline_mode = #tpu.pipeline_mode<synchronous>, transform_indices = @transform_10, window_bounds = array<i64: 32, 1>}, {pipeline_mode = #tpu.pipeline_mode<synchronous>, transform_indices = @transform_11, window_bounds = array<i64: 32, 1>}, {pipeline_mode = #tpu.pipeline_mode<synchronous>, transform_indices = @transform_12, window_bounds = array<i64: 32, 1>}, {pipeline_mode = #tpu.pipeline_mode<synchronous>, transform_indices = @transform_13, window_bounds = array<i64: 64, 512>}, {pipeline_mode = #tpu.pipeline_mode<synchronous>, transform_indices = @transform_14, window_bounds = array<i64: 64, 1>}, {pipeline_mode = #tpu.pipeline_mode<synchronous>, transform_indices = @transform_15, window_bounds = array<i64: 64, 1>}, {pipeline_mode = #tpu.pipeline_mode<synchronous>, transform_indices = @transform_16, window_bounds = array<i64: 64, 1>}, {pipeline_mode = #tpu.pipeline_mode<synchronous>, transform_indices = @transform_17, window_bounds = array<i64: 1, 1152>}, {pipeline_mode = #tpu.pipeline_mode<synchronous>, transform_indices = @transform_18, window_bounds = array<i64: 1, 128>}, {pipeline_mode = #tpu.pipeline_mode<synchronous>, transform_indices = @transform_19, window_bounds = array<i64: 1152, 384>}, {pipeline_mode = #tpu.pipeline_mode<synchronous>, transform_indices = @transform_20, window_bounds = array<i64: 384, 128>}, {pipeline_mode = #tpu.pipeline_mode<synchronous>, transform_indices = @transform_21, window_bounds = array<i64: 128, 9>}, {pipeline_mode = #tpu.pipeline_mode<synchronous>, transform_indices = @transform_22, window_bounds = array<i64: 10, 64, 9>}, {pipeline_mode = #tpu.pipeline_mode<synchronous>, transform_indices = @transform_23, window_bounds = array<i64: 10, 1>}, {transform_indices = @transform_24, window_bounds = array<i64: 1, 10, 128>}]} {
    %c0 = arith.constant 0 : index
    %c0_0 = arith.constant 0 : index
    %c0_1 = arith.constant 0 : index
    %0 = vector.load %arg1[%c0, %c0_0, %c0_1] : memref<1x16x1152xf32, #tpu.memory_space<vmem>>, vector<1x16x1152xf32>
    %1 = vector.shape_cast %0 : vector<1x16x1152xf32> to vector<16x1152xf32>
    %2 = arith.truncf %1 : vector<16x1152xf32> to vector<16x1152xbf16>
    %cst = arith.constant 0.000000e+00 : bf16
    %3 = vector.broadcast %cst : bf16 to vector<16x128xbf16>
    %4 = tpu.concatenate %3, %2, %3 in 1 : vector<16x128xbf16>, vector<16x1152xbf16>, vector<16x128xbf16> -> vector<16x1408xbf16>
    %5 = vector.extract_strided_slice %4 {offsets = [0, 58], sizes = [16, 1152], strides = [1, 1]} : vector<16x1408xbf16> to vector<16x1152xbf16>
    %6 = vector.extract_strided_slice %4 {offsets = [0, 59], sizes = [16, 1152], strides = [1, 1]} : vector<16x1408xbf16> to vector<16x1152xbf16>
    %7 = vector.extract_strided_slice %4 {offsets = [0, 60], sizes = [16, 1152], strides = [1, 1]} : vector<16x1408xbf16> to vector<16x1152xbf16>
    %8 = vector.extract_strided_slice %4 {offsets = [0, 61], sizes = [16, 1152], strides = [1, 1]} : vector<16x1408xbf16> to vector<16x1152xbf16>
    %9 = vector.extract_strided_slice %4 {offsets = [0, 62], sizes = [16, 1152], strides = [1, 1]} : vector<16x1408xbf16> to vector<16x1152xbf16>
    %10 = vector.extract_strided_slice %4 {offsets = [0, 92], sizes = [16, 1152], strides = [1, 1]} : vector<16x1408xbf16> to vector<16x1152xbf16>
    %11 = vector.extract_strided_slice %4 {offsets = [0, 93], sizes = [16, 1152], strides = [1, 1]} : vector<16x1408xbf16> to vector<16x1152xbf16>
    %12 = vector.extract_strided_slice %4 {offsets = [0, 94], sizes = [16, 1152], strides = [1, 1]} : vector<16x1408xbf16> to vector<16x1152xbf16>
    %13 = vector.extract_strided_slice %4 {offsets = [0, 95], sizes = [16, 1152], strides = [1, 1]} : vector<16x1408xbf16> to vector<16x1152xbf16>
    %14 = vector.extract_strided_slice %4 {offsets = [0, 96], sizes = [16, 1152], strides = [1, 1]} : vector<16x1408xbf16> to vector<16x1152xbf16>
    %15 = vector.extract_strided_slice %4 {offsets = [0, 126], sizes = [16, 1152], strides = [1, 1]} : vector<16x1408xbf16> to vector<16x1152xbf16>
    %16 = vector.extract_strided_slice %4 {offsets = [0, 127], sizes = [16, 1152], strides = [1, 1]} : vector<16x1408xbf16> to vector<16x1152xbf16>
    %17 = vector.extract_strided_slice %4 {offsets = [0, 128], sizes = [16, 1152], strides = [1, 1]} : vector<16x1408xbf16> to vector<16x1152xbf16>
    %18 = vector.extract_strided_slice %4 {offsets = [0, 129], sizes = [16, 1152], strides = [1, 1]} : vector<16x1408xbf16> to vector<16x1152xbf16>
    %19 = vector.extract_strided_slice %4 {offsets = [0, 130], sizes = [16, 1152], strides = [1, 1]} : vector<16x1408xbf16> to vector<16x1152xbf16>
    %20 = vector.extract_strided_slice %4 {offsets = [0, 160], sizes = [16, 1152], strides = [1, 1]} : vector<16x1408xbf16> to vector<16x1152xbf16>
    %21 = vector.extract_strided_slice %4 {offsets = [0, 161], sizes = [16, 1152], strides = [1, 1]} : vector<16x1408xbf16> to vector<16x1152xbf16>
    %22 = vector.extract_strided_slice %4 {offsets = [0, 162], sizes = [16, 1152], strides = [1, 1]} : vector<16x1408xbf16> to vector<16x1152xbf16>
    %23 = vector.extract_strided_slice %4 {offsets = [0, 163], sizes = [16, 1152], strides = [1, 1]} : vector<16x1408xbf16> to vector<16x1152xbf16>
    %24 = vector.extract_strided_slice %4 {offsets = [0, 164], sizes = [16, 1152], strides = [1, 1]} : vector<16x1408xbf16> to vector<16x1152xbf16>
    %25 = vector.extract_strided_slice %4 {offsets = [0, 194], sizes = [16, 1152], strides = [1, 1]} : vector<16x1408xbf16> to vector<16x1152xbf16>
    %26 = vector.extract_strided_slice %4 {offsets = [0, 195], sizes = [16, 1152], strides = [1, 1]} : vector<16x1408xbf16> to vector<16x1152xbf16>
    %27 = vector.extract_strided_slice %4 {offsets = [0, 196], sizes = [16, 1152], strides = [1, 1]} : vector<16x1408xbf16> to vector<16x1152xbf16>
    %28 = vector.extract_strided_slice %4 {offsets = [0, 197], sizes = [16, 1152], strides = [1, 1]} : vector<16x1408xbf16> to vector<16x1152xbf16>
    %29 = vector.extract_strided_slice %4 {offsets = [0, 198], sizes = [16, 1152], strides = [1, 1]} : vector<16x1408xbf16> to vector<16x1152xbf16>
    %30 = tpu.concatenate %5, %6, %7, %8, %9, %10, %11, %12, %13, %14, %15, %16, %17, %18, %19, %20 in 0 : vector<16x1152xbf16>, vector<16x1152xbf16>, vector<16x1152xbf16>, vector<16x1152xbf16>, vector<16x1152xbf16>, vector<16x1152xbf16>, vector<16x1152xbf16>, vector<16x1152xbf16>, vector<16x1152xbf16>, vector<16x1152xbf16>, vector<16x1152xbf16>, vector<16x1152xbf16>, vector<16x1152xbf16>, vector<16x1152xbf16>, vector<16x1152xbf16>, vector<16x1152xbf16> -> vector<256x1152xbf16>
    %31 = tpu.concatenate %21, %22, %23, %24, %25, %26, %27, %28, %29 in 0 : vector<16x1152xbf16>, vector<16x1152xbf16>, vector<16x1152xbf16>, vector<16x1152xbf16>, vector<16x1152xbf16>, vector<16x1152xbf16>, vector<16x1152xbf16>, vector<16x1152xbf16>, vector<16x1152xbf16> -> vector<144x1152xbf16>
    %32 = tpu.concatenate %30, %31 in 0 : vector<256x1152xbf16>, vector<144x1152xbf16> -> vector<400x1152xbf16>
    %c0_2 = arith.constant 0 : index
    %c0_3 = arith.constant 0 : index
    %33 = vector.load %arg2[%c0_2, %c0_3] : memref<16x400xbf16, #tpu.memory_space<vmem>>, vector<16x400xbf16>
    %cst_4 = arith.constant dense<0.000000e+00> : vector<16x1152xf32>
    %34 = tpu.matmul %33, %32, %cst_4 {dimension_numbers = #tpu.dot_dimension_numbers<[1], [0], [0], [1], [0, 0, 1, 1], [], []>} : vector<16x400xbf16>, vector<400x1152xbf16>, vector<16x1152xf32> -> vector<16x1152xf32>
    %c0_5 = arith.constant 0 : index
    %c0_6 = arith.constant 0 : index
    %35 = vector.load %arg3[%c0_5, %c0_6] : memref<16x1xf32, #tpu.memory_space<vmem>>, vector<16x1xf32>
    %36 = vector.broadcast %35 : vector<16x1xf32> to vector<16x1152xf32>
    %37 = arith.addf %34, %36 : vector<16x1152xf32>
    %cst_7 = arith.constant 0.000000e+00 : f32
    %38 = vector.broadcast %cst_7 : f32 to vector<16x1152xf32>
    %39 = arith.maximumf %37, %38 : vector<16x1152xf32>
    %c0_8 = arith.constant 0 : index
    %c0_9 = arith.constant 0 : index
    %40 = vector.load %arg4[%c0_8, %c0_9] : memref<16x1xf32, #tpu.memory_space<vmem>>, vector<16x1xf32>
    %41 = vector.broadcast %40 : vector<16x1xf32> to vector<16x1152xf32>
    %42 = arith.mulf %39, %41 : vector<16x1152xf32>
    %c0_10 = arith.constant 0 : index
    %c0_11 = arith.constant 0 : index
    %43 = vector.load %arg5[%c0_10, %c0_11] : memref<16x1xf32, #tpu.memory_space<vmem>>, vector<16x1xf32>
    %44 = vector.broadcast %43 : vector<16x1xf32> to vector<16x1152xf32>
    %45 = arith.addf %42, %44 : vector<16x1152xf32>
    %c0_12 = arith.constant 0 : index
    %c0_13 = arith.constant 0 : index
    %46 = vector.load %arg18[%c0_12, %c0_13] : memref<1x1152xf32, #tpu.memory_space<vmem>>, vector<1x1152xf32>
    %47 = vector.broadcast %46 : vector<1x1152xf32> to vector<16x1152xf32>
    %48 = arith.mulf %45, %47 : vector<16x1152xf32>
    %49 = arith.truncf %48 : vector<16x1152xf32> to vector<16x1152xbf16>
    %cst_14 = arith.constant 0.000000e+00 : bf16
    %50 = vector.broadcast %cst_14 : bf16 to vector<16x128xbf16>
    %51 = tpu.concatenate %50, %49, %50 in 1 : vector<16x128xbf16>, vector<16x1152xbf16>, vector<16x128xbf16> -> vector<16x1408xbf16>
    %52 = vector.extract_strided_slice %51 {offsets = [0, 58], sizes = [16, 1152], strides = [1, 1]} : vector<16x1408xbf16> to vector<16x1152xbf16>
    %53 = vector.extract_strided_slice %51 {offsets = [0, 59], sizes = [16, 1152], strides = [1, 1]} : vector<16x1408xbf16> to vector<16x1152xbf16>
    %54 = vector.extract_strided_slice %51 {offsets = [0, 60], sizes = [16, 1152], strides = [1, 1]} : vector<16x1408xbf16> to vector<16x1152xbf16>
    %55 = vector.extract_strided_slice %51 {offsets = [0, 61], sizes = [16, 1152], strides = [1, 1]} : vector<16x1408xbf16> to vector<16x1152xbf16>
    %56 = vector.extract_strided_slice %51 {offsets = [0, 62], sizes = [16, 1152], strides = [1, 1]} : vector<16x1408xbf16> to vector<16x1152xbf16>
    %57 = vector.extract_strided_slice %51 {offsets = [0, 92], sizes = [16, 1152], strides = [1, 1]} : vector<16x1408xbf16> to vector<16x1152xbf16>
    %58 = vector.extract_strided_slice %51 {offsets = [0, 93], sizes = [16, 1152], strides = [1, 1]} : vector<16x1408xbf16> to vector<16x1152xbf16>
    %59 = vector.extract_strided_slice %51 {offsets = [0, 94], sizes = [16, 1152], strides = [1, 1]} : vector<16x1408xbf16> to vector<16x1152xbf16>
    %60 = vector.extract_strided_slice %51 {offsets = [0, 95], sizes = [16, 1152], strides = [1, 1]} : vector<16x1408xbf16> to vector<16x1152xbf16>
    %61 = vector.extract_strided_slice %51 {offsets = [0, 96], sizes = [16, 1152], strides = [1, 1]} : vector<16x1408xbf16> to vector<16x1152xbf16>
    %62 = vector.extract_strided_slice %51 {offsets = [0, 126], sizes = [16, 1152], strides = [1, 1]} : vector<16x1408xbf16> to vector<16x1152xbf16>
    %63 = vector.extract_strided_slice %51 {offsets = [0, 127], sizes = [16, 1152], strides = [1, 1]} : vector<16x1408xbf16> to vector<16x1152xbf16>
    %64 = vector.extract_strided_slice %51 {offsets = [0, 128], sizes = [16, 1152], strides = [1, 1]} : vector<16x1408xbf16> to vector<16x1152xbf16>
    %65 = vector.extract_strided_slice %51 {offsets = [0, 129], sizes = [16, 1152], strides = [1, 1]} : vector<16x1408xbf16> to vector<16x1152xbf16>
    %66 = vector.extract_strided_slice %51 {offsets = [0, 130], sizes = [16, 1152], strides = [1, 1]} : vector<16x1408xbf16> to vector<16x1152xbf16>
    %67 = vector.extract_strided_slice %51 {offsets = [0, 160], sizes = [16, 1152], strides = [1, 1]} : vector<16x1408xbf16> to vector<16x1152xbf16>
    %68 = vector.extract_strided_slice %51 {offsets = [0, 161], sizes = [16, 1152], strides = [1, 1]} : vector<16x1408xbf16> to vector<16x1152xbf16>
    %69 = vector.extract_strided_slice %51 {offsets = [0, 162], sizes = [16, 1152], strides = [1, 1]} : vector<16x1408xbf16> to vector<16x1152xbf16>
    %70 = vector.extract_strided_slice %51 {offsets = [0, 163], sizes = [16, 1152], strides = [1, 1]} : vector<16x1408xbf16> to vector<16x1152xbf16>
    %71 = vector.extract_strided_slice %51 {offsets = [0, 164], sizes = [16, 1152], strides = [1, 1]} : vector<16x1408xbf16> to vector<16x1152xbf16>
    %72 = vector.extract_strided_slice %51 {offsets = [0, 194], sizes = [16, 1152], strides = [1, 1]} : vector<16x1408xbf16> to vector<16x1152xbf16>
    %73 = vector.extract_strided_slice %51 {offsets = [0, 195], sizes = [16, 1152], strides = [1, 1]} : vector<16x1408xbf16> to vector<16x1152xbf16>
    %74 = vector.extract_strided_slice %51 {offsets = [0, 196], sizes = [16, 1152], strides = [1, 1]} : vector<16x1408xbf16> to vector<16x1152xbf16>
    %75 = vector.extract_strided_slice %51 {offsets = [0, 197], sizes = [16, 1152], strides = [1, 1]} : vector<16x1408xbf16> to vector<16x1152xbf16>
    %76 = vector.extract_strided_slice %51 {offsets = [0, 198], sizes = [16, 1152], strides = [1, 1]} : vector<16x1408xbf16> to vector<16x1152xbf16>
    %77 = tpu.concatenate %52, %53, %54, %55, %56, %57, %58, %59, %60, %61, %62, %63, %64, %65, %66, %67 in 0 : vector<16x1152xbf16>, vector<16x1152xbf16>, vector<16x1152xbf16>, vector<16x1152xbf16>, vector<16x1152xbf16>, vector<16x1152xbf16>, vector<16x1152xbf16>, vector<16x1152xbf16>, vector<16x1152xbf16>, vector<16x1152xbf16>, vector<16x1152xbf16>, vector<16x1152xbf16>, vector<16x1152xbf16>, vector<16x1152xbf16>, vector<16x1152xbf16>, vector<16x1152xbf16> -> vector<256x1152xbf16>
    %78 = tpu.concatenate %68, %69, %70, %71, %72, %73, %74, %75, %76 in 0 : vector<16x1152xbf16>, vector<16x1152xbf16>, vector<16x1152xbf16>, vector<16x1152xbf16>, vector<16x1152xbf16>, vector<16x1152xbf16>, vector<16x1152xbf16>, vector<16x1152xbf16>, vector<16x1152xbf16> -> vector<144x1152xbf16>
    %79 = tpu.concatenate %77, %78 in 0 : vector<256x1152xbf16>, vector<144x1152xbf16> -> vector<400x1152xbf16>
    %c0_15 = arith.constant 0 : index
    %c0_16 = arith.constant 0 : index
    %80 = vector.load %arg6[%c0_15, %c0_16] : memref<16x400xbf16, #tpu.memory_space<vmem>>, vector<16x400xbf16>
    %cst_17 = arith.constant dense<0.000000e+00> : vector<16x1152xf32>
    %81 = tpu.matmul %80, %79, %cst_17 {dimension_numbers = #tpu.dot_dimension_numbers<[1], [0], [0], [1], [0, 0, 1, 1], [], []>} : vector<16x400xbf16>, vector<400x1152xbf16>, vector<16x1152xf32> -> vector<16x1152xf32>
    %c0_18 = arith.constant 0 : index
    %c0_19 = arith.constant 0 : index
    %82 = vector.load %arg7[%c0_18, %c0_19] : memref<16x1xf32, #tpu.memory_space<vmem>>, vector<16x1xf32>
    %83 = vector.broadcast %82 : vector<16x1xf32> to vector<16x1152xf32>
    %84 = arith.addf %81, %83 : vector<16x1152xf32>
    %cst_20 = arith.constant 0.000000e+00 : f32
    %85 = vector.broadcast %cst_20 : f32 to vector<16x1152xf32>
    %86 = arith.maximumf %84, %85 : vector<16x1152xf32>
    %c0_21 = arith.constant 0 : index
    %c0_22 = arith.constant 0 : index
    %87 = vector.load %arg8[%c0_21, %c0_22] : memref<16x1xf32, #tpu.memory_space<vmem>>, vector<16x1xf32>
    %88 = vector.broadcast %87 : vector<16x1xf32> to vector<16x1152xf32>
    %89 = arith.mulf %86, %88 : vector<16x1152xf32>
    %c0_23 = arith.constant 0 : index
    %c0_24 = arith.constant 0 : index
    %90 = vector.load %arg9[%c0_23, %c0_24] : memref<16x1xf32, #tpu.memory_space<vmem>>, vector<16x1xf32>
    %91 = vector.broadcast %90 : vector<16x1xf32> to vector<16x1152xf32>
    %92 = arith.addf %89, %91 : vector<16x1152xf32>
    %93 = arith.truncf %92 : vector<16x1152xf32> to vector<16x1152xbf16>
    %c0_25 = arith.constant 0 : index
    %c0_26 = arith.constant 0 : index
    %94 = vector.load %arg20[%c0_25, %c0_26] : memref<1152x384xbf16, #tpu.memory_space<vmem>>, vector<1152x384xbf16>
    %cst_27 = arith.constant dense<0.000000e+00> : vector<16x384xf32>
    %95 = tpu.matmul %93, %94, %cst_27 {dimension_numbers = #tpu.dot_dimension_numbers<[1], [0], [0], [1], [0, 0, 1, 1], [], []>} : vector<16x1152xbf16>, vector<1152x384xbf16>, vector<16x384xf32> -> vector<16x384xf32>
    %96 = arith.truncf %95 : vector<16x384xf32> to vector<16x384xbf16>
    %cst_28 = arith.constant 0.000000e+00 : bf16
    %97 = vector.broadcast %cst_28 : bf16 to vector<16x128xbf16>
    %98 = tpu.concatenate %97, %96, %97 in 1 : vector<16x128xbf16>, vector<16x384xbf16>, vector<16x128xbf16> -> vector<16x640xbf16>
    %99 = vector.extract_strided_slice %98 {offsets = [0, 109], sizes = [16, 384], strides = [1, 1]} : vector<16x640xbf16> to vector<16x384xbf16>
    %100 = vector.extract_strided_slice %98 {offsets = [0, 110], sizes = [16, 384], strides = [1, 1]} : vector<16x640xbf16> to vector<16x384xbf16>
    %101 = vector.extract_strided_slice %98 {offsets = [0, 111], sizes = [16, 384], strides = [1, 1]} : vector<16x640xbf16> to vector<16x384xbf16>
    %102 = vector.extract_strided_slice %98 {offsets = [0, 127], sizes = [16, 384], strides = [1, 1]} : vector<16x640xbf16> to vector<16x384xbf16>
    %103 = vector.extract_strided_slice %98 {offsets = [0, 128], sizes = [16, 384], strides = [1, 1]} : vector<16x640xbf16> to vector<16x384xbf16>
    %104 = vector.extract_strided_slice %98 {offsets = [0, 129], sizes = [16, 384], strides = [1, 1]} : vector<16x640xbf16> to vector<16x384xbf16>
    %105 = vector.extract_strided_slice %98 {offsets = [0, 145], sizes = [16, 384], strides = [1, 1]} : vector<16x640xbf16> to vector<16x384xbf16>
    %106 = vector.extract_strided_slice %98 {offsets = [0, 146], sizes = [16, 384], strides = [1, 1]} : vector<16x640xbf16> to vector<16x384xbf16>
    %107 = vector.extract_strided_slice %98 {offsets = [0, 147], sizes = [16, 384], strides = [1, 1]} : vector<16x640xbf16> to vector<16x384xbf16>
    %108 = tpu.concatenate %99, %100, %101, %102, %103, %104, %105, %106, %107 in 0 : vector<16x384xbf16>, vector<16x384xbf16>, vector<16x384xbf16>, vector<16x384xbf16>, vector<16x384xbf16>, vector<16x384xbf16>, vector<16x384xbf16>, vector<16x384xbf16>, vector<16x384xbf16> -> vector<144x384xbf16>
    %c0_29 = arith.constant 0 : index
    %c0_30 = arith.constant 0 : index
    %109 = vector.load %arg10[%c0_29, %c0_30] : memref<32x144xbf16, #tpu.memory_space<vmem>>, vector<32x144xbf16>
    %cst_31 = arith.constant dense<0.000000e+00> : vector<32x384xf32>
    %110 = tpu.matmul %109, %108, %cst_31 {dimension_numbers = #tpu.dot_dimension_numbers<[1], [0], [0], [1], [0, 0, 1, 1], [], []>} : vector<32x144xbf16>, vector<144x384xbf16>, vector<32x384xf32> -> vector<32x384xf32>
    %c0_32 = arith.constant 0 : index
    %c0_33 = arith.constant 0 : index
    %111 = vector.load %arg11[%c0_32, %c0_33] : memref<32x1xf32, #tpu.memory_space<vmem>>, vector<32x1xf32>
    %112 = vector.broadcast %111 : vector<32x1xf32> to vector<32x384xf32>
    %113 = arith.addf %110, %112 : vector<32x384xf32>
    %cst_34 = arith.constant 0.000000e+00 : f32
    %114 = vector.broadcast %cst_34 : f32 to vector<32x384xf32>
    %115 = arith.maximumf %113, %114 : vector<32x384xf32>
    %c0_35 = arith.constant 0 : index
    %c0_36 = arith.constant 0 : index
    %116 = vector.load %arg12[%c0_35, %c0_36] : memref<32x1xf32, #tpu.memory_space<vmem>>, vector<32x1xf32>
    %117 = vector.broadcast %116 : vector<32x1xf32> to vector<32x384xf32>
    %118 = arith.mulf %115, %117 : vector<32x384xf32>
    %c0_37 = arith.constant 0 : index
    %c0_38 = arith.constant 0 : index
    %119 = vector.load %arg13[%c0_37, %c0_38] : memref<32x1xf32, #tpu.memory_space<vmem>>, vector<32x1xf32>
    %120 = vector.broadcast %119 : vector<32x1xf32> to vector<32x384xf32>
    %121 = arith.addf %118, %120 : vector<32x384xf32>
    %122 = arith.truncf %121 : vector<32x384xf32> to vector<32x384xbf16>
    %c0_39 = arith.constant 0 : index
    %c0_40 = arith.constant 0 : index
    %123 = vector.load %arg21[%c0_39, %c0_40] : memref<384x128xbf16, #tpu.memory_space<vmem>>, vector<384x128xbf16>
    %cst_41 = arith.constant dense<0.000000e+00> : vector<32x128xf32>
    %124 = tpu.matmul %122, %123, %cst_41 {dimension_numbers = #tpu.dot_dimension_numbers<[1], [0], [0], [1], [0, 0, 1, 1], [], []>} : vector<32x384xbf16>, vector<384x128xbf16>, vector<32x128xf32> -> vector<32x128xf32>
    %125 = arith.truncf %124 : vector<32x128xf32> to vector<32x128xbf16>
    %cst_42 = arith.constant 0.000000e+00 : bf16
    %126 = vector.broadcast %cst_42 : bf16 to vector<32x128xbf16>
    %127 = tpu.concatenate %126, %125, %126 in 1 : vector<32x128xbf16>, vector<32x128xbf16>, vector<32x128xbf16> -> vector<32x384xbf16>
    %128 = vector.extract_strided_slice %127 {offsets = [0, 117], sizes = [32, 128], strides = [1, 1]} : vector<32x384xbf16> to vector<32x128xbf16>
    %129 = vector.extract_strided_slice %127 {offsets = [0, 118], sizes = [32, 128], strides = [1, 1]} : vector<32x384xbf16> to vector<32x128xbf16>
    %130 = vector.extract_strided_slice %127 {offsets = [0, 119], sizes = [32, 128], strides = [1, 1]} : vector<32x384xbf16> to vector<32x128xbf16>
    %131 = vector.extract_strided_slice %127 {offsets = [0, 120], sizes = [32, 128], strides = [1, 1]} : vector<32x384xbf16> to vector<32x128xbf16>
    %132 = vector.extract_strided_slice %127 {offsets = [0, 127], sizes = [32, 128], strides = [1, 1]} : vector<32x384xbf16> to vector<32x128xbf16>
    %133 = vector.extract_strided_slice %127 {offsets = [0, 128], sizes = [32, 128], strides = [1, 1]} : vector<32x384xbf16> to vector<32x128xbf16>
    %134 = vector.extract_strided_slice %127 {offsets = [0, 129], sizes = [32, 128], strides = [1, 1]} : vector<32x384xbf16> to vector<32x128xbf16>
    %135 = vector.extract_strided_slice %127 {offsets = [0, 130], sizes = [32, 128], strides = [1, 1]} : vector<32x384xbf16> to vector<32x128xbf16>
    %136 = vector.extract_strided_slice %127 {offsets = [0, 137], sizes = [32, 128], strides = [1, 1]} : vector<32x384xbf16> to vector<32x128xbf16>
    %137 = vector.extract_strided_slice %127 {offsets = [0, 138], sizes = [32, 128], strides = [1, 1]} : vector<32x384xbf16> to vector<32x128xbf16>
    %138 = vector.extract_strided_slice %127 {offsets = [0, 139], sizes = [32, 128], strides = [1, 1]} : vector<32x384xbf16> to vector<32x128xbf16>
    %139 = vector.extract_strided_slice %127 {offsets = [0, 140], sizes = [32, 128], strides = [1, 1]} : vector<32x384xbf16> to vector<32x128xbf16>
    %140 = vector.extract_strided_slice %127 {offsets = [0, 147], sizes = [32, 128], strides = [1, 1]} : vector<32x384xbf16> to vector<32x128xbf16>
    %141 = vector.extract_strided_slice %127 {offsets = [0, 148], sizes = [32, 128], strides = [1, 1]} : vector<32x384xbf16> to vector<32x128xbf16>
    %142 = vector.extract_strided_slice %127 {offsets = [0, 149], sizes = [32, 128], strides = [1, 1]} : vector<32x384xbf16> to vector<32x128xbf16>
    %143 = vector.extract_strided_slice %127 {offsets = [0, 150], sizes = [32, 128], strides = [1, 1]} : vector<32x384xbf16> to vector<32x128xbf16>
    %144 = tpu.concatenate %128, %129, %130, %131, %132, %133, %134, %135, %136, %137, %138, %139, %140, %141, %142, %143 in 0 : vector<32x128xbf16>, vector<32x128xbf16>, vector<32x128xbf16>, vector<32x128xbf16>, vector<32x128xbf16>, vector<32x128xbf16>, vector<32x128xbf16>, vector<32x128xbf16>, vector<32x128xbf16>, vector<32x128xbf16>, vector<32x128xbf16>, vector<32x128xbf16>, vector<32x128xbf16>, vector<32x128xbf16>, vector<32x128xbf16>, vector<32x128xbf16> -> vector<512x128xbf16>
    %c0_43 = arith.constant 0 : index
    %c0_44 = arith.constant 0 : index
    %145 = vector.load %arg14[%c0_43, %c0_44] : memref<64x512xbf16, #tpu.memory_space<vmem>>, vector<64x512xbf16>
    %cst_45 = arith.constant dense<0.000000e+00> : vector<64x128xf32>
    %146 = tpu.matmul %145, %144, %cst_45 {dimension_numbers = #tpu.dot_dimension_numbers<[1], [0], [0], [1], [0, 0, 1, 1], [], []>} : vector<64x512xbf16>, vector<512x128xbf16>, vector<64x128xf32> -> vector<64x128xf32>
    %c0_46 = arith.constant 0 : index
    %c0_47 = arith.constant 0 : index
    %147 = vector.load %arg15[%c0_46, %c0_47] : memref<64x1xf32, #tpu.memory_space<vmem>>, vector<64x1xf32>
    %148 = vector.broadcast %147 : vector<64x1xf32> to vector<64x128xf32>
    %149 = arith.addf %146, %148 : vector<64x128xf32>
    %cst_48 = arith.constant 0.000000e+00 : f32
    %150 = vector.broadcast %cst_48 : f32 to vector<64x128xf32>
    %151 = arith.maximumf %149, %150 : vector<64x128xf32>
    %c0_49 = arith.constant 0 : index
    %c0_50 = arith.constant 0 : index
    %152 = vector.load %arg16[%c0_49, %c0_50] : memref<64x1xf32, #tpu.memory_space<vmem>>, vector<64x1xf32>
    %153 = vector.broadcast %152 : vector<64x1xf32> to vector<64x128xf32>
    %154 = arith.mulf %151, %153 : vector<64x128xf32>
    %c0_51 = arith.constant 0 : index
    %c0_52 = arith.constant 0 : index
    %155 = vector.load %arg17[%c0_51, %c0_52] : memref<64x1xf32, #tpu.memory_space<vmem>>, vector<64x1xf32>
    %156 = vector.broadcast %155 : vector<64x1xf32> to vector<64x128xf32>
    %157 = arith.addf %154, %156 : vector<64x128xf32>
    %c0_53 = arith.constant 0 : index
    %c0_54 = arith.constant 0 : index
    %158 = vector.load %arg19[%c0_53, %c0_54] : memref<1x128xf32, #tpu.memory_space<vmem>>, vector<1x128xf32>
    %cst_55 = arith.constant 0.000000e+00 : f32
    %159 = vector.broadcast %cst_55 : f32 to vector<1x128xf32>
    %160 = arith.cmpf ogt, %158, %159 : vector<1x128xf32>
    %cst_56 = arith.constant -1.000000e+30 : f32
    %161 = vector.shape_cast %160 : vector<1x128xi1> to vector<1x128xi1>
    %162 = vector.broadcast %161 : vector<1x128xi1> to vector<64x128xi1>
    %163 = vector.broadcast %cst_56 : f32 to vector<64x128xf32>
    %164 = arith.select %162, %157, %163 : vector<64x128xi1>, vector<64x128xf32>
    %cst_57 = arith.constant -1.000000e+30 : f32
    %165 = vector.broadcast %cst_57 : f32 to vector<64x128xf32>
    %166 = tpu.concatenate %165, %164, %165 in 1 : vector<64x128xf32>, vector<64x128xf32>, vector<64x128xf32> -> vector<64x384xf32>
    %167 = vector.extract_strided_slice %166 {offsets = [0, 106], sizes = [64, 128], strides = [1, 1]} : vector<64x384xf32> to vector<64x128xf32>
    %168 = vector.extract_strided_slice %166 {offsets = [0, 107], sizes = [64, 128], strides = [1, 1]} : vector<64x384xf32> to vector<64x128xf32>
    %169 = arith.maximumf %167, %168 : vector<64x128xf32>
    %170 = vector.extract_strided_slice %166 {offsets = [0, 108], sizes = [64, 128], strides = [1, 1]} : vector<64x384xf32> to vector<64x128xf32>
    %171 = arith.maximumf %169, %170 : vector<64x128xf32>
    %172 = vector.extract_strided_slice %166 {offsets = [0, 109], sizes = [64, 128], strides = [1, 1]} : vector<64x384xf32> to vector<64x128xf32>
    %173 = arith.maximumf %171, %172 : vector<64x128xf32>
    %174 = vector.extract_strided_slice %166 {offsets = [0, 116], sizes = [64, 128], strides = [1, 1]} : vector<64x384xf32> to vector<64x128xf32>
    %175 = arith.maximumf %173, %174 : vector<64x128xf32>
    %176 = vector.extract_strided_slice %166 {offsets = [0, 117], sizes = [64, 128], strides = [1, 1]} : vector<64x384xf32> to vector<64x128xf32>
    %177 = arith.maximumf %175, %176 : vector<64x128xf32>
    %178 = vector.extract_strided_slice %166 {offsets = [0, 118], sizes = [64, 128], strides = [1, 1]} : vector<64x384xf32> to vector<64x128xf32>
    %179 = arith.maximumf %177, %178 : vector<64x128xf32>
    %180 = vector.extract_strided_slice %166 {offsets = [0, 119], sizes = [64, 128], strides = [1, 1]} : vector<64x384xf32> to vector<64x128xf32>
    %181 = arith.maximumf %179, %180 : vector<64x128xf32>
    %182 = vector.extract_strided_slice %166 {offsets = [0, 126], sizes = [64, 128], strides = [1, 1]} : vector<64x384xf32> to vector<64x128xf32>
    %183 = arith.maximumf %181, %182 : vector<64x128xf32>
    %184 = vector.extract_strided_slice %166 {offsets = [0, 127], sizes = [64, 128], strides = [1, 1]} : vector<64x384xf32> to vector<64x128xf32>
    %185 = arith.maximumf %183, %184 : vector<64x128xf32>
    %186 = vector.extract_strided_slice %166 {offsets = [0, 128], sizes = [64, 128], strides = [1, 1]} : vector<64x384xf32> to vector<64x128xf32>
    %187 = arith.maximumf %185, %186 : vector<64x128xf32>
    %188 = vector.extract_strided_slice %166 {offsets = [0, 129], sizes = [64, 128], strides = [1, 1]} : vector<64x384xf32> to vector<64x128xf32>
    %189 = arith.maximumf %187, %188 : vector<64x128xf32>
    %190 = vector.extract_strided_slice %166 {offsets = [0, 136], sizes = [64, 128], strides = [1, 1]} : vector<64x384xf32> to vector<64x128xf32>
    %191 = arith.maximumf %189, %190 : vector<64x128xf32>
    %192 = vector.extract_strided_slice %166 {offsets = [0, 137], sizes = [64, 128], strides = [1, 1]} : vector<64x384xf32> to vector<64x128xf32>
    %193 = arith.maximumf %191, %192 : vector<64x128xf32>
    %194 = vector.extract_strided_slice %166 {offsets = [0, 138], sizes = [64, 128], strides = [1, 1]} : vector<64x384xf32> to vector<64x128xf32>
    %195 = arith.maximumf %193, %194 : vector<64x128xf32>
    %196 = vector.extract_strided_slice %166 {offsets = [0, 139], sizes = [64, 128], strides = [1, 1]} : vector<64x384xf32> to vector<64x128xf32>
    %197 = arith.maximumf %195, %196 : vector<64x128xf32>
    %cst_58 = arith.constant -1.000000e+29 : f32
    %198 = vector.broadcast %cst_58 : f32 to vector<64x128xf32>
    %199 = arith.cmpf olt, %197, %198 : vector<64x128xf32>
    %cst_59 = arith.constant 0.000000e+00 : f32
    %200 = vector.broadcast %cst_59 : f32 to vector<64x128xf32>
    %201 = arith.select %199, %200, %197 : vector<64x128xi1>, vector<64x128xf32>
    %c0_60 = arith.constant 0 : index
    %c0_61 = arith.constant 0 : index
    %202 = vector.load %arg22[%c0_60, %c0_61] : memref<128x9xf32, #tpu.memory_space<vmem>>, vector<128x9xf32>
    %cst_62 = arith.constant dense<0.000000e+00> : vector<64x9xf32>
    %203 = tpu.matmul %201, %202, %cst_62 {dimension_numbers = #tpu.dot_dimension_numbers<[1], [0], [0], [1], [0, 0, 1, 1], [], []>} : vector<64x128xf32>, vector<128x9xf32>, vector<64x9xf32> -> vector<64x9xf32>
    %c0_63 = arith.constant 0 : index
    %c0_64 = arith.constant 0 : index
    %c0_65 = arith.constant 0 : index
    %204 = vector.load %arg23[%c0_63, %c0_64, %c0_65] : memref<10x64x9xf32, #tpu.memory_space<vmem>>, vector<10x64x9xf32>
    %205 = vector.shape_cast %203 : vector<64x9xf32> to vector<1x64x9xf32>
    %206 = vector.broadcast %205 : vector<1x64x9xf32> to vector<10x64x9xf32>
    %207 = arith.mulf %204, %206 : vector<10x64x9xf32>
    %cst_66 = arith.constant dense<0.000000e+00> : vector<10x64xf32>
    %208 = vector.multi_reduction <add>, %207, %cst_66 [2] : vector<10x64x9xf32> to vector<10x64xf32>
    %cst_67 = arith.constant dense<0.000000e+00> : vector<10xf32>
    %209 = vector.multi_reduction <add>, %208, %cst_67 [1] : vector<10x64xf32> to vector<10xf32>
    %210 = vector.shape_cast %209 : vector<10xf32> to vector<10x1xf32>
    %c0_68 = arith.constant 0 : index
    %c0_69 = arith.constant 0 : index
    %211 = vector.load %arg24[%c0_68, %c0_69] : memref<10x1xf32, #tpu.memory_space<vmem>>, vector<10x1xf32>
    %212 = arith.addf %210, %211 : vector<10x1xf32>
    %cst_70 = arith.constant dense<0xFF800000> : vector<1xf32>
    %213 = vector.multi_reduction <maximumf>, %212, %cst_70 [0] : vector<10x1xf32> to vector<1xf32>
    %214 = vector.shape_cast %213 : vector<1xf32> to vector<1x1xf32>
    %215 = vector.broadcast %214 : vector<1x1xf32> to vector<10x1xf32>
    %216 = arith.subf %212, %215 : vector<10x1xf32>
    %217 = math.exp %216 : vector<10x1xf32>
    %cst_71 = arith.constant dense<0.000000e+00> : vector<1xf32>
    %218 = vector.multi_reduction <add>, %217, %cst_71 [0] : vector<10x1xf32> to vector<1xf32>
    %219 = vector.shape_cast %218 : vector<1xf32> to vector<1x1xf32>
    %220 = math.log %219 : vector<1x1xf32>
    %221 = vector.broadcast %220 : vector<1x1xf32> to vector<10x1xf32>
    %222 = arith.subf %216, %221 : vector<10x1xf32>
    %223 = vector.shape_cast %222 : vector<10x1xf32> to vector<10x1xf32>
    %224 = vector.broadcast %223 : vector<10x1xf32> to vector<10x128xf32>
    %c0_72 = arith.constant 0 : index
    %c0_73 = arith.constant 0 : index
    %c0_74 = arith.constant 0 : index
    %225 = vector.load %arg25[%c0_72, %c0_73, %c0_74] : memref<1x10x128xf32, #tpu.memory_space<vmem>>, vector<1x10x128xf32>
    %226 = vector.shape_cast %225 : vector<1x10x128xf32> to vector<10x128xf32>
    %227 = vector.shape_cast %224 : vector<10x128xf32> to vector<1x10x128xf32>
    tpu.vector_store %arg25[%c0_72, %c0_73, %c0_74], %227 {strides = array<i32>} : memref<1x10x128xf32, #tpu.memory_space<vmem>>, vector<1x10x128xf32>,
    return
  }
  func.func @transform_0(%arg0: i32) -> (i32, i32, i32) {
    %c0_i32 = arith.constant 0 : i32
    %c0_i32_0 = arith.constant 0 : i32
    %c0_i32_1 = arith.constant 0 : i32
    return %arg0, %c0_i32, %c0_i32_0 : i32, i32, i32
  }
  func.func @transform_1(%arg0: i32) -> (i32, i32) {
    %c0_i32 = arith.constant 0 : i32
    %c0_i32_0 = arith.constant 0 : i32
    %c0_i32_1 = arith.constant 0 : i32
    return %c0_i32, %c0_i32_0 : i32, i32
  }
  func.func @transform_2(%arg0: i32) -> (i32, i32) {
    %c0_i32 = arith.constant 0 : i32
    %c0_i32_0 = arith.constant 0 : i32
    %c0_i32_1 = arith.constant 0 : i32
    return %c0_i32, %c0_i32_0 : i32, i32
  }
  func.func @transform_3(%arg0: i32) -> (i32, i32) {
    %c0_i32 = arith.constant 0 : i32
    %c0_i32_0 = arith.constant 0 : i32
    %c0_i32_1 = arith.constant 0 : i32
    return %c0_i32, %c0_i32_0 : i32, i32
  }
  func.func @transform_4(%arg0: i32) -> (i32, i32) {
    %c0_i32 = arith.constant 0 : i32
    %c0_i32_0 = arith.constant 0 : i32
    %c0_i32_1 = arith.constant 0 : i32
    return %c0_i32, %c0_i32_0 : i32, i32
  }
  func.func @transform_5(%arg0: i32) -> (i32, i32) {
    %c0_i32 = arith.constant 0 : i32
    %c0_i32_0 = arith.constant 0 : i32
    %c0_i32_1 = arith.constant 0 : i32
    return %c0_i32, %c0_i32_0 : i32, i32
  }
  func.func @transform_6(%arg0: i32) -> (i32, i32) {
    %c0_i32 = arith.constant 0 : i32
    %c0_i32_0 = arith.constant 0 : i32
    %c0_i32_1 = arith.constant 0 : i32
    return %c0_i32, %c0_i32_0 : i32, i32
  }
  func.func @transform_7(%arg0: i32) -> (i32, i32) {
    %c0_i32 = arith.constant 0 : i32
    %c0_i32_0 = arith.constant 0 : i32
    %c0_i32_1 = arith.constant 0 : i32
    return %c0_i32, %c0_i32_0 : i32, i32
  }
  func.func @transform_8(%arg0: i32) -> (i32, i32) {
    %c0_i32 = arith.constant 0 : i32
    %c0_i32_0 = arith.constant 0 : i32
    %c0_i32_1 = arith.constant 0 : i32
    return %c0_i32, %c0_i32_0 : i32, i32
  }
  func.func @transform_9(%arg0: i32) -> (i32, i32) {
    %c0_i32 = arith.constant 0 : i32
    %c0_i32_0 = arith.constant 0 : i32
    %c0_i32_1 = arith.constant 0 : i32
    return %c0_i32, %c0_i32_0 : i32, i32
  }
  func.func @transform_10(%arg0: i32) -> (i32, i32) {
    %c0_i32 = arith.constant 0 : i32
    %c0_i32_0 = arith.constant 0 : i32
    %c0_i32_1 = arith.constant 0 : i32
    return %c0_i32, %c0_i32_0 : i32, i32
  }
  func.func @transform_11(%arg0: i32) -> (i32, i32) {
    %c0_i32 = arith.constant 0 : i32
    %c0_i32_0 = arith.constant 0 : i32
    %c0_i32_1 = arith.constant 0 : i32
    return %c0_i32, %c0_i32_0 : i32, i32
  }
  func.func @transform_12(%arg0: i32) -> (i32, i32) {
    %c0_i32 = arith.constant 0 : i32
    %c0_i32_0 = arith.constant 0 : i32
    %c0_i32_1 = arith.constant 0 : i32
    return %c0_i32, %c0_i32_0 : i32, i32
  }
  func.func @transform_13(%arg0: i32) -> (i32, i32) {
    %c0_i32 = arith.constant 0 : i32
    %c0_i32_0 = arith.constant 0 : i32
    %c0_i32_1 = arith.constant 0 : i32
    return %c0_i32, %c0_i32_0 : i32, i32
  }
  func.func @transform_14(%arg0: i32) -> (i32, i32) {
    %c0_i32 = arith.constant 0 : i32
    %c0_i32_0 = arith.constant 0 : i32
    %c0_i32_1 = arith.constant 0 : i32
    return %c0_i32, %c0_i32_0 : i32, i32
  }
  func.func @transform_15(%arg0: i32) -> (i32, i32) {
    %c0_i32 = arith.constant 0 : i32
    %c0_i32_0 = arith.constant 0 : i32
    %c0_i32_1 = arith.constant 0 : i32
    return %c0_i32, %c0_i32_0 : i32, i32
  }
  func.func @transform_16(%arg0: i32) -> (i32, i32) {
    %c0_i32 = arith.constant 0 : i32
    %c0_i32_0 = arith.constant 0 : i32
    %c0_i32_1 = arith.constant 0 : i32
    return %c0_i32, %c0_i32_0 : i32, i32
  }
  func.func @transform_17(%arg0: i32) -> (i32, i32) {
    %c0_i32 = arith.constant 0 : i32
    %c0_i32_0 = arith.constant 0 : i32
    %c0_i32_1 = arith.constant 0 : i32
    return %c0_i32, %c0_i32_0 : i32, i32
  }
  func.func @transform_18(%arg0: i32) -> (i32, i32) {
    %c0_i32 = arith.constant 0 : i32
    %c0_i32_0 = arith.constant 0 : i32
    %c0_i32_1 = arith.constant 0 : i32
    return %c0_i32, %c0_i32_0 : i32, i32
  }
  func.func @transform_19(%arg0: i32) -> (i32, i32) {
    %c0_i32 = arith.constant 0 : i32
    %c0_i32_0 = arith.constant 0 : i32
    %c0_i32_1 = arith.constant 0 : i32
    return %c0_i32, %c0_i32_0 : i32, i32
  }
  func.func @transform_20(%arg0: i32) -> (i32, i32) {
    %c0_i32 = arith.constant 0 : i32
    %c0_i32_0 = arith.constant 0 : i32
    %c0_i32_1 = arith.constant 0 : i32
    return %c0_i32, %c0_i32_0 : i32, i32
  }
  func.func @transform_21(%arg0: i32) -> (i32, i32) {
    %c0_i32 = arith.constant 0 : i32
    %c0_i32_0 = arith.constant 0 : i32
    %c0_i32_1 = arith.constant 0 : i32
    return %c0_i32, %c0_i32_0 : i32, i32
  }
  func.func @transform_22(%arg0: i32) -> (i32, i32, i32) {
    %c0_i32 = arith.constant 0 : i32
    %c0_i32_0 = arith.constant 0 : i32
    %c0_i32_1 = arith.constant 0 : i32
    %c0_i32_2 = arith.constant 0 : i32
    return %c0_i32, %c0_i32_0, %c0_i32_1 : i32, i32, i32
  }
  func.func @transform_23(%arg0: i32) -> (i32, i32) {
    %c0_i32 = arith.constant 0 : i32
    %c0_i32_0 = arith.constant 0 : i32
    %c0_i32_1 = arith.constant 0 : i32
    return %c0_i32, %c0_i32_0 : i32, i32
  }
  func.func @transform_24(%arg0: i32) -> (i32, i32, i32) {
    %c0_i32 = arith.constant 0 : i32
    %c0_i32_0 = arith.constant 0 : i32
    %c0_i32_1 = arith.constant 0 : i32
    return %arg0, %c0_i32, %c0_i32_0 : i32, i32, i32
  }
}

</mosaic_0001>

<llo_original>
// kernel: cnn_forward.1
$region0: #{cnn_forward.1}
  #allocation0 [shape = 'u32[]', space=smem, size = 0x4, offset = 0x4, fixed_abs, tag = 'smem constant byte address 0x4 - core index']
  #allocation1 [shape = 'u32[144,128]{1,0:T(1,128)}', space=vmem, size = 0x12000, scoped, tag = 'internal scratch']
  %s0 = inlined_call_operand.vmem [shape: f32[2,16,1152], index: 0, kind: input, shape index: {}]
  %s1 = inlined_call_operand.vmem [shape: bf16[16,400], index: 1, kind: input, shape index: {}]
  %s2 = inlined_call_operand.vmem [shape: f32[16,1], index: 2, kind: input, shape index: {}]
  %s3 = inlined_call_operand.vmem [shape: f32[16,1], index: 3, kind: input, shape index: {}]
  %s4 = inlined_call_operand.vmem [shape: f32[16,1], index: 4, kind: input, shape index: {}]
  %s5 = inlined_call_operand.vmem [shape: bf16[16,400], index: 5, kind: input, shape index: {}]
  %s6 = inlined_call_operand.vmem [shape: f32[16,1], index: 6, kind: input, shape index: {}]
  %s7 = inlined_call_operand.vmem [shape: f32[16,1], index: 7, kind: input, shape index: {}]
  %s8 = inlined_call_operand.vmem [shape: f32[16,1], index: 8, kind: input, shape index: {}]
  %s9 = inlined_call_operand.vmem [shape: bf16[32,144], index: 9, kind: input, shape index: {}]
  %s10 = inlined_call_operand.vmem [shape: f32[32,1], index: 10, kind: input, shape index: {}]
  %s11 = inlined_call_operand.vmem [shape: f32[32,1], index: 11, kind: input, shape index: {}]
  %s12 = inlined_call_operand.vmem [shape: f32[32,1], index: 12, kind: input, shape index: {}]
  %s13 = inlined_call_operand.vmem [shape: bf16[64,512], index: 13, kind: input, shape index: {}]
  %s14 = inlined_call_operand.vmem [shape: f32[64,1], index: 14, kind: input, shape index: {}]
  %s15 = inlined_call_operand.vmem [shape: f32[64,1], index: 15, kind: input, shape index: {}]
  %s16 = inlined_call_operand.vmem [shape: f32[64,1], index: 16, kind: input, shape index: {}]
  %s17 = inlined_call_operand.vmem [shape: f32[1,1152], index: 17, kind: input, shape index: {}]
  %s18 = inlined_call_operand.vmem [shape: f32[1,128], index: 18, kind: input, shape index: {}]
  %s19 = inlined_call_operand.vmem [shape: bf16[1152,384], index: 19, kind: input, shape index: {}]
  %s20 = inlined_call_operand.vmem [shape: bf16[384,128], index: 20, kind: input, shape index: {}]
  %s21 = inlined_call_operand.vmem [shape: f32[128,9], index: 21, kind: input, shape index: {}]
  %s22 = inlined_call_operand.vmem [shape: f32[10,64,9], index: 22, kind: input, shape index: {}]
  %s23 = inlined_call_operand.vmem [shape: f32[10,1], index: 23, kind: input, shape index: {}]
  %s24 = inlined_call_operand.vmem [shape: f32[2,10,128], index: 24, kind: output, shape index: {}]
  %s25 = sld [smem:[#allocation0]]
  $region129: #{cnn_forward.1} parent=0
    _
  %s27 = ssub.s32 1, %s25
  %s28 = scalar_select 0, %s27, %s25
  loop: start=0, step=1, limit=4
  $region2: #{cnn_forward.1} parent=0 // loop_pre_header
    _
  $region3: #{cnn_forward.1} parent=0 // loop_header
    %s30 = sphi 0, %s34
    %p31 = scmp.ge.s32.totalorder %s30, 4
    %s40 = sphi 0, %s42
    %s43 = sphi 0, %s40
    %s44 = sphi 0, %s43
    %s60 = sphi 0, %s44
    %s64 = sphi 0, %s64
    %s66 = sphi 0, %s64
    %s67 = sphi 0, %s66
    %s81 = sphi 0, %s67
    %s85 = sphi 0, %s85
    %s87 = sphi 0, %s85
    %s88 = sphi 0, %s87
    %s102 = sphi 0, %s88
    %s106 = sphi 0, %s106
    %s108 = sphi 0, %s106
    %s109 = sphi 0, %s108
    %s123 = sphi 0, %s109
    %s127 = sphi 0, %s127
    %s129 = sphi 0, %s127
    %s130 = sphi 0, %s129
    %s144 = sphi 0, %s130
    %s148 = sphi 0, %s148
    %s150 = sphi 0, %s148
    %s151 = sphi 0, %s150
    %s165 = sphi 0, %s151
    %s169 = sphi 0, %s169
    %s171 = sphi 0, %s169
    %s172 = sphi 0, %s171
    %s186 = sphi 0, %s172
    %s190 = sphi 0, %s190
    %s192 = sphi 0, %s190
    %s193 = sphi 0, %s192
    %s207 = sphi 0, %s193
    %s211 = sphi 0, %s211
    %s213 = sphi 0, %s211
    %s214 = sphi 0, %s213
    %s228 = sphi 0, %s214
    %s232 = sphi 0, %s232
    %s234 = sphi 0, %s232
    %s235 = sphi 0, %s234
    %s249 = sphi 0, %s235
    %s253 = sphi 0, %s253
    %s255 = sphi 0, %s253
    %s256 = sphi 0, %s255
    %s270 = sphi 0, %s256
    %s274 = sphi 0, %s274
    %s276 = sphi 0, %s274
    %s277 = sphi 0, %s276
    %s291 = sphi 0, %s277
    %s295 = sphi 0, %s295
    %s297 = sphi 0, %s295
    %s298 = sphi 0, %s297
    %s312 = sphi 0, %s298
    %s316 = sphi 0, %s316
    %s318 = sphi 0, %s316
    %s319 = sphi 0, %s318
    %s333 = sphi 0, %s319
    %s337 = sphi 0, %s337
    %s339 = sphi 0, %s337
    %s340 = sphi 0, %s339
    %s354 = sphi 0, %s340
    %s358 = sphi 0, %s358
    %s360 = sphi 0, %s358
    %s361 = sphi 0, %s360
    %s375 = sphi 0, %s361
    %s379 = sphi 0, %s379
    %s381 = sphi 0, %s379
    %s382 = sphi 0, %s381
    %s396 = sphi 0, %s382
    %s400 = sphi 0, %s400
    %s402 = sphi 0, %s400
    %s403 = sphi 0, %s402
    %s417 = sphi 0, %s403
    %s421 = sphi 0, %s421
    %s423 = sphi 0, %s421
    %s424 = sphi 0, %s423
    %s438 = sphi 0, %s424
    %s442 = sphi 0, %s442
    %s444 = sphi 0, %s442
    %s445 = sphi 0, %s444
    %s459 = sphi 0, %s445
    %s463 = sphi 0, %s463
    %s465 = sphi 0, %s463
    %s466 = sphi 0, %s465
    %s480 = sphi 0, %s466
    %s484 = sphi 0, %s484
    %s486 = sphi 0, %s484
    %s487 = sphi 0, %s486
    %s501 = sphi 0, %s487
    %s505 = sphi 0, %s505
    %s507 = sphi 0, %s505
    %s508 = sphi 0, %s507
    %s522 = sphi 0, %s508
    %s526 = sphi 0, %s526
    %s528 = sphi 0, %s526
    %s529 = sphi 0, %s528
    %s543 = sphi 0, %s529
    %s549 = sphi 0, %s551
    %s552 = sphi 0, %s549
    %s553 = sphi 0, %s552
    %s569 = sphi 0, %s553
  $region4: #{cnn_forward.1} parent=0 // loop_header_branch
    %33 = sbr.rel (%p31) target = $region8
  $region5: #{cnn_forward.1} parent=0 // loop_body
    %s35 = ssub.s32 %s30, 1
    %s36 = ssub.s32 %s30, 2
    %s37 = sadd.s32 %s30, 1
    %s38 = ssub.s32 %s30, %s37
    %p39 = scmp.eq.s32.totalorder %s38, 0
    %s41 = sadd.s32 %s40, 1
    %s42 = scalar_select %p39, %s40, %s41
    %p45 = pneg %p39
    %p46 = scmp.eq.s32.totalorder %s30, 1
    %p47 = por %p45, %p46
    %p48 = scmp.ne.s32.totalorder %s40, %s43
    %p49 = scmp.eq.s32.totalorder %s30, 0
    %p50 = por %p48, %p49
    %p51 = scmp.ne.s32.totalorder %s40, %s43
    %p52 = scmp.eq.s32.totalorder %s35, 1
    %p53 = por %p51, %p52
    %p54 = scmp.ne.s32.totalorder %s43, %s44
    %p55 = scmp.eq.s32.totalorder %s35, 0
    %p56 = por %p54, %p55
    %p57 = scmp.ne.s32.totalorder %s43, %s44
    %p58 = scmp.eq.s32.totalorder %s36, 1
    %p59 = por %p57, %p58
    %p61 = scmp.ne.s32.totalorder %s44, %s60
    %p62 = scmp.eq.s32.totalorder %s36, 0
    %p63 = por %p61, %p62
    %s65 = sadd.s32 %s64, 1
    %p68 = scmp.eq.s32.totalorder %s30, 1
    %p69 = scmp.ne.s32.totalorder %s64, %s66
    %p70 = scmp.eq.s32.totalorder %s30, 0
    %p71 = por %p69, %p70
    %p72 = scmp.ne.s32.totalorder %s64, %s66
    %p73 = scmp.eq.s32.totalorder %s35, 1
    %p74 = por %p72, %p73
    %p75 = scmp.ne.s32.totalorder %s66, %s67
    %p76 = scmp.eq.s32.totalorder %s35, 0
    %p77 = por %p75, %p76
    %p78 = scmp.ne.s32.totalorder %s66, %s67
    %p79 = scmp.eq.s32.totalorder %s36, 1
    %p80 = por %p78, %p79
    %p82 = scmp.ne.s32.totalorder %s67, %s81
    %p83 = scmp.eq.s32.totalorder %s36, 0
    %p84 = por %p82, %p83
    %s86 = sadd.s32 %s85, 1
    %p89 = scmp.eq.s32.totalorder %s30, 1
    %p90 = scmp.ne.s32.totalorder %s85, %s87
    %p91 = scmp.eq.s32.totalorder %s30, 0
    %p92 = por %p90, %p91
    %p93 = scmp.ne.s32.totalorder %s85, %s87
    %p94 = scmp.eq.s32.totalorder %s35, 1
    %p95 = por %p93, %p94
    %p96 = scmp.ne.s32.totalorder %s87, %s88
    %p97 = scmp.eq.s32.totalorder %s35, 0
    %p98 = por %p96, %p97
    %p99 = scmp.ne.s32.totalorder %s87, %s88
    %p100 = scmp.eq.s32.totalorder %s36, 1
    %p101 = por %p99, %p100
    %p103 = scmp.ne.s32.totalorder %s88, %s102
    %p104 = scmp.eq.s32.totalorder %s36, 0
    %p105 = por %p103, %p104
    %s107 = sadd.s32 %s106, 1
    %p110 = scmp.eq.s32.totalorder %s30, 1
    %p111 = scmp.ne.s32.totalorder %s106, %s108
    %p112 = scmp.eq.s32.totalorder %s30, 0
    %p113 = por %p111, %p112
    %p114 = scmp.ne.s32.totalorder %s106, %s108
    %p115 = scmp.eq.s32.totalorder %s35, 1
    %p116 = por %p114, %p115
    %p117 = scmp.ne.s32.totalorder %s108, %s109
    %p118 = scmp.eq.s32.totalorder %s35, 0
    %p119 = por %p117, %p118
    %p120 = scmp.ne.s32.totalorder %s108, %s109
    %p121 = scmp.eq.s32.totalorder %s36, 1
    %p122 = por %p120, %p121
    %p124 = scmp.ne.s32.totalorder %s109, %s123
    %p125 = scmp.eq.s32.totalorder %s36, 0
    %p126 = por %p124, %p125
    %s128 = sadd.s32 %s127, 1
    %p131 = scmp.eq.s32.totalorder %s30, 1
    %p132 = scmp.ne.s32.totalorder %s127, %s129
    %p133 = scmp.eq.s32.totalorder %s30, 0
    %p134 = por %p132, %p133
    %p135 = scmp.ne.s32.totalorder %s127, %s129
    %p136 = scmp.eq.s32.totalorder %s35, 1
    %p137 = por %p135, %p136
    %p138 = scmp.ne.s32.totalorder %s129, %s130
    %p139 = scmp.eq.s32.totalorder %s35, 0
    %p140 = por %p138, %p139
    %p141 = scmp.ne.s32.totalorder %s129, %s130
    %p142 = scmp.eq.s32.totalorder %s36, 1
    %p143 = por %p141, %p142
    %p145 = scmp.ne.s32.totalorder %s130, %s144
    %p146 = scmp.eq.s32.totalorder %s36, 0
    %p147 = por %p145, %p146
    %s149 = sadd.s32 %s148, 1
    %p152 = scmp.eq.s32.totalorder %s30, 1
    %p153 = scmp.ne.s32.totalorder %s148, %s150
    %p154 = scmp.eq.s32.totalorder %s30, 0
    %p155 = por %p153, %p154
    %p156 = scmp.ne.s32.totalorder %s148, %s150
    %p157 = scmp.eq.s32.totalorder %s35, 1
    %p158 = por %p156, %p157
    %p159 = scmp.ne.s32.totalorder %s150, %s151
    %p160 = scmp.eq.s32.totalorder %s35, 0
    %p161 = por %p159, %p160
    %p162 = scmp.ne.s32.totalorder %s150, %s151
    %p163 = scmp.eq.s32.totalorder %s36, 1
    %p164 = por %p162, %p163
    %p166 = scmp.ne.s32.totalorder %s151, %s165
    %p167 = scmp.eq.s32.totalorder %s36, 0
    %p168 = por %p166, %p167
    %s170 = sadd.s32 %s169, 1
    %p173 = scmp.eq.s32.totalorder %s30, 1
    %p174 = scmp.ne.s32.totalorder %s169, %s171
    %p175 = scmp.eq.s32.totalorder %s30, 0
    %p176 = por %p174, %p175
    %p177 = scmp.ne.s32.totalorder %s169, %s171
    %p178 = scmp.eq.s32.totalorder %s35, 1
    %p179 = por %p177, %p178
    %p180 = scmp.ne.s32.totalorder %s171, %s172
    %p181 = scmp.eq.s32.totalorder %s35, 0
    %p182 = por %p180, %p181
    %p183 = scmp.ne.s32.totalorder %s171, %s172
    %p184 = scmp.eq.s32.totalorder %s36, 1
    %p185 = por %p183, %p184
    %p187 = scmp.ne.s32.totalorder %s172, %s186
    %p188 = scmp.eq.s32.totalorder %s36, 0
    %p189 = por %p187, %p188
    %s191 = sadd.s32 %s190, 1
    %p194 = scmp.eq.s32.totalorder %s30, 1
    %p195 = scmp.ne.s32.totalorder %s190, %s192
    %p196 = scmp.eq.s32.totalorder %s30, 0
    %p197 = por %p195, %p196
    %p198 = scmp.ne.s32.totalorder %s190, %s192
    %p199 = scmp.eq.s32.totalorder %s35, 1
    %p200 = por %p198, %p199
    %p201 = scmp.ne.s32.totalorder %s192, %s193
    %p202 = scmp.eq.s32.totalorder %s35, 0
    %p203 = por %p201, %p202
    %p204 = scmp.ne.s32.totalorder %s192, %s193
    %p205 = scmp.eq.s32.totalorder %s36, 1
    %p206 = por %p204, %p205
    %p208 = scmp.ne.s32.totalorder %s193, %s207
    %p209 = scmp.eq.s32.totalorder %s36, 0
    %p210 = por %p208, %p209
    %s212 = sadd.s32 %s211, 1
    %p215 = scmp.eq.s32.totalorder %s30, 1
    %p216 = scmp.ne.s32.totalorder %s211, %s213
    %p217 = scmp.eq.s32.totalorder %s30, 0
    %p218 = por %p216, %p217
    %p219 = scmp.ne.s32.totalorder %s211, %s213
    %p220 = scmp.eq.s32.totalorder %s35, 1
    %p221 = por %p219, %p220
    %p222 = scmp.ne.s32.totalorder %s213, %s214
    %p223 = scmp.eq.s32.totalorder %s35, 0
    %p224 = por %p222, %p223
    %p225 = scmp.ne.s32.totalorder %s213, %s214
    %p226 = scmp.eq.s32.totalorder %s36, 1
    %p227 = por %p225, %p226
    %p229 = scmp.ne.s32.totalorder %s214, %s228
    %p230 = scmp.eq.s32.totalorder %s36, 0
    %p231 = por %p229, %p230
    %s233 = sadd.s32 %s232, 1
    %p236 = scmp.eq.s32.totalorder %s30, 1
    %p237 = scmp.ne.s32.totalorder %s232, %s234
    %p238 = scmp.eq.s32.totalorder %s30, 0
    %p239 = por %p237, %p238
    %p240 = scmp.ne.s32.totalorder %s232, %s234
    %p241 = scmp.eq.s32.totalorder %s35, 1
    %p242 = por %p240, %p241
    %p243 = scmp.ne.s32.totalorder %s234, %s235
    %p244 = scmp.eq.s32.totalorder %s35, 0
    %p245 = por %p243, %p244
    %p246 = scmp.ne.s32.totalorder %s234, %s235
    %p247 = scmp.eq.s32.totalorder %s36, 1
    %p248 = por %p246, %p247
    %p250 = scmp.ne.s32.totalorder %s235, %s249
    %p251 = scmp.eq.s32.totalorder %s36, 0
    %p252 = por %p250, %p251
    %s254 = sadd.s32 %s253, 1
    %p257 = scmp.eq.s32.totalorder %s30, 1
    %p258 = scmp.ne.s32.totalorder %s253, %s255
    %p259 = scmp.eq.s32.totalorder %s30, 0
    %p260 = por %p258, %p259
    %p261 = scmp.ne.s32.totalorder %s253, %s255
    %p262 = scmp.eq.s32.totalorder %s35, 1
    %p263 = por %p261, %p262
    %p264 = scmp.ne.s32.totalorder %s255, %s256
    %p265 = scmp.eq.s32.totalorder %s35, 0
    %p266 = por %p264, %p265
    %p267 = scmp.ne.s32.totalorder %s255, %s256
    %p268 = scmp.eq.s32.totalorder %s36, 1
    %p269 = por %p267, %p268
    %p271 = scmp.ne.s32.totalorder %s256, %s270
    %p272 = scmp.eq.s32.totalorder %s36, 0
    %p273 = por %p271, %p272
    %s275 = sadd.s32 %s274, 1
    %p278 = scmp.eq.s32.totalorder %s30, 1
    %p279 = scmp.ne.s32.totalorder %s274, %s276
    %p280 = scmp.eq.s32.totalorder %s30, 0
    %p281 = por %p279, %p280
    %p282 = scmp.ne.s32.totalorder %s274, %s276
    %p283 = scmp.eq.s32.totalorder %s35, 1
    %p284 = por %p282, %p283
    %p285 = scmp.ne.s32.totalorder %s276, %s277
    %p286 = scmp.eq.s32.totalorder %s35, 0
    %p287 = por %p285, %p286
    %p288 = scmp.ne.s32.totalorder %s276, %s277
    %p289 = scmp.eq.s32.totalorder %s36, 1
    %p290 = por %p288, %p289
    %p292 = scmp.ne.s32.totalorder %s277, %s291
    %p293 = scmp.eq.s32.totalorder %s36, 0
    %p294 = por %p292, %p293
    %s296 = sadd.s32 %s295, 1
    %p299 = scmp.eq.s32.totalorder %s30, 1
    %p300 = scmp.ne.s32.totalorder %s295, %s297
    %p301 = scmp.eq.s32.totalorder %s30, 0
    %p302 = por %p300, %p301
    %p303 = scmp.ne.s32.totalorder %s295, %s297
    %p304 = scmp.eq.s32.totalorder %s35, 1
    %p305 = por %p303, %p304
    %p306 = scmp.ne.s32.totalorder %s297, %s298
    %p307 = scmp.eq.s32.totalorder %s35, 0
    %p308 = por %p306, %p307
    %p309 = scmp.ne.s32.totalorder %s297, %s298
    %p310 = scmp.eq.s32.totalorder %s36, 1
    %p311 = por %p309, %p310
    %p313 = scmp.ne.s32.totalorder %s298, %s312
    %p314 = scmp.eq.s32.totalorder %s36, 0
    %p315 = por %p313, %p314
    %s317 = sadd.s32 %s316, 1
    %p320 = scmp.eq.s32.totalorder %s30, 1
    %p321 = scmp.ne.s32.totalorder %s316, %s318
    %p322 = scmp.eq.s32.totalorder %s30, 0
    %p323 = por %p321, %p322
    %p324 = scmp.ne.s32.totalorder %s316, %s318
    %p325 = scmp.eq.s32.totalorder %s35, 1
    %p326 = por %p324, %p325
    %p327 = scmp.ne.s32.totalorder %s318, %s319
    %p328 = scmp.eq.s32.totalorder %s35, 0
    %p329 = por %p327, %p328
    %p330 = scmp.ne.s32.totalorder %s318, %s319
    %p331 = scmp.eq.s32.totalorder %s36, 1
    %p332 = por %p330, %p331
    %p334 = scmp.ne.s32.totalorder %s319, %s333
    %p335 = scmp.eq.s32.totalorder %s36, 0
    %p336 = por %p334, %p335
    %s338 = sadd.s32 %s337, 1
    %p341 = scmp.eq.s32.totalorder %s30, 1
    %p342 = scmp.ne.s32.totalorder %s337, %s339
    %p343 = scmp.eq.s32.totalorder %s30, 0
    %p344 = por %p342, %p343
    %p345 = scmp.ne.s32.totalorder %s337, %s339
    %p346 = scmp.eq.s32.totalorder %s35, 1
    %p347 = por %p345, %p346
    %p348 = scmp.ne.s32.totalorder %s339, %s340
    %p349 = scmp.eq.s32.totalorder %s35, 0
    %p350 = por %p348, %p349
    %p351 = scmp.ne.s32.totalorder %s339, %s340
    %p352 = scmp.eq.s32.totalorder %s36, 1
    %p353 = por %p351, %p352
    %p355 = scmp.ne.s32.totalorder %s340, %s354
    %p356 = scmp.eq.s32.totalorder %s36, 0
    %p357 = por %p355, %p356
    %s359 = sadd.s32 %s358, 1
    %p362 = scmp.eq.s32.totalorder %s30, 1
    %p363 = scmp.ne.s32.totalorder %s358, %s360
    %p364 = scmp.eq.s32.totalorder %s30, 0
    %p365 = por %p363, %p364
    %p366 = scmp.ne.s32.totalorder %s358, %s360
    %p367 = scmp.eq.s32.totalorder %s35, 1
    %p368 = por %p366, %p367
    %p369 = scmp.ne.s32.totalorder %s360, %s361
    %p370 = scmp.eq.s32.totalorder %s35, 0
    %p371 = por %p369, %p370
    %p372 = scmp.ne.s32.totalorder %s360, %s361
    %p373 = scmp.eq.s32.totalorder %s36, 1
    %p374 = por %p372, %p373
    %p376 = scmp.ne.s32.totalorder %s361, %s375
    %p377 = scmp.eq.s32.totalorder %s36, 0
    %p378 = por %p376, %p377
    %s380 = sadd.s32 %s379, 1
    %p383 = scmp.eq.s32.totalorder %s30, 1
    %p384 = scmp.ne.s32.totalorder %s379, %s381
    %p385 = scmp.eq.s32.totalorder %s30, 0
    %p386 = por %p384, %p385
    %p387 = scmp.ne.s32.totalorder %s379, %s381
    %p388 = scmp.eq.s32.totalorder %s35, 1
    %p389 = por %p387, %p388
    %p390 = scmp.ne.s32.totalorder %s381, %s382
    %p391 = scmp.eq.s32.totalorder %s35, 0
    %p392 = por %p390, %p391
    %p393 = scmp.ne.s32.totalorder %s381, %s382
    %p394 = scmp.eq.s32.totalorder %s36, 1
    %p395 = por %p393, %p394
    %p397 = scmp.ne.s32.totalorder %s382, %s396
    %p398 = scmp.eq.s32.totalorder %s36, 0
    %p399 = por %p397, %p398
    %s401 = sadd.s32 %s400, 1
    %p404 = scmp.eq.s32.totalorder %s30, 1
    %p405 = scmp.ne.s32.totalorder %s400, %s402
    %p406 = scmp.eq.s32.totalorder %s30, 0
    %p407 = por %p405, %p406
    %p408 = scmp.ne.s32.totalorder %s400, %s402
    %p409 = scmp.eq.s32.totalorder %s35, 1
    %p410 = por %p408, %p409
    %p411 = scmp.ne.s32.totalorder %s402, %s403
    %p412 = scmp.eq.s32.totalorder %s35, 0
    %p413 = por %p411, %p412
    %p414 = scmp.ne.s32.totalorder %s402, %s403
    %p415 = scmp.eq.s32.totalorder %s36, 1
    %p416 = por %p414, %p415
    %p418 = scmp.ne.s32.totalorder %s403, %s417
    %p419 = scmp.eq.s32.totalorder %s36, 0
    %p420 = por %p418, %p419
    %s422 = sadd.s32 %s421, 1
    %p425 = scmp.eq.s32.totalorder %s30, 1
    %p426 = scmp.ne.s32.totalorder %s421, %s423
    %p427 = scmp.eq.s32.totalorder %s30, 0
    %p428 = por %p426, %p427
    %p429 = scmp.ne.s32.totalorder %s421, %s423
    %p430 = scmp.eq.s32.totalorder %s35, 1
    %p431 = por %p429, %p430
    %p432 = scmp.ne.s32.totalorder %s423, %s424
    %p433 = scmp.eq.s32.totalorder %s35, 0
    %p434 = por %p432, %p433
    %p435 = scmp.ne.s32.totalorder %s423, %s424
    %p436 = scmp.eq.s32.totalorder %s36, 1
    %p437 = por %p435, %p436
    %p439 = scmp.ne.s32.totalorder %s424, %s438
    %p440 = scmp.eq.s32.totalorder %s36, 0
    %p441 = por %p439, %p440
    %s443 = sadd.s32 %s442, 1
    %p446 = scmp.eq.s32.totalorder %s30, 1
    %p447 = scmp.ne.s32.totalorder %s442, %s444
    %p448 = scmp.eq.s32.totalorder %s30, 0
    %p449 = por %p447, %p448
    %p450 = scmp.ne.s32.totalorder %s442, %s444
    %p451 = scmp.eq.s32.totalorder %s35, 1
    %p452 = por %p450, %p451
    %p453 = scmp.ne.s32.totalorder %s444, %s445
    %p454 = scmp.eq.s32.totalorder %s35, 0
    %p455 = por %p453, %p454
    %p456 = scmp.ne.s32.totalorder %s444, %s445
    %p457 = scmp.eq.s32.totalorder %s36, 1
    %p458 = por %p456, %p457
    %p460 = scmp.ne.s32.totalorder %s445, %s459
    %p461 = scmp.eq.s32.totalorder %s36, 0
    %p462 = por %p460, %p461
    %s464 = sadd.s32 %s463, 1
    %p467 = scmp.eq.s32.totalorder %s30, 1
    %p468 = scmp.ne.s32.totalorder %s463, %s465
    %p469 = scmp.eq.s32.totalorder %s30, 0
    %p470 = por %p468, %p469
    %p471 = scmp.ne.s32.totalorder %s463, %s465
    %p472 = scmp.eq.s32.totalorder %s35, 1
    %p473 = por %p471, %p472
    %p474 = scmp.ne.s32.totalorder %s465, %s466
    %p475 = scmp.eq.s32.totalorder %s35, 0
    %p476 = por %p474, %p475
    %p477 = scmp.ne.s32.totalorder %s465, %s466
    %p478 = scmp.eq.s32.totalorder %s36, 1
    %p479 = por %p477, %p478
    %p481 = scmp.ne.s32.totalorder %s466, %s480
    %p482 = scmp.eq.s32.totalorder %s36, 0
    %p483 = por %p481, %p482
    %s485 = sadd.s32 %s484, 1
    %p488 = scmp.eq.s32.totalorder %s30, 1
    %p489 = scmp.ne.s32.totalorder %s484, %s486
    %p490 = scmp.eq.s32.totalorder %s30, 0
    %p491 = por %p489, %p490
    %p492 = scmp.ne.s32.totalorder %s484, %s486
    %p493 = scmp.eq.s32.totalorder %s35, 1
    %p494 = por %p492, %p493
    %p495 = scmp.ne.s32.totalorder %s486, %s487
    %p496 = scmp.eq.s32.totalorder %s35, 0
    %p497 = por %p495, %p496
    %p498 = scmp.ne.s32.totalorder %s486, %s487
    %p499 = scmp.eq.s32.totalorder %s36, 1
    %p500 = por %p498, %p499
    %p502 = scmp.ne.s32.totalorder %s487, %s501
    %p503 = scmp.eq.s32.totalorder %s36, 0
    %p504 = por %p502, %p503
    %s506 = sadd.s32 %s505, 1
    %p509 = scmp.eq.s32.totalorder %s30, 1
    %p510 = scmp.ne.s32.totalorder %s505, %s507
    %p511 = scmp.eq.s32.totalorder %s30, 0
    %p512 = por %p510, %p511
    %p513 = scmp.ne.s32.totalorder %s505, %s507
    %p514 = scmp.eq.s32.totalorder %s35, 1
    %p515 = por %p513, %p514
    %p516 = scmp.ne.s32.totalorder %s507, %s508
    %p517 = scmp.eq.s32.totalorder %s35, 0
    %p518 = por %p516, %p517
    %p519 = scmp.ne.s32.totalorder %s507, %s508
    %p520 = scmp.eq.s32.totalorder %s36, 1
    %p521 = por %p519, %p520
    %p523 = scmp.ne.s32.totalorder %s508, %s522
    %p524 = scmp.eq.s32.totalorder %s36, 0
    %p525 = por %p523, %p524
    %s527 = sadd.s32 %s526, 1
    %p530 = scmp.eq.s32.totalorder %s30, 1
    %p531 = scmp.ne.s32.totalorder %s526, %s528
    %p532 = scmp.eq.s32.totalorder %s30, 0
    %p533 = por %p531, %p532
    %p534 = scmp.ne.s32.totalorder %s526, %s528
    %p535 = scmp.eq.s32.totalorder %s35, 1
    %p536 = por %p534, %p535
    %p537 = scmp.ne.s32.totalorder %s528, %s529
    %p538 = scmp.eq.s32.totalorder %s35, 0
    %p539 = por %p537, %p538
    %p540 = scmp.ne.s32.totalorder %s528, %s529
    %p541 = scmp.eq.s32.totalorder %s36, 1
    %p542 = por %p540, %p541
    %p544 = scmp.ne.s32.totalorder %s529, %s543
    %p545 = scmp.eq.s32.totalorder %s36, 0
    %p546 = por %p544, %p545
    %s547 = ssub.s32 %s30, %s37
    %p548 = scmp.eq.s32.totalorder %s547, 0
    %s550 = sadd.s32 %s549, 1
    %s551 = scalar_select %p548, %s549, %s550
    %p554 = pneg %p548
    %p555 = scmp.eq.s32.totalorder %s30, 1
    %p556 = por %p554, %p555
    %p557 = scmp.ne.s32.totalorder %s549, %s552
    %p558 = scmp.eq.s32.totalorder %s30, 0
    %p559 = por %p557, %p558
    %p560 = scmp.ne.s32.totalorder %s549, %s552
    %p561 = scmp.eq.s32.totalorder %s35, 1
    %p562 = por %p560, %p561
    %p563 = scmp.ne.s32.totalorder %s552, %s553
    %p564 = scmp.eq.s32.totalorder %s35, 0
    %p565 = por %p563, %p564
    %p566 = scmp.ne.s32.totalorder %s552, %s553
    %p567 = scmp.eq.s32.totalorder %s36, 1
    %p568 = por %p566, %p567
    %p570 = scmp.ne.s32.totalorder %s553, %s569
    %p571 = scmp.eq.s32.totalorder %s36, 0
    %p572 = por %p570, %p571
    %p573 = scmp.le.s32.totalorder 1, %s30
    %p574 = scmp.lt.s32.totalorder %s30, 3
    %p575 = pnand %p573, %p574
    %p576 = pneg %p575
    // Predicated region
    $region9: #{cnn_forward.1} parent=5 // pred_check
      _
    $region10: #{cnn_forward.1} parent=5 // pred_check_branch
      %578 = sbr.rel (%p575) target = $region12
    $region11: #{cnn_forward.1} parent=5 // pred_region
      %s579 = ssub.s32 %s30, 1
      // Predicated region
      $region13: #{cnn_forward.1} parent=11 // pred_check
        %p580 = pneg %p77
      $region14: #{cnn_forward.1} parent=11 // pred_check_branch
        %582 = sbr.rel (%p580) target = $region16
      $region15: #{cnn_forward.1} parent=11 // pred_region
        _
      $region16: #{cnn_forward.1} parent=11 // pred_fallthru
        _
      // Predicated region
      $region17: #{cnn_forward.1} parent=11 // pred_check
        %p583 = pneg %p98
      $region18: #{cnn_forward.1} parent=11 // pred_check_branch
        %585 = sbr.rel (%p583) target = $region20
      $region19: #{cnn_forward.1} parent=11 // pred_region
        _
      $region20: #{cnn_forward.1} parent=11 // pred_fallthru
        _
      // Predicated region
      $region21: #{cnn_forward.1} parent=11 // pred_check
        %p586 = pneg %p119
      $region22: #{cnn_forward.1} parent=11 // pred_check_branch
        %588 = sbr.rel (%p586) target = $region24
      $region23: #{cnn_forward.1} parent=11 // pred_region
        _
      $region24: #{cnn_forward.1} parent=11 // pred_fallthru
        _
      // Predicated region
      $region25: #{cnn_forward.1} parent=11 // pred_check
        %p589 = pneg %p140
      $region26: #{cnn_forward.1} parent=11 // pred_check_branch
        %591 = sbr.rel (%p589) target = $region28
      $region27: #{cnn_forward.1} parent=11 // pred_region
        _
      $region28: #{cnn_forward.1} parent=11 // pred_fallthru
        _
      // Predicated region
      $region29: #{cnn_forward.1} parent=11 // pred_check
        %p592 = pneg %p161
      $region30: #{cnn_forward.1} parent=11 // pred_check_branch
        %594 = sbr.rel (%p592) target = $region32
      $region31: #{cnn_forward.1} parent=11 // pred_region
        _
      $region32: #{cnn_forward.1} parent=11 // pred_fallthru
        _
      // Predicated region
      $region33: #{cnn_forward.1} parent=11 // pred_check
        %p595 = pneg %p182
      $region34: #{cnn_forward.1} parent=11 // pred_check_branch
        %597 = sbr.rel (%p595) target = $region36
      $region35: #{cnn_forward.1} parent=11 // pred_region
        _
      $region36: #{cnn_forward.1} parent=11 // pred_fallthru
        _
      // Predicated region
      $region37: #{cnn_forward.1} parent=11 // pred_check
        %p598 = pneg %p203
      $region38: #{cnn_forward.1} parent=11 // pred_check_branch
        %600 = sbr.rel (%p598) target = $region40
      $region39: #{cnn_forward.1} parent=11 // pred_region
        _
      $region40: #{cnn_forward.1} parent=11 // pred_fallthru
        _
      // Predicated region
      $region41: #{cnn_forward.1} parent=11 // pred_check
        %p601 = pneg %p224
      $region42: #{cnn_forward.1} parent=11 // pred_check_branch
        %603 = sbr.rel (%p601) target = $region44
      $region43: #{cnn_forward.1} parent=11 // pred_region
        _
      $region44: #{cnn_forward.1} parent=11 // pred_fallthru
        _
      // Predicated region
      $region45: #{cnn_forward.1} parent=11 // pred_check
        %p604 = pneg %p245
      $region46: #{cnn_forward.1} parent=11 // pred_check_branch
        %606 = sbr.rel (%p604) target = $region48
      $region47: #{cnn_forward.1} parent=11 // pred_region
        _
      $region48: #{cnn_forward.1} parent=11 // pred_fallthru
        _
      // Predicated region
      $region49: #{cnn_forward.1} parent=11 // pred_check
        %p607 = pneg %p266
      $region50: #{cnn_forward.1} parent=11 // pred_check_branch
        %609 = sbr.rel (%p607) target = $region52
      $region51: #{cnn_forward.1} parent=11 // pred_region
        _
      $region52: #{cnn_forward.1} parent=11 // pred_fallthru
        _
      // Predicated region
      $region53: #{cnn_forward.1} parent=11 // pred_check
        %p610 = pneg %p287
      $region54: #{cnn_forward.1} parent=11 // pred_check_branch
        %612 = sbr.rel (%p610) target = $region56
      $region55: #{cnn_forward.1} parent=11 // pred_region
        _
      $region56: #{cnn_forward.1} parent=11 // pred_fallthru
        _
      // Predicated region
      $region57: #{cnn_forward.1} parent=11 // pred_check
        %p613 = pneg %p308
      $region58: #{cnn_forward.1} parent=11 // pred_check_branch
        %615 = sbr.rel (%p613) target = $region60
      $region59: #{cnn_forward.1} parent=11 // pred_region
        _
      $region60: #{cnn_forward.1} parent=11 // pred_fallthru
        _
      // Predicated region
      $region61: #{cnn_forward.1} parent=11 // pred_check
        %p616 = pneg %p329
      $region62: #{cnn_forward.1} parent=11 // pred_check_branch
        %618 = sbr.rel (%p616) target = $region64
      $region63: #{cnn_forward.1} parent=11 // pred_region
        _
      $region64: #{cnn_forward.1} parent=11 // pred_fallthru
        _
      // Predicated region
      $region65: #{cnn_forward.1} parent=11 // pred_check
        %p619 = pneg %p350
      $region66: #{cnn_forward.1} parent=11 // pred_check_branch
        %621 = sbr.rel (%p619) target = $region68
      $region67: #{cnn_forward.1} parent=11 // pred_region
        _
      $region68: #{cnn_forward.1} parent=11 // pred_fallthru
        _
      // Predicated region
      $region69: #{cnn_forward.1} parent=11 // pred_check
        %p622 = pneg %p371
      $region70: #{cnn_forward.1} parent=11 // pred_check_branch
        %624 = sbr.rel (%p622) target = $region72
      $region71: #{cnn_forward.1} parent=11 // pred_region
        _
      $region72: #{cnn_forward.1} parent=11 // pred_fallthru
        _
      // Predicated region
      $region73: #{cnn_forward.1} parent=11 // pred_check
        %p625 = pneg %p392
      $region74: #{cnn_forward.1} parent=11 // pred_check_branch
        %627 = sbr.rel (%p625) target = $region76
      $region75: #{cnn_forward.1} parent=11 // pred_region
        _
      $region76: #{cnn_forward.1} parent=11 // pred_fallthru
        _
      // Predicated region
      $region77: #{cnn_forward.1} parent=11 // pred_check
        %p628 = pneg %p413
      $region78: #{cnn_forward.1} parent=11 // pred_check_branch
        %630 = sbr.rel (%p628) target = $region80
      $region79: #{cnn_forward.1} parent=11 // pred_region
        _
      $region80: #{cnn_forward.1} parent=11 // pred_fallthru
        _
      // Predicated region
      $region81: #{cnn_forward.1} parent=11 // pred_check
        %p631 = pneg %p434
      $region82: #{cnn_forward.1} parent=11 // pred_check_branch
        %633 = sbr.rel (%p631) target = $region84
      $region83: #{cnn_forward.1} parent=11 // pred_region
        _
      $region84: #{cnn_forward.1} parent=11 // pred_fallthru
        _
      // Predicated region
      $region85: #{cnn_forward.1} parent=11 // pred_check
        %p634 = pneg %p455
      $region86: #{cnn_forward.1} parent=11 // pred_check_branch
        %636 = sbr.rel (%p634) target = $region88
      $region87: #{cnn_forward.1} parent=11 // pred_region
        _
      $region88: #{cnn_forward.1} parent=11 // pred_fallthru
        _
      // Predicated region
      $region89: #{cnn_forward.1} parent=11 // pred_check
        %p637 = pneg %p476
      $region90: #{cnn_forward.1} parent=11 // pred_check_branch
        %639 = sbr.rel (%p637) target = $region92
      $region91: #{cnn_forward.1} parent=11 // pred_region
        _
      $region92: #{cnn_forward.1} parent=11 // pred_fallthru
        _
      // Predicated region
      $region93: #{cnn_forward.1} parent=11 // pred_check
        %p640 = pneg %p497
      $region94: #{cnn_forward.1} parent=11 // pred_check_branch
        %642 = sbr.rel (%p640) target = $region96
      $region95: #{cnn_forward.1} parent=11 // pred_region
        _
      $region96: #{cnn_forward.1} parent=11 // pred_fallthru
        _
      // Predicated region
      $region97: #{cnn_forward.1} parent=11 // pred_check
        %p643 = pneg %p518
      $region98: #{cnn_forward.1} parent=11 // pred_check_branch
        %645 = sbr.rel (%p643) target = $region100
      $region99: #{cnn_forward.1} parent=11 // pred_region
        _
      $region100: #{cnn_forward.1} parent=11 // pred_fallthru
        _
      // Predicated region
      $region101: #{cnn_forward.1} parent=11 // pred_check
        %p646 = pneg %p539
      $region102: #{cnn_forward.1} parent=11 // pred_check_branch
        %648 = sbr.rel (%p646) target = $region104
      $region103: #{cnn_forward.1} parent=11 // pred_region
        _
      $region104: #{cnn_forward.1} parent=11 // pred_fallthru
        _
    $region12: #{cnn_forward.1} parent=5 // pred_fallthru
      _
    %p649 = scmp.lt.s32.totalorder %s30, 2
    // Predicated region
    $region105: #{cnn_forward.1} parent=5 // pred_check
      %p650 = pneg %p649
    $region106: #{cnn_forward.1} parent=5 // pred_check_branch
      %652 = sbr.rel (%p650) target = $region108
    $region107: #{cnn_forward.1} parent=5 // pred_region
      // Predicated region
      $region109: #{cnn_forward.1} parent=107 // pred_check
        %p653 = pneg %p50
      $region110: #{cnn_forward.1} parent=107 // pred_check_branch
        %655 = sbr.rel (%p653) target = $region112
      $region111: #{cnn_forward.1} parent=107 // pred_region
        %p656 = scmp.lt.s32.totalorder %s30, 1
        %s657 = scalar_select %p656, %s30, 1
        %s658 = smul.addr %s657, 18
        %s659 = smul.addr %s658, 8
        %s660 = scalar_lea.vmem %s0, %s659
      $region112: #{cnn_forward.1} parent=107 // pred_fallthru
        _
    $region108: #{cnn_forward.1} parent=5 // pred_fallthru
      _
    %p661 = scmp.le.s32.totalorder 1, %s30
    %p662 = scmp.lt.s32.totalorder %s30, 3
    %p663 = pnand %p661, %p662
    %p664 = pneg %p663
    // Predicated region
    $region113: #{cnn_forward.1} parent=5 // pred_check
      _
    $region114: #{cnn_forward.1} parent=5 // pred_check_branch
      %666 = sbr.rel (%p663) target = $region116
    $region115: #{cnn_forward.1} parent=5 // pred_region
      %s667 = ssub.s32 %s30, 1
      %p668 = scmp.lt.s32.totalorder %s35, 1
      %s669 = scalar_select %p668, %s35, 1
      %s670 = smul.addr %s669, 18
      %s671 = smul.addr %s670, 8
      %s672 = scalar_lea.vmem %s0, %s671
      %p673 = pneg %p56
      %p674 = pneg %p53
      %p675 = pneg %p77
      %p676 = pneg %p74
      %p677 = pneg %p98
      %p678 = pneg %p95
      %p679 = pneg %p119
      %p680 = pneg %p116
      %p681 = pneg %p140
      %p682 = pneg %p137
      %p683 = pneg %p161
      %p684 = pneg %p158
      %p685 = pneg %p182
      %p686 = pneg %p179
      %p687 = pneg %p203
      %p688 = pneg %p200
      %p689 = pneg %p224
      %p690 = pneg %p221
      %p691 = pneg %p245
      %p692 = pneg %p242
      %p693 = pneg %p266
      %p694 = pneg %p263
      %p695 = pneg %p287
      %p696 = pneg %p284
      %p697 = pneg %p308
      %p698 = pneg %p305
      %p699 = pneg %p329
      %p700 = pneg %p326
      %p701 = pneg %p350
      %p702 = pneg %p347
      %p703 = pneg %p371
      %p704 = pneg %p368
      %p705 = pneg %p392
      %p706 = pneg %p389
      %p707 = pneg %p413
      %p708 = pneg %p410
      %p709 = pneg %p434
      %p710 = pneg %p431
      %p711 = pneg %p455
      %p712 = pneg %p452
      %p713 = pneg %p476
      %p714 = pneg %p473
      %p715 = pneg %p497
      %p716 = pneg %p494
      %p717 = pneg %p518
      %p718 = pneg %p515
      %p719 = pneg %p539
      %p720 = pneg %p536
      %p721 = pneg %p565
      %p722 = pneg %p562
      %p723 = scmp.lt.s32.totalorder %s35, 1
      %s724 = scalar_select %p723, %s35, 1
      %s725 = smul.addr %s724, 2
      %s726 = smul.addr %s725, 8
      %s727 = scalar_lea.vmem %s24, %s726
      %p728 = scmp.lt.s32.totalorder %s35, 1
      %s729 = scalar_select %p728, %s35, 1
      %s730 = smul.addr %s729, 18
      %s731 = smul.addr %s730, 8
      %s732 = scalar_lea.vmem %s0, %s731
      %p733 = scmp.lt.s32.totalorder %s35, 1
      %s734 = scalar_select %p733, %s35, 1
      %s735 = smul.addr %s734, 2
      %s736 = smul.addr %s735, 8
      %s737 = scalar_lea.vmem %s24, %s736
      %v739 = vld [vmem:[%s732] sm:$0xff]
      %v740 = vld [vmem:[%s732 + $0x8] sm:$0xff]
      %v741 = vld [vmem:[%s732 + $0x10] sm:$0xff]
      %v742 = vld [vmem:[%s732 + $0x18] sm:$0xff]
      %v743 = vld [vmem:[%s732 + $0x20] sm:$0xff]
      %v744 = vld [vmem:[%s732 + $0x28] sm:$0xff]
      %v745 = vld [vmem:[%s732 + $0x30] sm:$0xff]
      %v746 = vld [vmem:[%s732 + $0x38] sm:$0xff]
      %v747 = vld [vmem:[%s732 + $0x40] sm:$0xff]
      %v748 = vld [vmem:[%s732 + $0x48] sm:$0xff]
      %v749 = vld [vmem:[%s732 + $0x50] sm:$0xff]
      %v750 = vld [vmem:[%s732 + $0x58] sm:$0xff]
      %v751 = vld [vmem:[%s732 + $0x60] sm:$0xff]
      %v752 = vld [vmem:[%s732 + $0x68] sm:$0xff]
      %v753 = vld [vmem:[%s732 + $0x70] sm:$0xff]
      %v754 = vld [vmem:[%s732 + $0x78] sm:$0xff]
      %v755 = vld [vmem:[%s732 + $0x80] sm:$0xff]
      %v756 = vld [vmem:[%s732 + $0x88] sm:$0xff]
      %v757 = vpack.c.bf16 %v748, %v739
      %v758 = vpack.c.bf16 %v749, %v740
      %v759 = vpack.c.bf16 %v750, %v741
      %v760 = vpack.c.bf16 %v751, %v742
      %v761 = vpack.c.bf16 %v752, %v743
      %v762 = vpack.c.bf16 %v753, %v744
      %v763 = vpack.c.bf16 %v754, %v745
      %v764 = vpack.c.bf16 %v755, %v746
      %v765 = vpack.c.bf16 %v756, %v747
      %776 = vrot.lane.b32.xlu0 0, 127
      %v777 = vpop.permute.xlu0 %776
      %778 = vrot.lane.b32.xlu0 %v757, 127
      %v779 = vpop.permute.xlu0 %778
      %780 = vrot.lane.b32.xlu0 %v758, 127
      %v781 = vpop.permute.xlu0 %780
      %782 = vrot.lane.b32.xlu0 %v759, 127
      %v783 = vpop.permute.xlu0 %782
      %784 = vrot.lane.b32.xlu0 %v760, 127
      %v785 = vpop.permute.xlu0 %784
      %786 = vrot.lane.b32.xlu0 %v761, 127
      %v787 = vpop.permute.xlu0 %786
      %788 = vrot.lane.b32.xlu0 %v762, 127
      %v789 = vpop.permute.xlu0 %788
      %790 = vrot.lane.b32.xlu0 %v763, 127
      %v791 = vpop.permute.xlu0 %790
      %792 = vrot.lane.b32.xlu0 %v764, 127
      %v793 = vpop.permute.xlu0 %792
      %794 = vrot.lane.b32.xlu0 %v765, 127
      %v795 = vpop.permute.xlu0 %794
      %vm796 = vcmask 1039360
      %v797 = vsel %vm796, %v777, %v779
      %v798 = vsel %vm796, %v779, %v781
      %v799 = vsel %vm796, %v781, %v783
      %v800 = vsel %vm796, %v783, %v785
      %v801 = vsel %vm796, %v785, %v787
      %v802 = vsel %vm796, %v787, %v789
      %v803 = vsel %vm796, %v789, %v791
      %v804 = vsel %vm796, %v791, %v793
      %v805 = vsel %vm796, %v793, %v795
      %806 = vrot.lane.b32.xlu0 0, 126
      %v807 = vpop.permute.xlu0 %806
      %808 = vrot.lane.b32.xlu0 %v757, 126
      %v809 = vpop.permute.xlu0 %808
      %810 = vrot.lane.b32.xlu0 %v758, 126
      %v811 = vpop.permute.xlu0 %810
      %812 = vrot.lane.b32.xlu0 %v759, 126
      %v813 = vpop.permute.xlu0 %812
      %814 = vrot.lane.b32.xlu0 %v760, 126
      %v815 = vpop.permute.xlu0 %814
      %816 = vrot.lane.b32.xlu0 %v761, 126
      %v817 = vpop.permute.xlu0 %816
      %818 = vrot.lane.b32.xlu0 %v762, 126
      %v819 = vpop.permute.xlu0 %818
      %820 = vrot.lane.b32.xlu0 %v763, 126
      %v821 = vpop.permute.xlu0 %820
      %822 = vrot.lane.b32.xlu0 %v764, 126
      %v823 = vpop.permute.xlu0 %822
      %824 = vrot.lane.b32.xlu0 %v765, 126
      %v825 = vpop.permute.xlu0 %824
      %vm826 = vcmask 1031168
      %v827 = vsel %vm826, %v807, %v809
      %v828 = vsel %vm826, %v809, %v811
      %v829 = vsel %vm826, %v811, %v813
      %v830 = vsel %vm826, %v813, %v815
      %v831 = vsel %vm826, %v815, %v817
      %v832 = vsel %vm826, %v817, %v819
      %v833 = vsel %vm826, %v819, %v821
      %v834 = vsel %vm826, %v821, %v823
      %v835 = vsel %vm826, %v823, %v825
      %836 = vrot.lane.b32.xlu0 0, 125
      %v837 = vpop.permute.xlu0 %836
      %838 = vrot.lane.b32.xlu0 %v757, 125
      %v839 = vpop.permute.xlu0 %838
      %840 = vrot.lane.b32.xlu0 %v758, 125
      %v841 = vpop.permute.xlu0 %840
      %842 = vrot.lane.b32.xlu0 %v759, 125
      %v843 = vpop.permute.xlu0 %842
      %844 = vrot.lane.b32.xlu0 %v760, 125
      %v845 = vpop.permute.xlu0 %844
      %846 = vrot.lane.b32.xlu0 %v761, 125
      %v847 = vpop.permute.xlu0 %846
      %848 = vrot.lane.b32.xlu0 %v762, 125
      %v849 = vpop.permute.xlu0 %848
      %850 = vrot.lane.b32.xlu0 %v763, 125
      %v851 = vpop.permute.xlu0 %850
      %852 = vrot.lane.b32.xlu0 %v764, 125
      %v853 = vpop.permute.xlu0 %852
      %854 = vrot.lane.b32.xlu0 %v765, 125
      %v855 = vpop.permute.xlu0 %854
      %vm856 = vcmask 1022976
      %v857 = vsel %vm856, %v837, %v839
      %v858 = vsel %vm856, %v839, %v841
      %v859 = vsel %vm856, %v841, %v843
      %v860 = vsel %vm856, %v843, %v845
      %v861 = vsel %vm856, %v845, %v847
      %v862 = vsel %vm856, %v847, %v849
      %v863 = vsel %vm856, %v849, %v851
      %v864 = vsel %vm856, %v851, %v853
      %v865 = vsel %vm856, %v853, %v855
      %866 = vrot.lane.b32.xlu0 0, 124
      %v867 = vpop.permute.xlu0 %866
      %868 = vrot.lane.b32.xlu0 %v757, 124
      %v869 = vpop.permute.xlu0 %868
      %870 = vrot.lane.b32.xlu0 %v758, 124
      %v871 = vpop.permute.xlu0 %870
      %872 = vrot.lane.b32.xlu0 %v759, 124
      %v873 = vpop.permute.xlu0 %872
      %874 = vrot.lane.b32.xlu0 %v760, 124
      %v875 = vpop.permute.xlu0 %874
      %876 = vrot.lane.b32.xlu0 %v761, 124
      %v877 = vpop.permute.xlu0 %876
      %878 = vrot.lane.b32.xlu0 %v762, 124
      %v879 = vpop.permute.xlu0 %878
      %880 = vrot.lane.b32.xlu0 %v763, 124
      %v881 = vpop.permute.xlu0 %880
      %882 = vrot.lane.b32.xlu0 %v764, 124
      %v883 = vpop.permute.xlu0 %882
      %884 = vrot.lane.b32.xlu0 %v765, 124
      %v885 = vpop.permute.xlu0 %884
      %vm886 = vcmask 1014784
      %v887 = vsel %vm886, %v867, %v869
      %v888 = vsel %vm886, %v869, %v871
      %v889 = vsel %vm886, %v871, %v873
      %v890 = vsel %vm886, %v873, %v875
      %v891 = vsel %vm886, %v875, %v877
      %v892 = vsel %vm886, %v877, %v879
      %v893 = vsel %vm886, %v879, %v881
      %v894 = vsel %vm886, %v881, %v883
      %v895 = vsel %vm886, %v883, %v885
      %896 = vrot.lane.b32.xlu0 0, 94
      %v897 = vpop.permute.xlu0 %896
      %898 = vrot.lane.b32.xlu0 %v757, 94
      %v899 = vpop.permute.xlu0 %898
      %900 = vrot.lane.b32.xlu0 %v758, 94
      %v901 = vpop.permute.xlu0 %900
      %902 = vrot.lane.b32.xlu0 %v759, 94
      %v903 = vpop.permute.xlu0 %902
      %904 = vrot.lane.b32.xlu0 %v760, 94
      %v905 = vpop.permute.xlu0 %904
      %906 = vrot.lane.b32.xlu0 %v761, 94
      %v907 = vpop.permute.xlu0 %906
      %908 = vrot.lane.b32.xlu0 %v762, 94
      %v909 = vpop.permute.xlu0 %908
      %910 = vrot.lane.b32.xlu0 %v763, 94
      %v911 = vpop.permute.xlu0 %910
      %912 = vrot.lane.b32.xlu0 %v764, 94
      %v913 = vpop.permute.xlu0 %912
      %914 = vrot.lane.b32.xlu0 %v765, 94
      %v915 = vpop.permute.xlu0 %914
      %vm916 = vcmask 769024
      %v917 = vsel %vm916, %v897, %v899
      %v918 = vsel %vm916, %v899, %v901
      %v919 = vsel %vm916, %v901, %v903
      %v920 = vsel %vm916, %v903, %v905
      %v921 = vsel %vm916, %v905, %v907
      %v922 = vsel %vm916, %v907, %v909
      %v923 = vsel %vm916, %v909, %v911
      %v924 = vsel %vm916, %v911, %v913
      %v925 = vsel %vm916, %v913, %v915
      %926 = vrot.lane.b32.xlu0 0, 93
      %v927 = vpop.permute.xlu0 %926
      %928 = vrot.lane.b32.xlu0 %v757, 93
      %v929 = vpop.permute.xlu0 %928
      %930 = vrot.lane.b32.xlu0 %v758, 93
      %v931 = vpop.permute.xlu0 %930
      %932 = vrot.lane.b32.xlu0 %v759, 93
      %v933 = vpop.permute.xlu0 %932
      %934 = vrot.lane.b32.xlu0 %v760, 93
      %v935 = vpop.permute.xlu0 %934
      %936 = vrot.lane.b32.xlu0 %v761, 93
      %v937 = vpop.permute.xlu0 %936
      %938 = vrot.lane.b32.xlu0 %v762, 93
      %v939 = vpop.permute.xlu0 %938
      %940 = vrot.lane.b32.xlu0 %v763, 93
      %v941 = vpop.permute.xlu0 %940
      %942 = vrot.lane.b32.xlu0 %v764, 93
      %v943 = vpop.permute.xlu0 %942
      %944 = vrot.lane.b32.xlu0 %v765, 93
      %v945 = vpop.permute.xlu0 %944
      %vm946 = vcmask 760832
      %v947 = vsel %vm946, %v927, %v929
      %v948 = vsel %vm946, %v929, %v931
      %v949 = vsel %vm946, %v931, %v933
      %v950 = vsel %vm946, %v933, %v935
      %v951 = vsel %vm946, %v935, %v937
      %v952 = vsel %vm946, %v937, %v939
      %v953 = vsel %vm946, %v939, %v941
      %v954 = vsel %vm946, %v941, %v943
      %v955 = vsel %vm946, %v943, %v945
      %956 = vrot.lane.b32.xlu0 0, 92
      %v957 = vpop.permute.xlu0 %956
      %958 = vrot.lane.b32.xlu0 %v757, 92
      %v959 = vpop.permute.xlu0 %958
      %960 = vrot.lane.b32.xlu0 %v758, 92
      %v961 = vpop.permute.xlu0 %960
      %962 = vrot.lane.b32.xlu0 %v759, 92
      %v963 = vpop.permute.xlu0 %962
      %964 = vrot.lane.b32.xlu0 %v760, 92
      %v965 = vpop.permute.xlu0 %964
      %966 = vrot.lane.b32.xlu0 %v761, 92
      %v967 = vpop.permute.xlu0 %966
      %968 = vrot.lane.b32.xlu0 %v762, 92
      %v969 = vpop.permute.xlu0 %968
      %970 = vrot.lane.b32.xlu0 %v763, 92
      %v971 = vpop.permute.xlu0 %970
      %972 = vrot.lane.b32.xlu0 %v764, 92
      %v973 = vpop.permute.xlu0 %972
      %974 = vrot.lane.b32.xlu0 %v765, 92
      %v975 = vpop.permute.xlu0 %974
      %vm976 = vcmask 752640
      %v977 = vsel %vm976, %v957, %v959
      %v978 = vsel %vm976, %v959, %v961
      %v979 = vsel %vm976, %v961, %v963
      %v980 = vsel %vm976, %v963, %v965
      %v981 = vsel %vm976, %v965, %v967
      %v982 = vsel %vm976, %v967, %v969
      %v983 = vsel %vm976, %v969, %v971
      %v984 = vsel %vm976, %v971, %v973
      %v985 = vsel %vm976, %v973, %v975
      %986 = vrot.lane.b32.xlu0 0, 91
      %v987 = vpop.permute.xlu0 %986
      %988 = vrot.lane.b32.xlu0 %v757, 91
      %v989 = vpop.permute.xlu0 %988
      %990 = vrot.lane.b32.xlu0 %v758, 91
      %v991 = vpop.permute.xlu0 %990
      %992 = vrot.lane.b32.xlu0 %v759, 91
      %v993 = vpop.permute.xlu0 %992
      %994 = vrot.lane.b32.xlu0 %v760, 91
      %v995 = vpop.permute.xlu0 %994
      %996 = vrot.lane.b32.xlu0 %v761, 91
      %v997 = vpop.permute.xlu0 %996
      %998 = vrot.lane.b32.xlu0 %v762, 91
      %v999 = vpop.permute.xlu0 %998
      %1000 = vrot.lane.b32.xlu0 %v763, 91
      %v1001 = vpop.permute.xlu0 %1000
      %1002 = vrot.lane.b32.xlu0 %v764, 91
      %v1003 = vpop.permute.xlu0 %1002
      %1004 = vrot.lane.b32.xlu0 %v765, 91
      %v1005 = vpop.permute.xlu0 %1004
      %vm1006 = vcmask 744448
      %v1007 = vsel %vm1006, %v987, %v989
      %v1008 = vsel %vm1006, %v989, %v991
      %v1009 = vsel %vm1006, %v991, %v993
      %v1010 = vsel %vm1006, %v993, %v995
      %v1011 = vsel %vm1006, %v995, %v997
      %v1012 = vsel %vm1006, %v997, %v999
      %v1013 = vsel %vm1006, %v999, %v1001
      %v1014 = vsel %vm1006, %v1001, %v1003
      %v1015 = vsel %vm1006, %v1003, %v1005
      %1016 = vrot.lane.b32.xlu0 0, 90
      %v1017 = vpop.permute.xlu0 %1016
      %1018 = vrot.lane.b32.xlu0 %v757, 90
      %v1019 = vpop.permute.xlu0 %1018
      %1020 = vrot.lane.b32.xlu0 %v758, 90
      %v1021 = vpop.permute.xlu0 %1020
      %1022 = vrot.lane.b32.xlu0 %v759, 90
      %v1023 = vpop.permute.xlu0 %1022
      %1024 = vrot.lane.b32.xlu0 %v760, 90
      %v1025 = vpop.permute.xlu0 %1024
      %1026 = vrot.lane.b32.xlu0 %v761, 90
      %v1027 = vpop.permute.xlu0 %1026
      %1028 = vrot.lane.b32.xlu0 %v762, 90
      %v1029 = vpop.permute.xlu0 %1028
      %1030 = vrot.lane.b32.xlu0 %v763, 90
      %v1031 = vpop.permute.xlu0 %1030
      %1032 = vrot.lane.b32.xlu0 %v764, 90
      %v1033 = vpop.permute.xlu0 %1032
      %1034 = vrot.lane.b32.xlu0 %v765, 90
      %v1035 = vpop.permute.xlu0 %1034
      %vm1036 = vcmask 736256
      %v1037 = vsel %vm1036, %v1017, %v1019
      %v1038 = vsel %vm1036, %v1019, %v1021
      %v1039 = vsel %vm1036, %v1021, %v1023
      %v1040 = vsel %vm1036, %v1023, %v1025
      %v1041 = vsel %vm1036, %v1025, %v1027
      %v1042 = vsel %vm1036, %v1027, %v1029
      %v1043 = vsel %vm1036, %v1029, %v1031
      %v1044 = vsel %vm1036, %v1031, %v1033
      %v1045 = vsel %vm1036, %v1033, %v1035
      %1046 = vrot.lane.b32.xlu0 0, 60
      %v1047 = vpop.permute.xlu0 %1046
      %1048 = vrot.lane.b32.xlu0 %v757, 60
      %v1049 = vpop.permute.xlu0 %1048
      %1050 = vrot.lane.b32.xlu0 %v758, 60
      %v1051 = vpop.permute.xlu0 %1050
      %1052 = vrot.lane.b32.xlu0 %v759, 60
      %v1053 = vpop.permute.xlu0 %1052
      %1054 = vrot.lane.b32.xlu0 %v760, 60
      %v1055 = vpop.permute.xlu0 %1054
      %1056 = vrot.lane.b32.xlu0 %v761, 60
      %v1057 = vpop.permute.xlu0 %1056
      %1058 = vrot.lane.b32.xlu0 %v762, 60
      %v1059 = vpop.permute.xlu0 %1058
      %1060 = vrot.lane.b32.xlu0 %v763, 60
      %v1061 = vpop.permute.xlu0 %1060
      %1062 = vrot.lane.b32.xlu0 %v764, 60
      %v1063 = vpop.permute.xlu0 %1062
      %1064 = vrot.lane.b32.xlu0 %v765, 60
      %v1065 = vpop.permute.xlu0 %1064
      %vm1066 = vcmask 490496
      %v1067 = vsel %vm1066, %v1047, %v1049
      %v1068 = vsel %vm1066, %v1049, %v1051
      %v1069 = vsel %vm1066, %v1051, %v1053
      %v1070 = vsel %vm1066, %v1053, %v1055
      %v1071 = vsel %vm1066, %v1055, %v1057
      %v1072 = vsel %vm1066, %v1057, %v1059
      %v1073 = vsel %vm1066, %v1059, %v1061
      %v1074 = vsel %vm1066, %v1061, %v1063
      %v1075 = vsel %vm1066, %v1063, %v1065
      %1076 = vrot.lane.b32.xlu0 0, 59
      %v1077 = vpop.permute.xlu0 %1076
      %1078 = vrot.lane.b32.xlu0 %v757, 59
      %v1079 = vpop.permute.xlu0 %1078
      %1080 = vrot.lane.b32.xlu0 %v758, 59
      %v1081 = vpop.permute.xlu0 %1080
      %1082 = vrot.lane.b32.xlu0 %v759, 59
      %v1083 = vpop.permute.xlu0 %1082
      %1084 = vrot.lane.b32.xlu0 %v760, 59
      %v1085 = vpop.permute.xlu0 %1084
      %1086 = vrot.lane.b32.xlu0 %v761, 59
      %v1087 = vpop.permute.xlu0 %1086
      %1088 = vrot.lane.b32.xlu0 %v762, 59
      %v1089 = vpop.permute.xlu0 %1088
      %1090 = vrot.lane.b32.xlu0 %v763, 59
      %v1091 = vpop.permute.xlu0 %1090
      %1092 = vrot.lane.b32.xlu0 %v764, 59
      %v1093 = vpop.permute.xlu0 %1092
      %1094 = vrot.lane.b32.xlu0 %v765, 59
      %v1095 = vpop.permute.xlu0 %1094
      %vm1096 = vcmask 482304
      %v1097 = vsel %vm1096, %v1077, %v1079
      %v1098 = vsel %vm1096, %v1079, %v1081
      %v1099 = vsel %vm1096, %v1081, %v1083
      %v1100 = vsel %vm1096, %v1083, %v1085
      %v1101 = vsel %vm1096, %v1085, %v1087
      %v1102 = vsel %vm1096, %v1087, %v1089
      %v1103 = vsel %vm1096, %v1089, %v1091
      %v1104 = vsel %vm1096, %v1091, %v1093
      %v1105 = vsel %vm1096, %v1093, %v1095
      %1106 = vrot.lane.b32.xlu0 %v757, 58
      %v1107 = vpop.permute.xlu0 %1106
      %1108 = vrot.lane.b32.xlu0 %v758, 58
      %v1109 = vpop.permute.xlu0 %1108
      %1110 = vrot.lane.b32.xlu0 %v759, 58
      %v1111 = vpop.permute.xlu0 %1110
      %1112 = vrot.lane.b32.xlu0 %v760, 58
      %v1113 = vpop.permute.xlu0 %1112
      %1114 = vrot.lane.b32.xlu0 %v761, 58
      %v1115 = vpop.permute.xlu0 %1114
      %1116 = vrot.lane.b32.xlu0 %v762, 58
      %v1117 = vpop.permute.xlu0 %1116
      %1118 = vrot.lane.b32.xlu0 %v763, 58
      %v1119 = vpop.permute.xlu0 %1118
      %1120 = vrot.lane.b32.xlu0 %v764, 58
      %v1121 = vpop.permute.xlu0 %1120
      %1122 = vrot.lane.b32.xlu0 %v765, 58
      %v1123 = vpop.permute.xlu0 %1122
      %vm1124 = vcmask 474112
      %v1125 = vsel %vm1124, %v1107, %v1109
      %v1126 = vsel %vm1124, %v1109, %v1111
      %v1127 = vsel %vm1124, %v1111, %v1113
      %v1128 = vsel %vm1124, %v1113, %v1115
      %v1129 = vsel %vm1124, %v1115, %v1117
      %v1130 = vsel %vm1124, %v1117, %v1119
      %v1131 = vsel %vm1124, %v1119, %v1121
      %v1132 = vsel %vm1124, %v1121, %v1123
      %1133 = vrot.lane.b32.xlu0 %v757, 57
      %v1134 = vpop.permute.xlu0 %1133
      %1135 = vrot.lane.b32.xlu0 %v758, 57
      %v1136 = vpop.permute.xlu0 %1135
      %1137 = vrot.lane.b32.xlu0 %v759, 57
      %v1138 = vpop.permute.xlu0 %1137
      %1139 = vrot.lane.b32.xlu0 %v760, 57
      %v1140 = vpop.permute.xlu0 %1139
      %1141 = vrot.lane.b32.xlu0 %v761, 57
      %v1142 = vpop.permute.xlu0 %1141
      %1143 = vrot.lane.b32.xlu0 %v762, 57
      %v1144 = vpop.permute.xlu0 %1143
      %1145 = vrot.lane.b32.xlu0 %v763, 57
      %v1146 = vpop.permute.xlu0 %1145
      %1147 = vrot.lane.b32.xlu0 %v764, 57
      %v1148 = vpop.permute.xlu0 %1147
      %1149 = vrot.lane.b32.xlu0 %v765, 57
      %v1150 = vpop.permute.xlu0 %1149
      %1151 = vrot.lane.b32.xlu0 0, 57
      %v1152 = vpop.permute.xlu0 %1151
      %vm1153 = vcmask 465920
      %v1154 = vsel %vm1153, %v1134, %v1136
      %v1155 = vsel %vm1153, %v1136, %v1138
      %v1156 = vsel %vm1153, %v1138, %v1140
      %v1157 = vsel %vm1153, %v1140, %v1142
      %v1158 = vsel %vm1153, %v1142, %v1144
      %v1159 = vsel %vm1153, %v1144, %v1146
      %v1160 = vsel %vm1153, %v1146, %v1148
      %v1161 = vsel %vm1153, %v1148, %v1150
      %v1162 = vsel %vm1153, %v1150, %v1152
      %1163 = vrot.lane.b32.xlu0 %v757, 56
      %v1164 = vpop.permute.xlu0 %1163
      %1165 = vrot.lane.b32.xlu0 %v758, 56
      %v1166 = vpop.permute.xlu0 %1165
      %1167 = vrot.lane.b32.xlu0 %v759, 56
      %v1168 = vpop.permute.xlu0 %1167
      %1169 = vrot.lane.b32.xlu0 %v760, 56
      %v1170 = vpop.permute.xlu0 %1169
      %1171 = vrot.lane.b32.xlu0 %v761, 56
      %v1172 = vpop.permute.xlu0 %1171
      %1173 = vrot.lane.b32.xlu0 %v762, 56
      %v1174 = vpop.permute.xlu0 %1173
      %1175 = vrot.lane.b32.xlu0 %v763, 56
      %v1176 = vpop.permute.xlu0 %1175
      %1177 = vrot.lane.b32.xlu0 %v764, 56
      %v1178 = vpop.permute.xlu0 %1177
      %1179 = vrot.lane.b32.xlu0 %v765, 56
      %v1180 = vpop.permute.xlu0 %1179
      %1181 = vrot.lane.b32.xlu0 0, 56
      %v1182 = vpop.permute.xlu0 %1181
      %vm1183 = vcmask 457728
      %v1184 = vsel %vm1183, %v1164, %v1166
      %v1185 = vsel %vm1183, %v1166, %v1168
      %v1186 = vsel %vm1183, %v1168, %v1170
      %v1187 = vsel %vm1183, %v1170, %v1172
      %v1188 = vsel %vm1183, %v1172, %v1174
      %v1189 = vsel %vm1183, %v1174, %v1176
      %v1190 = vsel %vm1183, %v1176, %v1178
      %v1191 = vsel %vm1183, %v1178, %v1180
      %v1192 = vsel %vm1183, %v1180, %v1182
      %1193 = vrot.lane.b32.xlu0 %v757, 26
      %v1194 = vpop.permute.xlu0 %1193
      %1195 = vrot.lane.b32.xlu0 %v758, 26
      %v1196 = vpop.permute.xlu0 %1195
      %1197 = vrot.lane.b32.xlu0 %v759, 26
      %v1198 = vpop.permute.xlu0 %1197
      %1199 = vrot.lane.b32.xlu0 %v760, 26
      %v1200 = vpop.permute.xlu0 %1199
      %1201 = vrot.lane.b32.xlu0 %v761, 26
      %v1202 = vpop.permute.xlu0 %1201
      %1203 = vrot.lane.b32.xlu0 %v762, 26
      %v1204 = vpop.permute.xlu0 %1203
      %1205 = vrot.lane.b32.xlu0 %v763, 26
      %v1206 = vpop.permute.xlu0 %1205
      %1207 = vrot.lane.b32.xlu0 %v764, 26
      %v1208 = vpop.permute.xlu0 %1207
      %1209 = vrot.lane.b32.xlu0 %v765, 26
      %v1210 = vpop.permute.xlu0 %1209
      %1211 = vrot.lane.b32.xlu0 0, 26
      %v1212 = vpop.permute.xlu0 %1211
      %vm1213 = vcmask 211968
      %v1214 = vsel %vm1213, %v1194, %v1196
      %v1215 = vsel %vm1213, %v1196, %v1198
      %v1216 = vsel %vm1213, %v1198, %v1200
      %v1217 = vsel %vm1213, %v1200, %v1202
      %v1218 = vsel %vm1213, %v1202, %v1204
      %v1219 = vsel %vm1213, %v1204, %v1206
      %v1220 = vsel %vm1213, %v1206, %v1208
      %v1221 = vsel %vm1213, %v1208, %v1210
      %v1222 = vsel %vm1213, %v1210, %v1212
      %v1223 = vsel %vm796, %v795, %v777
      %v1224 = vsel %vm826, %v825, %v807
      %v1225 = vsel %vm856, %v855, %v837
      %1226 = vrot.lane.b32.xlu0 %v757, 95
      %v1227 = vpop.permute.xlu0 %1226
      %1228 = vrot.lane.b32.xlu0 %v758, 95
      %v1229 = vpop.permute.xlu0 %1228
      %1230 = vrot.lane.b32.xlu0 %v759, 95
      %v1231 = vpop.permute.xlu0 %1230
      %1232 = vrot.lane.b32.xlu0 %v760, 95
      %v1233 = vpop.permute.xlu0 %1232
      %1234 = vrot.lane.b32.xlu0 %v761, 95
      %v1235 = vpop.permute.xlu0 %1234
      %1236 = vrot.lane.b32.xlu0 %v762, 95
      %v1237 = vpop.permute.xlu0 %1236
      %1238 = vrot.lane.b32.xlu0 %v763, 95
      %v1239 = vpop.permute.xlu0 %1238
      %1240 = vrot.lane.b32.xlu0 %v764, 95
      %v1241 = vpop.permute.xlu0 %1240
      %1242 = vrot.lane.b32.xlu0 %v765, 95
      %v1243 = vpop.permute.xlu0 %1242
      %1244 = vrot.lane.b32.xlu0 0, 95
      %v1245 = vpop.permute.xlu0 %1244
      %vm1246 = vcmask 777216
      %v1247 = vsel %vm1246, %v1227, %v1229
      %v1248 = vsel %vm1246, %v1229, %v1231
      %v1249 = vsel %vm1246, %v1231, %v1233
      %v1250 = vsel %vm1246, %v1233, %v1235
      %v1251 = vsel %vm1246, %v1235, %v1237
      %v1252 = vsel %vm1246, %v1237, %v1239
      %v1253 = vsel %vm1246, %v1239, %v1241
      %v1254 = vsel %vm1246, %v1241, %v1243
      %v1255 = vsel %vm1246, %v1243, %v1245
      %v1256 = vsel %vm916, %v915, %v897
      %v1257 = vsel %vm946, %v945, %v927
      %v1258 = vsel %vm976, %v975, %v957
      %v1259 = vsel %vm1006, %v1005, %v987
      %1260 = vrot.lane.b32.xlu0 %v757, 25
      %v1261 = vpop.permute.xlu0 %1260
      %1262 = vrot.lane.b32.xlu0 %v758, 25
      %v1263 = vpop.permute.xlu0 %1262
      %1264 = vrot.lane.b32.xlu0 %v759, 25
      %v1265 = vpop.permute.xlu0 %1264
      %1266 = vrot.lane.b32.xlu0 %v760, 25
      %v1267 = vpop.permute.xlu0 %1266
      %1268 = vrot.lane.b32.xlu0 %v761, 25
      %v1269 = vpop.permute.xlu0 %1268
      %1270 = vrot.lane.b32.xlu0 %v762, 25
      %v1271 = vpop.permute.xlu0 %1270
      %1272 = vrot.lane.b32.xlu0 %v763, 25
      %v1273 = vpop.permute.xlu0 %1272
      %1274 = vrot.lane.b32.xlu0 %v764, 25
      %v1275 = vpop.permute.xlu0 %1274
      %1276 = vrot.lane.b32.xlu0 %v765, 25
      %v1277 = vpop.permute.xlu0 %1276
      %1278 = vrot.lane.b32.xlu0 0, 25
      %v1279 = vpop.permute.xlu0 %1278
      %1280 = vrot.lane.b32.xlu0 %v798, 25
      %v1281 = vpop.permute.xlu0 %1280
      %1282 = vrot.lane.b32.xlu0 %v799, 25
      %v1283 = vpop.permute.xlu0 %1282
      %1284 = vrot.lane.b32.xlu0 %v800, 25
      %v1285 = vpop.permute.xlu0 %1284
      %1286 = vrot.lane.b32.xlu0 %v801, 25
      %v1287 = vpop.permute.xlu0 %1286
      %1288 = vrot.lane.b32.xlu0 %v802, 25
      %v1289 = vpop.permute.xlu0 %1288
      %1290 = vrot.lane.b32.xlu0 %v803, 25
      %v1291 = vpop.permute.xlu0 %1290
      %1292 = vrot.lane.b32.xlu0 %v804, 25
      %v1293 = vpop.permute.xlu0 %1292
      %1294 = vrot.lane.b32.xlu0 %v805, 25
      %v1295 = vpop.permute.xlu0 %1294
      %1296 = vrot.lane.b32.xlu0 %v1223, 25
      %v1297 = vpop.permute.xlu0 %1296
      %1298 = vrot.lane.b32.xlu0 %v777, 25
      %v1299 = vpop.permute.xlu0 %1298
      %1300 = vrot.lane.b32.xlu0 %v828, 25
      %v1301 = vpop.permute.xlu0 %1300
      %1302 = vrot.lane.b32.xlu0 %v829, 25
      %v1303 = vpop.permute.xlu0 %1302
      %1304 = vrot.lane.b32.xlu0 %v830, 25
      %v1305 = vpop.permute.xlu0 %1304
      %1306 = vrot.lane.b32.xlu0 %v831, 25
      %v1307 = vpop.permute.xlu0 %1306
      %1308 = vrot.lane.b32.xlu0 %v832, 25
      %v1309 = vpop.permute.xlu0 %1308
      %1310 = vrot.lane.b32.xlu0 %v833, 25
      %v1311 = vpop.permute.xlu0 %1310
      %1312 = vrot.lane.b32.xlu0 %v834, 25
      %v1313 = vpop.permute.xlu0 %1312
      %1314 = vrot.lane.b32.xlu0 %v835, 25
      %v1315 = vpop.permute.xlu0 %1314
      %1316 = vrot.lane.b32.xlu0 %v1224, 25
      %v1317 = vpop.permute.xlu0 %1316
      %1318 = vrot.lane.b32.xlu0 %v807, 25
      %v1319 = vpop.permute.xlu0 %1318
      %1320 = vrot.lane.b32.xlu0 %v858, 25
      %v1321 = vpop.permute.xlu0 %1320
      %1322 = vrot.lane.b32.xlu0 %v859, 25
      %v1323 = vpop.permute.xlu0 %1322
      %1324 = vrot.lane.b32.xlu0 %v860, 25
      %v1325 = vpop.permute.xlu0 %1324
      %1326 = vrot.lane.b32.xlu0 %v861, 25
      %v1327 = vpop.permute.xlu0 %1326
      %1328 = vrot.lane.b32.xlu0 %v862, 25
      %v1329 = vpop.permute.xlu0 %1328
      %1330 = vrot.lane.b32.xlu0 %v863, 25
      %v1331 = vpop.permute.xlu0 %1330
      %1332 = vrot.lane.b32.xlu0 %v864, 25
      %v1333 = vpop.permute.xlu0 %1332
      %1334 = vrot.lane.b32.xlu0 %v865, 25
      %v1335 = vpop.permute.xlu0 %1334
      %1336 = vrot.lane.b32.xlu0 %v1225, 25
      %v1337 = vpop.permute.xlu0 %1336
      %1338 = vrot.lane.b32.xlu0 %v837, 25
      %v1339 = vpop.permute.xlu0 %1338
      %1340 = vrot.lane.b32.xlu0 %v1247, 25
      %v1341 = vpop.permute.xlu0 %1340
      %1342 = vrot.lane.b32.xlu0 %v1248, 25
      %v1343 = vpop.permute.xlu0 %1342
      %1344 = vrot.lane.b32.xlu0 %v1249, 25
      %v1345 = vpop.permute.xlu0 %1344
      %1346 = vrot.lane.b32.xlu0 %v1250, 25
      %v1347 = vpop.permute.xlu0 %1346
      %1348 = vrot.lane.b32.xlu0 %v1251, 25
      %v1349 = vpop.permute.xlu0 %1348
      %1350 = vrot.lane.b32.xlu0 %v1252, 25
      %v1351 = vpop.permute.xlu0 %1350
      %1352 = vrot.lane.b32.xlu0 %v1253, 25
      %v1353 = vpop.permute.xlu0 %1352
      %1354 = vrot.lane.b32.xlu0 %v1254, 25
      %v1355 = vpop.permute.xlu0 %1354
      %1356 = vrot.lane.b32.xlu0 %v1255, 25
      %v1357 = vpop.permute.xlu0 %1356
      %1358 = vrot.lane.b32.xlu0 %v1245, 25
      %v1359 = vpop.permute.xlu0 %1358
      %1360 = vrot.lane.b32.xlu0 %v918, 25
      %v1361 = vpop.permute.xlu0 %1360
      %1362 = vrot.lane.b32.xlu0 %v919, 25
      %v1363 = vpop.permute.xlu0 %1362
      %1364 = vrot.lane.b32.xlu0 %v920, 25
      %v1365 = vpop.permute.xlu0 %1364
      %1366 = vrot.lane.b32.xlu0 %v921, 25
      %v1367 = vpop.permute.xlu0 %1366
      %1368 = vrot.lane.b32.xlu0 %v922, 25
      %v1369 = vpop.permute.xlu0 %1368
      %1370 = vrot.lane.b32.xlu0 %v923, 25
      %v1371 = vpop.permute.xlu0 %1370
      %1372 = vrot.lane.b32.xlu0 %v924, 25
      %v1373 = vpop.permute.xlu0 %1372
      %1374 = vrot.lane.b32.xlu0 %v925, 25
      %v1375 = vpop.permute.xlu0 %1374
      %1376 = vrot.lane.b32.xlu0 %v1256, 25
      %v1377 = vpop.permute.xlu0 %1376
      %1378 = vrot.lane.b32.xlu0 %v897, 25
      %v1379 = vpop.permute.xlu0 %1378
      %1380 = vrot.lane.b32.xlu0 %v948, 25
      %v1381 = vpop.permute.xlu0 %1380
      %1382 = vrot.lane.b32.xlu0 %v949, 25
      %v1383 = vpop.permute.xlu0 %1382
      %1384 = vrot.lane.b32.xlu0 %v950, 25
      %v1385 = vpop.permute.xlu0 %1384
      %1386 = vrot.lane.b32.xlu0 %v951, 25
      %v1387 = vpop.permute.xlu0 %1386
      %1388 = vrot.lane.b32.xlu0 %v952, 25
      %v1389 = vpop.permute.xlu0 %1388
      %1390 = vrot.lane.b32.xlu0 %v953, 25
      %v1391 = vpop.permute.xlu0 %1390
      %1392 = vrot.lane.b32.xlu0 %v954, 25
      %v1393 = vpop.permute.xlu0 %1392
      %1394 = vrot.lane.b32.xlu0 %v955, 25
      %v1395 = vpop.permute.xlu0 %1394
      %1396 = vrot.lane.b32.xlu0 %v1257, 25
      %v1397 = vpop.permute.xlu0 %1396
      %1398 = vrot.lane.b32.xlu0 %v927, 25
      %v1399 = vpop.permute.xlu0 %1398
      %1400 = vrot.lane.b32.xlu0 %v978, 25
      %v1401 = vpop.permute.xlu0 %1400
      %1402 = vrot.lane.b32.xlu0 %v979, 25
      %v1403 = vpop.permute.xlu0 %1402
      %1404 = vrot.lane.b32.xlu0 %v980, 25
      %v1405 = vpop.permute.xlu0 %1404
      %1406 = vrot.lane.b32.xlu0 %v981, 25
      %v1407 = vpop.permute.xlu0 %1406
      %1408 = vrot.lane.b32.xlu0 %v982, 25
      %v1409 = vpop.permute.xlu0 %1408
      %1410 = vrot.lane.b32.xlu0 %v983, 25
      %v1411 = vpop.permute.xlu0 %1410
      %1412 = vrot.lane.b32.xlu0 %v984, 25
      %v1413 = vpop.permute.xlu0 %1412
      %1414 = vrot.lane.b32.xlu0 %v985, 25
      %v1415 = vpop.permute.xlu0 %1414
      %1416 = vrot.lane.b32.xlu0 %v1258, 25
      %v1417 = vpop.permute.xlu0 %1416
      %1418 = vrot.lane.b32.xlu0 %v957, 25
      %v1419 = vpop.permute.xlu0 %1418
      %1420 = vrot.lane.b32.xlu0 %v1008, 25
      %v1421 = vpop.permute.xlu0 %1420
      %1422 = vrot.lane.b32.xlu0 %v1009, 25
      %v1423 = vpop.permute.xlu0 %1422
      %1424 = vrot.lane.b32.xlu0 %v1010, 25
      %v1425 = vpop.permute.xlu0 %1424
      %1426 = vrot.lane.b32.xlu0 %v1011, 25
      %v1427 = vpop.permute.xlu0 %1426
      %1428 = vrot.lane.b32.xlu0 %v1012, 25
      %v1429 = vpop.permute.xlu0 %1428
      %1430 = vrot.lane.b32.xlu0 %v1013, 25
      %v1431 = vpop.permute.xlu0 %1430
      %1432 = vrot.lane.b32.xlu0 %v1014, 25
      %v1433 = vpop.permute.xlu0 %1432
      %1434 = vrot.lane.b32.xlu0 %v1015, 25
      %v1435 = vpop.permute.xlu0 %1434
      %1436 = vrot.lane.b32.xlu0 %v1259, 25
      %v1437 = vpop.permute.xlu0 %1436
      %1438 = vrot.lane.b32.xlu0 %v987, 25
      %v1439 = vpop.permute.xlu0 %1438
      %vm1440 = vcmask 203776
      %v1441 = vsel %vm1440, %v1261, %v1263
      %v1442 = vsel %vm1440, %v1263, %v1265
      %v1443 = vsel %vm1440, %v1265, %v1267
      %v1444 = vsel %vm1440, %v1267, %v1269
      %v1445 = vsel %vm1440, %v1269, %v1271
      %v1446 = vsel %vm1440, %v1271, %v1273
      %v1447 = vsel %vm1440, %v1273, %v1275
      %v1448 = vsel %vm1440, %v1275, %v1277
      %v1449 = vsel %vm1440, %v1277, %v1279
      %v1450 = vsel %vm1440, %v1281, %v1283
      %v1451 = vsel %vm1440, %v1283, %v1285
      %v1452 = vsel %vm1440, %v1285, %v1287
      %v1453 = vsel %vm1440, %v1287, %v1289
      %v1454 = vsel %vm1440, %v1289, %v1291
      %v1455 = vsel %vm1440, %v1291, %v1293
      %v1456 = vsel %vm1440, %v1293, %v1295
      %v1457 = vsel %vm1440, %v1295, %v1297
      %v1458 = vsel %vm1440, %v1297, %v1299
      %v1459 = vsel %vm1440, %v1301, %v1303
      %v1460 = vsel %vm1440, %v1303, %v1305
      %v1461 = vsel %vm1440, %v1305, %v1307
      %v1462 = vsel %vm1440, %v1307, %v1309
      %v1463 = vsel %vm1440, %v1309, %v1311
      %v1464 = vsel %vm1440, %v1311, %v1313
      %v1465 = vsel %vm1440, %v1313, %v1315
      %v1466 = vsel %vm1440, %v1315, %v1317
      %v1467 = vsel %vm1440, %v1317, %v1319
      %v1468 = vsel %vm1440, %v1321, %v1323
      %v1469 = vsel %vm1440, %v1323, %v1325
      %v1470 = vsel %vm1440, %v1325, %v1327
      %v1471 = vsel %vm1440, %v1327, %v1329
      %v1472 = vsel %vm1440, %v1329, %v1331
      %v1473 = vsel %vm1440, %v1331, %v1333
      %v1474 = vsel %vm1440, %v1333, %v1335
      %v1475 = vsel %vm1440, %v1335, %v1337
      %v1476 = vsel %vm1440, %v1337, %v1339
      %v1477 = vsel %vm1440, %v1341, %v1343
      %v1478 = vsel %vm1440, %v1343, %v1345
      %v1479 = vsel %vm1440, %v1345, %v1347
      %v1480 = vsel %vm1440, %v1347, %v1349
      %v1481 = vsel %vm1440, %v1349, %v1351
      %v1482 = vsel %vm1440, %v1351, %v1353
      %v1483 = vsel %vm1440, %v1353, %v1355
      %v1484 = vsel %vm1440, %v1355, %v1357
      %v1485 = vsel %vm1440, %v1357, %v1359
      %v1486 = vsel %vm1440, %v1361, %v1363
      %v1487 = vsel %vm1440, %v1363, %v1365
      %v1488 = vsel %vm1440, %v1365, %v1367
      %v1489 = vsel %vm1440, %v1367, %v1369
      %v1490 = vsel %vm1440, %v1369, %v1371
      %v1491 = vsel %vm1440, %v1371, %v1373
      %v1492 = vsel %vm1440, %v1373, %v1375
      %v1493 = vsel %vm1440, %v1375, %v1377
      %v1494 = vsel %vm1440, %v1377, %v1379
      %v1495 = vsel %vm1440, %v1381, %v1383
      %v1496 = vsel %vm1440, %v1383, %v1385
      %v1497 = vsel %vm1440, %v1385, %v1387
      %v1498 = vsel %vm1440, %v1387, %v1389
      %v1499 = vsel %vm1440, %v1389, %v1391
      %v1500 = vsel %vm1440, %v1391, %v1393
      %v1501 = vsel %vm1440, %v1393, %v1395
      %v1502 = vsel %vm1440, %v1395, %v1397
      %v1503 = vsel %vm1440, %v1397, %v1399
      %v1504 = vsel %vm1440, %v1401, %v1403
      %v1505 = vsel %vm1440, %v1403, %v1405
      %v1506 = vsel %vm1440, %v1405, %v1407
      %v1507 = vsel %vm1440, %v1407, %v1409
      %v1508 = vsel %vm1440, %v1409, %v1411
      %v1509 = vsel %vm1440, %v1411, %v1413
      %v1510 = vsel %vm1440, %v1413, %v1415
      %v1511 = vsel %vm1440, %v1415, %v1417
      %v1512 = vsel %vm1440, %v1417, %v1419
      %v1513 = vsel %vm1440, %v1421, %v1423
      %v1514 = vsel %vm1440, %v1423, %v1425
      %v1515 = vsel %vm1440, %v1425, %v1427
      %v1516 = vsel %vm1440, %v1427, %v1429
      %v1517 = vsel %vm1440, %v1429, %v1431
      %v1518 = vsel %vm1440, %v1431, %v1433
      %v1519 = vsel %vm1440, %v1433, %v1435
      %v1520 = vsel %vm1440, %v1435, %v1437
      %v1521 = vsel %vm1440, %v1437, %v1439
      %v1522 = vld [vmem:[%s1] sm:$0xff]
      %v1523 = vld [vmem:[%s1 + $0x8] sm:$0xff]
      %v1524 = vld [vmem:[%s1 + $0x10] sm:$0xff]
      %v1525 = vld [vmem:[%s1 + $0x18] sm:$0xff]
      %v1526 = vld [vmem:[%s2] sm:$0xff]
      %v1527 = vld [vmem:[%s2 + $0x8] sm:$0xff]
      %1529 = vset.pattern.permute.xlu0 0
      %1530 = vperm.xlu0 %1529, %v1526
      %v1531 = vpop.permute.xlu0 %1530
      %1534 = vset.pattern.permute.xlu0 0
      %1535 = vperm.xlu0 %1534, %v1527
      %v1536 = vpop.permute.xlu0 %1535
      %v1542 = vunpack.c.l.b16 %v1522
      %v1543 = vunpack.c.h.b16 %v1522
      %v1544 = vunpack.c.l.b16 %v1523
      %v1545 = vunpack.c.h.b16 %v1523
      %v1546 = vunpack.c.l.b16 %v1524
      %v1547 = vunpack.c.h.b16 %v1524
      %v1548 = vunpack.c.l.b16 %v1525
      %v1549 = vunpack.c.h.b16 %v1525
      %v1550 = vpack.c.b16 %v1546, %v1542
      %v1551 = vpack.c.b16 %v1547, %v1543
      %v1552 = vpack.c.b16 %v1548, %v1544
      %v1553 = vpack.c.b16 %v1549, %v1545
      %1557 = vrot.lane.b32.xlu0 0, 70
      %v1558 = vpop.permute.xlu0 %1557
      %1559 = vrot.lane.b32.xlu0 %v757, 70
      %v1560 = vpop.permute.xlu0 %1559
      %1561 = vrot.lane.b32.xlu0 %v758, 70
      %v1562 = vpop.permute.xlu0 %1561
      %1563 = vrot.lane.b32.xlu0 %v759, 70
      %v1564 = vpop.permute.xlu0 %1563
      %1565 = vrot.lane.b32.xlu0 %v760, 70
      %v1566 = vpop.permute.xlu0 %1565
      %1567 = vrot.lane.b32.xlu0 %v761, 70
      %v1568 = vpop.permute.xlu0 %1567
      %1569 = vrot.lane.b32.xlu0 %v762, 70
      %v1570 = vpop.permute.xlu0 %1569
      %1571 = vrot.lane.b32.xlu0 %v763, 70
      %v1572 = vpop.permute.xlu0 %1571
      %1573 = vrot.lane.b32.xlu0 %v764, 70
      %v1574 = vpop.permute.xlu0 %1573
      %1575 = vrot.lane.b32.xlu0 %v765, 70
      %v1576 = vpop.permute.xlu0 %1575
      %1577 = vrot.lane.b32.xlu0 %v797, 70
      %v1578 = vpop.permute.xlu0 %1577
      %1579 = vrot.lane.b32.xlu0 %v798, 70
      %v1580 = vpop.permute.xlu0 %1579
      %1581 = vrot.lane.b32.xlu0 %v799, 70
      %v1582 = vpop.permute.xlu0 %1581
      %1583 = vrot.lane.b32.xlu0 %v800, 70
      %v1584 = vpop.permute.xlu0 %1583
      %1585 = vrot.lane.b32.xlu0 %v801, 70
      %v1586 = vpop.permute.xlu0 %1585
      %1587 = vrot.lane.b32.xlu0 %v802, 70
      %v1588 = vpop.permute.xlu0 %1587
      %1589 = vrot.lane.b32.xlu0 %v803, 70
      %v1590 = vpop.permute.xlu0 %1589
      %1591 = vrot.lane.b32.xlu0 %v804, 70
      %v1592 = vpop.permute.xlu0 %1591
      %1593 = vrot.lane.b32.xlu0 %v805, 70
      %v1594 = vpop.permute.xlu0 %1593
      %1595 = vrot.lane.b32.xlu0 %v795, 70
      %v1596 = vpop.permute.xlu0 %1595
      %1597 = vrot.lane.b32.xlu0 %v827, 70
      %v1598 = vpop.permute.xlu0 %1597
      %1599 = vrot.lane.b32.xlu0 %v828, 70
      %v1600 = vpop.permute.xlu0 %1599
      %1601 = vrot.lane.b32.xlu0 %v829, 70
      %v1602 = vpop.permute.xlu0 %1601
      %1603 = vrot.lane.b32.xlu0 %v830, 70
      %v1604 = vpop.permute.xlu0 %1603
      %1605 = vrot.lane.b32.xlu0 %v831, 70
      %v1606 = vpop.permute.xlu0 %1605
      %1607 = vrot.lane.b32.xlu0 %v832, 70
      %v1608 = vpop.permute.xlu0 %1607
      %1609 = vrot.lane.b32.xlu0 %v833, 70
      %v1610 = vpop.permute.xlu0 %1609
      %1611 = vrot.lane.b32.xlu0 %v834, 70
      %v1612 = vpop.permute.xlu0 %1611
      %1613 = vrot.lane.b32.xlu0 %v835, 70
      %v1614 = vpop.permute.xlu0 %1613
      %1615 = vrot.lane.b32.xlu0 %v825, 70
      %v1616 = vpop.permute.xlu0 %1615
      %1617 = vrot.lane.b32.xlu0 %v857, 70
      %v1618 = vpop.permute.xlu0 %1617
      %1619 = vrot.lane.b32.xlu0 %v858, 70
      %v1620 = vpop.permute.xlu0 %1619
      %1621 = vrot.lane.b32.xlu0 %v859, 70
      %v1622 = vpop.permute.xlu0 %1621
      %1623 = vrot.lane.b32.xlu0 %v860, 70
      %v1624 = vpop.permute.xlu0 %1623
      %1625 = vrot.lane.b32.xlu0 %v861, 70
      %v1626 = vpop.permute.xlu0 %1625
      %1627 = vrot.lane.b32.xlu0 %v862, 70
      %v1628 = vpop.permute.xlu0 %1627
      %1629 = vrot.lane.b32.xlu0 %v863, 70
      %v1630 = vpop.permute.xlu0 %1629
      %1631 = vrot.lane.b32.xlu0 %v864, 70
      %v1632 = vpop.permute.xlu0 %1631
      %1633 = vrot.lane.b32.xlu0 %v865, 70
      %v1634 = vpop.permute.xlu0 %1633
      %1635 = vrot.lane.b32.xlu0 %v855, 70
      %v1636 = vpop.permute.xlu0 %1635
      %1637 = vrot.lane.b32.xlu0 %v887, 70
      %v1638 = vpop.permute.xlu0 %1637
      %1639 = vrot.lane.b32.xlu0 %v888, 70
      %v1640 = vpop.permute.xlu0 %1639
      %1641 = vrot.lane.b32.xlu0 %v889, 70
      %v1642 = vpop.permute.xlu0 %1641
      %1643 = vrot.lane.b32.xlu0 %v890, 70
      %v1644 = vpop.permute.xlu0 %1643
      %1645 = vrot.lane.b32.xlu0 %v891, 70
      %v1646 = vpop.permute.xlu0 %1645
      %1647 = vrot.lane.b32.xlu0 %v892, 70
      %v1648 = vpop.permute.xlu0 %1647
      %1649 = vrot.lane.b32.xlu0 %v893, 70
      %v1650 = vpop.permute.xlu0 %1649
      %1651 = vrot.lane.b32.xlu0 %v894, 70
      %v1652 = vpop.permute.xlu0 %1651
      %1653 = vrot.lane.b32.xlu0 %v895, 70
      %v1654 = vpop.permute.xlu0 %1653
      %1655 = vrot.lane.b32.xlu0 %v885, 70
      %v1656 = vpop.permute.xlu0 %1655
      %1657 = vrot.lane.b32.xlu0 %v917, 70
      %v1658 = vpop.permute.xlu0 %1657
      %1659 = vrot.lane.b32.xlu0 %v918, 70
      %v1660 = vpop.permute.xlu0 %1659
      %1661 = vrot.lane.b32.xlu0 %v919, 70
      %v1662 = vpop.permute.xlu0 %1661
      %1663 = vrot.lane.b32.xlu0 %v920, 70
      %v1664 = vpop.permute.xlu0 %1663
      %1665 = vrot.lane.b32.xlu0 %v921, 70
      %v1666 = vpop.permute.xlu0 %1665
      %1667 = vrot.lane.b32.xlu0 %v922, 70
      %v1668 = vpop.permute.xlu0 %1667
      %1669 = vrot.lane.b32.xlu0 %v923, 70
      %v1670 = vpop.permute.xlu0 %1669
      %1671 = vrot.lane.b32.xlu0 %v924, 70
      %v1672 = vpop.permute.xlu0 %1671
      %1673 = vrot.lane.b32.xlu0 %v925, 70
      %v1674 = vpop.permute.xlu0 %1673
      %1675 = vrot.lane.b32.xlu0 %v915, 70
      %v1676 = vpop.permute.xlu0 %1675
      %1677 = vrot.lane.b32.xlu0 %v947, 70
      %v1678 = vpop.permute.xlu0 %1677
      %1679 = vrot.lane.b32.xlu0 %v948, 70
      %v1680 = vpop.permute.xlu0 %1679
      %1681 = vrot.lane.b32.xlu0 %v949, 70
      %v1682 = vpop.permute.xlu0 %1681
      %1683 = vrot.lane.b32.xlu0 %v950, 70
      %v1684 = vpop.permute.xlu0 %1683
      %1685 = vrot.lane.b32.xlu0 %v951, 70
      %v1686 = vpop.permute.xlu0 %1685
      %1687 = vrot.lane.b32.xlu0 %v952, 70
      %v1688 = vpop.permute.xlu0 %1687
      %1689 = vrot.lane.b32.xlu0 %v953, 70
      %v1690 = vpop.permute.xlu0 %1689
      %1691 = vrot.lane.b32.xlu0 %v954, 70
      %v1692 = vpop.permute.xlu0 %1691
      %1693 = vrot.lane.b32.xlu0 %v955, 70
      %v1694 = vpop.permute.xlu0 %1693
      %1695 = vrot.lane.b32.xlu0 %v945, 70
      %v1696 = vpop.permute.xlu0 %1695
      %1697 = vrot.lane.b32.xlu0 %v977, 70
      %v1698 = vpop.permute.xlu0 %1697
      %1699 = vrot.lane.b32.xlu0 %v978, 70
      %v1700 = vpop.permute.xlu0 %1699
      %1701 = vrot.lane.b32.xlu0 %v979, 70
      %v1702 = vpop.permute.xlu0 %1701
      %1703 = vrot.lane.b32.xlu0 %v980, 70
      %v1704 = vpop.permute.xlu0 %1703
      %1705 = vrot.lane.b32.xlu0 %v981, 70
      %v1706 = vpop.permute.xlu0 %1705
      %1707 = vrot.lane.b32.xlu0 %v982, 70
      %v1708 = vpop.permute.xlu0 %1707
      %1709 = vrot.lane.b32.xlu0 %v983, 70
      %v1710 = vpop.permute.xlu0 %1709
      %1711 = vrot.lane.b32.xlu0 %v984, 70
      %v1712 = vpop.permute.xlu0 %1711
      %1713 = vrot.lane.b32.xlu0 %v985, 70
      %v1714 = vpop.permute.xlu0 %1713
      %1715 = vrot.lane.b32.xlu0 %v975, 70
      %v1716 = vpop.permute.xlu0 %1715
      %1717 = vrot.lane.b32.xlu0 %v1007, 70
      %v1718 = vpop.permute.xlu0 %1717
      %1719 = vrot.lane.b32.xlu0 %v1008, 70
      %v1720 = vpop.permute.xlu0 %1719
      %1721 = vrot.lane.b32.xlu0 %v1009, 70
      %v1722 = vpop.permute.xlu0 %1721
      %1723 = vrot.lane.b32.xlu0 %v1010, 70
      %v1724 = vpop.permute.xlu0 %1723
      %1725 = vrot.lane.b32.xlu0 %v1011, 70
      %v1726 = vpop.permute.xlu0 %1725
      %1727 = vrot.lane.b32.xlu0 %v1012, 70
      %v1728 = vpop.permute.xlu0 %1727
      %1729 = vrot.lane.b32.xlu0 %v1013, 70
      %v1730 = vpop.permute.xlu0 %1729
      %1731 = vrot.lane.b32.xlu0 %v1014, 70
      %v1732 = vpop.permute.xlu0 %1731
      %1733 = vrot.lane.b32.xlu0 %v1015, 70
      %v1734 = vpop.permute.xlu0 %1733
      %1735 = vrot.lane.b32.xlu0 %v1005, 70
      %v1736 = vpop.permute.xlu0 %1735
      %1737 = vrot.lane.b32.xlu0 %v1037, 70
      %v1738 = vpop.permute.xlu0 %1737
      %1739 = vrot.lane.b32.xlu0 %v1038, 70
      %v1740 = vpop.permute.xlu0 %1739
      %1741 = vrot.lane.b32.xlu0 %v1039, 70
      %v1742 = vpop.permute.xlu0 %1741
      %1743 = vrot.lane.b32.xlu0 %v1040, 70
      %v1744 = vpop.permute.xlu0 %1743
      %1745 = vrot.lane.b32.xlu0 %v1041, 70
      %v1746 = vpop.permute.xlu0 %1745
      %1747 = vrot.lane.b32.xlu0 %v1042, 70
      %v1748 = vpop.permute.xlu0 %1747
      %1749 = vrot.lane.b32.xlu0 %v1043, 70
      %v1750 = vpop.permute.xlu0 %1749
      %1751 = vrot.lane.b32.xlu0 %v1044, 70
      %v1752 = vpop.permute.xlu0 %1751
      %1753 = vrot.lane.b32.xlu0 %v1045, 70
      %v1754 = vpop.permute.xlu0 %1753
      %1755 = vrot.lane.b32.xlu0 %v1035, 70
      %v1756 = vpop.permute.xlu0 %1755
      %1757 = vrot.lane.b32.xlu0 %v1067, 70
      %v1758 = vpop.permute.xlu0 %1757
      %1759 = vrot.lane.b32.xlu0 %v1068, 70
      %v1760 = vpop.permute.xlu0 %1759
      %1761 = vrot.lane.b32.xlu0 %v1069, 70
      %v1762 = vpop.permute.xlu0 %1761
      %1763 = vrot.lane.b32.xlu0 %v1070, 70
      %v1764 = vpop.permute.xlu0 %1763
      %1765 = vrot.lane.b32.xlu0 %v1071, 70
      %v1766 = vpop.permute.xlu0 %1765
      %1767 = vrot.lane.b32.xlu0 %v1072, 70
      %v1768 = vpop.permute.xlu0 %1767
      %1769 = vrot.lane.b32.xlu0 %v1073, 70
      %v1770 = vpop.permute.xlu0 %1769
      %1771 = vrot.lane.b32.xlu0 %v1074, 70
      %v1772 = vpop.permute.xlu0 %1771
      %1773 = vrot.lane.b32.xlu0 %v1075, 70
      %v1774 = vpop.permute.xlu0 %1773
      %1775 = vrot.lane.b32.xlu0 %v1065, 70
      %v1776 = vpop.permute.xlu0 %1775
      %1777 = vrot.lane.b32.xlu0 %v1097, 70
      %v1778 = vpop.permute.xlu0 %1777
      %1779 = vrot.lane.b32.xlu0 %v1098, 70
      %v1780 = vpop.permute.xlu0 %1779
      %1781 = vrot.lane.b32.xlu0 %v1099, 70
      %v1782 = vpop.permute.xlu0 %1781
      %1783 = vrot.lane.b32.xlu0 %v1100, 70
      %v1784 = vpop.permute.xlu0 %1783
      %1785 = vrot.lane.b32.xlu0 %v1101, 70
      %v1786 = vpop.permute.xlu0 %1785
      %1787 = vrot.lane.b32.xlu0 %v1102, 70
      %v1788 = vpop.permute.xlu0 %1787
      %1789 = vrot.lane.b32.xlu0 %v1103, 70
      %v1790 = vpop.permute.xlu0 %1789
      %1791 = vrot.lane.b32.xlu0 %v1104, 70
      %v1792 = vpop.permute.xlu0 %1791
      %1793 = vrot.lane.b32.xlu0 %v1105, 70
      %v1794 = vpop.permute.xlu0 %1793
      %1795 = vrot.lane.b32.xlu0 %v1095, 70
      %v1796 = vpop.permute.xlu0 %1795
      %1797 = vrot.lane.b32.xlu0 %v1107, 70
      %v1798 = vpop.permute.xlu0 %1797
      %1799 = vrot.lane.b32.xlu0 %v1125, 70
      %v1800 = vpop.permute.xlu0 %1799
      %1801 = vrot.lane.b32.xlu0 %v1126, 70
      %v1802 = vpop.permute.xlu0 %1801
      %1803 = vrot.lane.b32.xlu0 %v1127, 70
      %v1804 = vpop.permute.xlu0 %1803
      %1805 = vrot.lane.b32.xlu0 %v1128, 70
      %v1806 = vpop.permute.xlu0 %1805
      %1807 = vrot.lane.b32.xlu0 %v1129, 70
      %v1808 = vpop.permute.xlu0 %1807
      %1809 = vrot.lane.b32.xlu0 %v1130, 70
      %v1810 = vpop.permute.xlu0 %1809
      %1811 = vrot.lane.b32.xlu0 %v1131, 70
      %v1812 = vpop.permute.xlu0 %1811
      %1813 = vrot.lane.b32.xlu0 %v1132, 70
      %v1814 = vpop.permute.xlu0 %1813
      %1815 = vrot.lane.b32.xlu0 %v1123, 70
      %v1816 = vpop.permute.xlu0 %1815
      %1817 = vrot.lane.b32.xlu0 %v1134, 70
      %v1818 = vpop.permute.xlu0 %1817
      %1819 = vrot.lane.b32.xlu0 %v1154, 70
      %v1820 = vpop.permute.xlu0 %1819
      %1821 = vrot.lane.b32.xlu0 %v1155, 70
      %v1822 = vpop.permute.xlu0 %1821
      %1823 = vrot.lane.b32.xlu0 %v1156, 70
      %v1824 = vpop.permute.xlu0 %1823
      %1825 = vrot.lane.b32.xlu0 %v1157, 70
      %v1826 = vpop.permute.xlu0 %1825
      %1827 = vrot.lane.b32.xlu0 %v1158, 70
      %v1828 = vpop.permute.xlu0 %1827
      %1829 = vrot.lane.b32.xlu0 %v1159, 70
      %v1830 = vpop.permute.xlu0 %1829
      %1831 = vrot.lane.b32.xlu0 %v1160, 70
      %v1832 = vpop.permute.xlu0 %1831
      %1833 = vrot.lane.b32.xlu0 %v1161, 70
      %v1834 = vpop.permute.xlu0 %1833
      %1835 = vrot.lane.b32.xlu0 %v1162, 70
      %v1836 = vpop.permute.xlu0 %1835
      %1837 = vrot.lane.b32.xlu0 %v1164, 70
      %v1838 = vpop.permute.xlu0 %1837
      %1839 = vrot.lane.b32.xlu0 %v1184, 70
      %v1840 = vpop.permute.xlu0 %1839
      %1841 = vrot.lane.b32.xlu0 %v1185, 70
      %v1842 = vpop.permute.xlu0 %1841
      %1843 = vrot.lane.b32.xlu0 %v1186, 70
      %v1844 = vpop.permute.xlu0 %1843
      %1845 = vrot.lane.b32.xlu0 %v1187, 70
      %v1846 = vpop.permute.xlu0 %1845
      %1847 = vrot.lane.b32.xlu0 %v1188, 70
      %v1848 = vpop.permute.xlu0 %1847
      %1849 = vrot.lane.b32.xlu0 %v1189, 70
      %v1850 = vpop.permute.xlu0 %1849
      %1851 = vrot.lane.b32.xlu0 %v1190, 70
      %v1852 = vpop.permute.xlu0 %1851
      %1853 = vrot.lane.b32.xlu0 %v1191, 70
      %v1854 = vpop.permute.xlu0 %1853
      %1855 = vrot.lane.b32.xlu0 %v1192, 70
      %v1856 = vpop.permute.xlu0 %1855
      %1857 = vrot.lane.b32.xlu0 %v1194, 70
      %v1858 = vpop.permute.xlu0 %1857
      %1859 = vrot.lane.b32.xlu0 %v1214, 70
      %v1860 = vpop.permute.xlu0 %1859
      %1861 = vrot.lane.b32.xlu0 %v1215, 70
      %v1862 = vpop.permute.xlu0 %1861
      %1863 = vrot.lane.b32.xlu0 %v1216, 70
      %v1864 = vpop.permute.xlu0 %1863
      %1865 = vrot.lane.b32.xlu0 %v1217, 70
      %v1866 = vpop.permute.xlu0 %1865
      %1867 = vrot.lane.b32.xlu0 %v1218, 70
      %v1868 = vpop.permute.xlu0 %1867
      %1869 = vrot.lane.b32.xlu0 %v1219, 70
      %v1870 = vpop.permute.xlu0 %1869
      %1871 = vrot.lane.b32.xlu0 %v1220, 70
      %v1872 = vpop.permute.xlu0 %1871
      %1873 = vrot.lane.b32.xlu0 %v1221, 70
      %v1874 = vpop.permute.xlu0 %1873
      %1875 = vrot.lane.b32.xlu0 %v1222, 70
      %v1876 = vpop.permute.xlu0 %1875
      %1877 = vrot.lane.b32.xlu0 %v1261, 70
      %v1878 = vpop.permute.xlu0 %1877
      %1879 = vrot.lane.b32.xlu0 %v1441, 70
      %v1880 = vpop.permute.xlu0 %1879
      %1881 = vrot.lane.b32.xlu0 %v1442, 70
      %v1882 = vpop.permute.xlu0 %1881
      %1883 = vrot.lane.b32.xlu0 %v1443, 70
      %v1884 = vpop.permute.xlu0 %1883
      %1885 = vrot.lane.b32.xlu0 %v1444, 70
      %v1886 = vpop.permute.xlu0 %1885
      %1887 = vrot.lane.b32.xlu0 %v1445, 70
      %v1888 = vpop.permute.xlu0 %1887
      %1889 = vrot.lane.b32.xlu0 %v1446, 70
      %v1890 = vpop.permute.xlu0 %1889
      %1891 = vrot.lane.b32.xlu0 %v1447, 70
      %v1892 = vpop.permute.xlu0 %1891
      %1893 = vrot.lane.b32.xlu0 %v1448, 70
      %v1894 = vpop.permute.xlu0 %1893
      %1895 = vrot.lane.b32.xlu0 %v1449, 70
      %v1896 = vpop.permute.xlu0 %1895
      %1897 = vrot.lane.b32.xlu0 %v1281, 70
      %v1898 = vpop.permute.xlu0 %1897
      %1899 = vrot.lane.b32.xlu0 %v1450, 70
      %v1900 = vpop.permute.xlu0 %1899
      %1901 = vrot.lane.b32.xlu0 %v1451, 70
      %v1902 = vpop.permute.xlu0 %1901
      %1903 = vrot.lane.b32.xlu0 %v1452, 70
      %v1904 = vpop.permute.xlu0 %1903
      %1905 = vrot.lane.b32.xlu0 %v1453, 70
      %v1906 = vpop.permute.xlu0 %1905
      %1907 = vrot.lane.b32.xlu0 %v1454, 70
      %v1908 = vpop.permute.xlu0 %1907
      %1909 = vrot.lane.b32.xlu0 %v1455, 70
      %v1910 = vpop.permute.xlu0 %1909
      %1911 = vrot.lane.b32.xlu0 %v1456, 70
      %v1912 = vpop.permute.xlu0 %1911
      %1913 = vrot.lane.b32.xlu0 %v1457, 70
      %v1914 = vpop.permute.xlu0 %1913
      %1915 = vrot.lane.b32.xlu0 %v1458, 70
      %v1916 = vpop.permute.xlu0 %1915
      %1917 = vrot.lane.b32.xlu0 %v1301, 70
      %v1918 = vpop.permute.xlu0 %1917
      %1919 = vrot.lane.b32.xlu0 %v1459, 70
      %v1920 = vpop.permute.xlu0 %1919
      %1921 = vrot.lane.b32.xlu0 %v1460, 70
      %v1922 = vpop.permute.xlu0 %1921
      %1923 = vrot.lane.b32.xlu0 %v1461, 70
      %v1924 = vpop.permute.xlu0 %1923
      %1925 = vrot.lane.b32.xlu0 %v1462, 70
      %v1926 = vpop.permute.xlu0 %1925
      %1927 = vrot.lane.b32.xlu0 %v1463, 70
      %v1928 = vpop.permute.xlu0 %1927
      %1929 = vrot.lane.b32.xlu0 %v1464, 70
      %v1930 = vpop.permute.xlu0 %1929
      %1931 = vrot.lane.b32.xlu0 %v1465, 70
      %v1932 = vpop.permute.xlu0 %1931
      %1933 = vrot.lane.b32.xlu0 %v1466, 70
      %v1934 = vpop.permute.xlu0 %1933
      %1935 = vrot.lane.b32.xlu0 %v1467, 70
      %v1936 = vpop.permute.xlu0 %1935
      %1937 = vrot.lane.b32.xlu0 %v1321, 70
      %v1938 = vpop.permute.xlu0 %1937
      %1939 = vrot.lane.b32.xlu0 %v1468, 70
      %v1940 = vpop.permute.xlu0 %1939
      %1941 = vrot.lane.b32.xlu0 %v1469, 70
      %v1942 = vpop.permute.xlu0 %1941
      %1943 = vrot.lane.b32.xlu0 %v1470, 70
      %v1944 = vpop.permute.xlu0 %1943
      %1945 = vrot.lane.b32.xlu0 %v1471, 70
      %v1946 = vpop.permute.xlu0 %1945
      %1947 = vrot.lane.b32.xlu0 %v1472, 70
      %v1948 = vpop.permute.xlu0 %1947
      %1949 = vrot.lane.b32.xlu0 %v1473, 70
      %v1950 = vpop.permute.xlu0 %1949
      %1951 = vrot.lane.b32.xlu0 %v1474, 70
      %v1952 = vpop.permute.xlu0 %1951
      %1953 = vrot.lane.b32.xlu0 %v1475, 70
      %v1954 = vpop.permute.xlu0 %1953
      %1955 = vrot.lane.b32.xlu0 %v1476, 70
      %v1956 = vpop.permute.xlu0 %1955
      %1957 = vrot.lane.b32.xlu0 %v1341, 70
      %v1958 = vpop.permute.xlu0 %1957
      %1959 = vrot.lane.b32.xlu0 %v1477, 70
      %v1960 = vpop.permute.xlu0 %1959
      %1961 = vrot.lane.b32.xlu0 %v1478, 70
      %v1962 = vpop.permute.xlu0 %1961
      %1963 = vrot.lane.b32.xlu0 %v1479, 70
      %v1964 = vpop.permute.xlu0 %1963
      %1965 = vrot.lane.b32.xlu0 %v1480, 70
      %v1966 = vpop.permute.xlu0 %1965
      %1967 = vrot.lane.b32.xlu0 %v1481, 70
      %v1968 = vpop.permute.xlu0 %1967
      %1969 = vrot.lane.b32.xlu0 %v1482, 70
      %v1970 = vpop.permute.xlu0 %1969
      %1971 = vrot.lane.b32.xlu0 %v1483, 70
      %v1972 = vpop.permute.xlu0 %1971
      %1973 = vrot.lane.b32.xlu0 %v1484, 70
      %v1974 = vpop.permute.xlu0 %1973
      %1975 = vrot.lane.b32.xlu0 %v1485, 70
      %v1976 = vpop.permute.xlu0 %1975
      %1977 = vrot.lane.b32.xlu0 %v1361, 70
      %v1978 = vpop.permute.xlu0 %1977
      %1979 = vrot.lane.b32.xlu0 %v1486, 70
      %v1980 = vpop.permute.xlu0 %1979
      %1981 = vrot.lane.b32.xlu0 %v1487, 70
      %v1982 = vpop.permute.xlu0 %1981
      %1983 = vrot.lane.b32.xlu0 %v1488, 70
      %v1984 = vpop.permute.xlu0 %1983
      %1985 = vrot.lane.b32.xlu0 %v1489, 70
      %v1986 = vpop.permute.xlu0 %1985
      %1987 = vrot.lane.b32.xlu0 %v1490, 70
      %v1988 = vpop.permute.xlu0 %1987
      %1989 = vrot.lane.b32.xlu0 %v1491, 70
      %v1990 = vpop.permute.xlu0 %1989
      %1991 = vrot.lane.b32.xlu0 %v1492, 70
      %v1992 = vpop.permute.xlu0 %1991
      %1993 = vrot.lane.b32.xlu0 %v1493, 70
      %v1994 = vpop.permute.xlu0 %1993
      %1995 = vrot.lane.b32.xlu0 %v1494, 70
      %v1996 = vpop.permute.xlu0 %1995
      %1997 = vrot.lane.b32.xlu0 %v1381, 70
      %v1998 = vpop.permute.xlu0 %1997
      %1999 = vrot.lane.b32.xlu0 %v1495, 70
      %v2000 = vpop.permute.xlu0 %1999
      %2001 = vrot.lane.b32.xlu0 %v1496, 70
      %v2002 = vpop.permute.xlu0 %2001
      %2003 = vrot.lane.b32.xlu0 %v1497, 70
      %v2004 = vpop.permute.xlu0 %2003
      %2005 = vrot.lane.b32.xlu0 %v1498, 70
      %v2006 = vpop.permute.xlu0 %2005
      %2007 = vrot.lane.b32.xlu0 %v1499, 70
      %v2008 = vpop.permute.xlu0 %2007
      %2009 = vrot.lane.b32.xlu0 %v1500, 70
      %v2010 = vpop.permute.xlu0 %2009
      %2011 = vrot.lane.b32.xlu0 %v1501, 70
      %v2012 = vpop.permute.xlu0 %2011
      %2013 = vrot.lane.b32.xlu0 %v1502, 70
      %v2014 = vpop.permute.xlu0 %2013
      %2015 = vrot.lane.b32.xlu0 %v1503, 70
      %v2016 = vpop.permute.xlu0 %2015
      %2017 = vrot.lane.b32.xlu0 %v1401, 70
      %v2018 = vpop.permute.xlu0 %2017
      %2019 = vrot.lane.b32.xlu0 %v1504, 70
      %v2020 = vpop.permute.xlu0 %2019
      %2021 = vrot.lane.b32.xlu0 %v1505, 70
      %v2022 = vpop.permute.xlu0 %2021
      %2023 = vrot.lane.b32.xlu0 %v1506, 70
      %v2024 = vpop.permute.xlu0 %2023
      %2025 = vrot.lane.b32.xlu0 %v1507, 70
      %v2026 = vpop.permute.xlu0 %2025
      %2027 = vrot.lane.b32.xlu0 %v1508, 70
      %v2028 = vpop.permute.xlu0 %2027
      %2029 = vrot.lane.b32.xlu0 %v1509, 70
      %v2030 = vpop.permute.xlu0 %2029
      %2031 = vrot.lane.b32.xlu0 %v1510, 70
      %v2032 = vpop.permute.xlu0 %2031
      %2033 = vrot.lane.b32.xlu0 %v1511, 70
      %v2034 = vpop.permute.xlu0 %2033
      %2035 = vrot.lane.b32.xlu0 %v1512, 70
      %v2036 = vpop.permute.xlu0 %2035
      %2037 = vrot.lane.b32.xlu0 %v1421, 70
      %v2038 = vpop.permute.xlu0 %2037
      %2039 = vrot.lane.b32.xlu0 %v1513, 70
      %v2040 = vpop.permute.xlu0 %2039
      %2041 = vrot.lane.b32.xlu0 %v1514, 70
      %v2042 = vpop.permute.xlu0 %2041
      %2043 = vrot.lane.b32.xlu0 %v1515, 70
      %v2044 = vpop.permute.xlu0 %2043
      %2045 = vrot.lane.b32.xlu0 %v1516, 70
      %v2046 = vpop.permute.xlu0 %2045
      %2047 = vrot.lane.b32.xlu0 %v1517, 70
      %v2048 = vpop.permute.xlu0 %2047
      %2049 = vrot.lane.b32.xlu0 %v1518, 70
      %v2050 = vpop.permute.xlu0 %2049
      %2051 = vrot.lane.b32.xlu0 %v1519, 70
      %v2052 = vpop.permute.xlu0 %2051
      %2053 = vrot.lane.b32.xlu0 %v1520, 70
      %v2054 = vpop.permute.xlu0 %2053
      %2055 = vrot.lane.b32.xlu0 %v1521, 70
      %v2056 = vpop.permute.xlu0 %2055
      %vm2057 = vcmask 572416
      %v2058 = vsel %vm2057, %v1558, %v1560
      %v2059 = vsel %vm2057, %v1560, %v1562
      %v2060 = vsel %vm2057, %v1562, %v1564
      %v2061 = vsel %vm2057, %v1564, %v1566
      %v2062 = vsel %vm2057, %v1566, %v1568
      %v2063 = vsel %vm2057, %v1568, %v1570
      %v2064 = vsel %vm2057, %v1570, %v1572
      %v2065 = vsel %vm2057, %v1572, %v1574
      %v2066 = vsel %vm2057, %v1574, %v1576
      %v2067 = vsel %vm2057, %v1578, %v1580
      %v2068 = vsel %vm2057, %v1580, %v1582
      %v2069 = vsel %vm2057, %v1582, %v1584
      %v2070 = vsel %vm2057, %v1584, %v1586
      %v2071 = vsel %vm2057, %v1586, %v1588
      %v2072 = vsel %vm2057, %v1588, %v1590
      %v2073 = vsel %vm2057, %v1590, %v1592
      %v2074 = vsel %vm2057, %v1592, %v1594
      %v2075 = vsel %vm2057, %v1594, %v1596
      %v2076 = vsel %vm2057, %v1598, %v1600
      %v2077 = vsel %vm2057, %v1600, %v1602
      %v2078 = vsel %vm2057, %v1602, %v1604
      %v2079 = vsel %vm2057, %v1604, %v1606
      %v2080 = vsel %vm2057, %v1606, %v1608
      %v2081 = vsel %vm2057, %v1608, %v1610
      %v2082 = vsel %vm2057, %v1610, %v1612
      %v2083 = vsel %vm2057, %v1612, %v1614
      %v2084 = vsel %vm2057, %v1614, %v1616
      %v2085 = vsel %vm2057, %v1618, %v1620
      %v2086 = vsel %vm2057, %v1620, %v1622
      %v2087 = vsel %vm2057, %v1622, %v1624
      %v2088 = vsel %vm2057, %v1624, %v1626
      %v2089 = vsel %vm2057, %v1626, %v1628
      %v2090 = vsel %vm2057, %v1628, %v1630
      %v2091 = vsel %vm2057, %v1630, %v1632
      %v2092 = vsel %vm2057, %v1632, %v1634
      %v2093 = vsel %vm2057, %v1634, %v1636
      %v2094 = vsel %vm2057, %v1638, %v1640
      %v2095 = vsel %vm2057, %v1640, %v1642
      %v2096 = vsel %vm2057, %v1642, %v1644
      %v2097 = vsel %vm2057, %v1644, %v1646
      %v2098 = vsel %vm2057, %v1646, %v1648
      %v2099 = vsel %vm2057, %v1648, %v1650
      %v2100 = vsel %vm2057, %v1650, %v1652
      %v2101 = vsel %vm2057, %v1652, %v1654
      %v2102 = vsel %vm2057, %v1654, %v1656
      %v2103 = vsel %vm2057, %v1658, %v1660
      %v2104 = vsel %vm2057, %v1660, %v1662
      %v2105 = vsel %vm2057, %v1662, %v1664
      %v2106 = vsel %vm2057, %v1664, %v1666
      %v2107 = vsel %vm2057, %v1666, %v1668
      %v2108 = vsel %vm2057, %v1668, %v1670
      %v2109 = vsel %vm2057, %v1670, %v1672
      %v2110 = vsel %vm2057, %v1672, %v1674
      %v2111 = vsel %vm2057, %v1674, %v1676
      %v2112 = vsel %vm2057, %v1678, %v1680
      %v2113 = vsel %vm2057, %v1680, %v1682
      %v2114 = vsel %vm2057, %v1682, %v1684
      %v2115 = vsel %vm2057, %v1684, %v1686
      %v2116 = vsel %vm2057, %v1686, %v1688
      %v2117 = vsel %vm2057, %v1688, %v1690
      %v2118 = vsel %vm2057, %v1690, %v1692
      %v2119 = vsel %vm2057, %v1692, %v1694
      %v2120 = vsel %vm2057, %v1694, %v1696
      %v2121 = vsel %vm2057, %v1698, %v1700
      %v2122 = vsel %vm2057, %v1700, %v1702
      %v2123 = vsel %vm2057, %v1702, %v1704
      %v2124 = vsel %vm2057, %v1704, %v1706
      %v2125 = vsel %vm2057, %v1706, %v1708
      %v2126 = vsel %vm2057, %v1708, %v1710
      %v2127 = vsel %vm2057, %v1710, %v1712
      %v2128 = vsel %vm2057, %v1712, %v1714
      %v2129 = vsel %vm2057, %v1714, %v1716
      %v2130 = vsel %vm2057, %v1718, %v1720
      %v2131 = vsel %vm2057, %v1720, %v1722
      %v2132 = vsel %vm2057, %v1722, %v1724
      %v2133 = vsel %vm2057, %v1724, %v1726
      %v2134 = vsel %vm2057, %v1726, %v1728
      %v2135 = vsel %vm2057, %v1728, %v1730
      %v2136 = vsel %vm2057, %v1730, %v1732
      %v2137 = vsel %vm2057, %v1732, %v1734
      %v2138 = vsel %vm2057, %v1734, %v1736
      %v2139 = vsel %vm2057, %v1738, %v1740
      %v2140 = vsel %vm2057, %v1740, %v1742
      %v2141 = vsel %vm2057, %v1742, %v1744
      %v2142 = vsel %vm2057, %v1744, %v1746
      %v2143 = vsel %vm2057, %v1746, %v1748
      %v2144 = vsel %vm2057, %v1748, %v1750
      %v2145 = vsel %vm2057, %v1750, %v1752
      %v2146 = vsel %vm2057, %v1752, %v1754
      %v2147 = vsel %vm2057, %v1754, %v1756
      %v2148 = vsel %vm2057, %v1758, %v1760
      %v2149 = vsel %vm2057, %v1760, %v1762
      %v2150 = vsel %vm2057, %v1762, %v1764
      %v2151 = vsel %vm2057, %v1764, %v1766
      %v2152 = vsel %vm2057, %v1766, %v1768
      %v2153 = vsel %vm2057, %v1768, %v1770
      %v2154 = vsel %vm2057, %v1770, %v1772
      %v2155 = vsel %vm2057, %v1772, %v1774
      %v2156 = vsel %vm2057, %v1774, %v1776
      %v2157 = vsel %vm2057, %v1778, %v1780
      %v2158 = vsel %vm2057, %v1780, %v1782
      %v2159 = vsel %vm2057, %v1782, %v1784
      %v2160 = vsel %vm2057, %v1784, %v1786
      %v2161 = vsel %vm2057, %v1786, %v1788
      %v2162 = vsel %vm2057, %v1788, %v1790
      %v2163 = vsel %vm2057, %v1790, %v1792
      %v2164 = vsel %vm2057, %v1792, %v1794
      %v2165 = vsel %vm2057, %v1794, %v1796
      %v2166 = vsel %vm2057, %v1798, %v1800
      %v2167 = vsel %vm2057, %v1800, %v1802
      %v2168 = vsel %vm2057, %v1802, %v1804
      %v2169 = vsel %vm2057, %v1804, %v1806
      %v2170 = vsel %vm2057, %v1806, %v1808
      %v2171 = vsel %vm2057, %v1808, %v1810
      %v2172 = vsel %vm2057, %v1810, %v1812
      %v2173 = vsel %vm2057, %v1812, %v1814
      %v2174 = vsel %vm2057, %v1814, %v1816
      %v2175 = vsel %vm2057, %v1818, %v1820
      %v2176 = vsel %vm2057, %v1820, %v1822
      %v2177 = vsel %vm2057, %v1822, %v1824
      %v2178 = vsel %vm2057, %v1824, %v1826
      %v2179 = vsel %vm2057, %v1826, %v1828
      %v2180 = vsel %vm2057, %v1828, %v1830
      %v2181 = vsel %vm2057, %v1830, %v1832
      %v2182 = vsel %vm2057, %v1832, %v1834
      %v2183 = vsel %vm2057, %v1834, %v1836
      %v2184 = vsel %vm2057, %v1838, %v1840
      %v2185 = vsel %vm2057, %v1840, %v1842
      %v2186 = vsel %vm2057, %v1842, %v1844
      %v2187 = vsel %vm2057, %v1844, %v1846
      %v2188 = vsel %vm2057, %v1846, %v1848
      %v2189 = vsel %vm2057, %v1848, %v1850
      %v2190 = vsel %vm2057, %v1850, %v1852
      %v2191 = vsel %vm2057, %v1852, %v1854
      %v2192 = vsel %vm2057, %v1854, %v1856
      %v2193 = vsel %vm2057, %v1858, %v1860
      %v2194 = vsel %vm2057, %v1860, %v1862
      %v2195 = vsel %vm2057, %v1862, %v1864
      %v2196 = vsel %vm2057, %v1864, %v1866
      %v2197 = vsel %vm2057, %v1866, %v1868
      %v2198 = vsel %vm2057, %v1868, %v1870
      %v2199 = vsel %vm2057, %v1870, %v1872
      %v2200 = vsel %vm2057, %v1872, %v1874
      %v2201 = vsel %vm2057, %v1874, %v1876
      %v2202 = vsel %vm2057, %v1878, %v1880
      %v2203 = vsel %vm2057, %v1880, %v1882
      %v2204 = vsel %vm2057, %v1882, %v1884
      %v2205 = vsel %vm2057, %v1884, %v1886
      %v2206 = vsel %vm2057, %v1886, %v1888
      %v2207 = vsel %vm2057, %v1888, %v1890
      %v2208 = vsel %vm2057, %v1890, %v1892
      %v2209 = vsel %vm2057, %v1892, %v1894
      %v2210 = vsel %vm2057, %v1894, %v1896
      %v2211 = vsel %vm2057, %v1898, %v1900
      %v2212 = vsel %vm2057, %v1900, %v1902
      %v2213 = vsel %vm2057, %v1902, %v1904
      %v2214 = vsel %vm2057, %v1904, %v1906
      %v2215 = vsel %vm2057, %v1906, %v1908
      %v2216 = vsel %vm2057, %v1908, %v1910
      %v2217 = vsel %vm2057, %v1910, %v1912
      %v2218 = vsel %vm2057, %v1912, %v1914
      %v2219 = vsel %vm2057, %v1914, %v1916
      %v2220 = vsel %vm2057, %v1918, %v1920
      %v2221 = vsel %vm2057, %v1920, %v1922
      %v2222 = vsel %vm2057, %v1922, %v1924
      %v2223 = vsel %vm2057, %v1924, %v1926
      %v2224 = vsel %vm2057, %v1926, %v1928
      %v2225 = vsel %vm2057, %v1928, %v1930
      %v2226 = vsel %vm2057, %v1930, %v1932
      %v2227 = vsel %vm2057, %v1932, %v1934
      %v2228 = vsel %vm2057, %v1934, %v1936
      %v2229 = vsel %vm2057, %v1938, %v1940
      %v2230 = vsel %vm2057, %v1940, %v1942
      %v2231 = vsel %vm2057, %v1942, %v1944
      %v2232 = vsel %vm2057, %v1944, %v1946
      %v2233 = vsel %vm2057, %v1946, %v1948
      %v2234 = vsel %vm2057, %v1948, %v1950
      %v2235 = vsel %vm2057, %v1950, %v1952
      %v2236 = vsel %vm2057, %v1952, %v1954
      %v2237 = vsel %vm2057, %v1954, %v1956
      %v2238 = vsel %vm2057, %v1958, %v1960
      %v2239 = vsel %vm2057, %v1960, %v1962
      %v2240 = vsel %vm2057, %v1962, %v1964
      %v2241 = vsel %vm2057, %v1964, %v1966
      %v2242 = vsel %vm2057, %v1966, %v1968
      %v2243 = vsel %vm2057, %v1968, %v1970
      %v2244 = vsel %vm2057, %v1970, %v1972
      %v2245 = vsel %vm2057, %v1972, %v1974
      %v2246 = vsel %vm2057, %v1974, %v1976
      %v2247 = vsel %vm2057, %v1978, %v1980
      %v2248 = vsel %vm2057, %v1980, %v1982
      %v2249 = vsel %vm2057, %v1982, %v1984
      %v2250 = vsel %vm2057, %v1984, %v1986
      %v2251 = vsel %vm2057, %v1986, %v1988
      %v2252 = vsel %vm2057, %v1988, %v1990
      %v2253 = vsel %vm2057, %v1990, %v1992
      %v2254 = vsel %vm2057, %v1992, %v1994
      %v2255 = vsel %vm2057, %v1994, %v1996
      %v2256 = vsel %vm2057, %v1998, %v2000
      %v2257 = vsel %vm2057, %v2000, %v2002
      %v2258 = vsel %vm2057, %v2002, %v2004
      %v2259 = vsel %vm2057, %v2004, %v2006
      %v2260 = vsel %vm2057, %v2006, %v2008
      %v2261 = vsel %vm2057, %v2008, %v2010
      %v2262 = vsel %vm2057, %v2010, %v2012
      %v2263 = vsel %vm2057, %v2012, %v2014
      %v2264 = vsel %vm2057, %v2014, %v2016
      %v2265 = vsel %vm2057, %v2018, %v2020
      %v2266 = vsel %vm2057, %v2020, %v2022
      %v2267 = vsel %vm2057, %v2022, %v2024
      %v2268 = vsel %vm2057, %v2024, %v2026
      %v2269 = vsel %vm2057, %v2026, %v2028
      %v2270 = vsel %vm2057, %v2028, %v2030
      %v2271 = vsel %vm2057, %v2030, %v2032
      %v2272 = vsel %vm2057, %v2032, %v2034
      %v2273 = vsel %vm2057, %v2034, %v2036
      %v2274 = vsel %vm2057, %v2038, %v2040
      %v2275 = vsel %vm2057, %v2040, %v2042
      %v2276 = vsel %vm2057, %v2042, %v2044
      %v2277 = vsel %vm2057, %v2044, %v2046
      %v2278 = vsel %vm2057, %v2046, %v2048
      %v2279 = vsel %vm2057, %v2048, %v2050
      %v2280 = vsel %vm2057, %v2050, %v2052
      %v2281 = vsel %vm2057, %v2052, %v2054
      %v2282 = vsel %vm2057, %v2054, %v2056
      %vm2508 = vcmask 130048
      %v2510 = vsel %vm2508, %v1553, 0
      %2512 = vmatprep.subr.bf16.mxu0 %v2059
      %2513 = vmatpush1.bf16.msra.mxu0 %v2058
      %2514 = vmatprep.subr.bf16.mxu0 %v2068
      %2515 = vmatpush1.bf16.msra.mxu0 %v2067
      %2516 = vmatprep.subr.bf16.mxu0 %v2077
      %2517 = vmatpush1.bf16.msra.mxu0 %v2076
      %2518 = vmatprep.subr.bf16.mxu0 %v2086
      %2519 = vmatpush1.bf16.msra.mxu0 %v2085
      %2520 = vmatprep.subr.bf16.mxu0 %v2095
      %2521 = vmatpush1.bf16.msra.mxu0 %v2094
      %2522 = vmatprep.subr.bf16.mxu0 %v2104
      %2523 = vmatpush1.bf16.msra.mxu0 %v2103
      %2524 = vmatprep.subr.bf16.mxu0 %v2113
      %2525 = vmatpush1.bf16.msra.mxu0 %v2112
      %2526 = vmatprep.subr.bf16.mxu0 %v2122
      %2527 = vmatpush1.bf16.msra.mxu0 %v2121
      %2528 = vmatprep.subr.bf16.mxu0 %v2131
      %2529 = vmatpush1.bf16.msra.mxu0 %v2130
      %2530 = vmatprep.subr.bf16.mxu0 %v2140
      %2531 = vmatpush1.bf16.msra.mxu0 %v2139
      %2532 = vmatprep.subr.bf16.mxu0 %v2149
      %2533 = vmatpush1.bf16.msra.mxu0 %v2148
      %2534 = vmatprep.subr.bf16.mxu0 %v2158
      %2535 = vmatpush1.bf16.msra.mxu0 %v2157
      %2536 = vmatprep.subr.bf16.mxu0 %v2167
      %2537 = vmatpush1.bf16.msra.mxu0 %v2166
      %2538 = vmatprep.subr.bf16.mxu0 %v2176
      %2539 = vmatpush1.bf16.msra.mxu0 %v2175
      %2540 = vmatprep.subr.bf16.mxu0 %v2185
      %2541 = vmatpush1.bf16.msra.mxu0 %v2184
      %2542 = vmatprep.subr.bf16.mxu0 %v2194
      %2543 = vmatpush1.bf16.msra.mxu0 %v2193
      %2544 = vmatprep.mubr.bf16.mxu0 %v1551
      %2545 = vmatmul.mubr.bf16.gmra.mrb[0].mxu0 %v1550
      %v2546 = vpop.f32.mrb[0].mxu0
      %v2547 = vadd.f32 %v1531, %v2546
      %v2548 = vpop.f32.mrb[0].mxu0
      %v2549 = vadd.f32 %v1531, %v2548
      %v2550 = vpop.f32.mrb[0].mxu0
      %v2551 = vadd.f32 %v1536, %v2550
      %v2552 = vpop.f32.mrb[0].mxu0
      %v2553 = vadd.f32 %v1536, %v2552
      %2554 = vdwg.mxu0
      %2555 = vmatprep.subr.bf16.mxu0 %v2203
      %2556 = vmatpush1.bf16.msra.mxu0 %v2202
      %2557 = vmatprep.subr.bf16.mxu0 %v2212
      %2558 = vmatpush1.bf16.msra.mxu0 %v2211
      %2559 = vmatprep.subr.bf16.mxu0 %v2221
      %2560 = vmatpush1.bf16.msra.mxu0 %v2220
      %2561 = vmatprep.subr.bf16.mxu0 %v2230
      %2562 = vmatpush1.bf16.msra.mxu0 %v2229
      %2563 = vmatprep.subr.bf16.mxu0 %v2239
      %2564 = vmatpush1.bf16.msra.mxu0 %v2238
      %2565 = vmatprep.subr.bf16.mxu0 %v2248
      %2566 = vmatpush1.bf16.msra.mxu0 %v2247
      %2567 = vmatprep.subr.bf16.mxu0 %v2257
      %2568 = vmatpush1.bf16.msra.mxu0 %v2256
      %2569 = vmatprep.subr.bf16.mxu0 %v2266
      %2570 = vmatpush1.bf16.msra.mxu0 %v2265
      %2571 = vmatprep.subr.bf16.mxu0 %v2275
      %2572 = vmatpush1.bf16.msra.mxu0 %v2274
      %2573 = vmatprep.subr.bf16.mxu0 0
      %2574 = vmatpush1.bf16.msra.mxu0 0
      %2575 = vmatprep.subr.bf16.mxu0 0
      %2576 = vmatpush1.bf16.msra.mxu0 0
      %2577 = vmatprep.subr.bf16.mxu0 0
      %2578 = vmatpush1.bf16.msra.mxu0 0
      %2579 = vmatprep.subr.bf16.mxu0 0
      %2580 = vmatpush1.bf16.msra.mxu0 0
      %2581 = vmatprep.subr.bf16.mxu0 0
      %2582 = vmatpush1.bf16.msra.mxu0 0
      %2583 = vmatprep.subr.bf16.mxu0 0
      %2584 = vmatpush1.bf16.msra.mxu0 0
      %2585 = vmatprep.subr.bf16.mxu0 0
      %2586 = vmatpush1.bf16.msra.mxu0 0
      %2587 = vmatprep.mubr.bf16.mxu0 %v2510
      %2588 = vmatmul.mubr.bf16.gmra.mrb[0].mxu0 %v1552
      %v2589 = vpop.f32.mrb[0].mxu0
      %v2590 = vadd.f32 %v2547, %v2589
      %v2591 = vpop.f32.mrb[0].mxu0
      %v2592 = vadd.f32 %v2549, %v2591
      %v2593 = vpop.f32.mrb[0].mxu0
      %v2594 = vadd.f32 %v2551, %v2593
      %v2595 = vpop.f32.mrb[0].mxu0
      %v2596 = vadd.f32 %v2553, %v2595
      %2597 = vdwg.mxu0
      %2598 = vmatprep.subr.bf16.mxu0 %v2061
      %2599 = vmatpush1.bf16.msra.mxu0 %v2060
      %2600 = vmatprep.subr.bf16.mxu0 %v2070
      %2601 = vmatpush1.bf16.msra.mxu0 %v2069
      %2602 = vmatprep.subr.bf16.mxu0 %v2079
      %2603 = vmatpush1.bf16.msra.mxu0 %v2078
      %2604 = vmatprep.subr.bf16.mxu0 %v2088
      %2605 = vmatpush1.bf16.msra.mxu0 %v2087
      %2606 = vmatprep.subr.bf16.mxu0 %v2097
      %2607 = vmatpush1.bf16.msra.mxu0 %v2096
      %2608 = vmatprep.subr.bf16.mxu0 %v2106
      %2609 = vmatpush1.bf16.msra.mxu0 %v2105
      %2610 = vmatprep.subr.bf16.mxu0 %v2115
      %2611 = vmatpush1.bf16.msra.mxu0 %v2114
      %2612 = vmatprep.subr.bf16.mxu0 %v2124
      %2613 = vmatpush1.bf16.msra.mxu0 %v2123
      %2614 = vmatprep.subr.bf16.mxu0 %v2133
      %2615 = vmatpush1.bf16.msra.mxu0 %v2132
      %2616 = vmatprep.subr.bf16.mxu0 %v2142
      %2617 = vmatpush1.bf16.msra.mxu0 %v2141
      %2618 = vmatprep.subr.bf16.mxu0 %v2151
      %2619 = vmatpush1.bf16.msra.mxu0 %v2150
      %2620 = vmatprep.subr.bf16.mxu0 %v2160
      %2621 = vmatpush1.bf16.msra.mxu0 %v2159
      %2622 = vmatprep.subr.bf16.mxu0 %v2169
      %2623 = vmatpush1.bf16.msra.mxu0 %v2168
      %2624 = vmatprep.subr.bf16.mxu0 %v2178
      %2625 = vmatpush1.bf16.msra.mxu0 %v2177
      %2626 = vmatprep.subr.bf16.mxu0 %v2187
      %2627 = vmatpush1.bf16.msra.mxu0 %v2186
      %2628 = vmatprep.subr.bf16.mxu0 %v2196
      %2629 = vmatpush1.bf16.msra.mxu0 %v2195
      %2630 = vmatprep.mubr.bf16.mxu0 %v1551
      %2631 = vmatmul.mubr.bf16.gmra.mrb[0].mxu0 %v1550
      %v2632 = vpop.f32.mrb[0].mxu0
      %v2633 = vadd.f32 %v1531, %v2632
      %v2634 = vpop.f32.mrb[0].mxu0
      %v2635 = vadd.f32 %v1531, %v2634
      %v2636 = vpop.f32.mrb[0].mxu0
      %v2637 = vadd.f32 %v1536, %v2636
      %v2638 = vpop.f32.mrb[0].mxu0
      %v2639 = vadd.f32 %v1536, %v2638
      %2640 = vdwg.mxu0
      %2641 = vmatprep.subr.bf16.mxu0 %v2205
      %2642 = vmatpush1.bf16.msra.mxu0 %v2204
      %2643 = vmatprep.subr.bf16.mxu0 %v2214
      %2644 = vmatpush1.bf16.msra.mxu0 %v2213
      %2645 = vmatprep.subr.bf16.mxu0 %v2223
      %2646 = vmatpush1.bf16.msra.mxu0 %v2222
      %2647 = vmatprep.subr.bf16.mxu0 %v2232
      %2648 = vmatpush1.bf16.msra.mxu0 %v2231
      %2649 = vmatprep.subr.bf16.mxu0 %v2241
      %2650 = vmatpush1.bf16.msra.mxu0 %v2240
      %2651 = vmatprep.subr.bf16.mxu0 %v2250
      %2652 = vmatpush1.bf16.msra.mxu0 %v2249
      %2653 = vmatprep.subr.bf16.mxu0 %v2259
      %2654 = vmatpush1.bf16.msra.mxu0 %v2258
      %2655 = vmatprep.subr.bf16.mxu0 %v2268
      %2656 = vmatpush1.bf16.msra.mxu0 %v2267
      %2657 = vmatprep.subr.bf16.mxu0 %v2277
      %2658 = vmatpush1.bf16.msra.mxu0 %v2276
      %2659 = vmatprep.subr.bf16.mxu0 0
      %2660 = vmatpush1.bf16.msra.mxu0 0
      %2661 = vmatprep.subr.bf16.mxu0 0
      %2662 = vmatpush1.bf16.msra.mxu0 0
      %2663 = vmatprep.subr.bf16.mxu0 0
      %2664 = vmatpush1.bf16.msra.mxu0 0
      %2665 = vmatprep.subr.bf16.mxu0 0
      %2666 = vmatpush1.bf16.msra.mxu0 0
      %2667 = vmatprep.subr.bf16.mxu0 0
      %2668 = vmatpush1.bf16.msra.mxu0 0
      %2669 = vmatprep.subr.bf16.mxu0 0
      %2670 = vmatpush1.bf16.msra.mxu0 0
      %2671 = vmatprep.subr.bf16.mxu0 0
      %2672 = vmatpush1.bf16.msra.mxu0 0
      %2673 = vmatprep.mubr.bf16.mxu0 %v2510
      %2674 = vmatmul.mubr.bf16.gmra.mrb[0].mxu0 %v1552
      %v2675 = vpop.f32.mrb[0].mxu0
      %v2676 = vadd.f32 %v2633, %v2675
      %v2677 = vpop.f32.mrb[0].mxu0
      %v2678 = vadd.f32 %v2635, %v2677
      %v2679 = vpop.f32.mrb[0].mxu0
      %v2680 = vadd.f32 %v2637, %v2679
      %v2681 = vpop.f32.mrb[0].mxu0
      %v2682 = vadd.f32 %v2639, %v2681
      %2683 = vdwg.mxu0
      %2684 = vmatprep.subr.bf16.mxu0 %v2063
      %2685 = vmatpush1.bf16.msra.mxu0 %v2062
      %2686 = vmatprep.subr.bf16.mxu0 %v2072
      %2687 = vmatpush1.bf16.msra.mxu0 %v2071
      %2688 = vmatprep.subr.bf16.mxu0 %v2081
      %2689 = vmatpush1.bf16.msra.mxu0 %v2080
      %2690 = vmatprep.subr.bf16.mxu0 %v2090
      %2691 = vmatpush1.bf16.msra.mxu0 %v2089
      %2692 = vmatprep.subr.bf16.mxu0 %v2099
      %2693 = vmatpush1.bf16.msra.mxu0 %v2098
      %2694 = vmatprep.subr.bf16.mxu0 %v2108
      %2695 = vmatpush1.bf16.msra.mxu0 %v2107
      %2696 = vmatprep.subr.bf16.mxu0 %v2117
      %2697 = vmatpush1.bf16.msra.mxu0 %v2116
      %2698 = vmatprep.subr.bf16.mxu0 %v2126
      %2699 = vmatpush1.bf16.msra.mxu0 %v2125
      %2700 = vmatprep.subr.bf16.mxu0 %v2135
      %2701 = vmatpush1.bf16.msra.mxu0 %v2134
      %2702 = vmatprep.subr.bf16.mxu0 %v2144
      %2703 = vmatpush1.bf16.msra.mxu0 %v2143
      %2704 = vmatprep.subr.bf16.mxu0 %v2153
      %2705 = vmatpush1.bf16.msra.mxu0 %v2152
      %2706 = vmatprep.subr.bf16.mxu0 %v2162
      %2707 = vmatpush1.bf16.msra.mxu0 %v2161
      %2708 = vmatprep.subr.bf16.mxu0 %v2171
      %2709 = vmatpush1.bf16.msra.mxu0 %v2170
      %2710 = vmatprep.subr.bf16.mxu0 %v2180
      %2711 = vmatpush1.bf16.msra.mxu0 %v2179
      %2712 = vmatprep.subr.bf16.mxu0 %v2189
      %2713 = vmatpush1.bf16.msra.mxu0 %v2188
      %2714 = vmatprep.subr.bf16.mxu0 %v2198
      %2715 = vmatpush1.bf16.msra.mxu0 %v2197
      %2716 = vmatprep.mubr.bf16.mxu0 %v1551
      %2717 = vmatmul.mubr.bf16.gmra.mrb[0].mxu0 %v1550
      %v2718 = vpop.f32.mrb[0].mxu0
      %v2719 = vadd.f32 %v1531, %v2718
      %v2720 = vpop.f32.mrb[0].mxu0
      %v2721 = vadd.f32 %v1531, %v2720
      %v2722 = vpop.f32.mrb[0].mxu0
      %v2723 = vadd.f32 %v1536, %v2722
      %v2724 = vpop.f32.mrb[0].mxu0
      %v2725 = vadd.f32 %v1536, %v2724
      %2726 = vdwg.mxu0
      %2727 = vmatprep.subr.bf16.mxu0 %v2207
      %2728 = vmatpush1.bf16.msra.mxu0 %v2206
      %2729 = vmatprep.subr.bf16.mxu0 %v2216
      %2730 = vmatpush1.bf16.msra.mxu0 %v2215
      %2731 = vmatprep.subr.bf16.mxu0 %v2225
      %2732 = vmatpush1.bf16.msra.mxu0 %v2224
      %2733 = vmatprep.subr.bf16.mxu0 %v2234
      %2734 = vmatpush1.bf16.msra.mxu0 %v2233
      %2735 = vmatprep.subr.bf16.mxu0 %v2243
      %2736 = vmatpush1.bf16.msra.mxu0 %v2242
      %2737 = vmatprep.subr.bf16.mxu0 %v2252
      %2738 = vmatpush1.bf16.msra.mxu0 %v2251
      %2739 = vmatprep.subr.bf16.mxu0 %v2261
      %2740 = vmatpush1.bf16.msra.mxu0 %v2260
      %2741 = vmatprep.subr.bf16.mxu0 %v2270
      %2742 = vmatpush1.bf16.msra.mxu0 %v2269
      %2743 = vmatprep.subr.bf16.mxu0 %v2279
      %2744 = vmatpush1.bf16.msra.mxu0 %v2278
      %2745 = vmatprep.subr.bf16.mxu0 0
      %2746 = vmatpush1.bf16.msra.mxu0 0
      %2747 = vmatprep.subr.bf16.mxu0 0
      %2748 = vmatpush1.bf16.msra.mxu0 0
      %2749 = vmatprep.subr.bf16.mxu0 0
      %2750 = vmatpush1.bf16.msra.mxu0 0
      %2751 = vmatprep.subr.bf16.mxu0 0
      %2752 = vmatpush1.bf16.msra.mxu0 0
      %2753 = vmatprep.subr.bf16.mxu0 0
      %2754 = vmatpush1.bf16.msra.mxu0 0
      %2755 = vmatprep.subr.bf16.mxu0 0
      %2756 = vmatpush1.bf16.msra.mxu0 0
      %2757 = vmatprep.subr.bf16.mxu0 0
      %2758 = vmatpush1.bf16.msra.mxu0 0
      %2759 = vmatprep.mubr.bf16.mxu0 %v2510
      %2760 = vmatmul.mubr.bf16.gmra.mrb[0].mxu0 %v1552
      %v2761 = vpop.f32.mrb[0].mxu0
      %v2762 = vadd.f32 %v2719, %v2761
      %v2763 = vpop.f32.mrb[0].mxu0
      %v2764 = vadd.f32 %v2721, %v2763
      %v2765 = vpop.f32.mrb[0].mxu0
      %v2766 = vadd.f32 %v2723, %v2765
      %v2767 = vpop.f32.mrb[0].mxu0
      %v2768 = vadd.f32 %v2725, %v2767
      %2769 = vdwg.mxu0
      %2770 = vmatprep.subr.bf16.mxu0 %v2065
      %2771 = vmatpush1.bf16.msra.mxu0 %v2064
      %2772 = vmatprep.subr.bf16.mxu0 %v2074
      %2773 = vmatpush1.bf16.msra.mxu0 %v2073
      %2774 = vmatprep.subr.bf16.mxu0 %v2083
      %2775 = vmatpush1.bf16.msra.mxu0 %v2082
      %2776 = vmatprep.subr.bf16.mxu0 %v2092
      %2777 = vmatpush1.bf16.msra.mxu0 %v2091
      %2778 = vmatprep.subr.bf16.mxu0 %v2101
      %2779 = vmatpush1.bf16.msra.mxu0 %v2100
      %2780 = vmatprep.subr.bf16.mxu0 %v2110
      %2781 = vmatpush1.bf16.msra.mxu0 %v2109
      %2782 = vmatprep.subr.bf16.mxu0 %v2119
      %2783 = vmatpush1.bf16.msra.mxu0 %v2118
      %2784 = vmatprep.subr.bf16.mxu0 %v2128
      %2785 = vmatpush1.bf16.msra.mxu0 %v2127
      %2786 = vmatprep.subr.bf16.mxu0 %v2137
      %2787 = vmatpush1.bf16.msra.mxu0 %v2136
      %2788 = vmatprep.subr.bf16.mxu0 %v2146
      %2789 = vmatpush1.bf16.msra.mxu0 %v2145
      %2790 = vmatprep.subr.bf16.mxu0 %v2155
      %2791 = vmatpush1.bf16.msra.mxu0 %v2154
      %2792 = vmatprep.subr.bf16.mxu0 %v2164
      %2793 = vmatpush1.bf16.msra.mxu0 %v2163
      %2794 = vmatprep.subr.bf16.mxu0 %v2173
      %2795 = vmatpush1.bf16.msra.mxu0 %v2172
      %2796 = vmatprep.subr.bf16.mxu0 %v2182
      %2797 = vmatpush1.bf16.msra.mxu0 %v2181
      %2798 = vmatprep.subr.bf16.mxu0 %v2191
      %2799 = vmatpush1.bf16.msra.mxu0 %v2190
      %2800 = vmatprep.subr.bf16.mxu0 %v2200
      %2801 = vmatpush1.bf16.msra.mxu0 %v2199
      %2802 = vmatprep.mubr.bf16.mxu0 %v1551
      %2803 = vmatmul.mubr.bf16.gmra.mrb[0].mxu0 %v1550
      %v2804 = vpop.f32.mrb[0].mxu0
      %v2805 = vadd.f32 %v1531, %v2804
      %v2806 = vpop.f32.mrb[0].mxu0
      %v2807 = vadd.f32 %v1531, %v2806
      %v2808 = vpop.f32.mrb[0].mxu0
      %v2809 = vadd.f32 %v1536, %v2808
      %v2810 = vpop.f32.mrb[0].mxu0
      %v2811 = vadd.f32 %v1536, %v2810
      %2812 = vdwg.mxu0
      %2813 = vmatprep.subr.bf16.mxu0 %v2209
      %2814 = vmatpush1.bf16.msra.mxu0 %v2208
      %2815 = vmatprep.subr.bf16.mxu0 %v2218
      %2816 = vmatpush1.bf16.msra.mxu0 %v2217
      %2817 = vmatprep.subr.bf16.mxu0 %v2227
      %2818 = vmatpush1.bf16.msra.mxu0 %v2226
      %2819 = vmatprep.subr.bf16.mxu0 %v2236
      %2820 = vmatpush1.bf16.msra.mxu0 %v2235
      %2821 = vmatprep.subr.bf16.mxu0 %v2245
      %2822 = vmatpush1.bf16.msra.mxu0 %v2244
      %2823 = vmatprep.subr.bf16.mxu0 %v2254
      %2824 = vmatpush1.bf16.msra.mxu0 %v2253
      %2825 = vmatprep.subr.bf16.mxu0 %v2263
      %2826 = vmatpush1.bf16.msra.mxu0 %v2262
      %2827 = vmatprep.subr.bf16.mxu0 %v2272
      %2828 = vmatpush1.bf16.msra.mxu0 %v2271
      %2829 = vmatprep.subr.bf16.mxu0 %v2281
      %2830 = vmatpush1.bf16.msra.mxu0 %v2280
      %2831 = vmatprep.subr.bf16.mxu0 0
      %2832 = vmatpush1.bf16.msra.mxu0 0
      %2833 = vmatprep.subr.bf16.mxu0 0
      %2834 = vmatpush1.bf16.msra.mxu0 0
      %2835 = vmatprep.subr.bf16.mxu0 0
      %2836 = vmatpush1.bf16.msra.mxu0 0
      %2837 = vmatprep.subr.bf16.mxu0 0
      %2838 = vmatpush1.bf16.msra.mxu0 0
      %2839 = vmatprep.subr.bf16.mxu0 0
      %2840 = vmatpush1.bf16.msra.mxu0 0
      %2841 = vmatprep.subr.bf16.mxu0 0
      %2842 = vmatpush1.bf16.msra.mxu0 0
      %2843 = vmatprep.subr.bf16.mxu0 0
      %2844 = vmatpush1.bf16.msra.mxu0 0
      %2845 = vmatprep.mubr.bf16.mxu0 %v2510
      %2846 = vmatmul.mubr.bf16.gmra.mrb[0].mxu0 %v1552
      %v2847 = vpop.f32.mrb[0].mxu0
      %v2848 = vadd.f32 %v2805, %v2847
      %v2849 = vpop.f32.mrb[0].mxu0
      %v2850 = vadd.f32 %v2807, %v2849
      %v2851 = vpop.f32.mrb[0].mxu0
      %v2852 = vadd.f32 %v2809, %v2851
      %v2853 = vpop.f32.mrb[0].mxu0
      %v2854 = vadd.f32 %v2811, %v2853
      %2855 = vdwg.mxu0
      %2856 = vmatprep.subr.bf16.mxu0 0
      %2857 = vmatpush1.bf16.msra.mxu0 %v2066
      %2858 = vmatprep.subr.bf16.mxu0 0
      %2859 = vmatpush1.bf16.msra.mxu0 %v2075
      %2860 = vmatprep.subr.bf16.mxu0 0
      %2861 = vmatpush1.bf16.msra.mxu0 %v2084
      %2862 = vmatprep.subr.bf16.mxu0 0
      %2863 = vmatpush1.bf16.msra.mxu0 %v2093
      %2864 = vmatprep.subr.bf16.mxu0 0
      %2865 = vmatpush1.bf16.msra.mxu0 %v2102
      %2866 = vmatprep.subr.bf16.mxu0 0
      %2867 = vmatpush1.bf16.msra.mxu0 %v2111
      %2868 = vmatprep.subr.bf16.mxu0 0
      %2869 = vmatpush1.bf16.msra.mxu0 %v2120
      %2870 = vmatprep.subr.bf16.mxu0 0
      %2871 = vmatpush1.bf16.msra.mxu0 %v2129
      %2872 = vmatprep.subr.bf16.mxu0 0
      %2873 = vmatpush1.bf16.msra.mxu0 %v2138
      %2874 = vmatprep.subr.bf16.mxu0 0
      %2875 = vmatpush1.bf16.msra.mxu0 %v2147
      %2876 = vmatprep.subr.bf16.mxu0 0
      %2877 = vmatpush1.bf16.msra.mxu0 %v2156
      %2878 = vmatprep.subr.bf16.mxu0 0
      %2879 = vmatpush1.bf16.msra.mxu0 %v2165
      %2880 = vmatprep.subr.bf16.mxu0 0
      %2881 = vmatpush1.bf16.msra.mxu0 %v2174
      %2882 = vmatprep.subr.bf16.mxu0 0
      %2883 = vmatpush1.bf16.msra.mxu0 %v2183
      %2884 = vmatprep.subr.bf16.mxu0 0
      %2885 = vmatpush1.bf16.msra.mxu0 %v2192
      %2886 = vmatprep.subr.bf16.mxu0 0
      %2887 = vmatpush1.bf16.msra.mxu0 %v2201
      %2888 = vmatprep.mubr.bf16.mxu0 %v1551
      %2889 = vmatmul.mubr.bf16.gmra.mrb[0].mxu0 %v1550
      %v2890 = vpop.f32.mrb[0].mxu0
      %v2891 = vadd.f32 %v1531, %v2890
      %v2892 = vpop.f32.mrb[0].mxu0
      %v2893 = vpop.f32.mrb[0].mxu0
      %v2894 = vadd.f32 %v1536, %v2893
      %v2895 = vpop.f32.mrb[0].mxu0
      %2896 = vdwg.mxu0
      %2897 = vmatprep.subr.bf16.mxu0 0
      %2898 = vmatpush1.bf16.msra.mxu0 %v2210
      %2899 = vmatprep.subr.bf16.mxu0 0
      %2900 = vmatpush1.bf16.msra.mxu0 %v2219
      %2901 = vmatprep.subr.bf16.mxu0 0
      %2902 = vmatpush1.bf16.msra.mxu0 %v2228
      %2903 = vmatprep.subr.bf16.mxu0 0
      %2904 = vmatpush1.bf16.msra.mxu0 %v2237
      %2905 = vmatprep.subr.bf16.mxu0 0
      %2906 = vmatpush1.bf16.msra.mxu0 %v2246
      %2907 = vmatprep.subr.bf16.mxu0 0
      %2908 = vmatpush1.bf16.msra.mxu0 %v2255
      %2909 = vmatprep.subr.bf16.mxu0 0
      %2910 = vmatpush1.bf16.msra.mxu0 %v2264
      %2911 = vmatprep.subr.bf16.mxu0 0
      %2912 = vmatpush1.bf16.msra.mxu0 %v2273
      %2913 = vmatprep.subr.bf16.mxu0 0
      %2914 = vmatpush1.bf16.msra.mxu0 %v2282
      %2915 = vmatprep.subr.bf16.mxu0 0
      %2916 = vmatpush1.bf16.msra.mxu0 0
      %2917 = vmatprep.subr.bf16.mxu0 0
      %2918 = vmatpush1.bf16.msra.mxu0 0
      %2919 = vmatprep.subr.bf16.mxu0 0
      %2920 = vmatpush1.bf16.msra.mxu0 0
      %2921 = vmatprep.subr.bf16.mxu0 0
      %2922 = vmatpush1.bf16.msra.mxu0 0
      %2923 = vmatprep.subr.bf16.mxu0 0
      %2924 = vmatpush1.bf16.msra.mxu0 0
      %2925 = vmatprep.subr.bf16.mxu0 0
      %2926 = vmatpush1.bf16.msra.mxu0 0
      %2927 = vmatprep.subr.bf16.mxu0 0
      %2928 = vmatpush1.bf16.msra.mxu0 0
      %2929 = vmatprep.mubr.bf16.mxu0 %v2510
      %2930 = vmatmul.mubr.bf16.gmra.mrb[0].mxu0 %v1552
      %v2931 = vpop.f32.mrb[0].mxu0
      %v2932 = vadd.f32 %v2891, %v2931
      %v2933 = vpop.f32.mrb[0].mxu0
      %v2934 = vpop.f32.mrb[0].mxu0
      %v2935 = vadd.f32 %v2894, %v2934
      %v2936 = vpop.f32.mrb[0].mxu0
      %2937 = vdwg.mxu0
      %v2938 = vmax.f32 %v2590, 0.0
      %v2939 = vmax.f32 %v2592, 0.0
      %v2940 = vmax.f32 %v2676, 0.0
      %v2941 = vmax.f32 %v2678, 0.0
      %v2942 = vmax.f32 %v2762, 0.0
      %v2943 = vmax.f32 %v2764, 0.0
      %v2944 = vmax.f32 %v2848, 0.0
      %v2945 = vmax.f32 %v2850, 0.0
      %v2946 = vmax.f32 %v2932, 0.0
      %v2947 = vmax.f32 %v2594, 0.0
      %v2948 = vmax.f32 %v2596, 0.0
      %v2949 = vmax.f32 %v2680, 0.0
      %v2950 = vmax.f32 %v2682, 0.0
      %v2951 = vmax.f32 %v2766, 0.0
      %v2952 = vmax.f32 %v2768, 0.0
      %v2953 = vmax.f32 %v2852, 0.0
      %v2954 = vmax.f32 %v2854, 0.0
      %v2955 = vmax.f32 %v2935, 0.0
      %v2956 = vld [vmem:[%s3] sm:$0xff]
      %v2957 = vld [vmem:[%s3 + $0x8] sm:$0xff]
      %2959 = vset.pattern.permute.xlu0 0
      %2960 = vperm.xlu0 %2959, %v2956
      %v2961 = vpop.permute.xlu0 %2960
      %2964 = vset.pattern.permute.xlu0 0
      %2965 = vperm.xlu0 %2964, %v2957
      %v2966 = vpop.permute.xlu0 %2965
      %v2968 = vmul.f32 %v2938, %v2961
      %v2969 = vmul.f32 %v2939, %v2961
      %v2970 = vmul.f32 %v2940, %v2961
      %v2971 = vmul.f32 %v2941, %v2961
      %v2972 = vmul.f32 %v2942, %v2961
      %v2973 = vmul.f32 %v2943, %v2961
      %v2974 = vmul.f32 %v2944, %v2961
      %v2975 = vmul.f32 %v2945, %v2961
      %v2976 = vmul.f32 %v2946, %v2961
      %v2977 = vmul.f32 %v2947, %v2966
      %v2978 = vmul.f32 %v2948, %v2966
      %v2979 = vmul.f32 %v2949, %v2966
      %v2980 = vmul.f32 %v2950, %v2966
      %v2981 = vmul.f32 %v2951, %v2966
      %v2982 = vmul.f32 %v2952, %v2966
      %v2983 = vmul.f32 %v2953, %v2966
      %v2984 = vmul.f32 %v2954, %v2966
      %v2985 = vmul.f32 %v2955, %v2966
      %v2986 = vld [vmem:[%s4] sm:$0xff]
      %v2987 = vld [vmem:[%s4 + $0x8] sm:$0xff]
      %2989 = vset.pattern.permute.xlu0 0
      %2990 = vperm.xlu0 %2989, %v2986
      %v2991 = vpop.permute.xlu0 %2990
      %2994 = vset.pattern.permute.xlu0 0
      %2995 = vperm.xlu0 %2994, %v2987
      %v2996 = vpop.permute.xlu0 %2995
      %v2998 = vadd.f32 %v2968, %v2991
      %v2999 = vadd.f32 %v2969, %v2991
      %v3000 = vadd.f32 %v2970, %v2991
      %v3001 = vadd.f32 %v2971, %v2991
      %v3002 = vadd.f32 %v2972, %v2991
      %v3003 = vadd.f32 %v2973, %v2991
      %v3004 = vadd.f32 %v2974, %v2991
      %v3005 = vadd.f32 %v2975, %v2991
      %v3006 = vadd.f32 %v2976, %v2991
      %v3007 = vadd.f32 %v2977, %v2996
      %v3008 = vadd.f32 %v2978, %v2996
      %v3009 = vadd.f32 %v2979, %v2996
      %v3010 = vadd.f32 %v2980, %v2996
      %v3011 = vadd.f32 %v2981, %v2996
      %v3012 = vadd.f32 %v2982, %v2996
      %v3013 = vadd.f32 %v2983, %v2996
      %v3014 = vadd.f32 %v2984, %v2996
      %v3015 = vadd.f32 %v2985, %v2996
      %v3016 = vld [vmem:[%s17] sm:$0xff]
      %v3017 = vld [vmem:[%s17 + $0x8] sm:$0x1]
      %v3020 = vlaneseq
      %v3021 = vshrl.u32 %v3020, 7
      %v3022 = vsub.s32 0, %v3021
      %v3023 = vrot.slane %v3016, %v3022
      %v3024 = vlaneseq
      %v3025 = vshrl.u32 %v3024, 7
      %v3026 = vsub.s32 1, %v3025
      %v3027 = vrot.slane %v3016, %v3026
      %v3028 = vlaneseq
      %v3029 = vshrl.u32 %v3028, 7
      %v3030 = vsub.s32 2, %v3029
      %v3031 = vrot.slane %v3016, %v3030
      %v3032 = vlaneseq
      %v3033 = vshrl.u32 %v3032, 7
      %v3034 = vsub.s32 3, %v3033
      %v3035 = vrot.slane %v3016, %v3034
      %v3036 = vlaneseq
      %v3037 = vshrl.u32 %v3036, 7
      %v3038 = vsub.s32 4, %v3037
      %v3039 = vrot.slane %v3016, %v3038
      %v3040 = vlaneseq
      %v3041 = vshrl.u32 %v3040, 7
      %v3042 = vsub.s32 5, %v3041
      %v3043 = vrot.slane %v3016, %v3042
      %v3044 = vlaneseq
      %v3045 = vshrl.u32 %v3044, 7
      %v3046 = vsub.s32 6, %v3045
      %v3047 = vrot.slane %v3016, %v3046
      %v3048 = vlaneseq
      %v3049 = vshrl.u32 %v3048, 7
      %v3050 = vsub.s32 7, %v3049
      %v3051 = vrot.slane %v3016, %v3050
      %v3052 = vlaneseq
      %v3053 = vshrl.u32 %v3052, 7
      %v3054 = vsub.s32 0, %v3053
      %v3055 = vrot.slane %v3017, %v3054
      %v3065 = vmul.f32 %v2998, %v3023
      %v3066 = vmul.f32 %v2999, %v3027
      %v3067 = vmul.f32 %v3000, %v3031
      %v3068 = vmul.f32 %v3001, %v3035
      %v3069 = vmul.f32 %v3002, %v3039
      %v3070 = vmul.f32 %v3003, %v3043
      %v3071 = vmul.f32 %v3004, %v3047
      %v3072 = vmul.f32 %v3005, %v3051
      %v3073 = vmul.f32 %v3006, %v3055
      %v3074 = vmul.f32 %v3007, %v3023
      %v3075 = vmul.f32 %v3008, %v3027
      %v3076 = vmul.f32 %v3009, %v3031
      %v3077 = vmul.f32 %v3010, %v3035
      %v3078 = vmul.f32 %v3011, %v3039
      %v3079 = vmul.f32 %v3012, %v3043
      %v3080 = vmul.f32 %v3013, %v3047
      %v3081 = vmul.f32 %v3014, %v3051
      %v3082 = vmul.f32 %v3015, %v3055
      %v3083 = vpack.c.bf16 %v3074, %v3065
      %v3084 = vpack.c.bf16 %v3075, %v3066
      %v3085 = vpack.c.bf16 %v3076, %v3067
      %v3086 = vpack.c.bf16 %v3077, %v3068
      %v3087 = vpack.c.bf16 %v3078, %v3069
      %v3088 = vpack.c.bf16 %v3079, %v3070
      %v3089 = vpack.c.bf16 %v3080, %v3071
      %v3090 = vpack.c.bf16 %v3081, %v3072
      %v3091 = vpack.c.bf16 %v3082, %v3073
      %3101 = vrot.lane.b32.xlu0 %v3083, 127
      %v3102 = vpop.permute.xlu0 %3101
      %3103 = vrot.lane.b32.xlu0 %v3084, 127
      %v3104 = vpop.permute.xlu0 %3103
      %3105 = vrot.lane.b32.xlu0 %v3085, 127
      %v3106 = vpop.permute.xlu0 %3105
      %3107 = vrot.lane.b32.xlu0 %v3086, 127
      %v3108 = vpop.permute.xlu0 %3107
      %3109 = vrot.lane.b32.xlu0 %v3087, 127
      %v3110 = vpop.permute.xlu0 %3109
      %3111 = vrot.lane.b32.xlu0 %v3088, 127
      %v3112 = vpop.permute.xlu0 %3111
      %3113 = vrot.lane.b32.xlu0 %v3089, 127
      %v3114 = vpop.permute.xlu0 %3113
      %3115 = vrot.lane.b32.xlu0 %v3090, 127
      %v3116 = vpop.permute.xlu0 %3115
      %3117 = vrot.lane.b32.xlu0 %v3091, 127
      %v3118 = vpop.permute.xlu0 %3117
      %v3119 = vsel %vm796, %v777, %v3102
      %v3120 = vsel %vm796, %v3102, %v3104
      %v3121 = vsel %vm796, %v3104, %v3106
      %v3122 = vsel %vm796, %v3106, %v3108
      %v3123 = vsel %vm796, %v3108, %v3110
      %v3124 = vsel %vm796, %v3110, %v3112
      %v3125 = vsel %vm796, %v3112, %v3114
      %v3126 = vsel %vm796, %v3114, %v3116
      %v3127 = vsel %vm796, %v3116, %v3118
      %3128 = vrot.lane.b32.xlu0 %v3083, 126
      %v3129 = vpop.permute.xlu0 %3128
      %3130 = vrot.lane.b32.xlu0 %v3084, 126
      %v3131 = vpop.permute.xlu0 %3130
      %3132 = vrot.lane.b32.xlu0 %v3085, 126
      %v3133 = vpop.permute.xlu0 %3132
      %3134 = vrot.lane.b32.xlu0 %v3086, 126
      %v3135 = vpop.permute.xlu0 %3134
      %3136 = vrot.lane.b32.xlu0 %v3087, 126
      %v3137 = vpop.permute.xlu0 %3136
      %3138 = vrot.lane.b32.xlu0 %v3088, 126
      %v3139 = vpop.permute.xlu0 %3138
      %3140 = vrot.lane.b32.xlu0 %v3089, 126
      %v3141 = vpop.permute.xlu0 %3140
      %3142 = vrot.lane.b32.xlu0 %v3090, 126
      %v3143 = vpop.permute.xlu0 %3142
      %3144 = vrot.lane.b32.xlu0 %v3091, 126
      %v3145 = vpop.permute.xlu0 %3144
      %v3146 = vsel %vm826, %v807, %v3129
      %v3147 = vsel %vm826, %v3129, %v3131
      %v3148 = vsel %vm826, %v3131, %v3133
      %v3149 = vsel %vm826, %v3133, %v3135
      %v3150 = vsel %vm826, %v3135, %v3137
      %v3151 = vsel %vm826, %v3137, %v3139
      %v3152 = vsel %vm826, %v3139, %v3141
      %v3153 = vsel %vm826, %v3141, %v3143
      %v3154 = vsel %vm826, %v3143, %v3145
      %3155 = vrot.lane.b32.xlu0 %v3083, 125
      %v3156 = vpop.permute.xlu0 %3155
      %3157 = vrot.lane.b32.xlu0 %v3084, 125
      %v3158 = vpop.permute.xlu0 %3157
      %3159 = vrot.lane.b32.xlu0 %v3085, 125
      %v3160 = vpop.permute.xlu0 %3159
      %3161 = vrot.lane.b32.xlu0 %v3086, 125
      %v3162 = vpop.permute.xlu0 %3161
      %3163 = vrot.lane.b32.xlu0 %v3087, 125
      %v3164 = vpop.permute.xlu0 %3163
      %3165 = vrot.lane.b32.xlu0 %v3088, 125
      %v3166 = vpop.permute.xlu0 %3165
      %3167 = vrot.lane.b32.xlu0 %v3089, 125
      %v3168 = vpop.permute.xlu0 %3167
      %3169 = vrot.lane.b32.xlu0 %v3090, 125
      %v3170 = vpop.permute.xlu0 %3169
      %3171 = vrot.lane.b32.xlu0 %v3091, 125
      %v3172 = vpop.permute.xlu0 %3171
      %v3173 = vsel %vm856, %v837, %v3156
      %v3174 = vsel %vm856, %v3156, %v3158
      %v3175 = vsel %vm856, %v3158, %v3160
      %v3176 = vsel %vm856, %v3160, %v3162
      %v3177 = vsel %vm856, %v3162, %v3164
      %v3178 = vsel %vm856, %v3164, %v3166
      %v3179 = vsel %vm856, %v3166, %v3168
      %v3180 = vsel %vm856, %v3168, %v3170
      %v3181 = vsel %vm856, %v3170, %v3172
      %3182 = vrot.lane.b32.xlu0 %v3083, 124
      %v3183 = vpop.permute.xlu0 %3182
      %3184 = vrot.lane.b32.xlu0 %v3084, 124
      %v3185 = vpop.permute.xlu0 %3184
      %3186 = vrot.lane.b32.xlu0 %v3085, 124
      %v3187 = vpop.permute.xlu0 %3186
      %3188 = vrot.lane.b32.xlu0 %v3086, 124
      %v3189 = vpop.permute.xlu0 %3188
      %3190 = vrot.lane.b32.xlu0 %v3087, 124
      %v3191 = vpop.permute.xlu0 %3190
      %3192 = vrot.lane.b32.xlu0 %v3088, 124
      %v3193 = vpop.permute.xlu0 %3192
      %3194 = vrot.lane.b32.xlu0 %v3089, 124
      %v3195 = vpop.permute.xlu0 %3194
      %3196 = vrot.lane.b32.xlu0 %v3090, 124
      %v3197 = vpop.permute.xlu0 %3196
      %3198 = vrot.lane.b32.xlu0 %v3091, 124
      %v3199 = vpop.permute.xlu0 %3198
      %v3200 = vsel %vm886, %v867, %v3183
      %v3201 = vsel %vm886, %v3183, %v3185
      %v3202 = vsel %vm886, %v3185, %v3187
      %v3203 = vsel %vm886, %v3187, %v3189
      %v3204 = vsel %vm886, %v3189, %v3191
      %v3205 = vsel %vm886, %v3191, %v3193
      %v3206 = vsel %vm886, %v3193, %v3195
      %v3207 = vsel %vm886, %v3195, %v3197
      %v3208 = vsel %vm886, %v3197, %v3199
      %3209 = vrot.lane.b32.xlu0 %v3083, 94
      %v3210 = vpop.permute.xlu0 %3209
      %3211 = vrot.lane.b32.xlu0 %v3084, 94
      %v3212 = vpop.permute.xlu0 %3211
      %3213 = vrot.lane.b32.xlu0 %v3085, 94
      %v3214 = vpop.permute.xlu0 %3213
      %3215 = vrot.lane.b32.xlu0 %v3086, 94
      %v3216 = vpop.permute.xlu0 %3215
      %3217 = vrot.lane.b32.xlu0 %v3087, 94
      %v3218 = vpop.permute.xlu0 %3217
      %3219 = vrot.lane.b32.xlu0 %v3088, 94
      %v3220 = vpop.permute.xlu0 %3219
      %3221 = vrot.lane.b32.xlu0 %v3089, 94
      %v3222 = vpop.permute.xlu0 %3221
      %3223 = vrot.lane.b32.xlu0 %v3090, 94
      %v3224 = vpop.permute.xlu0 %3223
      %3225 = vrot.lane.b32.xlu0 %v3091, 94
      %v3226 = vpop.permute.xlu0 %3225
      %v3227 = vsel %vm916, %v897, %v3210
      %v3228 = vsel %vm916, %v3210, %v3212
      %v3229 = vsel %vm916, %v3212, %v3214
      %v3230 = vsel %vm916, %v3214, %v3216
      %v3231 = vsel %vm916, %v3216, %v3218
      %v3232 = vsel %vm916, %v3218, %v3220
      %v3233 = vsel %vm916, %v3220, %v3222
      %v3234 = vsel %vm916, %v3222, %v3224
      %v3235 = vsel %vm916, %v3224, %v3226
      %3236 = vrot.lane.b32.xlu0 %v3083, 93
      %v3237 = vpop.permute.xlu0 %3236
      %3238 = vrot.lane.b32.xlu0 %v3084, 93
      %v3239 = vpop.permute.xlu0 %3238
      %3240 = vrot.lane.b32.xlu0 %v3085, 93
      %v3241 = vpop.permute.xlu0 %3240
      %3242 = vrot.lane.b32.xlu0 %v3086, 93
      %v3243 = vpop.permute.xlu0 %3242
      %3244 = vrot.lane.b32.xlu0 %v3087, 93
      %v3245 = vpop.permute.xlu0 %3244
      %3246 = vrot.lane.b32.xlu0 %v3088, 93
      %v3247 = vpop.permute.xlu0 %3246
      %3248 = vrot.lane.b32.xlu0 %v3089, 93
      %v3249 = vpop.permute.xlu0 %3248
      %3250 = vrot.lane.b32.xlu0 %v3090, 93
      %v3251 = vpop.permute.xlu0 %3250
      %3252 = vrot.lane.b32.xlu0 %v3091, 93
      %v3253 = vpop.permute.xlu0 %3252
      %v3254 = vsel %vm946, %v927, %v3237
      %v3255 = vsel %vm946, %v3237, %v3239
      %v3256 = vsel %vm946, %v3239, %v3241
      %v3257 = vsel %vm946, %v3241, %v3243
      %v3258 = vsel %vm946, %v3243, %v3245
      %v3259 = vsel %vm946, %v3245, %v3247
      %v3260 = vsel %vm946, %v3247, %v3249
      %v3261 = vsel %vm946, %v3249, %v3251
      %v3262 = vsel %vm946, %v3251, %v3253
      %3263 = vrot.lane.b32.xlu0 %v3083, 92
      %v3264 = vpop.permute.xlu0 %3263
      %3265 = vrot.lane.b32.xlu0 %v3084, 92
      %v3266 = vpop.permute.xlu0 %3265
      %3267 = vrot.lane.b32.xlu0 %v3085, 92
      %v3268 = vpop.permute.xlu0 %3267
      %3269 = vrot.lane.b32.xlu0 %v3086, 92
      %v3270 = vpop.permute.xlu0 %3269
      %3271 = vrot.lane.b32.xlu0 %v3087, 92
      %v3272 = vpop.permute.xlu0 %3271
      %3273 = vrot.lane.b32.xlu0 %v3088, 92
      %v3274 = vpop.permute.xlu0 %3273
      %3275 = vrot.lane.b32.xlu0 %v3089, 92
      %v3276 = vpop.permute.xlu0 %3275
      %3277 = vrot.lane.b32.xlu0 %v3090, 92
      %v3278 = vpop.permute.xlu0 %3277
      %3279 = vrot.lane.b32.xlu0 %v3091, 92
      %v3280 = vpop.permute.xlu0 %3279
      %v3281 = vsel %vm976, %v957, %v3264
      %v3282 = vsel %vm976, %v3264, %v3266
      %v3283 = vsel %vm976, %v3266, %v3268
      %v3284 = vsel %vm976, %v3268, %v3270
      %v3285 = vsel %vm976, %v3270, %v3272
      %v3286 = vsel %vm976, %v3272, %v3274
      %v3287 = vsel %vm976, %v3274, %v3276
      %v3288 = vsel %vm976, %v3276, %v3278
      %v3289 = vsel %vm976, %v3278, %v3280
      %3290 = vrot.lane.b32.xlu0 %v3083, 91
      %v3291 = vpop.permute.xlu0 %3290
      %3292 = vrot.lane.b32.xlu0 %v3084, 91
      %v3293 = vpop.permute.xlu0 %3292
      %3294 = vrot.lane.b32.xlu0 %v3085, 91
      %v3295 = vpop.permute.xlu0 %3294
      %3296 = vrot.lane.b32.xlu0 %v3086, 91
      %v3297 = vpop.permute.xlu0 %3296
      %3298 = vrot.lane.b32.xlu0 %v3087, 91
      %v3299 = vpop.permute.xlu0 %3298
      %3300 = vrot.lane.b32.xlu0 %v3088, 91
      %v3301 = vpop.permute.xlu0 %3300
      %3302 = vrot.lane.b32.xlu0 %v3089, 91
      %v3303 = vpop.permute.xlu0 %3302
      %3304 = vrot.lane.b32.xlu0 %v3090, 91
      %v3305 = vpop.permute.xlu0 %3304
      %3306 = vrot.lane.b32.xlu0 %v3091, 91
      %v3307 = vpop.permute.xlu0 %3306
      %v3308 = vsel %vm1006, %v987, %v3291
      %v3309 = vsel %vm1006, %v3291, %v3293
      %v3310 = vsel %vm1006, %v3293, %v3295
      %v3311 = vsel %vm1006, %v3295, %v3297
      %v3312 = vsel %vm1006, %v3297, %v3299
      %v3313 = vsel %vm1006, %v3299, %v3301
      %v3314 = vsel %vm1006, %v3301, %v3303
      %v3315 = vsel %vm1006, %v3303, %v3305
      %v3316 = vsel %vm1006, %v3305, %v3307
      %3317 = vrot.lane.b32.xlu0 %v3083, 90
      %v3318 = vpop.permute.xlu0 %3317
      %3319 = vrot.lane.b32.xlu0 %v3084, 90
      %v3320 = vpop.permute.xlu0 %3319
      %3321 = vrot.lane.b32.xlu0 %v3085, 90
      %v3322 = vpop.permute.xlu0 %3321
      %3323 = vrot.lane.b32.xlu0 %v3086, 90
      %v3324 = vpop.permute.xlu0 %3323
      %3325 = vrot.lane.b32.xlu0 %v3087, 90
      %v3326 = vpop.permute.xlu0 %3325
      %3327 = vrot.lane.b32.xlu0 %v3088, 90
      %v3328 = vpop.permute.xlu0 %3327
      %3329 = vrot.lane.b32.xlu0 %v3089, 90
      %v3330 = vpop.permute.xlu0 %3329
      %3331 = vrot.lane.b32.xlu0 %v3090, 90
      %v3332 = vpop.permute.xlu0 %3331
      %3333 = vrot.lane.b32.xlu0 %v3091, 90
      %v3334 = vpop.permute.xlu0 %3333
      %v3335 = vsel %vm1036, %v1017, %v3318
      %v3336 = vsel %vm1036, %v3318, %v3320
      %v3337 = vsel %vm1036, %v3320, %v3322
      %v3338 = vsel %vm1036, %v3322, %v3324
      %v3339 = vsel %vm1036, %v3324, %v3326
      %v3340 = vsel %vm1036, %v3326, %v3328
      %v3341 = vsel %vm1036, %v3328, %v3330
      %v3342 = vsel %vm1036, %v3330, %v3332
      %v3343 = vsel %vm1036, %v3332, %v3334
      %3344 = vrot.lane.b32.xlu0 %v3083, 60
      %v3345 = vpop.permute.xlu0 %3344
      %3346 = vrot.lane.b32.xlu0 %v3084, 60
      %v3347 = vpop.permute.xlu0 %3346
      %3348 = vrot.lane.b32.xlu0 %v3085, 60
      %v3349 = vpop.permute.xlu0 %3348
      %3350 = vrot.lane.b32.xlu0 %v3086, 60
      %v3351 = vpop.permute.xlu0 %3350
      %3352 = vrot.lane.b32.xlu0 %v3087, 60
      %v3353 = vpop.permute.xlu0 %3352
      %3354 = vrot.lane.b32.xlu0 %v3088, 60
      %v3355 = vpop.permute.xlu0 %3354
      %3356 = vrot.lane.b32.xlu0 %v3089, 60
      %v3357 = vpop.permute.xlu0 %3356
      %3358 = vrot.lane.b32.xlu0 %v3090, 60
      %v3359 = vpop.permute.xlu0 %3358
      %3360 = vrot.lane.b32.xlu0 %v3091, 60
      %v3361 = vpop.permute.xlu0 %3360
      %v3362 = vsel %vm1066, %v1047, %v3345
      %v3363 = vsel %vm1066, %v3345, %v3347
      %v3364 = vsel %vm1066, %v3347, %v3349
      %v3365 = vsel %vm1066, %v3349, %v3351
      %v3366 = vsel %vm1066, %v3351, %v3353
      %v3367 = vsel %vm1066, %v3353, %v3355
      %v3368 = vsel %vm1066, %v3355, %v3357
      %v3369 = vsel %vm1066, %v3357, %v3359
      %v3370 = vsel %vm1066, %v3359, %v3361
      %3371 = vrot.lane.b32.xlu0 %v3083, 59
      %v3372 = vpop.permute.xlu0 %3371
      %3373 = vrot.lane.b32.xlu0 %v3084, 59
      %v3374 = vpop.permute.xlu0 %3373
      %3375 = vrot.lane.b32.xlu0 %v3085, 59
      %v3376 = vpop.permute.xlu0 %3375
      %3377 = vrot.lane.b32.xlu0 %v3086, 59
      %v3378 = vpop.permute.xlu0 %3377
      %3379 = vrot.lane.b32.xlu0 %v3087, 59
      %v3380 = vpop.permute.xlu0 %3379
      %3381 = vrot.lane.b32.xlu0 %v3088, 59
      %v3382 = vpop.permute.xlu0 %3381
      %3383 = vrot.lane.b32.xlu0 %v3089, 59
      %v3384 = vpop.permute.xlu0 %3383
      %3385 = vrot.lane.b32.xlu0 %v3090, 59
      %v3386 = vpop.permute.xlu0 %3385
      %3387 = vrot.lane.b32.xlu0 %v3091, 59
      %v3388 = vpop.permute.xlu0 %3387
      %v3389 = vsel %vm1096, %v1077, %v3372
      %v3390 = vsel %vm1096, %v3372, %v3374
      %v3391 = vsel %vm1096, %v3374, %v3376
      %v3392 = vsel %vm1096, %v3376, %v3378
      %v3393 = vsel %vm1096, %v3378, %v3380
      %v3394 = vsel %vm1096, %v3380, %v3382
      %v3395 = vsel %vm1096, %v3382, %v3384
      %v3396 = vsel %vm1096, %v3384, %v3386
      %v3397 = vsel %vm1096, %v3386, %v3388
      %3398 = vrot.lane.b32.xlu0 %v3083, 58
      %v3399 = vpop.permute.xlu0 %3398
      %3400 = vrot.lane.b32.xlu0 %v3084, 58
      %v3401 = vpop.permute.xlu0 %3400
      %3402 = vrot.lane.b32.xlu0 %v3085, 58
      %v3403 = vpop.permute.xlu0 %3402
      %3404 = vrot.lane.b32.xlu0 %v3086, 58
      %v3405 = vpop.permute.xlu0 %3404
      %3406 = vrot.lane.b32.xlu0 %v3087, 58
      %v3407 = vpop.permute.xlu0 %3406
      %3408 = vrot.lane.b32.xlu0 %v3088, 58
      %v3409 = vpop.permute.xlu0 %3408
      %3410 = vrot.lane.b32.xlu0 %v3089, 58
      %v3411 = vpop.permute.xlu0 %3410
      %3412 = vrot.lane.b32.xlu0 %v3090, 58
      %v3413 = vpop.permute.xlu0 %3412
      %3414 = vrot.lane.b32.xlu0 %v3091, 58
      %v3415 = vpop.permute.xlu0 %3414
      %v3416 = vsel %vm1124, %v3399, %v3401
      %v3417 = vsel %vm1124, %v3401, %v3403
      %v3418 = vsel %vm1124, %v3403, %v3405
      %v3419 = vsel %vm1124, %v3405, %v3407
      %v3420 = vsel %vm1124, %v3407, %v3409
      %v3421 = vsel %vm1124, %v3409, %v3411
      %v3422 = vsel %vm1124, %v3411, %v3413
      %v3423 = vsel %vm1124, %v3413, %v3415
      %3424 = vrot.lane.b32.xlu0 %v3083, 57
      %v3425 = vpop.permute.xlu0 %3424
      %3426 = vrot.lane.b32.xlu0 %v3084, 57
      %v3427 = vpop.permute.xlu0 %3426
      %3428 = vrot.lane.b32.xlu0 %v3085, 57
      %v3429 = vpop.permute.xlu0 %3428
      %3430 = vrot.lane.b32.xlu0 %v3086, 57
      %v3431 = vpop.permute.xlu0 %3430
      %3432 = vrot.lane.b32.xlu0 %v3087, 57
      %v3433 = vpop.permute.xlu0 %3432
      %3434 = vrot.lane.b32.xlu0 %v3088, 57
      %v3435 = vpop.permute.xlu0 %3434
      %3436 = vrot.lane.b32.xlu0 %v3089, 57
      %v3437 = vpop.permute.xlu0 %3436
      %3438 = vrot.lane.b32.xlu0 %v3090, 57
      %v3439 = vpop.permute.xlu0 %3438
      %3440 = vrot.lane.b32.xlu0 %v3091, 57
      %v3441 = vpop.permute.xlu0 %3440
      %v3442 = vsel %vm1153, %v3425, %v3427
      %v3443 = vsel %vm1153, %v3427, %v3429
      %v3444 = vsel %vm1153, %v3429, %v3431
      %v3445 = vsel %vm1153, %v3431, %v3433
      %v3446 = vsel %vm1153, %v3433, %v3435
      %v3447 = vsel %vm1153, %v3435, %v3437
      %v3448 = vsel %vm1153, %v3437, %v3439
      %v3449 = vsel %vm1153, %v3439, %v3441
      %v3450 = vsel %vm1153, %v3441, %v1152
      %3451 = vrot.lane.b32.xlu0 %v3083, 56
      %v3452 = vpop.permute.xlu0 %3451
      %3453 = vrot.lane.b32.xlu0 %v3084, 56
      %v3454 = vpop.permute.xlu0 %3453
      %3455 = vrot.lane.b32.xlu0 %v3085, 56
      %v3456 = vpop.permute.xlu0 %3455
      %3457 = vrot.lane.b32.xlu0 %v3086, 56
      %v3458 = vpop.permute.xlu0 %3457
      %3459 = vrot.lane.b32.xlu0 %v3087, 56
      %v3460 = vpop.permute.xlu0 %3459
      %3461 = vrot.lane.b32.xlu0 %v3088, 56
      %v3462 = vpop.permute.xlu0 %3461
      %3463 = vrot.lane.b32.xlu0 %v3089, 56
      %v3464 = vpop.permute.xlu0 %3463
      %3465 = vrot.lane.b32.xlu0 %v3090, 56
      %v3466 = vpop.permute.xlu0 %3465
      %3467 = vrot.lane.b32.xlu0 %v3091, 56
      %v3468 = vpop.permute.xlu0 %3467
      %v3469 = vsel %vm1183, %v3452, %v3454
      %v3470 = vsel %vm1183, %v3454, %v3456
      %v3471 = vsel %vm1183, %v3456, %v3458
      %v3472 = vsel %vm1183, %v3458, %v3460
      %v3473 = vsel %vm1183, %v3460, %v3462
      %v3474 = vsel %vm1183, %v3462, %v3464
      %v3475 = vsel %vm1183, %v3464, %v3466
      %v3476 = vsel %vm1183, %v3466, %v3468
      %v3477 = vsel %vm1183, %v3468, %v1182
      %3478 = vrot.lane.b32.xlu0 %v3083, 26
      %v3479 = vpop.permute.xlu0 %3478
      %3480 = vrot.lane.b32.xlu0 %v3084, 26
      %v3481 = vpop.permute.xlu0 %3480
      %3482 = vrot.lane.b32.xlu0 %v3085, 26
      %v3483 = vpop.permute.xlu0 %3482
      %3484 = vrot.lane.b32.xlu0 %v3086, 26
      %v3485 = vpop.permute.xlu0 %3484
      %3486 = vrot.lane.b32.xlu0 %v3087, 26
      %v3487 = vpop.permute.xlu0 %3486
      %3488 = vrot.lane.b32.xlu0 %v3088, 26
      %v3489 = vpop.permute.xlu0 %3488
      %3490 = vrot.lane.b32.xlu0 %v3089, 26
      %v3491 = vpop.permute.xlu0 %3490
      %3492 = vrot.lane.b32.xlu0 %v3090, 26
      %v3493 = vpop.permute.xlu0 %3492
      %3494 = vrot.lane.b32.xlu0 %v3091, 26
      %v3495 = vpop.permute.xlu0 %3494
      %v3496 = vsel %vm1213, %v3479, %v3481
      %v3497 = vsel %vm1213, %v3481, %v3483
      %v3498 = vsel %vm1213, %v3483, %v3485
      %v3499 = vsel %vm1213, %v3485, %v3487
      %v3500 = vsel %vm1213, %v3487, %v3489
      %v3501 = vsel %vm1213, %v3489, %v3491
      %v3502 = vsel %vm1213, %v3491, %v3493
      %v3503 = vsel %vm1213, %v3493, %v3495
      %v3504 = vsel %vm1213, %v3495, %v1212
      %v3505 = vsel %vm796, %v3118, %v777
      %v3506 = vsel %vm826, %v3145, %v807
      %v3507 = vsel %vm856, %v3172, %v837
      %3508 = vrot.lane.b32.xlu0 %v3083, 95
      %v3509 = vpop.permute.xlu0 %3508
      %3510 = vrot.lane.b32.xlu0 %v3084, 95
      %v3511 = vpop.permute.xlu0 %3510
      %3512 = vrot.lane.b32.xlu0 %v3085, 95
      %v3513 = vpop.permute.xlu0 %3512
      %3514 = vrot.lane.b32.xlu0 %v3086, 95
      %v3515 = vpop.permute.xlu0 %3514
      %3516 = vrot.lane.b32.xlu0 %v3087, 95
      %v3517 = vpop.permute.xlu0 %3516
      %3518 = vrot.lane.b32.xlu0 %v3088, 95
      %v3519 = vpop.permute.xlu0 %3518
      %3520 = vrot.lane.b32.xlu0 %v3089, 95
      %v3521 = vpop.permute.xlu0 %3520
      %3522 = vrot.lane.b32.xlu0 %v3090, 95
      %v3523 = vpop.permute.xlu0 %3522
      %3524 = vrot.lane.b32.xlu0 %v3091, 95
      %v3525 = vpop.permute.xlu0 %3524
      %v3526 = vsel %vm1246, %v3509, %v3511
      %v3527 = vsel %vm1246, %v3511, %v3513
      %v3528 = vsel %vm1246, %v3513, %v3515
      %v3529 = vsel %vm1246, %v3515, %v3517
      %v3530 = vsel %vm1246, %v3517, %v3519
      %v3531 = vsel %vm1246, %v3519, %v3521
      %v3532 = vsel %vm1246, %v3521, %v3523
      %v3533 = vsel %vm1246, %v3523, %v3525
      %v3534 = vsel %vm1246, %v3525, %v1245
      %v3535 = vsel %vm916, %v3226, %v897
      %v3536 = vsel %vm946, %v3253, %v927
      %v3537 = vsel %vm976, %v3280, %v957
      %v3538 = vsel %vm1006, %v3307, %v987
      %3539 = vrot.lane.b32.xlu0 %v3083, 25
      %v3540 = vpop.permute.xlu0 %3539
      %3541 = vrot.lane.b32.xlu0 %v3084, 25
      %v3542 = vpop.permute.xlu0 %3541
      %3543 = vrot.lane.b32.xlu0 %v3085, 25
      %v3544 = vpop.permute.xlu0 %3543
      %3545 = vrot.lane.b32.xlu0 %v3086, 25
      %v3546 = vpop.permute.xlu0 %3545
      %3547 = vrot.lane.b32.xlu0 %v3087, 25
      %v3548 = vpop.permute.xlu0 %3547
      %3549 = vrot.lane.b32.xlu0 %v3088, 25
      %v3550 = vpop.permute.xlu0 %3549
      %3551 = vrot.lane.b32.xlu0 %v3089, 25
      %v3552 = vpop.permute.xlu0 %3551
      %3553 = vrot.lane.b32.xlu0 %v3090, 25
      %v3554 = vpop.permute.xlu0 %3553
      %3555 = vrot.lane.b32.xlu0 %v3091, 25
      %v3556 = vpop.permute.xlu0 %3555
      %3557 = vrot.lane.b32.xlu0 %v3120, 25
      %v3558 = vpop.permute.xlu0 %3557
      %3559 = vrot.lane.b32.xlu0 %v3121, 25
      %v3560 = vpop.permute.xlu0 %3559
      %3561 = vrot.lane.b32.xlu0 %v3122, 25
      %v3562 = vpop.permute.xlu0 %3561
      %3563 = vrot.lane.b32.xlu0 %v3123, 25
      %v3564 = vpop.permute.xlu0 %3563
      %3565 = vrot.lane.b32.xlu0 %v3124, 25
      %v3566 = vpop.permute.xlu0 %3565
      %3567 = vrot.lane.b32.xlu0 %v3125, 25
      %v3568 = vpop.permute.xlu0 %3567
      %3569 = vrot.lane.b32.xlu0 %v3126, 25
      %v3570 = vpop.permute.xlu0 %3569
      %3571 = vrot.lane.b32.xlu0 %v3127, 25
      %v3572 = vpop.permute.xlu0 %3571
      %3573 = vrot.lane.b32.xlu0 %v3505, 25
      %v3574 = vpop.permute.xlu0 %3573
      %3575 = vrot.lane.b32.xlu0 %v3147, 25
      %v3576 = vpop.permute.xlu0 %3575
      %3577 = vrot.lane.b32.xlu0 %v3148, 25
      %v3578 = vpop.permute.xlu0 %3577
      %3579 = vrot.lane.b32.xlu0 %v3149, 25
      %v3580 = vpop.permute.xlu0 %3579
      %3581 = vrot.lane.b32.xlu0 %v3150, 25
      %v3582 = vpop.permute.xlu0 %3581
      %3583 = vrot.lane.b32.xlu0 %v3151, 25
      %v3584 = vpop.permute.xlu0 %3583
      %3585 = vrot.lane.b32.xlu0 %v3152, 25
      %v3586 = vpop.permute.xlu0 %3585
      %3587 = vrot.lane.b32.xlu0 %v3153, 25
      %v3588 = vpop.permute.xlu0 %3587
      %3589 = vrot.lane.b32.xlu0 %v3154, 25
      %v3590 = vpop.permute.xlu0 %3589
      %3591 = vrot.lane.b32.xlu0 %v3506, 25
      %v3592 = vpop.permute.xlu0 %3591
      %3593 = vrot.lane.b32.xlu0 %v3174, 25
      %v3594 = vpop.permute.xlu0 %3593
      %3595 = vrot.lane.b32.xlu0 %v3175, 25
      %v3596 = vpop.permute.xlu0 %3595
      %3597 = vrot.lane.b32.xlu0 %v3176, 25
      %v3598 = vpop.permute.xlu0 %3597
      %3599 = vrot.lane.b32.xlu0 %v3177, 25
      %v3600 = vpop.permute.xlu0 %3599
      %3601 = vrot.lane.b32.xlu0 %v3178, 25
      %v3602 = vpop.permute.xlu0 %3601
      %3603 = vrot.lane.b32.xlu0 %v3179, 25
      %v3604 = vpop.permute.xlu0 %3603
      %3605 = vrot.lane.b32.xlu0 %v3180, 25
      %v3606 = vpop.permute.xlu0 %3605
      %3607 = vrot.lane.b32.xlu0 %v3181, 25
      %v3608 = vpop.permute.xlu0 %3607
      %3609 = vrot.lane.b32.xlu0 %v3507, 25
      %v3610 = vpop.permute.xlu0 %3609
      %3611 = vrot.lane.b32.xlu0 %v3526, 25
      %v3612 = vpop.permute.xlu0 %3611
      %3613 = vrot.lane.b32.xlu0 %v3527, 25
      %v3614 = vpop.permute.xlu0 %3613
      %3615 = vrot.lane.b32.xlu0 %v3528, 25
      %v3616 = vpop.permute.xlu0 %3615
      %3617 = vrot.lane.b32.xlu0 %v3529, 25
      %v3618 = vpop.permute.xlu0 %3617
      %3619 = vrot.lane.b32.xlu0 %v3530, 25
      %v3620 = vpop.permute.xlu0 %3619
      %3621 = vrot.lane.b32.xlu0 %v3531, 25
      %v3622 = vpop.permute.xlu0 %3621
      %3623 = vrot.lane.b32.xlu0 %v3532, 25
      %v3624 = vpop.permute.xlu0 %3623
      %3625 = vrot.lane.b32.xlu0 %v3533, 25
      %v3626 = vpop.permute.xlu0 %3625
      %3627 = vrot.lane.b32.xlu0 %v3534, 25
      %v3628 = vpop.permute.xlu0 %3627
      %3629 = vrot.lane.b32.xlu0 %v3228, 25
      %v3630 = vpop.permute.xlu0 %3629
      %3631 = vrot.lane.b32.xlu0 %v3229, 25
      %v3632 = vpop.permute.xlu0 %3631
      %3633 = vrot.lane.b32.xlu0 %v3230, 25
      %v3634 = vpop.permute.xlu0 %3633
      %3635 = vrot.lane.b32.xlu0 %v3231, 25
      %v3636 = vpop.permute.xlu0 %3635
      %3637 = vrot.lane.b32.xlu0 %v3232, 25
      %v3638 = vpop.permute.xlu0 %3637
      %3639 = vrot.lane.b32.xlu0 %v3233, 25
      %v3640 = vpop.permute.xlu0 %3639
      %3641 = vrot.lane.b32.xlu0 %v3234, 25
      %v3642 = vpop.permute.xlu0 %3641
      %3643 = vrot.lane.b32.xlu0 %v3235, 25
      %v3644 = vpop.permute.xlu0 %3643
      %3645 = vrot.lane.b32.xlu0 %v3535, 25
      %v3646 = vpop.permute.xlu0 %3645
      %3647 = vrot.lane.b32.xlu0 %v3255, 25
      %v3648 = vpop.permute.xlu0 %3647
      %3649 = vrot.lane.b32.xlu0 %v3256, 25
      %v3650 = vpop.permute.xlu0 %3649
      %3651 = vrot.lane.b32.xlu0 %v3257, 25
      %v3652 = vpop.permute.xlu0 %3651
      %3653 = vrot.lane.b32.xlu0 %v3258, 25
      %v3654 = vpop.permute.xlu0 %3653
      %3655 = vrot.lane.b32.xlu0 %v3259, 25
      %v3656 = vpop.permute.xlu0 %3655
      %3657 = vrot.lane.b32.xlu0 %v3260, 25
      %v3658 = vpop.permute.xlu0 %3657
      %3659 = vrot.lane.b32.xlu0 %v3261, 25
      %v3660 = vpop.permute.xlu0 %3659
      %3661 = vrot.lane.b32.xlu0 %v3262, 25
      %v3662 = vpop.permute.xlu0 %3661
      %3663 = vrot.lane.b32.xlu0 %v3536, 25
      %v3664 = vpop.permute.xlu0 %3663
      %3665 = vrot.lane.b32.xlu0 %v3282, 25
      %v3666 = vpop.permute.xlu0 %3665
      %3667 = vrot.lane.b32.xlu0 %v3283, 25
      %v3668 = vpop.permute.xlu0 %3667
      %3669 = vrot.lane.b32.xlu0 %v3284, 25
      %v3670 = vpop.permute.xlu0 %3669
      %3671 = vrot.lane.b32.xlu0 %v3285, 25
      %v3672 = vpop.permute.xlu0 %3671
      %3673 = vrot.lane.b32.xlu0 %v3286, 25
      %v3674 = vpop.permute.xlu0 %3673
      %3675 = vrot.lane.b32.xlu0 %v3287, 25
      %v3676 = vpop.permute.xlu0 %3675
      %3677 = vrot.lane.b32.xlu0 %v3288, 25
      %v3678 = vpop.permute.xlu0 %3677
      %3679 = vrot.lane.b32.xlu0 %v3289, 25
      %v3680 = vpop.permute.xlu0 %3679
      %3681 = vrot.lane.b32.xlu0 %v3537, 25
      %v3682 = vpop.permute.xlu0 %3681
      %3683 = vrot.lane.b32.xlu0 %v3309, 25
      %v3684 = vpop.permute.xlu0 %3683
      %3685 = vrot.lane.b32.xlu0 %v3310, 25
      %v3686 = vpop.permute.xlu0 %3685
      %3687 = vrot.lane.b32.xlu0 %v3311, 25
      %v3688 = vpop.permute.xlu0 %3687
      %3689 = vrot.lane.b32.xlu0 %v3312, 25
      %v3690 = vpop.permute.xlu0 %3689
      %3691 = vrot.lane.b32.xlu0 %v3313, 25
      %v3692 = vpop.permute.xlu0 %3691
      %3693 = vrot.lane.b32.xlu0 %v3314, 25
      %v3694 = vpop.permute.xlu0 %3693
      %3695 = vrot.lane.b32.xlu0 %v3315, 25
      %v3696 = vpop.permute.xlu0 %3695
      %3697 = vrot.lane.b32.xlu0 %v3316, 25
      %v3698 = vpop.permute.xlu0 %3697
      %3699 = vrot.lane.b32.xlu0 %v3538, 25
      %v3700 = vpop.permute.xlu0 %3699
      %v3701 = vsel %vm1440, %v3540, %v3542
      %v3702 = vsel %vm1440, %v3542, %v3544
      %v3703 = vsel %vm1440, %v3544, %v3546
      %v3704 = vsel %vm1440, %v3546, %v3548
      %v3705 = vsel %vm1440, %v3548, %v3550
      %v3706 = vsel %vm1440, %v3550, %v3552
      %v3707 = vsel %vm1440, %v3552, %v3554
      %v3708 = vsel %vm1440, %v3554, %v3556
      %v3709 = vsel %vm1440, %v3556, %v1279
      %v3710 = vsel %vm1440, %v3558, %v3560
      %v3711 = vsel %vm1440, %v3560, %v3562
      %v3712 = vsel %vm1440, %v3562, %v3564
      %v3713 = vsel %vm1440, %v3564, %v3566
      %v3714 = vsel %vm1440, %v3566, %v3568
      %v3715 = vsel %vm1440, %v3568, %v3570
      %v3716 = vsel %vm1440, %v3570, %v3572
      %v3717 = vsel %vm1440, %v3572, %v3574
      %v3718 = vsel %vm1440, %v3574, %v1299
      %v3719 = vsel %vm1440, %v3576, %v3578
      %v3720 = vsel %vm1440, %v3578, %v3580
      %v3721 = vsel %vm1440, %v3580, %v3582
      %v3722 = vsel %vm1440, %v3582, %v3584
      %v3723 = vsel %vm1440, %v3584, %v3586
      %v3724 = vsel %vm1440, %v3586, %v3588
      %v3725 = vsel %vm1440, %v3588, %v3590
      %v3726 = vsel %vm1440, %v3590, %v3592
      %v3727 = vsel %vm1440, %v3592, %v1319
      %v3728 = vsel %vm1440, %v3594, %v3596
      %v3729 = vsel %vm1440, %v3596, %v3598
      %v3730 = vsel %vm1440, %v3598, %v3600
      %v3731 = vsel %vm1440, %v3600, %v3602
      %v3732 = vsel %vm1440, %v3602, %v3604
      %v3733 = vsel %vm1440, %v3604, %v3606
      %v3734 = vsel %vm1440, %v3606, %v3608
      %v3735 = vsel %vm1440, %v3608, %v3610
      %v3736 = vsel %vm1440, %v3610, %v1339
      %v3737 = vsel %vm1440, %v3612, %v3614
      %v3738 = vsel %vm1440, %v3614, %v3616
      %v3739 = vsel %vm1440, %v3616, %v3618
      %v3740 = vsel %vm1440, %v3618, %v3620
      %v3741 = vsel %vm1440, %v3620, %v3622
      %v3742 = vsel %vm1440, %v3622, %v3624
      %v3743 = vsel %vm1440, %v3624, %v3626
      %v3744 = vsel %vm1440, %v3626, %v3628
      %v3745 = vsel %vm1440, %v3628, %v1359
      %v3746 = vsel %vm1440, %v3630, %v3632
      %v3747 = vsel %vm1440, %v3632, %v3634
      %v3748 = vsel %vm1440, %v3634, %v3636
      %v3749 = vsel %vm1440, %v3636, %v3638
      %v3750 = vsel %vm1440, %v3638, %v3640
      %v3751 = vsel %vm1440, %v3640, %v3642
      %v3752 = vsel %vm1440, %v3642, %v3644
      %v3753 = vsel %vm1440, %v3644, %v3646
      %v3754 = vsel %vm1440, %v3646, %v1379
      %v3755 = vsel %vm1440, %v3648, %v3650
      %v3756 = vsel %vm1440, %v3650, %v3652
      %v3757 = vsel %vm1440, %v3652, %v3654
      %v3758 = vsel %vm1440, %v3654, %v3656
      %v3759 = vsel %vm1440, %v3656, %v3658
      %v3760 = vsel %vm1440, %v3658, %v3660
      %v3761 = vsel %vm1440, %v3660, %v3662
      %v3762 = vsel %vm1440, %v3662, %v3664
      %v3763 = vsel %vm1440, %v3664, %v1399
      %v3764 = vsel %vm1440, %v3666, %v3668
      %v3765 = vsel %vm1440, %v3668, %v3670
      %v3766 = vsel %vm1440, %v3670, %v3672
      %v3767 = vsel %vm1440, %v3672, %v3674
      %v3768 = vsel %vm1440, %v3674, %v3676
      %v3769 = vsel %vm1440, %v3676, %v3678
      %v3770 = vsel %vm1440, %v3678, %v3680
      %v3771 = vsel %vm1440, %v3680, %v3682
      %v3772 = vsel %vm1440, %v3682, %v1419
      %v3773 = vsel %vm1440, %v3684, %v3686
      %v3774 = vsel %vm1440, %v3686, %v3688
      %v3775 = vsel %vm1440, %v3688, %v3690
      %v3776 = vsel %vm1440, %v3690, %v3692
      %v3777 = vsel %vm1440, %v3692, %v3694
      %v3778 = vsel %vm1440, %v3694, %v3696
      %v3779 = vsel %vm1440, %v3696, %v3698
      %v3780 = vsel %vm1440, %v3698, %v3700
      %v3781 = vsel %vm1440, %v3700, %v1439
      %v3782 = vld [vmem:[%s5] sm:$0xff]
      %v3783 = vld [vmem:[%s5 + $0x8] sm:$0xff]
      %v3784 = vld [vmem:[%s5 + $0x10] sm:$0xff]
      %v3785 = vld [vmem:[%s5 + $0x18] sm:$0xff]
      %v3786 = vld [vmem:[%s6] sm:$0xff]
      %v3787 = vld [vmem:[%s6 + $0x8] sm:$0xff]
      %3789 = vset.pattern.permute.xlu0 0
      %3790 = vperm.xlu0 %3789, %v3786
      %v3791 = vpop.permute.xlu0 %3790
      %3794 = vset.pattern.permute.xlu0 0
      %3795 = vperm.xlu0 %3794, %v3787
      %v3796 = vpop.permute.xlu0 %3795
      %v3802 = vunpack.c.l.b16 %v3782
      %v3803 = vunpack.c.h.b16 %v3782
      %v3804 = vunpack.c.l.b16 %v3783
      %v3805 = vunpack.c.h.b16 %v3783
      %v3806 = vunpack.c.l.b16 %v3784
      %v3807 = vunpack.c.h.b16 %v3784
      %v3808 = vunpack.c.l.b16 %v3785
      %v3809 = vunpack.c.h.b16 %v3785
      %v3810 = vpack.c.b16 %v3806, %v3802
      %v3811 = vpack.c.b16 %v3807, %v3803
      %v3812 = vpack.c.b16 %v3808, %v3804
      %v3813 = vpack.c.b16 %v3809, %v3805
      %3817 = vrot.lane.b32.xlu0 %v3083, 70
      %v3818 = vpop.permute.xlu0 %3817
      %3819 = vrot.lane.b32.xlu0 %v3084, 70
      %v3820 = vpop.permute.xlu0 %3819
      %3821 = vrot.lane.b32.xlu0 %v3085, 70
      %v3822 = vpop.permute.xlu0 %3821
      %3823 = vrot.lane.b32.xlu0 %v3086, 70
      %v3824 = vpop.permute.xlu0 %3823
      %3825 = vrot.lane.b32.xlu0 %v3087, 70
      %v3826 = vpop.permute.xlu0 %3825
      %3827 = vrot.lane.b32.xlu0 %v3088, 70
      %v3828 = vpop.permute.xlu0 %3827
      %3829 = vrot.lane.b32.xlu0 %v3089, 70
      %v3830 = vpop.permute.xlu0 %3829
      %3831 = vrot.lane.b32.xlu0 %v3090, 70
      %v3832 = vpop.permute.xlu0 %3831
      %3833 = vrot.lane.b32.xlu0 %v3091, 70
      %v3834 = vpop.permute.xlu0 %3833
      %3835 = vrot.lane.b32.xlu0 %v3119, 70
      %v3836 = vpop.permute.xlu0 %3835
      %3837 = vrot.lane.b32.xlu0 %v3120, 70
      %v3838 = vpop.permute.xlu0 %3837
      %3839 = vrot.lane.b32.xlu0 %v3121, 70
      %v3840 = vpop.permute.xlu0 %3839
      %3841 = vrot.lane.b32.xlu0 %v3122, 70
      %v3842 = vpop.permute.xlu0 %3841
      %3843 = vrot.lane.b32.xlu0 %v3123, 70
      %v3844 = vpop.permute.xlu0 %3843
      %3845 = vrot.lane.b32.xlu0 %v3124, 70
      %v3846 = vpop.permute.xlu0 %3845
      %3847 = vrot.lane.b32.xlu0 %v3125, 70
      %v3848 = vpop.permute.xlu0 %3847
      %3849 = vrot.lane.b32.xlu0 %v3126, 70
      %v3850 = vpop.permute.xlu0 %3849
      %3851 = vrot.lane.b32.xlu0 %v3127, 70
      %v3852 = vpop.permute.xlu0 %3851
      %3853 = vrot.lane.b32.xlu0 %v3118, 70
      %v3854 = vpop.permute.xlu0 %3853
      %3855 = vrot.lane.b32.xlu0 %v3146, 70
      %v3856 = vpop.permute.xlu0 %3855
      %3857 = vrot.lane.b32.xlu0 %v3147, 70
      %v3858 = vpop.permute.xlu0 %3857
      %3859 = vrot.lane.b32.xlu0 %v3148, 70
      %v3860 = vpop.permute.xlu0 %3859
      %3861 = vrot.lane.b32.xlu0 %v3149, 70
      %v3862 = vpop.permute.xlu0 %3861
      %3863 = vrot.lane.b32.xlu0 %v3150, 70
      %v3864 = vpop.permute.xlu0 %3863
      %3865 = vrot.lane.b32.xlu0 %v3151, 70
      %v3866 = vpop.permute.xlu0 %3865
      %3867 = vrot.lane.b32.xlu0 %v3152, 70
      %v3868 = vpop.permute.xlu0 %3867
      %3869 = vrot.lane.b32.xlu0 %v3153, 70
      %v3870 = vpop.permute.xlu0 %3869
      %3871 = vrot.lane.b32.xlu0 %v3154, 70
      %v3872 = vpop.permute.xlu0 %3871
      %3873 = vrot.lane.b32.xlu0 %v3145, 70
      %v3874 = vpop.permute.xlu0 %3873
      %3875 = vrot.lane.b32.xlu0 %v3173, 70
      %v3876 = vpop.permute.xlu0 %3875
      %3877 = vrot.lane.b32.xlu0 %v3174, 70
      %v3878 = vpop.permute.xlu0 %3877
      %3879 = vrot.lane.b32.xlu0 %v3175, 70
      %v3880 = vpop.permute.xlu0 %3879
      %3881 = vrot.lane.b32.xlu0 %v3176, 70
      %v3882 = vpop.permute.xlu0 %3881
      %3883 = vrot.lane.b32.xlu0 %v3177, 70
      %v3884 = vpop.permute.xlu0 %3883
      %3885 = vrot.lane.b32.xlu0 %v3178, 70
      %v3886 = vpop.permute.xlu0 %3885
      %3887 = vrot.lane.b32.xlu0 %v3179, 70
      %v3888 = vpop.permute.xlu0 %3887
      %3889 = vrot.lane.b32.xlu0 %v3180, 70
      %v3890 = vpop.permute.xlu0 %3889
      %3891 = vrot.lane.b32.xlu0 %v3181, 70
      %v3892 = vpop.permute.xlu0 %3891
      %3893 = vrot.lane.b32.xlu0 %v3172, 70
      %v3894 = vpop.permute.xlu0 %3893
      %3895 = vrot.lane.b32.xlu0 %v3200, 70
      %v3896 = vpop.permute.xlu0 %3895
      %3897 = vrot.lane.b32.xlu0 %v3201, 70
      %v3898 = vpop.permute.xlu0 %3897
      %3899 = vrot.lane.b32.xlu0 %v3202, 70
      %v3900 = vpop.permute.xlu0 %3899
      %3901 = vrot.lane.b32.xlu0 %v3203, 70
      %v3902 = vpop.permute.xlu0 %3901
      %3903 = vrot.lane.b32.xlu0 %v3204, 70
      %v3904 = vpop.permute.xlu0 %3903
      %3905 = vrot.lane.b32.xlu0 %v3205, 70
      %v3906 = vpop.permute.xlu0 %3905
      %3907 = vrot.lane.b32.xlu0 %v3206, 70
      %v3908 = vpop.permute.xlu0 %3907
      %3909 = vrot.lane.b32.xlu0 %v3207, 70
      %v3910 = vpop.permute.xlu0 %3909
      %3911 = vrot.lane.b32.xlu0 %v3208, 70
      %v3912 = vpop.permute.xlu0 %3911
      %3913 = vrot.lane.b32.xlu0 %v3199, 70
      %v3914 = vpop.permute.xlu0 %3913
      %3915 = vrot.lane.b32.xlu0 %v3227, 70
      %v3916 = vpop.permute.xlu0 %3915
      %3917 = vrot.lane.b32.xlu0 %v3228, 70
      %v3918 = vpop.permute.xlu0 %3917
      %3919 = vrot.lane.b32.xlu0 %v3229, 70
      %v3920 = vpop.permute.xlu0 %3919
      %3921 = vrot.lane.b32.xlu0 %v3230, 70
      %v3922 = vpop.permute.xlu0 %3921
      %3923 = vrot.lane.b32.xlu0 %v3231, 70
      %v3924 = vpop.permute.xlu0 %3923
      %3925 = vrot.lane.b32.xlu0 %v3232, 70
      %v3926 = vpop.permute.xlu0 %3925
      %3927 = vrot.lane.b32.xlu0 %v3233, 70
      %v3928 = vpop.permute.xlu0 %3927
      %3929 = vrot.lane.b32.xlu0 %v3234, 70
      %v3930 = vpop.permute.xlu0 %3929
      %3931 = vrot.lane.b32.xlu0 %v3235, 70
      %v3932 = vpop.permute.xlu0 %3931
      %3933 = vrot.lane.b32.xlu0 %v3226, 70
      %v3934 = vpop.permute.xlu0 %3933
      %3935 = vrot.lane.b32.xlu0 %v3254, 70
      %v3936 = vpop.permute.xlu0 %3935
      %3937 = vrot.lane.b32.xlu0 %v3255, 70
      %v3938 = vpop.permute.xlu0 %3937
      %3939 = vrot.lane.b32.xlu0 %v3256, 70
      %v3940 = vpop.permute.xlu0 %3939
      %3941 = vrot.lane.b32.xlu0 %v3257, 70
      %v3942 = vpop.permute.xlu0 %3941
      %3943 = vrot.lane.b32.xlu0 %v3258, 70
      %v3944 = vpop.permute.xlu0 %3943
      %3945 = vrot.lane.b32.xlu0 %v3259, 70
      %v3946 = vpop.permute.xlu0 %3945
      %3947 = vrot.lane.b32.xlu0 %v3260, 70
      %v3948 = vpop.permute.xlu0 %3947
      %3949 = vrot.lane.b32.xlu0 %v3261, 70
      %v3950 = vpop.permute.xlu0 %3949
      %3951 = vrot.lane.b32.xlu0 %v3262, 70
      %v3952 = vpop.permute.xlu0 %3951
      %3953 = vrot.lane.b32.xlu0 %v3253, 70
      %v3954 = vpop.permute.xlu0 %3953
      %3955 = vrot.lane.b32.xlu0 %v3281, 70
      %v3956 = vpop.permute.xlu0 %3955
      %3957 = vrot.lane.b32.xlu0 %v3282, 70
      %v3958 = vpop.permute.xlu0 %3957
      %3959 = vrot.lane.b32.xlu0 %v3283, 70
      %v3960 = vpop.permute.xlu0 %3959
      %3961 = vrot.lane.b32.xlu0 %v3284, 70
      %v3962 = vpop.permute.xlu0 %3961
      %3963 = vrot.lane.b32.xlu0 %v3285, 70
      %v3964 = vpop.permute.xlu0 %3963
      %3965 = vrot.lane.b32.xlu0 %v3286, 70
      %v3966 = vpop.permute.xlu0 %3965
      %3967 = vrot.lane.b32.xlu0 %v3287, 70
      %v3968 = vpop.permute.xlu0 %3967
      %3969 = vrot.lane.b32.xlu0 %v3288, 70
      %v3970 = vpop.permute.xlu0 %3969
      %3971 = vrot.lane.b32.xlu0 %v3289, 70
      %v3972 = vpop.permute.xlu0 %3971
      %3973 = vrot.lane.b32.xlu0 %v3280, 70
      %v3974 = vpop.permute.xlu0 %3973
      %3975 = vrot.lane.b32.xlu0 %v3308, 70
      %v3976 = vpop.permute.xlu0 %3975
      %3977 = vrot.lane.b32.xlu0 %v3309, 70
      %v3978 = vpop.permute.xlu0 %3977
      %3979 = vrot.lane.b32.xlu0 %v3310, 70
      %v3980 = vpop.permute.xlu0 %3979
      %3981 = vrot.lane.b32.xlu0 %v3311, 70
      %v3982 = vpop.permute.xlu0 %3981
      %3983 = vrot.lane.b32.xlu0 %v3312, 70
      %v3984 = vpop.permute.xlu0 %3983
      %3985 = vrot.lane.b32.xlu0 %v3313, 70
      %v3986 = vpop.permute.xlu0 %3985
      %3987 = vrot.lane.b32.xlu0 %v3314, 70
      %v3988 = vpop.permute.xlu0 %3987
      %3989 = vrot.lane.b32.xlu0 %v3315, 70
      %v3990 = vpop.permute.xlu0 %3989
      %3991 = vrot.lane.b32.xlu0 %v3316, 70
      %v3992 = vpop.permute.xlu0 %3991
      %3993 = vrot.lane.b32.xlu0 %v3307, 70
      %v3994 = vpop.permute.xlu0 %3993
      %3995 = vrot.lane.b32.xlu0 %v3335, 70
      %v3996 = vpop.permute.xlu0 %3995
      %3997 = vrot.lane.b32.xlu0 %v3336, 70
      %v3998 = vpop.permute.xlu0 %3997
      %3999 = vrot.lane.b32.xlu0 %v3337, 70
      %v4000 = vpop.permute.xlu0 %3999
      %4001 = vrot.lane.b32.xlu0 %v3338, 70
      %v4002 = vpop.permute.xlu0 %4001
      %4003 = vrot.lane.b32.xlu0 %v3339, 70
      %v4004 = vpop.permute.xlu0 %4003
      %4005 = vrot.lane.b32.xlu0 %v3340, 70
      %v4006 = vpop.permute.xlu0 %4005
      %4007 = vrot.lane.b32.xlu0 %v3341, 70
      %v4008 = vpop.permute.xlu0 %4007
      %4009 = vrot.lane.b32.xlu0 %v3342, 70
      %v4010 = vpop.permute.xlu0 %4009
      %4011 = vrot.lane.b32.xlu0 %v3343, 70
      %v4012 = vpop.permute.xlu0 %4011
      %4013 = vrot.lane.b32.xlu0 %v3334, 70
      %v4014 = vpop.permute.xlu0 %4013
      %4015 = vrot.lane.b32.xlu0 %v3362, 70
      %v4016 = vpop.permute.xlu0 %4015
      %4017 = vrot.lane.b32.xlu0 %v3363, 70
      %v4018 = vpop.permute.xlu0 %4017
      %4019 = vrot.lane.b32.xlu0 %v3364, 70
      %v4020 = vpop.permute.xlu0 %4019
      %4021 = vrot.lane.b32.xlu0 %v3365, 70
      %v4022 = vpop.permute.xlu0 %4021
      %4023 = vrot.lane.b32.xlu0 %v3366, 70
      %v4024 = vpop.permute.xlu0 %4023
      %4025 = vrot.lane.b32.xlu0 %v3367, 70
      %v4026 = vpop.permute.xlu0 %4025
      %4027 = vrot.lane.b32.xlu0 %v3368, 70
      %v4028 = vpop.permute.xlu0 %4027
      %4029 = vrot.lane.b32.xlu0 %v3369, 70
      %v4030 = vpop.permute.xlu0 %4029
      %4031 = vrot.lane.b32.xlu0 %v3370, 70
      %v4032 = vpop.permute.xlu0 %4031
      %4033 = vrot.lane.b32.xlu0 %v3361, 70
      %v4034 = vpop.permute.xlu0 %4033
      %4035 = vrot.lane.b32.xlu0 %v3389, 70
      %v4036 = vpop.permute.xlu0 %4035
      %4037 = vrot.lane.b32.xlu0 %v3390, 70
      %v4038 = vpop.permute.xlu0 %4037
      %4039 = vrot.lane.b32.xlu0 %v3391, 70
      %v4040 = vpop.permute.xlu0 %4039
      %4041 = vrot.lane.b32.xlu0 %v3392, 70
      %v4042 = vpop.permute.xlu0 %4041
      %4043 = vrot.lane.b32.xlu0 %v3393, 70
      %v4044 = vpop.permute.xlu0 %4043
      %4045 = vrot.lane.b32.xlu0 %v3394, 70
      %v4046 = vpop.permute.xlu0 %4045
      %4047 = vrot.lane.b32.xlu0 %v3395, 70
      %v4048 = vpop.permute.xlu0 %4047
      %4049 = vrot.lane.b32.xlu0 %v3396, 70
      %v4050 = vpop.permute.xlu0 %4049
      %4051 = vrot.lane.b32.xlu0 %v3397, 70
      %v4052 = vpop.permute.xlu0 %4051
      %4053 = vrot.lane.b32.xlu0 %v3388, 70
      %v4054 = vpop.permute.xlu0 %4053
      %4055 = vrot.lane.b32.xlu0 %v3399, 70
      %v4056 = vpop.permute.xlu0 %4055
      %4057 = vrot.lane.b32.xlu0 %v3416, 70
      %v4058 = vpop.permute.xlu0 %4057
      %4059 = vrot.lane.b32.xlu0 %v3417, 70
      %v4060 = vpop.permute.xlu0 %4059
      %4061 = vrot.lane.b32.xlu0 %v3418, 70
      %v4062 = vpop.permute.xlu0 %4061
      %4063 = vrot.lane.b32.xlu0 %v3419, 70
      %v4064 = vpop.permute.xlu0 %4063
      %4065 = vrot.lane.b32.xlu0 %v3420, 70
      %v4066 = vpop.permute.xlu0 %4065
      %4067 = vrot.lane.b32.xlu0 %v3421, 70
      %v4068 = vpop.permute.xlu0 %4067
      %4069 = vrot.lane.b32.xlu0 %v3422, 70
      %v4070 = vpop.permute.xlu0 %4069
      %4071 = vrot.lane.b32.xlu0 %v3423, 70
      %v4072 = vpop.permute.xlu0 %4071
      %4073 = vrot.lane.b32.xlu0 %v3415, 70
      %v4074 = vpop.permute.xlu0 %4073
      %4075 = vrot.lane.b32.xlu0 %v3425, 70
      %v4076 = vpop.permute.xlu0 %4075
      %4077 = vrot.lane.b32.xlu0 %v3442, 70
      %v4078 = vpop.permute.xlu0 %4077
      %4079 = vrot.lane.b32.xlu0 %v3443, 70
      %v4080 = vpop.permute.xlu0 %4079
      %4081 = vrot.lane.b32.xlu0 %v3444, 70
      %v4082 = vpop.permute.xlu0 %4081
      %4083 = vrot.lane.b32.xlu0 %v3445, 70
      %v4084 = vpop.permute.xlu0 %4083
      %4085 = vrot.lane.b32.xlu0 %v3446, 70
      %v4086 = vpop.permute.xlu0 %4085
      %4087 = vrot.lane.b32.xlu0 %v3447, 70
      %v4088 = vpop.permute.xlu0 %4087
      %4089 = vrot.lane.b32.xlu0 %v3448, 70
      %v4090 = vpop.permute.xlu0 %4089
      %4091 = vrot.lane.b32.xlu0 %v3449, 70
      %v4092 = vpop.permute.xlu0 %4091
      %4093 = vrot.lane.b32.xlu0 %v3450, 70
      %v4094 = vpop.permute.xlu0 %4093
      %4095 = vrot.lane.b32.xlu0 %v3452, 70
      %v4096 = vpop.permute.xlu0 %4095
      %4097 = vrot.lane.b32.xlu0 %v3469, 70
      %v4098 = vpop.permute.xlu0 %4097
      %4099 = vrot.lane.b32.xlu0 %v3470, 70
      %v4100 = vpop.permute.xlu0 %4099
      %4101 = vrot.lane.b32.xlu0 %v3471, 70
      %v4102 = vpop.permute.xlu0 %4101
      %4103 = vrot.lane.b32.xlu0 %v3472, 70
      %v4104 = vpop.permute.xlu0 %4103
      %4105 = vrot.lane.b32.xlu0 %v3473, 70
      %v4106 = vpop.permute.xlu0 %4105
      %4107 = vrot.lane.b32.xlu0 %v3474, 70
      %v4108 = vpop.permute.xlu0 %4107
      %4109 = vrot.lane.b32.xlu0 %v3475, 70
      %v4110 = vpop.permute.xlu0 %4109
      %4111 = vrot.lane.b32.xlu0 %v3476, 70
      %v4112 = vpop.permute.xlu0 %4111
      %4113 = vrot.lane.b32.xlu0 %v3477, 70
      %v4114 = vpop.permute.xlu0 %4113
      %4115 = vrot.lane.b32.xlu0 %v3479, 70
      %v4116 = vpop.permute.xlu0 %4115
      %4117 = vrot.lane.b32.xlu0 %v3496, 70
      %v4118 = vpop.permute.xlu0 %4117
      %4119 = vrot.lane.b32.xlu0 %v3497, 70
      %v4120 = vpop.permute.xlu0 %4119
      %4121 = vrot.lane.b32.xlu0 %v3498, 70
      %v4122 = vpop.permute.xlu0 %4121
      %4123 = vrot.lane.b32.xlu0 %v3499, 70
      %v4124 = vpop.permute.xlu0 %4123
      %4125 = vrot.lane.b32.xlu0 %v3500, 70
      %v4126 = vpop.permute.xlu0 %4125
      %4127 = vrot.lane.b32.xlu0 %v3501, 70
      %v4128 = vpop.permute.xlu0 %4127
      %4129 = vrot.lane.b32.xlu0 %v3502, 70
      %v4130 = vpop.permute.xlu0 %4129
      %4131 = vrot.lane.b32.xlu0 %v3503, 70
      %v4132 = vpop.permute.xlu0 %4131
      %4133 = vrot.lane.b32.xlu0 %v3504, 70
      %v4134 = vpop.permute.xlu0 %4133
      %4135 = vrot.lane.b32.xlu0 %v3540, 70
      %v4136 = vpop.permute.xlu0 %4135
      %4137 = vrot.lane.b32.xlu0 %v3701, 70
      %v4138 = vpop.permute.xlu0 %4137
      %4139 = vrot.lane.b32.xlu0 %v3702, 70
      %v4140 = vpop.permute.xlu0 %4139
      %4141 = vrot.lane.b32.xlu0 %v3703, 70
      %v4142 = vpop.permute.xlu0 %4141
      %4143 = vrot.lane.b32.xlu0 %v3704, 70
      %v4144 = vpop.permute.xlu0 %4143
      %4145 = vrot.lane.b32.xlu0 %v3705, 70
      %v4146 = vpop.permute.xlu0 %4145
      %4147 = vrot.lane.b32.xlu0 %v3706, 70
      %v4148 = vpop.permute.xlu0 %4147
      %4149 = vrot.lane.b32.xlu0 %v3707, 70
      %v4150 = vpop.permute.xlu0 %4149
      %4151 = vrot.lane.b32.xlu0 %v3708, 70
      %v4152 = vpop.permute.xlu0 %4151
      %4153 = vrot.lane.b32.xlu0 %v3709, 70
      %v4154 = vpop.permute.xlu0 %4153
      %4155 = vrot.lane.b32.xlu0 %v3558, 70
      %v4156 = vpop.permute.xlu0 %4155
      %4157 = vrot.lane.b32.xlu0 %v3710, 70
      %v4158 = vpop.permute.xlu0 %4157
      %4159 = vrot.lane.b32.xlu0 %v3711, 70
      %v4160 = vpop.permute.xlu0 %4159
      %4161 = vrot.lane.b32.xlu0 %v3712, 70
      %v4162 = vpop.permute.xlu0 %4161
      %4163 = vrot.lane.b32.xlu0 %v3713, 70
      %v4164 = vpop.permute.xlu0 %4163
      %4165 = vrot.lane.b32.xlu0 %v3714, 70
      %v4166 = vpop.permute.xlu0 %4165
      %4167 = vrot.lane.b32.xlu0 %v3715, 70
      %v4168 = vpop.permute.xlu0 %4167
      %4169 = vrot.lane.b32.xlu0 %v3716, 70
      %v4170 = vpop.permute.xlu0 %4169
      %4171 = vrot.lane.b32.xlu0 %v3717, 70
      %v4172 = vpop.permute.xlu0 %4171
      %4173 = vrot.lane.b32.xlu0 %v3718, 70
      %v4174 = vpop.permute.xlu0 %4173
      %4175 = vrot.lane.b32.xlu0 %v3576, 70
      %v4176 = vpop.permute.xlu0 %4175
      %4177 = vrot.lane.b32.xlu0 %v3719, 70
      %v4178 = vpop.permute.xlu0 %4177
      %4179 = vrot.lane.b32.xlu0 %v3720, 70
      %v4180 = vpop.permute.xlu0 %4179
      %4181 = vrot.lane.b32.xlu0 %v3721, 70
      %v4182 = vpop.permute.xlu0 %4181
      %4183 = vrot.lane.b32.xlu0 %v3722, 70
      %v4184 = vpop.permute.xlu0 %4183
      %4185 = vrot.lane.b32.xlu0 %v3723, 70
      %v4186 = vpop.permute.xlu0 %4185
      %4187 = vrot.lane.b32.xlu0 %v3724, 70
      %v4188 = vpop.permute.xlu0 %4187
      %4189 = vrot.lane.b32.xlu0 %v3725, 70
      %v4190 = vpop.permute.xlu0 %4189
      %4191 = vrot.lane.b32.xlu0 %v3726, 70
      %v4192 = vpop.permute.xlu0 %4191
      %4193 = vrot.lane.b32.xlu0 %v3727, 70
      %v4194 = vpop.permute.xlu0 %4193
      %4195 = vrot.lane.b32.xlu0 %v3594, 70
      %v4196 = vpop.permute.xlu0 %4195
      %4197 = vrot.lane.b32.xlu0 %v3728, 70
      %v4198 = vpop.permute.xlu0 %4197
      %4199 = vrot.lane.b32.xlu0 %v3729, 70
      %v4200 = vpop.permute.xlu0 %4199
      %4201 = vrot.lane.b32.xlu0 %v3730, 70
      %v4202 = vpop.permute.xlu0 %4201
      %4203 = vrot.lane.b32.xlu0 %v3731, 70
      %v4204 = vpop.permute.xlu0 %4203
      %4205 = vrot.lane.b32.xlu0 %v3732, 70
      %v4206 = vpop.permute.xlu0 %4205
      %4207 = vrot.lane.b32.xlu0 %v3733, 70
      %v4208 = vpop.permute.xlu0 %4207
      %4209 = vrot.lane.b32.xlu0 %v3734, 70
      %v4210 = vpop.permute.xlu0 %4209
      %4211 = vrot.lane.b32.xlu0 %v3735, 70
      %v4212 = vpop.permute.xlu0 %4211
      %4213 = vrot.lane.b32.xlu0 %v3736, 70
      %v4214 = vpop.permute.xlu0 %4213
      %4215 = vrot.lane.b32.xlu0 %v3612, 70
      %v4216 = vpop.permute.xlu0 %4215
      %4217 = vrot.lane.b32.xlu0 %v3737, 70
      %v4218 = vpop.permute.xlu0 %4217
      %4219 = vrot.lane.b32.xlu0 %v3738, 70
      %v4220 = vpop.permute.xlu0 %4219
      %4221 = vrot.lane.b32.xlu0 %v3739, 70
      %v4222 = vpop.permute.xlu0 %4221
      %4223 = vrot.lane.b32.xlu0 %v3740, 70
      %v4224 = vpop.permute.xlu0 %4223
      %4225 = vrot.lane.b32.xlu0 %v3741, 70
      %v4226 = vpop.permute.xlu0 %4225
      %4227 = vrot.lane.b32.xlu0 %v3742, 70
      %v4228 = vpop.permute.xlu0 %4227
      %4229 = vrot.lane.b32.xlu0 %v3743, 70
      %v4230 = vpop.permute.xlu0 %4229
      %4231 = vrot.lane.b32.xlu0 %v3744, 70
      %v4232 = vpop.permute.xlu0 %4231
      %4233 = vrot.lane.b32.xlu0 %v3745, 70
      %v4234 = vpop.permute.xlu0 %4233
      %4235 = vrot.lane.b32.xlu0 %v3630, 70
      %v4236 = vpop.permute.xlu0 %4235
      %4237 = vrot.lane.b32.xlu0 %v3746, 70
      %v4238 = vpop.permute.xlu0 %4237
      %4239 = vrot.lane.b32.xlu0 %v3747, 70
      %v4240 = vpop.permute.xlu0 %4239
      %4241 = vrot.lane.b32.xlu0 %v3748, 70
      %v4242 = vpop.permute.xlu0 %4241
      %4243 = vrot.lane.b32.xlu0 %v3749, 70
      %v4244 = vpop.permute.xlu0 %4243
      %4245 = vrot.lane.b32.xlu0 %v3750, 70
      %v4246 = vpop.permute.xlu0 %4245
      %4247 = vrot.lane.b32.xlu0 %v3751, 70
      %v4248 = vpop.permute.xlu0 %4247
      %4249 = vrot.lane.b32.xlu0 %v3752, 70
      %v4250 = vpop.permute.xlu0 %4249
      %4251 = vrot.lane.b32.xlu0 %v3753, 70
      %v4252 = vpop.permute.xlu0 %4251
      %4253 = vrot.lane.b32.xlu0 %v3754, 70
      %v4254 = vpop.permute.xlu0 %4253
      %4255 = vrot.lane.b32.xlu0 %v3648, 70
      %v4256 = vpop.permute.xlu0 %4255
      %4257 = vrot.lane.b32.xlu0 %v3755, 70
      %v4258 = vpop.permute.xlu0 %4257
      %4259 = vrot.lane.b32.xlu0 %v3756, 70
      %v4260 = vpop.permute.xlu0 %4259
      %4261 = vrot.lane.b32.xlu0 %v3757, 70
      %v4262 = vpop.permute.xlu0 %4261
      %4263 = vrot.lane.b32.xlu0 %v3758, 70
      %v4264 = vpop.permute.xlu0 %4263
      %4265 = vrot.lane.b32.xlu0 %v3759, 70
      %v4266 = vpop.permute.xlu0 %4265
      %4267 = vrot.lane.b32.xlu0 %v3760, 70
      %v4268 = vpop.permute.xlu0 %4267
      %4269 = vrot.lane.b32.xlu0 %v3761, 70
      %v4270 = vpop.permute.xlu0 %4269
      %4271 = vrot.lane.b32.xlu0 %v3762, 70
      %v4272 = vpop.permute.xlu0 %4271
      %4273 = vrot.lane.b32.xlu0 %v3763, 70
      %v4274 = vpop.permute.xlu0 %4273
      %4275 = vrot.lane.b32.xlu0 %v3666, 70
      %v4276 = vpop.permute.xlu0 %4275
      %4277 = vrot.lane.b32.xlu0 %v3764, 70
      %v4278 = vpop.permute.xlu0 %4277
      %4279 = vrot.lane.b32.xlu0 %v3765, 70
      %v4280 = vpop.permute.xlu0 %4279
      %4281 = vrot.lane.b32.xlu0 %v3766, 70
      %v4282 = vpop.permute.xlu0 %4281
      %4283 = vrot.lane.b32.xlu0 %v3767, 70
      %v4284 = vpop.permute.xlu0 %4283
      %4285 = vrot.lane.b32.xlu0 %v3768, 70
      %v4286 = vpop.permute.xlu0 %4285
      %4287 = vrot.lane.b32.xlu0 %v3769, 70
      %v4288 = vpop.permute.xlu0 %4287
      %4289 = vrot.lane.b32.xlu0 %v3770, 70
      %v4290 = vpop.permute.xlu0 %4289
      %4291 = vrot.lane.b32.xlu0 %v3771, 70
      %v4292 = vpop.permute.xlu0 %4291
      %4293 = vrot.lane.b32.xlu0 %v3772, 70
      %v4294 = vpop.permute.xlu0 %4293
      %4295 = vrot.lane.b32.xlu0 %v3684, 70
      %v4296 = vpop.permute.xlu0 %4295
      %4297 = vrot.lane.b32.xlu0 %v3773, 70
      %v4298 = vpop.permute.xlu0 %4297
      %4299 = vrot.lane.b32.xlu0 %v3774, 70
      %v4300 = vpop.permute.xlu0 %4299
      %4301 = vrot.lane.b32.xlu0 %v3775, 70
      %v4302 = vpop.permute.xlu0 %4301
      %4303 = vrot.lane.b32.xlu0 %v3776, 70
      %v4304 = vpop.permute.xlu0 %4303
      %4305 = vrot.lane.b32.xlu0 %v3777, 70
      %v4306 = vpop.permute.xlu0 %4305
      %4307 = vrot.lane.b32.xlu0 %v3778, 70
      %v4308 = vpop.permute.xlu0 %4307
      %4309 = vrot.lane.b32.xlu0 %v3779, 70
      %v4310 = vpop.permute.xlu0 %4309
      %4311 = vrot.lane.b32.xlu0 %v3780, 70
      %v4312 = vpop.permute.xlu0 %4311
      %4313 = vrot.lane.b32.xlu0 %v3781, 70
      %v4314 = vpop.permute.xlu0 %4313
      %v4315 = vsel %vm2057, %v1558, %v3818
      %v4316 = vsel %vm2057, %v3818, %v3820
      %v4317 = vsel %vm2057, %v3820, %v3822
      %v4318 = vsel %vm2057, %v3822, %v3824
      %v4319 = vsel %vm2057, %v3824, %v3826
      %v4320 = vsel %vm2057, %v3826, %v3828
      %v4321 = vsel %vm2057, %v3828, %v3830
      %v4322 = vsel %vm2057, %v3830, %v3832
      %v4323 = vsel %vm2057, %v3832, %v3834
      %v4324 = vsel %vm2057, %v3836, %v3838
      %v4325 = vsel %vm2057, %v3838, %v3840
      %v4326 = vsel %vm2057, %v3840, %v3842
      %v4327 = vsel %vm2057, %v3842, %v3844
      %v4328 = vsel %vm2057, %v3844, %v3846
      %v4329 = vsel %vm2057, %v3846, %v3848
      %v4330 = vsel %vm2057, %v3848, %v3850
      %v4331 = vsel %vm2057, %v3850, %v3852
      %v4332 = vsel %vm2057, %v3852, %v3854
      %v4333 = vsel %vm2057, %v3856, %v3858
      %v4334 = vsel %vm2057, %v3858, %v3860
      %v4335 = vsel %vm2057, %v3860, %v3862
      %v4336 = vsel %vm2057, %v3862, %v3864
      %v4337 = vsel %vm2057, %v3864, %v3866
      %v4338 = vsel %vm2057, %v3866, %v3868
      %v4339 = vsel %vm2057, %v3868, %v3870
      %v4340 = vsel %vm2057, %v3870, %v3872
      %v4341 = vsel %vm2057, %v3872, %v3874
      %v4342 = vsel %vm2057, %v3876, %v3878
      %v4343 = vsel %vm2057, %v3878, %v3880
      %v4344 = vsel %vm2057, %v3880, %v3882
      %v4345 = vsel %vm2057, %v3882, %v3884
      %v4346 = vsel %vm2057, %v3884, %v3886
      %v4347 = vsel %vm2057, %v3886, %v3888
      %v4348 = vsel %vm2057, %v3888, %v3890
      %v4349 = vsel %vm2057, %v3890, %v3892
      %v4350 = vsel %vm2057, %v3892, %v3894
      %v4351 = vsel %vm2057, %v3896, %v3898
      %v4352 = vsel %vm2057, %v3898, %v3900
      %v4353 = vsel %vm2057, %v3900, %v3902
      %v4354 = vsel %vm2057, %v3902, %v3904
      %v4355 = vsel %vm2057, %v3904, %v3906
      %v4356 = vsel %vm2057, %v3906, %v3908
      %v4357 = vsel %vm2057, %v3908, %v3910
      %v4358 = vsel %vm2057, %v3910, %v3912
      %v4359 = vsel %vm2057, %v3912, %v3914
      %v4360 = vsel %vm2057, %v3916, %v3918
      %v4361 = vsel %vm2057, %v3918, %v3920
      %v4362 = vsel %vm2057, %v3920, %v3922
      %v4363 = vsel %vm2057, %v3922, %v3924
      %v4364 = vsel %vm2057, %v3924, %v3926
      %v4365 = vsel %vm2057, %v3926, %v3928
      %v4366 = vsel %vm2057, %v3928, %v3930
      %v4367 = vsel %vm2057, %v3930, %v3932
      %v4368 = vsel %vm2057, %v3932, %v3934
      %v4369 = vsel %vm2057, %v3936, %v3938
      %v4370 = vsel %vm2057, %v3938, %v3940
      %v4371 = vsel %vm2057, %v3940, %v3942
      %v4372 = vsel %vm2057, %v3942, %v3944
      %v4373 = vsel %vm2057, %v3944, %v3946
      %v4374 = vsel %vm2057, %v3946, %v3948
      %v4375 = vsel %vm2057, %v3948, %v3950
      %v4376 = vsel %vm2057, %v3950, %v3952
      %v4377 = vsel %vm2057, %v3952, %v3954
      %v4378 = vsel %vm2057, %v3956, %v3958
      %v4379 = vsel %vm2057, %v3958, %v3960
      %v4380 = vsel %vm2057, %v3960, %v3962
      %v4381 = vsel %vm2057, %v3962, %v3964
      %v4382 = vsel %vm2057, %v3964, %v3966
      %v4383 = vsel %vm2057, %v3966, %v3968
      %v4384 = vsel %vm2057, %v3968, %v3970
      %v4385 = vsel %vm2057, %v3970, %v3972
      %v4386 = vsel %vm2057, %v3972, %v3974
      %v4387 = vsel %vm2057, %v3976, %v3978
      %v4388 = vsel %vm2057, %v3978, %v3980
      %v4389 = vsel %vm2057, %v3980, %v3982
      %v4390 = vsel %vm2057, %v3982, %v3984
      %v4391 = vsel %vm2057, %v3984, %v3986
      %v4392 = vsel %vm2057, %v3986, %v3988
      %v4393 = vsel %vm2057, %v3988, %v3990
      %v4394 = vsel %vm2057, %v3990, %v3992
      %v4395 = vsel %vm2057, %v3992, %v3994
      %v4396 = vsel %vm2057, %v3996, %v3998
      %v4397 = vsel %vm2057, %v3998, %v4000
      %v4398 = vsel %vm2057, %v4000, %v4002
      %v4399 = vsel %vm2057, %v4002, %v4004
      %v4400 = vsel %vm2057, %v4004, %v4006
      %v4401 = vsel %vm2057, %v4006, %v4008
      %v4402 = vsel %vm2057, %v4008, %v4010
      %v4403 = vsel %vm2057, %v4010, %v4012
      %v4404 = vsel %vm2057, %v4012, %v4014
      %v4405 = vsel %vm2057, %v4016, %v4018
      %v4406 = vsel %vm2057, %v4018, %v4020
      %v4407 = vsel %vm2057, %v4020, %v4022
      %v4408 = vsel %vm2057, %v4022, %v4024
      %v4409 = vsel %vm2057, %v4024, %v4026
      %v4410 = vsel %vm2057, %v4026, %v4028
      %v4411 = vsel %vm2057, %v4028, %v4030
      %v4412 = vsel %vm2057, %v4030, %v4032
      %v4413 = vsel %vm2057, %v4032, %v4034
      %v4414 = vsel %vm2057, %v4036, %v4038
      %v4415 = vsel %vm2057, %v4038, %v4040
      %v4416 = vsel %vm2057, %v4040, %v4042
      %v4417 = vsel %vm2057, %v4042, %v4044
      %v4418 = vsel %vm2057, %v4044, %v4046
      %v4419 = vsel %vm2057, %v4046, %v4048
      %v4420 = vsel %vm2057, %v4048, %v4050
      %v4421 = vsel %vm2057, %v4050, %v4052
      %v4422 = vsel %vm2057, %v4052, %v4054
      %v4423 = vsel %vm2057, %v4056, %v4058
      %v4424 = vsel %vm2057, %v4058, %v4060
      %v4425 = vsel %vm2057, %v4060, %v4062
      %v4426 = vsel %vm2057, %v4062, %v4064
      %v4427 = vsel %vm2057, %v4064, %v4066
      %v4428 = vsel %vm2057, %v4066, %v4068
      %v4429 = vsel %vm2057, %v4068, %v4070
      %v4430 = vsel %vm2057, %v4070, %v4072
      %v4431 = vsel %vm2057, %v4072, %v4074
      %v4432 = vsel %vm2057, %v4076, %v4078
      %v4433 = vsel %vm2057, %v4078, %v4080
      %v4434 = vsel %vm2057, %v4080, %v4082
      %v4435 = vsel %vm2057, %v4082, %v4084
      %v4436 = vsel %vm2057, %v4084, %v4086
      %v4437 = vsel %vm2057, %v4086, %v4088
      %v4438 = vsel %vm2057, %v4088, %v4090
      %v4439 = vsel %vm2057, %v4090, %v4092
      %v4440 = vsel %vm2057, %v4092, %v4094
      %v4441 = vsel %vm2057, %v4096, %v4098
      %v4442 = vsel %vm2057, %v4098, %v4100
      %v4443 = vsel %vm2057, %v4100, %v4102
      %v4444 = vsel %vm2057, %v4102, %v4104
      %v4445 = vsel %vm2057, %v4104, %v4106
      %v4446 = vsel %vm2057, %v4106, %v4108
      %v4447 = vsel %vm2057, %v4108, %v4110
      %v4448 = vsel %vm2057, %v4110, %v4112
      %v4449 = vsel %vm2057, %v4112, %v4114
      %v4450 = vsel %vm2057, %v4116, %v4118
      %v4451 = vsel %vm2057, %v4118, %v4120
      %v4452 = vsel %vm2057, %v4120, %v4122
      %v4453 = vsel %vm2057, %v4122, %v4124
      %v4454 = vsel %vm2057, %v4124, %v4126
      %v4455 = vsel %vm2057, %v4126, %v4128
      %v4456 = vsel %vm2057, %v4128, %v4130
      %v4457 = vsel %vm2057, %v4130, %v4132
      %v4458 = vsel %vm2057, %v4132, %v4134
      %v4459 = vsel %vm2057, %v4136, %v4138
      %v4460 = vsel %vm2057, %v4138, %v4140
      %v4461 = vsel %vm2057, %v4140, %v4142
      %v4462 = vsel %vm2057, %v4142, %v4144
      %v4463 = vsel %vm2057, %v4144, %v4146
      %v4464 = vsel %vm2057, %v4146, %v4148
      %v4465 = vsel %vm2057, %v4148, %v4150
      %v4466 = vsel %vm2057, %v4150, %v4152
      %v4467 = vsel %vm2057, %v4152, %v4154
      %v4468 = vsel %vm2057, %v4156, %v4158
      %v4469 = vsel %vm2057, %v4158, %v4160
      %v4470 = vsel %vm2057, %v4160, %v4162
      %v4471 = vsel %vm2057, %v4162, %v4164
      %v4472 = vsel %vm2057, %v4164, %v4166
      %v4473 = vsel %vm2057, %v4166, %v4168
      %v4474 = vsel %vm2057, %v4168, %v4170
      %v4475 = vsel %vm2057, %v4170, %v4172
      %v4476 = vsel %vm2057, %v4172, %v4174
      %v4477 = vsel %vm2057, %v4176, %v4178
      %v4478 = vsel %vm2057, %v4178, %v4180
      %v4479 = vsel %vm2057, %v4180, %v4182
      %v4480 = vsel %vm2057, %v4182, %v4184
      %v4481 = vsel %vm2057, %v4184, %v4186
      %v4482 = vsel %vm2057, %v4186, %v4188
      %v4483 = vsel %vm2057, %v4188, %v4190
      %v4484 = vsel %vm2057, %v4190, %v4192
      %v4485 = vsel %vm2057, %v4192, %v4194
      %v4486 = vsel %vm2057, %v4196, %v4198
      %v4487 = vsel %vm2057, %v4198, %v4200
      %v4488 = vsel %vm2057, %v4200, %v4202
      %v4489 = vsel %vm2057, %v4202, %v4204
      %v4490 = vsel %vm2057, %v4204, %v4206
      %v4491 = vsel %vm2057, %v4206, %v4208
      %v4492 = vsel %vm2057, %v4208, %v4210
      %v4493 = vsel %vm2057, %v4210, %v4212
      %v4494 = vsel %vm2057, %v4212, %v4214
      %v4495 = vsel %vm2057, %v4216, %v4218
      %v4496 = vsel %vm2057, %v4218, %v4220
      %v4497 = vsel %vm2057, %v4220, %v4222
      %v4498 = vsel %vm2057, %v4222, %v4224
      %v4499 = vsel %vm2057, %v4224, %v4226
      %v4500 = vsel %vm2057, %v4226, %v4228
      %v4501 = vsel %vm2057, %v4228, %v4230
      %v4502 = vsel %vm2057, %v4230, %v4232
      %v4503 = vsel %vm2057, %v4232, %v4234
      %v4504 = vsel %vm2057, %v4236, %v4238
      %v4505 = vsel %vm2057, %v4238, %v4240
      %v4506 = vsel %vm2057, %v4240, %v4242
      %v4507 = vsel %vm2057, %v4242, %v4244
      %v4508 = vsel %vm2057, %v4244, %v4246
      %v4509 = vsel %vm2057, %v4246, %v4248
      %v4510 = vsel %vm2057, %v4248, %v4250
      %v4511 = vsel %vm2057, %v4250, %v4252
      %v4512 = vsel %vm2057, %v4252, %v4254
      %v4513 = vsel %vm2057, %v4256, %v4258
      %v4514 = vsel %vm2057, %v4258, %v4260
      %v4515 = vsel %vm2057, %v4260, %v4262
      %v4516 = vsel %vm2057, %v4262, %v4264
      %v4517 = vsel %vm2057, %v4264, %v4266
      %v4518 = vsel %vm2057, %v4266, %v4268
      %v4519 = vsel %vm2057, %v4268, %v4270
      %v4520 = vsel %vm2057, %v4270, %v4272
      %v4521 = vsel %vm2057, %v4272, %v4274
      %v4522 = vsel %vm2057, %v4276, %v4278
      %v4523 = vsel %vm2057, %v4278, %v4280
      %v4524 = vsel %vm2057, %v4280, %v4282
      %v4525 = vsel %vm2057, %v4282, %v4284
      %v4526 = vsel %vm2057, %v4284, %v4286
      %v4527 = vsel %vm2057, %v4286, %v4288
      %v4528 = vsel %vm2057, %v4288, %v4290
      %v4529 = vsel %vm2057, %v4290, %v4292
      %v4530 = vsel %vm2057, %v4292, %v4294
      %v4531 = vsel %vm2057, %v4296, %v4298
      %v4532 = vsel %vm2057, %v4298, %v4300
      %v4533 = vsel %vm2057, %v4300, %v4302
      %v4534 = vsel %vm2057, %v4302, %v4304
      %v4535 = vsel %vm2057, %v4304, %v4306
      %v4536 = vsel %vm2057, %v4306, %v4308
      %v4537 = vsel %vm2057, %v4308, %v4310
      %v4538 = vsel %vm2057, %v4310, %v4312
      %v4539 = vsel %vm2057, %v4312, %v4314
      %v4766 = vsel %vm2508, %v3813, 0
      %4768 = vmatprep.subr.bf16.mxu0 %v4316
      %4769 = vmatpush1.bf16.msra.mxu0 %v4315
      %4770 = vmatprep.subr.bf16.mxu0 %v4325
      %4771 = vmatpush1.bf16.msra.mxu0 %v4324
      %4772 = vmatprep.subr.bf16.mxu0 %v4334
      %4773 = vmatpush1.bf16.msra.mxu0 %v4333
      %4774 = vmatprep.subr.bf16.mxu0 %v4343
      %4775 = vmatpush1.bf16.msra.mxu0 %v4342
      %4776 = vmatprep.subr.bf16.mxu0 %v4352
      %4777 = vmatpush1.bf16.msra.mxu0 %v4351
      %4778 = vmatprep.subr.bf16.mxu0 %v4361
      %4779 = vmatpush1.bf16.msra.mxu0 %v4360
      %4780 = vmatprep.subr.bf16.mxu0 %v4370
      %4781 = vmatpush1.bf16.msra.mxu0 %v4369
      %4782 = vmatprep.subr.bf16.mxu0 %v4379
      %4783 = vmatpush1.bf16.msra.mxu0 %v4378
      %4784 = vmatprep.subr.bf16.mxu0 %v4388
      %4785 = vmatpush1.bf16.msra.mxu0 %v4387
      %4786 = vmatprep.subr.bf16.mxu0 %v4397
      %4787 = vmatpush1.bf16.msra.mxu0 %v4396
      %4788 = vmatprep.subr.bf16.mxu0 %v4406
      %4789 = vmatpush1.bf16.msra.mxu0 %v4405
      %4790 = vmatprep.subr.bf16.mxu0 %v4415
      %4791 = vmatpush1.bf16.msra.mxu0 %v4414
      %4792 = vmatprep.subr.bf16.mxu0 %v4424
      %4793 = vmatpush1.bf16.msra.mxu0 %v4423
      %4794 = vmatprep.subr.bf16.mxu0 %v4433
      %4795 = vmatpush1.bf16.msra.mxu0 %v4432
      %4796 = vmatprep.subr.bf16.mxu0 %v4442
      %4797 = vmatpush1.bf16.msra.mxu0 %v4441
      %4798 = vmatprep.subr.bf16.mxu0 %v4451
      %4799 = vmatpush1.bf16.msra.mxu0 %v4450
      %4800 = vmatprep.mubr.bf16.mxu0 %v3811
      %4801 = vmatmul.mubr.bf16.gmra.mrb[0].mxu0 %v3810
      %v4802 = vpop.f32.mrb[0].mxu0
      %v4803 = vadd.f32 %v3791, %v4802
      %v4804 = vpop.f32.mrb[0].mxu0
      %v4805 = vadd.f32 %v3791, %v4804
      %v4806 = vpop.f32.mrb[0].mxu0
      %v4807 = vadd.f32 %v3796, %v4806
      %v4808 = vpop.f32.mrb[0].mxu0
      %v4809 = vadd.f32 %v3796, %v4808
      %4810 = vdwg.mxu0
      %4811 = vmatprep.subr.bf16.mxu0 %v4460
      %4812 = vmatpush1.bf16.msra.mxu0 %v4459
      %4813 = vmatprep.subr.bf16.mxu0 %v4469
      %4814 = vmatpush1.bf16.msra.mxu0 %v4468
      %4815 = vmatprep.subr.bf16.mxu0 %v4478
      %4816 = vmatpush1.bf16.msra.mxu0 %v4477
      %4817 = vmatprep.subr.bf16.mxu0 %v4487
      %4818 = vmatpush1.bf16.msra.mxu0 %v4486
      %4819 = vmatprep.subr.bf16.mxu0 %v4496
      %4820 = vmatpush1.bf16.msra.mxu0 %v4495
      %4821 = vmatprep.subr.bf16.mxu0 %v4505
      %4822 = vmatpush1.bf16.msra.mxu0 %v4504
      %4823 = vmatprep.subr.bf16.mxu0 %v4514
      %4824 = vmatpush1.bf16.msra.mxu0 %v4513
      %4825 = vmatprep.subr.bf16.mxu0 %v4523
      %4826 = vmatpush1.bf16.msra.mxu0 %v4522
      %4827 = vmatprep.subr.bf16.mxu0 %v4532
      %4828 = vmatpush1.bf16.msra.mxu0 %v4531
      %4829 = vmatprep.subr.bf16.mxu0 0
      %4830 = vmatpush1.bf16.msra.mxu0 0
      %4831 = vmatprep.subr.bf16.mxu0 0
      %4832 = vmatpush1.bf16.msra.mxu0 0
      %4833 = vmatprep.subr.bf16.mxu0 0
      %4834 = vmatpush1.bf16.msra.mxu0 0
      %4835 = vmatprep.subr.bf16.mxu0 0
      %4836 = vmatpush1.bf16.msra.mxu0 0
      %4837 = vmatprep.subr.bf16.mxu0 0
      %4838 = vmatpush1.bf16.msra.mxu0 0
      %4839 = vmatprep.subr.bf16.mxu0 0
      %4840 = vmatpush1.bf16.msra.mxu0 0
      %4841 = vmatprep.subr.bf16.mxu0 0
      %4842 = vmatpush1.bf16.msra.mxu0 0
      %4843 = vmatprep.mubr.bf16.mxu0 %v4766
      %4844 = vmatmul.mubr.bf16.gmra.mrb[0].mxu0 %v3812
      %v4845 = vpop.f32.mrb[0].mxu0
      %v4846 = vadd.f32 %v4803, %v4845
      %v4847 = vpop.f32.mrb[0].mxu0
      %v4848 = vadd.f32 %v4805, %v4847
      %v4849 = vpop.f32.mrb[0].mxu0
      %v4850 = vadd.f32 %v4807, %v4849
      %v4851 = vpop.f32.mrb[0].mxu0
      %v4852 = vadd.f32 %v4809, %v4851
      %4853 = vdwg.mxu0
      %4854 = vmatprep.subr.bf16.mxu0 %v4318
      %4855 = vmatpush1.bf16.msra.mxu0 %v4317
      %4856 = vmatprep.subr.bf16.mxu0 %v4327
      %4857 = vmatpush1.bf16.msra.mxu0 %v4326
      %4858 = vmatprep.subr.bf16.mxu0 %v4336
      %4859 = vmatpush1.bf16.msra.mxu0 %v4335
      %4860 = vmatprep.subr.bf16.mxu0 %v4345
      %4861 = vmatpush1.bf16.msra.mxu0 %v4344
      %4862 = vmatprep.subr.bf16.mxu0 %v4354
      %4863 = vmatpush1.bf16.msra.mxu0 %v4353
      %4864 = vmatprep.subr.bf16.mxu0 %v4363
      %4865 = vmatpush1.bf16.msra.mxu0 %v4362
      %4866 = vmatprep.subr.bf16.mxu0 %v4372
      %4867 = vmatpush1.bf16.msra.mxu0 %v4371
      %4868 = vmatprep.subr.bf16.mxu0 %v4381
      %4869 = vmatpush1.bf16.msra.mxu0 %v4380
      %4870 = vmatprep.subr.bf16.mxu0 %v4390
      %4871 = vmatpush1.bf16.msra.mxu0 %v4389
      %4872 = vmatprep.subr.bf16.mxu0 %v4399
      %4873 = vmatpush1.bf16.msra.mxu0 %v4398
      %4874 = vmatprep.subr.bf16.mxu0 %v4408
      %4875 = vmatpush1.bf16.msra.mxu0 %v4407
      %4876 = vmatprep.subr.bf16.mxu0 %v4417
      %4877 = vmatpush1.bf16.msra.mxu0 %v4416
      %4878 = vmatprep.subr.bf16.mxu0 %v4426
      %4879 = vmatpush1.bf16.msra.mxu0 %v4425
      %4880 = vmatprep.subr.bf16.mxu0 %v4435
      %4881 = vmatpush1.bf16.msra.mxu0 %v4434
      %4882 = vmatprep.subr.bf16.mxu0 %v4444
      %4883 = vmatpush1.bf16.msra.mxu0 %v4443
      %4884 = vmatprep.subr.bf16.mxu0 %v4453
      %4885 = vmatpush1.bf16.msra.mxu0 %v4452
      %4886 = vmatprep.mubr.bf16.mxu0 %v3811
      %4887 = vmatmul.mubr.bf16.gmra.mrb[0].mxu0 %v3810
      %v4888 = vpop.f32.mrb[0].mxu0
      %v4889 = vadd.f32 %v3791, %v4888
      %v4890 = vpop.f32.mrb[0].mxu0
      %v4891 = vadd.f32 %v3791, %v4890
      %v4892 = vpop.f32.mrb[0].mxu0
      %v4893 = vadd.f32 %v3796, %v4892
      %v4894 = vpop.f32.mrb[0].mxu0
      %v4895 = vadd.f32 %v3796, %v4894
      %4896 = vdwg.mxu0
      %4897 = vmatprep.subr.bf16.mxu0 %v4462
      %4898 = vmatpush1.bf16.msra.mxu0 %v4461
      %4899 = vmatprep.subr.bf16.mxu0 %v4471
      %4900 = vmatpush1.bf16.msra.mxu0 %v4470
      %4901 = vmatprep.subr.bf16.mxu0 %v4480
      %4902 = vmatpush1.bf16.msra.mxu0 %v4479
      %4903 = vmatprep.subr.bf16.mxu0 %v4489
      %4904 = vmatpush1.bf16.msra.mxu0 %v4488
      %4905 = vmatprep.subr.bf16.mxu0 %v4498
      %4906 = vmatpush1.bf16.msra.mxu0 %v4497
      %4907 = vmatprep.subr.bf16.mxu0 %v4507
      %4908 = vmatpush1.bf16.msra.mxu0 %v4506
      %4909 = vmatprep.subr.bf16.mxu0 %v4516
      %4910 = vmatpush1.bf16.msra.mxu0 %v4515
      %4911 = vmatprep.subr.bf16.mxu0 %v4525
      %4912 = vmatpush1.bf16.msra.mxu0 %v4524
      %4913 = vmatprep.subr.bf16.mxu0 %v4534
      %4914 = vmatpush1.bf16.msra.mxu0 %v4533
      %4915 = vmatprep.subr.bf16.mxu0 0
      %4916 = vmatpush1.bf16.msra.mxu0 0
      %4917 = vmatprep.subr.bf16.mxu0 0
      %4918 = vmatpush1.bf16.msra.mxu0 0
      %4919 = vmatprep.subr.bf16.mxu0 0
      %4920 = vmatpush1.bf16.msra.mxu0 0
      %4921 = vmatprep.subr.bf16.mxu0 0
      %4922 = vmatpush1.bf16.msra.mxu0 0
      %4923 = vmatprep.subr.bf16.mxu0 0
      %4924 = vmatpush1.bf16.msra.mxu0 0
      %4925 = vmatprep.subr.bf16.mxu0 0
      %4926 = vmatpush1.bf16.msra.mxu0 0
      %4927 = vmatprep.subr.bf16.mxu0 0
      %4928 = vmatpush1.bf16.msra.mxu0 0
      %4929 = vmatprep.mubr.bf16.mxu0 %v4766
      %4930 = vmatmul.mubr.bf16.gmra.mrb[0].mxu0 %v3812
      %v4931 = vpop.f32.mrb[0].mxu0
      %v4932 = vadd.f32 %v4889, %v4931
      %v4933 = vpop.f32.mrb[0].mxu0
      %v4934 = vadd.f32 %v4891, %v4933
      %v4935 = vpop.f32.mrb[0].mxu0
      %v4936 = vadd.f32 %v4893, %v4935
      %v4937 = vpop.f32.mrb[0].mxu0
      %v4938 = vadd.f32 %v4895, %v4937
      %4939 = vdwg.mxu0
      %4940 = vmatprep.subr.bf16.mxu0 %v4320
      %4941 = vmatpush1.bf16.msra.mxu0 %v4319
      %4942 = vmatprep.subr.bf16.mxu0 %v4329
      %4943 = vmatpush1.bf16.msra.mxu0 %v4328
      %4944 = vmatprep.subr.bf16.mxu0 %v4338
      %4945 = vmatpush1.bf16.msra.mxu0 %v4337
      %4946 = vmatprep.subr.bf16.mxu0 %v4347
      %4947 = vmatpush1.bf16.msra.mxu0 %v4346
      %4948 = vmatprep.subr.bf16.mxu0 %v4356
      %4949 = vmatpush1.bf16.msra.mxu0 %v4355
      %4950 = vmatprep.subr.bf16.mxu0 %v4365
      %4951 = vmatpush1.bf16.msra.mxu0 %v4364
      %4952 = vmatprep.subr.bf16.mxu0 %v4374
      %4953 = vmatpush1.bf16.msra.mxu0 %v4373
      %4954 = vmatprep.subr.bf16.mxu0 %v4383
      %4955 = vmatpush1.bf16.msra.mxu0 %v4382
      %4956 = vmatprep.subr.bf16.mxu0 %v4392
      %4957 = vmatpush1.bf16.msra.mxu0 %v4391
      %4958 = vmatprep.subr.bf16.mxu0 %v4401
      %4959 = vmatpush1.bf16.msra.mxu0 %v4400
      %4960 = vmatprep.subr.bf16.mxu0 %v4410
      %4961 = vmatpush1.bf16.msra.mxu0 %v4409
      %4962 = vmatprep.subr.bf16.mxu0 %v4419
      %4963 = vmatpush1.bf16.msra.mxu0 %v4418
      %4964 = vmatprep.subr.bf16.mxu0 %v4428
      %4965 = vmatpush1.bf16.msra.mxu0 %v4427
      %4966 = vmatprep.subr.bf16.mxu0 %v4437
      %4967 = vmatpush1.bf16.msra.mxu0 %v4436
      %4968 = vmatprep.subr.bf16.mxu0 %v4446
      %4969 = vmatpush1.bf16.msra.mxu0 %v4445
      %4970 = vmatprep.subr.bf16.mxu0 %v4455
      %4971 = vmatpush1.bf16.msra.mxu0 %v4454
      %4972 = vmatprep.mubr.bf16.mxu0 %v3811
      %4973 = vmatmul.mubr.bf16.gmra.mrb[0].mxu0 %v3810
      %v4974 = vpop.f32.mrb[0].mxu0
      %v4975 = vadd.f32 %v3791, %v4974
      %v4976 = vpop.f32.mrb[0].mxu0
      %v4977 = vadd.f32 %v3791, %v4976
      %v4978 = vpop.f32.mrb[0].mxu0
      %v4979 = vadd.f32 %v3796, %v4978
      %v4980 = vpop.f32.mrb[0].mxu0
      %v4981 = vadd.f32 %v3796, %v4980
      %4982 = vdwg.mxu0
      %4983 = vmatprep.subr.bf16.mxu0 %v4464
      %4984 = vmatpush1.bf16.msra.mxu0 %v4463
      %4985 = vmatprep.subr.bf16.mxu0 %v4473
      %4986 = vmatpush1.bf16.msra.mxu0 %v4472
      %4987 = vmatprep.subr.bf16.mxu0 %v4482
      %4988 = vmatpush1.bf16.msra.mxu0 %v4481
      %4989 = vmatprep.subr.bf16.mxu0 %v4491
      %4990 = vmatpush1.bf16.msra.mxu0 %v4490
      %4991 = vmatprep.subr.bf16.mxu0 %v4500
      %4992 = vmatpush1.bf16.msra.mxu0 %v4499
      %4993 = vmatprep.subr.bf16.mxu0 %v4509
      %4994 = vmatpush1.bf16.msra.mxu0 %v4508
      %4995 = vmatprep.subr.bf16.mxu0 %v4518
      %4996 = vmatpush1.bf16.msra.mxu0 %v4517
      %4997 = vmatprep.subr.bf16.mxu0 %v4527
      %4998 = vmatpush1.bf16.msra.mxu0 %v4526
      %4999 = vmatprep.subr.bf16.mxu0 %v4536
      %5000 = vmatpush1.bf16.msra.mxu0 %v4535
      %5001 = vmatprep.subr.bf16.mxu0 0
      %5002 = vmatpush1.bf16.msra.mxu0 0
      %5003 = vmatprep.subr.bf16.mxu0 0
      %5004 = vmatpush1.bf16.msra.mxu0 0
      %5005 = vmatprep.subr.bf16.mxu0 0
      %5006 = vmatpush1.bf16.msra.mxu0 0
      %5007 = vmatprep.subr.bf16.mxu0 0
      %5008 = vmatpush1.bf16.msra.mxu0 0
      %5009 = vmatprep.subr.bf16.mxu0 0
      %5010 = vmatpush1.bf16.msra.mxu0 0
      %5011 = vmatprep.subr.bf16.mxu0 0
      %5012 = vmatpush1.bf16.msra.mxu0 0
      %5013 = vmatprep.subr.bf16.mxu0 0
      %5014 = vmatpush1.bf16.msra.mxu0 0
      %5015 = vmatprep.mubr.bf16.mxu0 %v4766
      %5016 = vmatmul.mubr.bf16.gmra.mrb[0].mxu0 %v3812
      %v5017 = vpop.f32.mrb[0].mxu0
      %v5018 = vadd.f32 %v4975, %v5017
      %v5019 = vpop.f32.mrb[0].mxu0
      %v5020 = vadd.f32 %v4977, %v5019
      %v5021 = vpop.f32.mrb[0].mxu0
      %v5022 = vadd.f32 %v4979, %v5021
      %v5023 = vpop.f32.mrb[0].mxu0
      %v5024 = vadd.f32 %v4981, %v5023
      %5025 = vdwg.mxu0
      %5026 = vmatprep.subr.bf16.mxu0 %v4322
      %5027 = vmatpush1.bf16.msra.mxu0 %v4321
      %5028 = vmatprep.subr.bf16.mxu0 %v4331
      %5029 = vmatpush1.bf16.msra.mxu0 %v4330
      %5030 = vmatprep.subr.bf16.mxu0 %v4340
      %5031 = vmatpush1.bf16.msra.mxu0 %v4339
      %5032 = vmatprep.subr.bf16.mxu0 %v4349
      %5033 = vmatpush1.bf16.msra.mxu0 %v4348
      %5034 = vmatprep.subr.bf16.mxu0 %v4358
      %5035 = vmatpush1.bf16.msra.mxu0 %v4357
      %5036 = vmatprep.subr.bf16.mxu0 %v4367
      %5037 = vmatpush1.bf16.msra.mxu0 %v4366
      %5038 = vmatprep.subr.bf16.mxu0 %v4376
      %5039 = vmatpush1.bf16.msra.mxu0 %v4375
      %5040 = vmatprep.subr.bf16.mxu0 %v4385
      %5041 = vmatpush1.bf16.msra.mxu0 %v4384
      %5042 = vmatprep.subr.bf16.mxu0 %v4394
      %5043 = vmatpush1.bf16.msra.mxu0 %v4393
      %5044 = vmatprep.subr.bf16.mxu0 %v4403
      %5045 = vmatpush1.bf16.msra.mxu0 %v4402
      %5046 = vmatprep.subr.bf16.mxu0 %v4412
      %5047 = vmatpush1.bf16.msra.mxu0 %v4411
      %5048 = vmatprep.subr.bf16.mxu0 %v4421
      %5049 = vmatpush1.bf16.msra.mxu0 %v4420
      %5050 = vmatprep.subr.bf16.mxu0 %v4430
      %5051 = vmatpush1.bf16.msra.mxu0 %v4429
      %5052 = vmatprep.subr.bf16.mxu0 %v4439
      %5053 = vmatpush1.bf16.msra.mxu0 %v4438
      %5054 = vmatprep.subr.bf16.mxu0 %v4448
      %5055 = vmatpush1.bf16.msra.mxu0 %v4447
      %5056 = vmatprep.subr.bf16.mxu0 %v4457
      %5057 = vmatpush1.bf16.msra.mxu0 %v4456
      %5058 = vmatprep.mubr.bf16.mxu0 %v3811
      %5059 = vmatmul.mubr.bf16.gmra.mrb[0].mxu0 %v3810
      %v5060 = vpop.f32.mrb[0].mxu0
      %v5061 = vadd.f32 %v3791, %v5060
      %v5062 = vpop.f32.mrb[0].mxu0
      %v5063 = vadd.f32 %v3791, %v5062
      %v5064 = vpop.f32.mrb[0].mxu0
      %v5065 = vadd.f32 %v3796, %v5064
      %v5066 = vpop.f32.mrb[0].mxu0
      %v5067 = vadd.f32 %v3796, %v5066
      %5068 = vdwg.mxu0
      %5069 = vmatprep.subr.bf16.mxu0 %v4466
      %5070 = vmatpush1.bf16.msra.mxu0 %v4465
      %5071 = vmatprep.subr.bf16.mxu0 %v4475
      %5072 = vmatpush1.bf16.msra.mxu0 %v4474
      %5073 = vmatprep.subr.bf16.mxu0 %v4484
      %5074 = vmatpush1.bf16.msra.mxu0 %v4483
      %5075 = vmatprep.subr.bf16.mxu0 %v4493
      %5076 = vmatpush1.bf16.msra.mxu0 %v4492
      %5077 = vmatprep.subr.bf16.mxu0 %v4502
      %5078 = vmatpush1.bf16.msra.mxu0 %v4501
      %5079 = vmatprep.subr.bf16.mxu0 %v4511
      %5080 = vmatpush1.bf16.msra.mxu0 %v4510
      %5081 = vmatprep.subr.bf16.mxu0 %v4520
      %5082 = vmatpush1.bf16.msra.mxu0 %v4519
      %5083 = vmatprep.subr.bf16.mxu0 %v4529
      %5084 = vmatpush1.bf16.msra.mxu0 %v4528
      %5085 = vmatprep.subr.bf16.mxu0 %v4538
      %5086 = vmatpush1.bf16.msra.mxu0 %v4537
      %5087 = vmatprep.subr.bf16.mxu0 0
      %5088 = vmatpush1.bf16.msra.mxu0 0
      %5089 = vmatprep.subr.bf16.mxu0 0
      %5090 = vmatpush1.bf16.msra.mxu0 0
      %5091 = vmatprep.subr.bf16.mxu0 0
      %5092 = vmatpush1.bf16.msra.mxu0 0
      %5093 = vmatprep.subr.bf16.mxu0 0
      %5094 = vmatpush1.bf16.msra.mxu0 0
      %5095 = vmatprep.subr.bf16.mxu0 0
      %5096 = vmatpush1.bf16.msra.mxu0 0
      %5097 = vmatprep.subr.bf16.mxu0 0
      %5098 = vmatpush1.bf16.msra.mxu0 0
      %5099 = vmatprep.subr.bf16.mxu0 0
      %5100 = vmatpush1.bf16.msra.mxu0 0
      %5101 = vmatprep.mubr.bf16.mxu0 %v4766
      %5102 = vmatmul.mubr.bf16.gmra.mrb[0].mxu0 %v3812
      %v5103 = vpop.f32.mrb[0].mxu0
      %v5104 = vadd.f32 %v5061, %v5103
      %v5105 = vpop.f32.mrb[0].mxu0
      %v5106 = vadd.f32 %v5063, %v5105
      %v5107 = vpop.f32.mrb[0].mxu0
      %v5108 = vadd.f32 %v5065, %v5107
      %v5109 = vpop.f32.mrb[0].mxu0
      %v5110 = vadd.f32 %v5067, %v5109
      %5111 = vdwg.mxu0
      %5112 = vmatprep.subr.bf16.mxu0 0
      %5113 = vmatpush1.bf16.msra.mxu0 %v4323
      %5114 = vmatprep.subr.bf16.mxu0 0
      %5115 = vmatpush1.bf16.msra.mxu0 %v4332
      %5116 = vmatprep.subr.bf16.mxu0 0
      %5117 = vmatpush1.bf16.msra.mxu0 %v4341
      %5118 = vmatprep.subr.bf16.mxu0 0
      %5119 = vmatpush1.bf16.msra.mxu0 %v4350
      %5120 = vmatprep.subr.bf16.mxu0 0
      %5121 = vmatpush1.bf16.msra.mxu0 %v4359
      %5122 = vmatprep.subr.bf16.mxu0 0
      %5123 = vmatpush1.bf16.msra.mxu0 %v4368
      %5124 = vmatprep.subr.bf16.mxu0 0
      %5125 = vmatpush1.bf16.msra.mxu0 %v4377
      %5126 = vmatprep.subr.bf16.mxu0 0
      %5127 = vmatpush1.bf16.msra.mxu0 %v4386
      %5128 = vmatprep.subr.bf16.mxu0 0
      %5129 = vmatpush1.bf16.msra.mxu0 %v4395
      %5130 = vmatprep.subr.bf16.mxu0 0
      %5131 = vmatpush1.bf16.msra.mxu0 %v4404
      %5132 = vmatprep.subr.bf16.mxu0 0
      %5133 = vmatpush1.bf16.msra.mxu0 %v4413
      %5134 = vmatprep.subr.bf16.mxu0 0
      %5135 = vmatpush1.bf16.msra.mxu0 %v4422
      %5136 = vmatprep.subr.bf16.mxu0 0
      %5137 = vmatpush1.bf16.msra.mxu0 %v4431
      %5138 = vmatprep.subr.bf16.mxu0 0
      %5139 = vmatpush1.bf16.msra.mxu0 %v4440
      %5140 = vmatprep.subr.bf16.mxu0 0
      %5141 = vmatpush1.bf16.msra.mxu0 %v4449
      %5142 = vmatprep.subr.bf16.mxu0 0
      %5143 = vmatpush1.bf16.msra.mxu0 %v4458
      %5144 = vmatprep.mubr.bf16.mxu0 %v3811
      %5145 = vmatmul.mubr.bf16.gmra.mrb[0].mxu0 %v3810
      %v5146 = vpop.f32.mrb[0].mxu0
      %v5147 = vadd.f32 %v3791, %v5146
      %v5148 = vpop.f32.mrb[0].mxu0
      %v5149 = vpop.f32.mrb[0].mxu0
      %v5150 = vadd.f32 %v3796, %v5149
      %v5151 = vpop.f32.mrb[0].mxu0
      %5152 = vdwg.mxu0
      %5153 = vmatprep.subr.bf16.mxu0 0
      %5154 = vmatpush1.bf16.msra.mxu0 %v4467
      %5155 = vmatprep.subr.bf16.mxu0 0
      %5156 = vmatpush1.bf16.msra.mxu0 %v4476
      %5157 = vmatprep.subr.bf16.mxu0 0
      %5158 = vmatpush1.bf16.msra.mxu0 %v4485
      %5159 = vmatprep.subr.bf16.mxu0 0
      %5160 = vmatpush1.bf16.msra.mxu0 %v4494
      %5161 = vmatprep.subr.bf16.mxu0 0
      %5162 = vmatpush1.bf16.msra.mxu0 %v4503
      %5163 = vmatprep.subr.bf16.mxu0 0
      %5164 = vmatpush1.bf16.msra.mxu0 %v4512
      %5165 = vmatprep.subr.bf16.mxu0 0
      %5166 = vmatpush1.bf16.msra.mxu0 %v4521
      %5167 = vmatprep.subr.bf16.mxu0 0
      %5168 = vmatpush1.bf16.msra.mxu0 %v4530
      %5169 = vmatprep.subr.bf16.mxu0 0
      %5170 = vmatpush1.bf16.msra.mxu0 %v4539
      %5171 = vmatprep.subr.bf16.mxu0 0
      %5172 = vmatpush1.bf16.msra.mxu0 0
      %5173 = vmatprep.subr.bf16.mxu0 0
      %5174 = vmatpush1.bf16.msra.mxu0 0
      %5175 = vmatprep.subr.bf16.mxu0 0
      %5176 = vmatpush1.bf16.msra.mxu0 0
      %5177 = vmatprep.subr.bf16.mxu0 0
      %5178 = vmatpush1.bf16.msra.mxu0 0
      %5179 = vmatprep.subr.bf16.mxu0 0
      %5180 = vmatpush1.bf16.msra.mxu0 0
      %5181 = vmatprep.subr.bf16.mxu0 0
      %5182 = vmatpush1.bf16.msra.mxu0 0
      %5183 = vmatprep.subr.bf16.mxu0 0
      %5184 = vmatpush1.bf16.msra.mxu0 0
      %5185 = vmatprep.mubr.bf16.mxu0 %v4766
      %5186 = vmatmul.mubr.bf16.gmra.mrb[0].mxu0 %v3812
      %v5187 = vpop.f32.mrb[0].mxu0
      %v5188 = vadd.f32 %v5147, %v5187
      %v5189 = vpop.f32.mrb[0].mxu0
      %v5190 = vpop.f32.mrb[0].mxu0
      %v5191 = vadd.f32 %v5150, %v5190
      %v5192 = vpop.f32.mrb[0].mxu0
      %5193 = vdwg.mxu0
      %v5194 = vmax.f32 %v4846, 0.0
      %v5195 = vmax.f32 %v4848, 0.0
      %v5196 = vmax.f32 %v4932, 0.0
      %v5197 = vmax.f32 %v4934, 0.0
      %v5198 = vmax.f32 %v5018, 0.0
      %v5199 = vmax.f32 %v5020, 0.0
      %v5200 = vmax.f32 %v5104, 0.0
      %v5201 = vmax.f32 %v5106, 0.0
      %v5202 = vmax.f32 %v5188, 0.0
      %v5203 = vmax.f32 %v4850, 0.0
      %v5204 = vmax.f32 %v4852, 0.0
      %v5205 = vmax.f32 %v4936, 0.0
      %v5206 = vmax.f32 %v4938, 0.0
      %v5207 = vmax.f32 %v5022, 0.0
      %v5208 = vmax.f32 %v5024, 0.0
      %v5209 = vmax.f32 %v5108, 0.0
      %v5210 = vmax.f32 %v5110, 0.0
      %v5211 = vmax.f32 %v5191, 0.0
      %v5212 = vld [vmem:[%s7] sm:$0xff]
      %v5213 = vld [vmem:[%s7 + $0x8] sm:$0xff]
      %5215 = vset.pattern.permute.xlu0 0
      %5216 = vperm.xlu0 %5215, %v5212
      %v5217 = vpop.permute.xlu0 %5216
      %5220 = vset.pattern.permute.xlu0 0
      %5221 = vperm.xlu0 %5220, %v5213
      %v5222 = vpop.permute.xlu0 %5221
      %v5224 = vmul.f32 %v5194, %v5217
      %v5225 = vmul.f32 %v5195, %v5217
      %v5226 = vmul.f32 %v5196, %v5217
      %v5227 = vmul.f32 %v5197, %v5217
      %v5228 = vmul.f32 %v5198, %v5217
      %v5229 = vmul.f32 %v5199, %v5217
      %v5230 = vmul.f32 %v5200, %v5217
      %v5231 = vmul.f32 %v5201, %v5217
      %v5232 = vmul.f32 %v5202, %v5217
      %v5233 = vmul.f32 %v5203, %v5222
      %v5234 = vmul.f32 %v5204, %v5222
      %v5235 = vmul.f32 %v5205, %v5222
      %v5236 = vmul.f32 %v5206, %v5222
      %v5237 = vmul.f32 %v5207, %v5222
      %v5238 = vmul.f32 %v5208, %v5222
      %v5239 = vmul.f32 %v5209, %v5222
      %v5240 = vmul.f32 %v5210, %v5222
      %v5241 = vmul.f32 %v5211, %v5222
      %v5242 = vld [vmem:[%s8] sm:$0xff]
      %v5243 = vld [vmem:[%s8 + $0x8] sm:$0xff]
      %5245 = vset.pattern.permute.xlu0 0
      %5246 = vperm.xlu0 %5245, %v5242
      %v5247 = vpop.permute.xlu0 %5246
      %5250 = vset.pattern.permute.xlu0 0
      %5251 = vperm.xlu0 %5250, %v5243
      %v5252 = vpop.permute.xlu0 %5251
      %v5254 = vadd.f32 %v5224, %v5247
      %v5255 = vadd.f32 %v5225, %v5247
      %v5256 = vadd.f32 %v5226, %v5247
      %v5257 = vadd.f32 %v5227, %v5247
      %v5258 = vadd.f32 %v5228, %v5247
      %v5259 = vadd.f32 %v5229, %v5247
      %v5260 = vadd.f32 %v5230, %v5247
      %v5261 = vadd.f32 %v5231, %v5247
      %v5262 = vadd.f32 %v5232, %v5247
      %v5263 = vadd.f32 %v5233, %v5252
      %v5264 = vadd.f32 %v5234, %v5252
      %v5265 = vadd.f32 %v5235, %v5252
      %v5266 = vadd.f32 %v5236, %v5252
      %v5267 = vadd.f32 %v5237, %v5252
      %v5268 = vadd.f32 %v5238, %v5252
      %v5269 = vadd.f32 %v5239, %v5252
      %v5270 = vadd.f32 %v5240, %v5252
      %v5271 = vadd.f32 %v5241, %v5252
      %v5272 = vpack.c.bf16 %v5263, %v5254
      %v5273 = vpack.c.bf16 %v5264, %v5255
      %v5274 = vpack.c.bf16 %v5265, %v5256
      %v5275 = vpack.c.bf16 %v5266, %v5257
      %v5276 = vpack.c.bf16 %v5267, %v5258
      %v5277 = vpack.c.bf16 %v5268, %v5259
      %v5278 = vpack.c.bf16 %v5269, %v5260
      %v5279 = vpack.c.bf16 %v5270, %v5261
      %v5280 = vpack.c.bf16 %v5271, %v5262
      %v5281 = vld [vmem:[%s19] sm:$0xff]
      %v5282 = vld [vmem:[%s19 + $0x8] sm:$0xf]
      %v5283 = vld [vmem:[%s19 + $0xc] sm:$0xff]
      %v5284 = vld [vmem:[%s19 + $0x14] sm:$0xf]
      %v5285 = vld [vmem:[%s19 + $0x18] sm:$0xff]
      %v5286 = vld [vmem:[%s19 + $0x20] sm:$0xf]
      %v5287 = vld [vmem:[%s19 + $0x24] sm:$0xff]
      %v5288 = vld [vmem:[%s19 + $0x2c] sm:$0xf]
      %v5289 = vld [vmem:[%s19 + $0x30] sm:$0xff]
      %v5290 = vld [vmem:[%s19 + $0x38] sm:$0xf]
      %v5291 = vld [vmem:[%s19 + $0x3c] sm:$0xff]
      %v5292 = vld [vmem:[%s19 + $0x44] sm:$0xf]
      %v5293 = vld [vmem:[%s19 + $0x48] sm:$0xff]
      %v5294 = vld [vmem:[%s19 + $0x50] sm:$0xf]
      %v5295 = vld [vmem:[%s19 + $0x54] sm:$0xff]
      %v5296 = vld [vmem:[%s19 + $0x5c] sm:$0xf]
      %v5297 = vld [vmem:[%s19 + $0x60] sm:$0xff]
      %v5298 = vld [vmem:[%s19 + $0x68] sm:$0xf]
      %v5299 = vld [vmem:[%s19 + $0x6c] sm:$0xff]
      %v5300 = vld [vmem:[%s19 + $0x74] sm:$0xf]
      %v5301 = vld [vmem:[%s19 + $0x78] sm:$0xff]
      %v5302 = vld [vmem:[%s19 + $0x80] sm:$0xf]
      %v5303 = vld [vmem:[%s19 + $0x84] sm:$0xff]
      %v5304 = vld [vmem:[%s19 + $0x8c] sm:$0xf]
      %v5305 = vld [vmem:[%s19 + $0x90] sm:$0xff]
      %v5306 = vld [vmem:[%s19 + $0x98] sm:$0xf]
      %v5307 = vld [vmem:[%s19 + $0x9c] sm:$0xff]
      %v5308 = vld [vmem:[%s19 + $0xa4] sm:$0xf]
      %v5309 = vld [vmem:[%s19 + $0xa8] sm:$0xff]
      %v5310 = vld [vmem:[%s19 + $0xb0] sm:$0xf]
      %v5311 = vld [vmem:[%s19 + $0xb4] sm:$0xff]
      %v5312 = vld [vmem:[%s19 + $0xbc] sm:$0xf]
      %v5313 = vld [vmem:[%s19 + $0xc0] sm:$0xff]
      %v5314 = vld [vmem:[%s19 + $0xc8] sm:$0xf]
      %v5315 = vld [vmem:[%s19 + $0xcc] sm:$0xff]
      %v5316 = vld [vmem:[%s19 + $0xd4] sm:$0xf]
      %v5317 = vld [vmem:[%s19 + $0xd8] sm:$0xff]
      %v5318 = vld [vmem:[%s19 + $0xe0] sm:$0xf]
      %v5319 = vld [vmem:[%s19 + $0xe4] sm:$0xff]
      %v5320 = vld [vmem:[%s19 + $0xec] sm:$0xf]
      %v5321 = vld [vmem:[%s19 + $0xf0] sm:$0xff]
      %v5322 = vld [vmem:[%s19 + $0xf8] sm:$0xf]
      %v5323 = vld [vmem:[%s19 + $0xfc] sm:$0xff]
      %v5324 = vld [vmem:[%s19 + $0x104] sm:$0xf]
      %v5325 = vld [vmem:[%s19 + $0x108] sm:$0xff]
      %v5326 = vld [vmem:[%s19 + $0x110] sm:$0xf]
      %v5327 = vld [vmem:[%s19 + $0x114] sm:$0xff]
      %v5328 = vld [vmem:[%s19 + $0x11c] sm:$0xf]
      %v5329 = vld [vmem:[%s19 + $0x120] sm:$0xff]
      %v5330 = vld [vmem:[%s19 + $0x128] sm:$0xf]
      %v5331 = vld [vmem:[%s19 + $0x12c] sm:$0xff]
      %v5332 = vld [vmem:[%s19 + $0x134] sm:$0xf]
      %v5333 = vld [vmem:[%s19 + $0x138] sm:$0xff]
      %v5334 = vld [vmem:[%s19 + $0x140] sm:$0xf]
      %v5335 = vld [vmem:[%s19 + $0x144] sm:$0xff]
      %v5336 = vld [vmem:[%s19 + $0x14c] sm:$0xf]
      %v5337 = vld [vmem:[%s19 + $0x150] sm:$0xff]
      %v5338 = vld [vmem:[%s19 + $0x158] sm:$0xf]
      %v5339 = vld [vmem:[%s19 + $0x15c] sm:$0xff]
      %v5340 = vld [vmem:[%s19 + $0x164] sm:$0xf]
      %v5341 = vld [vmem:[%s19 + $0x168] sm:$0xff]
      %v5342 = vld [vmem:[%s19 + $0x170] sm:$0xf]
      %v5343 = vld [vmem:[%s19 + $0x174] sm:$0xff]
      %v5344 = vld [vmem:[%s19 + $0x17c] sm:$0xf]
      %v5345 = vld [vmem:[%s19 + $0x180] sm:$0xff]
      %v5346 = vld [vmem:[%s19 + $0x188] sm:$0xf]
      %v5347 = vld [vmem:[%s19 + $0x18c] sm:$0xff]
      %v5348 = vld [vmem:[%s19 + $0x194] sm:$0xf]
      %v5349 = vld [vmem:[%s19 + $0x198] sm:$0xff]
      %v5350 = vld [vmem:[%s19 + $0x1a0] sm:$0xf]
      %v5351 = vld [vmem:[%s19 + $0x1a4] sm:$0xff]
      %v5352 = vld [vmem:[%s19 + $0x1ac] sm:$0xf]
      %v5353 = vld [vmem:[%s19 + $0x1b0] sm:$0xff]
      %v5354 = vld [vmem:[%s19 + $0x1b8] sm:$0xf]
      %v5355 = vld [vmem:[%s19 + $0x1bc] sm:$0xff]
      %v5356 = vld [vmem:[%s19 + $0x1c4] sm:$0xf]
      %v5357 = vld [vmem:[%s19 + $0x1c8] sm:$0xff]
      %v5358 = vld [vmem:[%s19 + $0x1d0] sm:$0xf]
      %v5359 = vld [vmem:[%s19 + $0x1d4] sm:$0xff]
      %v5360 = vld [vmem:[%s19 + $0x1dc] sm:$0xf]
      %v5361 = vld [vmem:[%s19 + $0x1e0] sm:$0xff]
      %v5362 = vld [vmem:[%s19 + $0x1e8] sm:$0xf]
      %v5363 = vld [vmem:[%s19 + $0x1ec] sm:$0xff]
      %v5364 = vld [vmem:[%s19 + $0x1f4] sm:$0xf]
      %v5365 = vld [vmem:[%s19 + $0x1f8] sm:$0xff]
      %v5366 = vld [vmem:[%s19 + $0x200] sm:$0xf]
      %v5367 = vld [vmem:[%s19 + $0x204] sm:$0xff]
      %v5368 = vld [vmem:[%s19 + $0x20c] sm:$0xf]
      %v5369 = vld [vmem:[%s19 + $0x210] sm:$0xff]
      %v5370 = vld [vmem:[%s19 + $0x218] sm:$0xf]
      %v5371 = vld [vmem:[%s19 + $0x21c] sm:$0xff]
      %v5372 = vld [vmem:[%s19 + $0x224] sm:$0xf]
      %v5373 = vld [vmem:[%s19 + $0x228] sm:$0xff]
      %v5374 = vld [vmem:[%s19 + $0x230] sm:$0xf]
      %v5375 = vld [vmem:[%s19 + $0x234] sm:$0xff]
      %v5376 = vld [vmem:[%s19 + $0x23c] sm:$0xf]
      %v5377 = vld [vmem:[%s19 + $0x240] sm:$0xff]
      %v5378 = vld [vmem:[%s19 + $0x248] sm:$0xf]
      %v5379 = vld [vmem:[%s19 + $0x24c] sm:$0xff]
      %v5380 = vld [vmem:[%s19 + $0x254] sm:$0xf]
      %v5381 = vld [vmem:[%s19 + $0x258] sm:$0xff]
      %v5382 = vld [vmem:[%s19 + $0x260] sm:$0xf]
      %v5383 = vld [vmem:[%s19 + $0x264] sm:$0xff]
      %v5384 = vld [vmem:[%s19 + $0x26c] sm:$0xf]
      %v5385 = vld [vmem:[%s19 + $0x270] sm:$0xff]
      %v5386 = vld [vmem:[%s19 + $0x278] sm:$0xf]
      %v5387 = vld [vmem:[%s19 + $0x27c] sm:$0xff]
      %v5388 = vld [vmem:[%s19 + $0x284] sm:$0xf]
      %v5389 = vld [vmem:[%s19 + $0x288] sm:$0xff]
      %v5390 = vld [vmem:[%s19 + $0x290] sm:$0xf]
      %v5391 = vld [vmem:[%s19 + $0x294] sm:$0xff]
      %v5392 = vld [vmem:[%s19 + $0x29c] sm:$0xf]
      %v5393 = vld [vmem:[%s19 + $0x2a0] sm:$0xff]
      %v5394 = vld [vmem:[%s19 + $0x2a8] sm:$0xf]
      %v5395 = vld [vmem:[%s19 + $0x2ac] sm:$0xff]
      %v5396 = vld [vmem:[%s19 + $0x2b4] sm:$0xf]
      %v5397 = vld [vmem:[%s19 + $0x2b8] sm:$0xff]
      %v5398 = vld [vmem:[%s19 + $0x2c0] sm:$0xf]
      %v5399 = vld [vmem:[%s19 + $0x2c4] sm:$0xff]
      %v5400 = vld [vmem:[%s19 + $0x2cc] sm:$0xf]
      %v5401 = vld [vmem:[%s19 + $0x2d0] sm:$0xff]
      %v5402 = vld [vmem:[%s19 + $0x2d8] sm:$0xf]
      %v5403 = vld [vmem:[%s19 + $0x2dc] sm:$0xff]
      %v5404 = vld [vmem:[%s19 + $0x2e4] sm:$0xf]
      %v5405 = vld [vmem:[%s19 + $0x2e8] sm:$0xff]
      %v5406 = vld [vmem:[%s19 + $0x2f0] sm:$0xf]
      %v5407 = vld [vmem:[%s19 + $0x2f4] sm:$0xff]
      %v5408 = vld [vmem:[%s19 + $0x2fc] sm:$0xf]
      %v5409 = vld [vmem:[%s19 + $0x300] sm:$0xff]
      %v5410 = vld [vmem:[%s19 + $0x308] sm:$0xf]
      %v5411 = vld [vmem:[%s19 + $0x30c] sm:$0xff]
      %v5412 = vld [vmem:[%s19 + $0x314] sm:$0xf]
      %v5413 = vld [vmem:[%s19 + $0x318] sm:$0xff]
      %v5414 = vld [vmem:[%s19 + $0x320] sm:$0xf]
      %v5415 = vld [vmem:[%s19 + $0x324] sm:$0xff]
      %v5416 = vld [vmem:[%s19 + $0x32c] sm:$0xf]
      %v5417 = vld [vmem:[%s19 + $0x330] sm:$0xff]
      %v5418 = vld [vmem:[%s19 + $0x338] sm:$0xf]
      %v5419 = vld [vmem:[%s19 + $0x33c] sm:$0xff]
      %v5420 = vld [vmem:[%s19 + $0x344] sm:$0xf]
      %v5421 = vld [vmem:[%s19 + $0x348] sm:$0xff]
      %v5422 = vld [vmem:[%s19 + $0x350] sm:$0xf]
      %v5423 = vld [vmem:[%s19 + $0x354] sm:$0xff]
      %v5424 = vld [vmem:[%s19 + $0x35c] sm:$0xf]
      %v5425 = vld [vmem:[%s19 + $0x360] sm:$0xff]
      %v5426 = vld [vmem:[%s19 + $0x368] sm:$0xf]
      %v5427 = vld [vmem:[%s19 + $0x36c] sm:$0xff]
      %v5428 = vld [vmem:[%s19 + $0x374] sm:$0xf]
      %v5429 = vld [vmem:[%s19 + $0x378] sm:$0xff]
      %v5430 = vld [vmem:[%s19 + $0x380] sm:$0xf]
      %v5431 = vld [vmem:[%s19 + $0x384] sm:$0xff]
      %v5432 = vld [vmem:[%s19 + $0x38c] sm:$0xf]
      %v5433 = vld [vmem:[%s19 + $0x390] sm:$0xff]
      %v5434 = vld [vmem:[%s19 + $0x398] sm:$0xf]
      %v5435 = vld [vmem:[%s19 + $0x39c] sm:$0xff]
      %v5436 = vld [vmem:[%s19 + $0x3a4] sm:$0xf]
      %v5437 = vld [vmem:[%s19 + $0x3a8] sm:$0xff]
      %v5438 = vld [vmem:[%s19 + $0x3b0] sm:$0xf]
      %v5439 = vld [vmem:[%s19 + $0x3b4] sm:$0xff]
      %v5440 = vld [vmem:[%s19 + $0x3bc] sm:$0xf]
      %v5441 = vld [vmem:[%s19 + $0x3c0] sm:$0xff]
      %v5442 = vld [vmem:[%s19 + $0x3c8] sm:$0xf]
      %v5443 = vld [vmem:[%s19 + $0x3cc] sm:$0xff]
      %v5444 = vld [vmem:[%s19 + $0x3d4] sm:$0xf]
      %v5445 = vld [vmem:[%s19 + $0x3d8] sm:$0xff]
      %v5446 = vld [vmem:[%s19 + $0x3e0] sm:$0xf]
      %v5447 = vld [vmem:[%s19 + $0x3e4] sm:$0xff]
      %v5448 = vld [vmem:[%s19 + $0x3ec] sm:$0xf]
      %v5449 = vld [vmem:[%s19 + $0x3f0] sm:$0xff]
      %v5450 = vld [vmem:[%s19 + $0x3f8] sm:$0xf]
      %v5451 = vld [vmem:[%s19 + $0x3fc] sm:$0xff]
      %v5452 = vld [vmem:[%s19 + $0x404] sm:$0xf]
      %v5453 = vld [vmem:[%s19 + $0x408] sm:$0xff]
      %v5454 = vld [vmem:[%s19 + $0x410] sm:$0xf]
      %v5455 = vld [vmem:[%s19 + $0x414] sm:$0xff]
      %v5456 = vld [vmem:[%s19 + $0x41c] sm:$0xf]
      %v5457 = vld [vmem:[%s19 + $0x420] sm:$0xff]
      %v5458 = vld [vmem:[%s19 + $0x428] sm:$0xf]
      %v5459 = vld [vmem:[%s19 + $0x42c] sm:$0xff]
      %v5460 = vld [vmem:[%s19 + $0x434] sm:$0xf]
      %v5461 = vld [vmem:[%s19 + $0x438] sm:$0xff]
      %v5462 = vld [vmem:[%s19 + $0x440] sm:$0xf]
      %v5463 = vld [vmem:[%s19 + $0x444] sm:$0xff]
      %v5464 = vld [vmem:[%s19 + $0x44c] sm:$0xf]
      %v5465 = vld [vmem:[%s19 + $0x450] sm:$0xff]
      %v5466 = vld [vmem:[%s19 + $0x458] sm:$0xf]
      %v5467 = vld [vmem:[%s19 + $0x45c] sm:$0xff]
      %v5468 = vld [vmem:[%s19 + $0x464] sm:$0xf]
      %v5469 = vld [vmem:[%s19 + $0x468] sm:$0xff]
      %v5470 = vld [vmem:[%s19 + $0x470] sm:$0xf]
      %v5471 = vld [vmem:[%s19 + $0x474] sm:$0xff]
      %v5472 = vld [vmem:[%s19 + $0x47c] sm:$0xf]
      %v5473 = vld [vmem:[%s19 + $0x480] sm:$0xff]
      %v5474 = vld [vmem:[%s19 + $0x488] sm:$0xf]
      %v5475 = vld [vmem:[%s19 + $0x48c] sm:$0xff]
      %v5476 = vld [vmem:[%s19 + $0x494] sm:$0xf]
      %v5477 = vld [vmem:[%s19 + $0x498] sm:$0xff]
      %v5478 = vld [vmem:[%s19 + $0x4a0] sm:$0xf]
      %v5479 = vld [vmem:[%s19 + $0x4a4] sm:$0xff]
      %v5480 = vld [vmem:[%s19 + $0x4ac] sm:$0xf]
      %v5481 = vld [vmem:[%s19 + $0x4b0] sm:$0xff]
      %v5482 = vld [vmem:[%s19 + $0x4b8] sm:$0xf]
      %v5483 = vld [vmem:[%s19 + $0x4bc] sm:$0xff]
      %v5484 = vld [vmem:[%s19 + $0x4c4] sm:$0xf]
      %v5485 = vld [vmem:[%s19 + $0x4c8] sm:$0xff]
      %v5486 = vld [vmem:[%s19 + $0x4d0] sm:$0xf]
      %v5487 = vld [vmem:[%s19 + $0x4d4] sm:$0xff]
      %v5488 = vld [vmem:[%s19 + $0x4dc] sm:$0xf]
      %v5489 = vld [vmem:[%s19 + $0x4e0] sm:$0xff]
      %v5490 = vld [vmem:[%s19 + $0x4e8] sm:$0xf]
      %v5491 = vld [vmem:[%s19 + $0x4ec] sm:$0xff]
      %v5492 = vld [vmem:[%s19 + $0x4f4] sm:$0xf]
      %v5493 = vld [vmem:[%s19 + $0x4f8] sm:$0xff]
      %v5494 = vld [vmem:[%s19 + $0x500] sm:$0xf]
      %v5495 = vld [vmem:[%s19 + $0x504] sm:$0xff]
      %v5496 = vld [vmem:[%s19 + $0x50c] sm:$0xf]
      %v5497 = vld [vmem:[%s19 + $0x510] sm:$0xff]
      %v5498 = vld [vmem:[%s19 + $0x518] sm:$0xf]
      %v5499 = vld [vmem:[%s19 + $0x51c] sm:$0xff]
      %v5500 = vld [vmem:[%s19 + $0x524] sm:$0xf]
      %v5501 = vld [vmem:[%s19 + $0x528] sm:$0xff]
      %v5502 = vld [vmem:[%s19 + $0x530] sm:$0xf]
      %v5503 = vld [vmem:[%s19 + $0x534] sm:$0xff]
      %v5504 = vld [vmem:[%s19 + $0x53c] sm:$0xf]
      %v5505 = vld [vmem:[%s19 + $0x540] sm:$0xff]
      %v5506 = vld [vmem:[%s19 + $0x548] sm:$0xf]
      %v5507 = vld [vmem:[%s19 + $0x54c] sm:$0xff]
      %v5508 = vld [vmem:[%s19 + $0x554] sm:$0xf]
      %v5509 = vld [vmem:[%s19 + $0x558] sm:$0xff]
      %v5510 = vld [vmem:[%s19 + $0x560] sm:$0xf]
      %v5511 = vld [vmem:[%s19 + $0x564] sm:$0xff]
      %v5512 = vld [vmem:[%s19 + $0x56c] sm:$0xf]
      %v5513 = vld [vmem:[%s19 + $0x570] sm:$0xff]
      %v5514 = vld [vmem:[%s19 + $0x578] sm:$0xf]
      %v5515 = vld [vmem:[%s19 + $0x57c] sm:$0xff]
      %v5516 = vld [vmem:[%s19 + $0x584] sm:$0xf]
      %v5517 = vld [vmem:[%s19 + $0x588] sm:$0xff]
      %v5518 = vld [vmem:[%s19 + $0x590] sm:$0xf]
      %v5519 = vld [vmem:[%s19 + $0x594] sm:$0xff]
      %v5520 = vld [vmem:[%s19 + $0x59c] sm:$0xf]
      %v5521 = vld [vmem:[%s19 + $0x5a0] sm:$0xff]
      %v5522 = vld [vmem:[%s19 + $0x5a8] sm:$0xf]
      %v5523 = vld [vmem:[%s19 + $0x5ac] sm:$0xff]
      %v5524 = vld [vmem:[%s19 + $0x5b4] sm:$0xf]
      %v5525 = vld [vmem:[%s19 + $0x5b8] sm:$0xff]
      %v5526 = vld [vmem:[%s19 + $0x5c0] sm:$0xf]
      %v5527 = vld [vmem:[%s19 + $0x5c4] sm:$0xff]
      %v5528 = vld [vmem:[%s19 + $0x5cc] sm:$0xf]
      %v5529 = vld [vmem:[%s19 + $0x5d0] sm:$0xff]
      %v5530 = vld [vmem:[%s19 + $0x5d8] sm:$0xf]
      %v5531 = vld [vmem:[%s19 + $0x5dc] sm:$0xff]
      %v5532 = vld [vmem:[%s19 + $0x5e4] sm:$0xf]
      %v5533 = vld [vmem:[%s19 + $0x5e8] sm:$0xff]
      %v5534 = vld [vmem:[%s19 + $0x5f0] sm:$0xf]
      %v5535 = vld [vmem:[%s19 + $0x5f4] sm:$0xff]
      %v5536 = vld [vmem:[%s19 + $0x5fc] sm:$0xf]
      %v5537 = vld [vmem:[%s19 + $0x600] sm:$0xff]
      %v5538 = vld [vmem:[%s19 + $0x608] sm:$0xf]
      %v5539 = vld [vmem:[%s19 + $0x60c] sm:$0xff]
      %v5540 = vld [vmem:[%s19 + $0x614] sm:$0xf]
      %v5541 = vld [vmem:[%s19 + $0x618] sm:$0xff]
      %v5542 = vld [vmem:[%s19 + $0x620] sm:$0xf]
      %v5543 = vld [vmem:[%s19 + $0x624] sm:$0xff]
      %v5544 = vld [vmem:[%s19 + $0x62c] sm:$0xf]
      %v5545 = vld [vmem:[%s19 + $0x630] sm:$0xff]
      %v5546 = vld [vmem:[%s19 + $0x638] sm:$0xf]
      %v5547 = vld [vmem:[%s19 + $0x63c] sm:$0xff]
      %v5548 = vld [vmem:[%s19 + $0x644] sm:$0xf]
      %v5549 = vld [vmem:[%s19 + $0x648] sm:$0xff]
      %v5550 = vld [vmem:[%s19 + $0x650] sm:$0xf]
      %v5551 = vld [vmem:[%s19 + $0x654] sm:$0xff]
      %v5552 = vld [vmem:[%s19 + $0x65c] sm:$0xf]
      %v5553 = vld [vmem:[%s19 + $0x660] sm:$0xff]
      %v5554 = vld [vmem:[%s19 + $0x668] sm:$0xf]
      %v5555 = vld [vmem:[%s19 + $0x66c] sm:$0xff]
      %v5556 = vld [vmem:[%s19 + $0x674] sm:$0xf]
      %v5557 = vld [vmem:[%s19 + $0x678] sm:$0xff]
      %v5558 = vld [vmem:[%s19 + $0x680] sm:$0xf]
      %v5559 = vld [vmem:[%s19 + $0x684] sm:$0xff]
      %v5560 = vld [vmem:[%s19 + $0x68c] sm:$0xf]
      %v5561 = vld [vmem:[%s19 + $0x690] sm:$0xff]
      %v5562 = vld [vmem:[%s19 + $0x698] sm:$0xf]
      %v5563 = vld [vmem:[%s19 + $0x69c] sm:$0xff]
      %v5564 = vld [vmem:[%s19 + $0x6a4] sm:$0xf]
      %v5565 = vld [vmem:[%s19 + $0x6a8] sm:$0xff]
      %v5566 = vld [vmem:[%s19 + $0x6b0] sm:$0xf]
      %v5567 = vld [vmem:[%s19 + $0x6b4] sm:$0xff]
      %v5568 = vld [vmem:[%s19 + $0x6bc] sm:$0xf]
      %v5857 = vunpack.c.l.b16 %v5281
      %v5858 = vunpack.c.h.b16 %v5281
      %v5859 = vunpack.c.l.b16 %v5282
      %v5860 = vunpack.c.l.b16 %v5283
      %v5861 = vunpack.c.h.b16 %v5283
      %v5862 = vunpack.c.l.b16 %v5284
      %v5863 = vunpack.c.l.b16 %v5285
      %v5864 = vunpack.c.h.b16 %v5285
      %v5865 = vunpack.c.l.b16 %v5286
      %v5866 = vunpack.c.l.b16 %v5287
      %v5867 = vunpack.c.h.b16 %v5287
      %v5868 = vunpack.c.l.b16 %v5288
      %v5869 = vunpack.c.l.b16 %v5289
      %v5870 = vunpack.c.h.b16 %v5289
      %v5871 = vunpack.c.l.b16 %v5290
      %v5872 = vunpack.c.l.b16 %v5291
      %v5873 = vunpack.c.h.b16 %v5291
      %v5874 = vunpack.c.l.b16 %v5292
      %v5875 = vunpack.c.l.b16 %v5293
      %v5876 = vunpack.c.h.b16 %v5293
      %v5877 = vunpack.c.l.b16 %v5294
      %v5878 = vunpack.c.l.b16 %v5295
      %v5879 = vunpack.c.h.b16 %v5295
      %v5880 = vunpack.c.l.b16 %v5296
      %v5881 = vunpack.c.l.b16 %v5297
      %v5882 = vunpack.c.h.b16 %v5297
      %v5883 = vunpack.c.l.b16 %v5298
      %v5884 = vunpack.c.l.b16 %v5299
      %v5885 = vunpack.c.h.b16 %v5299
      %v5886 = vunpack.c.l.b16 %v5300
      %v5887 = vunpack.c.l.b16 %v5301
      %v5888 = vunpack.c.h.b16 %v5301
      %v5889 = vunpack.c.l.b16 %v5302
      %v5890 = vunpack.c.l.b16 %v5303
      %v5891 = vunpack.c.h.b16 %v5303
      %v5892 = vunpack.c.l.b16 %v5304
      %v5893 = vunpack.c.l.b16 %v5305
      %v5894 = vunpack.c.h.b16 %v5305
      %v5895 = vunpack.c.l.b16 %v5306
      %v5896 = vunpack.c.l.b16 %v5307
      %v5897 = vunpack.c.h.b16 %v5307
      %v5898 = vunpack.c.l.b16 %v5308
      %v5899 = vunpack.c.l.b16 %v5309
      %v5900 = vunpack.c.h.b16 %v5309
      %v5901 = vunpack.c.l.b16 %v5310
      %v5902 = vunpack.c.l.b16 %v5311
      %v5903 = vunpack.c.h.b16 %v5311
      %v5904 = vunpack.c.l.b16 %v5312
      %v5905 = vunpack.c.l.b16 %v5313
      %v5906 = vunpack.c.h.b16 %v5313
      %v5907 = vunpack.c.l.b16 %v5314
      %v5908 = vunpack.c.l.b16 %v5315
      %v5909 = vunpack.c.h.b16 %v5315
      %v5910 = vunpack.c.l.b16 %v5316
      %v5911 = vunpack.c.l.b16 %v5317
      %v5912 = vunpack.c.h.b16 %v5317
      %v5913 = vunpack.c.l.b16 %v5318
      %v5914 = vunpack.c.l.b16 %v5319
      %v5915 = vunpack.c.h.b16 %v5319
      %v5916 = vunpack.c.l.b16 %v5320
      %v5917 = vunpack.c.l.b16 %v5321
      %v5918 = vunpack.c.h.b16 %v5321
      %v5919 = vunpack.c.l.b16 %v5322
      %v5920 = vunpack.c.l.b16 %v5323
      %v5921 = vunpack.c.h.b16 %v5323
      %v5922 = vunpack.c.l.b16 %v5324
      %v5923 = vunpack.c.l.b16 %v5325
      %v5924 = vunpack.c.h.b16 %v5325
      %v5925 = vunpack.c.l.b16 %v5326
      %v5926 = vunpack.c.l.b16 %v5327
      %v5927 = vunpack.c.h.b16 %v5327
      %v5928 = vunpack.c.l.b16 %v5328
      %v5929 = vunpack.c.l.b16 %v5329
      %v5930 = vunpack.c.h.b16 %v5329
      %v5931 = vunpack.c.l.b16 %v5330
      %v5932 = vunpack.c.l.b16 %v5331
      %v5933 = vunpack.c.h.b16 %v5331
      %v5934 = vunpack.c.l.b16 %v5332
      %v5935 = vunpack.c.l.b16 %v5333
      %v5936 = vunpack.c.h.b16 %v5333
      %v5937 = vunpack.c.l.b16 %v5334
      %v5938 = vunpack.c.l.b16 %v5335
      %v5939 = vunpack.c.h.b16 %v5335
      %v5940 = vunpack.c.l.b16 %v5336
      %v5941 = vunpack.c.l.b16 %v5337
      %v5942 = vunpack.c.h.b16 %v5337
      %v5943 = vunpack.c.l.b16 %v5338
      %v5944 = vunpack.c.l.b16 %v5339
      %v5945 = vunpack.c.h.b16 %v5339
      %v5946 = vunpack.c.l.b16 %v5340
      %v5947 = vunpack.c.l.b16 %v5341
      %v5948 = vunpack.c.h.b16 %v5341
      %v5949 = vunpack.c.l.b16 %v5342
      %v5950 = vunpack.c.l.b16 %v5343
      %v5951 = vunpack.c.h.b16 %v5343
      %v5952 = vunpack.c.l.b16 %v5344
      %v5953 = vunpack.c.l.b16 %v5345
      %v5954 = vunpack.c.h.b16 %v5345
      %v5955 = vunpack.c.l.b16 %v5346
      %v5956 = vunpack.c.l.b16 %v5347
      %v5957 = vunpack.c.h.b16 %v5347
      %v5958 = vunpack.c.l.b16 %v5348
      %v5959 = vunpack.c.l.b16 %v5349
      %v5960 = vunpack.c.h.b16 %v5349
      %v5961 = vunpack.c.l.b16 %v5350
      %v5962 = vunpack.c.l.b16 %v5351
      %v5963 = vunpack.c.h.b16 %v5351
      %v5964 = vunpack.c.l.b16 %v5352
      %v5965 = vunpack.c.l.b16 %v5353
      %v5966 = vunpack.c.h.b16 %v5353
      %v5967 = vunpack.c.l.b16 %v5354
      %v5968 = vunpack.c.l.b16 %v5355
      %v5969 = vunpack.c.h.b16 %v5355
      %v5970 = vunpack.c.l.b16 %v5356
      %v5971 = vunpack.c.l.b16 %v5357
      %v5972 = vunpack.c.h.b16 %v5357
      %v5973 = vunpack.c.l.b16 %v5358
      %v5974 = vunpack.c.l.b16 %v5359
      %v5975 = vunpack.c.h.b16 %v5359
      %v5976 = vunpack.c.l.b16 %v5360
      %v5977 = vunpack.c.l.b16 %v5361
      %v5978 = vunpack.c.h.b16 %v5361
      %v5979 = vunpack.c.l.b16 %v5362
      %v5980 = vunpack.c.l.b16 %v5363
      %v5981 = vunpack.c.h.b16 %v5363
      %v5982 = vunpack.c.l.b16 %v5364
      %v5983 = vunpack.c.l.b16 %v5365
      %v5984 = vunpack.c.h.b16 %v5365
      %v5985 = vunpack.c.l.b16 %v5366
      %v5986 = vunpack.c.l.b16 %v5367
      %v5987 = vunpack.c.h.b16 %v5367
      %v5988 = vunpack.c.l.b16 %v5368
      %v5989 = vunpack.c.l.b16 %v5369
      %v5990 = vunpack.c.h.b16 %v5369
      %v5991 = vunpack.c.l.b16 %v5370
      %v5992 = vunpack.c.l.b16 %v5371
      %v5993 = vunpack.c.h.b16 %v5371
      %v5994 = vunpack.c.l.b16 %v5372
      %v5995 = vunpack.c.l.b16 %v5373
      %v5996 = vunpack.c.h.b16 %v5373
      %v5997 = vunpack.c.l.b16 %v5374
      %v5998 = vunpack.c.l.b16 %v5375
      %v5999 = vunpack.c.h.b16 %v5375
      %v6000 = vunpack.c.l.b16 %v5376
      %v6001 = vunpack.c.l.b16 %v5377
      %v6002 = vunpack.c.h.b16 %v5377
      %v6003 = vunpack.c.l.b16 %v5378
      %v6004 = vunpack.c.l.b16 %v5379
      %v6005 = vunpack.c.h.b16 %v5379
      %v6006 = vunpack.c.l.b16 %v5380
      %v6007 = vunpack.c.l.b16 %v5381
      %v6008 = vunpack.c.h.b16 %v5381
      %v6009 = vunpack.c.l.b16 %v5382
      %v6010 = vunpack.c.l.b16 %v5383
      %v6011 = vunpack.c.h.b16 %v5383
      %v6012 = vunpack.c.l.b16 %v5384
      %v6013 = vunpack.c.l.b16 %v5385
      %v6014 = vunpack.c.h.b16 %v5385
      %v6015 = vunpack.c.l.b16 %v5386
      %v6016 = vunpack.c.l.b16 %v5387
      %v6017 = vunpack.c.h.b16 %v5387
      %v6018 = vunpack.c.l.b16 %v5388
      %v6019 = vunpack.c.l.b16 %v5389
      %v6020 = vunpack.c.h.b16 %v5389
      %v6021 = vunpack.c.l.b16 %v5390
      %v6022 = vunpack.c.l.b16 %v5391
      %v6023 = vunpack.c.h.b16 %v5391
      %v6024 = vunpack.c.l.b16 %v5392
      %v6025 = vunpack.c.l.b16 %v5393
      %v6026 = vunpack.c.h.b16 %v5393
      %v6027 = vunpack.c.l.b16 %v5394
      %v6028 = vunpack.c.l.b16 %v5395
      %v6029 = vunpack.c.h.b16 %v5395
      %v6030 = vunpack.c.l.b16 %v5396
      %v6031 = vunpack.c.l.b16 %v5397
      %v6032 = vunpack.c.h.b16 %v5397
      %v6033 = vunpack.c.l.b16 %v5398
      %v6034 = vunpack.c.l.b16 %v5399
      %v6035 = vunpack.c.h.b16 %v5399
      %v6036 = vunpack.c.l.b16 %v5400
      %v6037 = vunpack.c.l.b16 %v5401
      %v6038 = vunpack.c.h.b16 %v5401
      %v6039 = vunpack.c.l.b16 %v5402
      %v6040 = vunpack.c.l.b16 %v5403
      %v6041 = vunpack.c.h.b16 %v5403
      %v6042 = vunpack.c.l.b16 %v5404
      %v6043 = vunpack.c.l.b16 %v5405
      %v6044 = vunpack.c.h.b16 %v5405
      %v6045 = vunpack.c.l.b16 %v5406
      %v6046 = vunpack.c.l.b16 %v5407
      %v6047 = vunpack.c.h.b16 %v5407
      %v6048 = vunpack.c.l.b16 %v5408
      %v6049 = vunpack.c.l.b16 %v5409
      %v6050 = vunpack.c.h.b16 %v5409
      %v6051 = vunpack.c.l.b16 %v5410
      %v6052 = vunpack.c.l.b16 %v5411
      %v6053 = vunpack.c.h.b16 %v5411
      %v6054 = vunpack.c.l.b16 %v5412
      %v6055 = vunpack.c.l.b16 %v5413
      %v6056 = vunpack.c.h.b16 %v5413
      %v6057 = vunpack.c.l.b16 %v5414
      %v6058 = vunpack.c.l.b16 %v5415
      %v6059 = vunpack.c.h.b16 %v5415
      %v6060 = vunpack.c.l.b16 %v5416
      %v6061 = vunpack.c.l.b16 %v5417
      %v6062 = vunpack.c.h.b16 %v5417
      %v6063 = vunpack.c.l.b16 %v5418
      %v6064 = vunpack.c.l.b16 %v5419
      %v6065 = vunpack.c.h.b16 %v5419
      %v6066 = vunpack.c.l.b16 %v5420
      %v6067 = vunpack.c.l.b16 %v5421
      %v6068 = vunpack.c.h.b16 %v5421
      %v6069 = vunpack.c.l.b16 %v5422
      %v6070 = vunpack.c.l.b16 %v5423
      %v6071 = vunpack.c.h.b16 %v5423
      %v6072 = vunpack.c.l.b16 %v5424
      %v6073 = vunpack.c.l.b16 %v5425
      %v6074 = vunpack.c.h.b16 %v5425
      %v6075 = vunpack.c.l.b16 %v5426
      %v6076 = vunpack.c.l.b16 %v5427
      %v6077 = vunpack.c.h.b16 %v5427
      %v6078 = vunpack.c.l.b16 %v5428
      %v6079 = vunpack.c.l.b16 %v5429
      %v6080 = vunpack.c.h.b16 %v5429
      %v6081 = vunpack.c.l.b16 %v5430
      %v6082 = vunpack.c.l.b16 %v5431
      %v6083 = vunpack.c.h.b16 %v5431
      %v6084 = vunpack.c.l.b16 %v5432
      %v6085 = vunpack.c.l.b16 %v5433
      %v6086 = vunpack.c.h.b16 %v5433
      %v6087 = vunpack.c.l.b16 %v5434
      %v6088 = vunpack.c.l.b16 %v5435
      %v6089 = vunpack.c.h.b16 %v5435
      %v6090 = vunpack.c.l.b16 %v5436
      %v6091 = vunpack.c.l.b16 %v5437
      %v6092 = vunpack.c.h.b16 %v5437
      %v6093 = vunpack.c.l.b16 %v5438
      %v6094 = vunpack.c.l.b16 %v5439
      %v6095 = vunpack.c.h.b16 %v5439
      %v6096 = vunpack.c.l.b16 %v5440
      %v6097 = vunpack.c.l.b16 %v5441
      %v6098 = vunpack.c.h.b16 %v5441
      %v6099 = vunpack.c.l.b16 %v5442
      %v6100 = vunpack.c.l.b16 %v5443
      %v6101 = vunpack.c.h.b16 %v5443
      %v6102 = vunpack.c.l.b16 %v5444
      %v6103 = vunpack.c.l.b16 %v5445
      %v6104 = vunpack.c.h.b16 %v5445
      %v6105 = vunpack.c.l.b16 %v5446
      %v6106 = vunpack.c.l.b16 %v5447
      %v6107 = vunpack.c.h.b16 %v5447
      %v6108 = vunpack.c.l.b16 %v5448
      %v6109 = vunpack.c.l.b16 %v5449
      %v6110 = vunpack.c.h.b16 %v5449
      %v6111 = vunpack.c.l.b16 %v5450
      %v6112 = vunpack.c.l.b16 %v5451
      %v6113 = vunpack.c.h.b16 %v5451
      %v6114 = vunpack.c.l.b16 %v5452
      %v6115 = vunpack.c.l.b16 %v5453
      %v6116 = vunpack.c.h.b16 %v5453
      %v6117 = vunpack.c.l.b16 %v5454
      %v6118 = vunpack.c.l.b16 %v5455
      %v6119 = vunpack.c.h.b16 %v5455
      %v6120 = vunpack.c.l.b16 %v5456
      %v6121 = vunpack.c.l.b16 %v5457
      %v6122 = vunpack.c.h.b16 %v5457
      %v6123 = vunpack.c.l.b16 %v5458
      %v6124 = vunpack.c.l.b16 %v5459
      %v6125 = vunpack.c.h.b16 %v5459
      %v6126 = vunpack.c.l.b16 %v5460
      %v6127 = vunpack.c.l.b16 %v5461
      %v6128 = vunpack.c.h.b16 %v5461
      %v6129 = vunpack.c.l.b16 %v5462
      %v6130 = vunpack.c.l.b16 %v5463
      %v6131 = vunpack.c.h.b16 %v5463
      %v6132 = vunpack.c.l.b16 %v5464
      %v6133 = vunpack.c.l.b16 %v5465
      %v6134 = vunpack.c.h.b16 %v5465
      %v6135 = vunpack.c.l.b16 %v5466
      %v6136 = vunpack.c.l.b16 %v5467
      %v6137 = vunpack.c.h.b16 %v5467
      %v6138 = vunpack.c.l.b16 %v5468
      %v6139 = vunpack.c.l.b16 %v5469
      %v6140 = vunpack.c.h.b16 %v5469
      %v6141 = vunpack.c.l.b16 %v5470
      %v6142 = vunpack.c.l.b16 %v5471
      %v6143 = vunpack.c.h.b16 %v5471
      %v6144 = vunpack.c.l.b16 %v5472
      %v6145 = vunpack.c.l.b16 %v5473
      %v6146 = vunpack.c.h.b16 %v5473
      %v6147 = vunpack.c.l.b16 %v5474
      %v6148 = vunpack.c.l.b16 %v5475
      %v6149 = vunpack.c.h.b16 %v5475
      %v6150 = vunpack.c.l.b16 %v5476
      %v6151 = vunpack.c.l.b16 %v5477
      %v6152 = vunpack.c.h.b16 %v5477
      %v6153 = vunpack.c.l.b16 %v5478
      %v6154 = vunpack.c.l.b16 %v5479
      %v6155 = vunpack.c.h.b16 %v5479
      %v6156 = vunpack.c.l.b16 %v5480
      %v6157 = vunpack.c.l.b16 %v5481
      %v6158 = vunpack.c.h.b16 %v5481
      %v6159 = vunpack.c.l.b16 %v5482
      %v6160 = vunpack.c.l.b16 %v5483
      %v6161 = vunpack.c.h.b16 %v5483
      %v6162 = vunpack.c.l.b16 %v5484
      %v6163 = vunpack.c.l.b16 %v5485
      %v6164 = vunpack.c.h.b16 %v5485
      %v6165 = vunpack.c.l.b16 %v5486
      %v6166 = vunpack.c.l.b16 %v5487
      %v6167 = vunpack.c.h.b16 %v5487
      %v6168 = vunpack.c.l.b16 %v5488
      %v6169 = vunpack.c.l.b16 %v5489
      %v6170 = vunpack.c.h.b16 %v5489
      %v6171 = vunpack.c.l.b16 %v5490
      %v6172 = vunpack.c.l.b16 %v5491
      %v6173 = vunpack.c.h.b16 %v5491
      %v6174 = vunpack.c.l.b16 %v5492
      %v6175 = vunpack.c.l.b16 %v5493
      %v6176 = vunpack.c.h.b16 %v5493
      %v6177 = vunpack.c.l.b16 %v5494
      %v6178 = vunpack.c.l.b16 %v5495
      %v6179 = vunpack.c.h.b16 %v5495
      %v6180 = vunpack.c.l.b16 %v5496
      %v6181 = vunpack.c.l.b16 %v5497
      %v6182 = vunpack.c.h.b16 %v5497
      %v6183 = vunpack.c.l.b16 %v5498
      %v6184 = vunpack.c.l.b16 %v5499
      %v6185 = vunpack.c.h.b16 %v5499
      %v6186 = vunpack.c.l.b16 %v5500
      %v6187 = vunpack.c.l.b16 %v5501
      %v6188 = vunpack.c.h.b16 %v5501
      %v6189 = vunpack.c.l.b16 %v5502
      %v6190 = vunpack.c.l.b16 %v5503
      %v6191 = vunpack.c.h.b16 %v5503
      %v6192 = vunpack.c.l.b16 %v5504
      %v6193 = vunpack.c.l.b16 %v5505
      %v6194 = vunpack.c.h.b16 %v5505
      %v6195 = vunpack.c.l.b16 %v5506
      %v6196 = vunpack.c.l.b16 %v5507
      %v6197 = vunpack.c.h.b16 %v5507
      %v6198 = vunpack.c.l.b16 %v5508
      %v6199 = vunpack.c.l.b16 %v5509
      %v6200 = vunpack.c.h.b16 %v5509
      %v6201 = vunpack.c.l.b16 %v5510
      %v6202 = vunpack.c.l.b16 %v5511
      %v6203 = vunpack.c.h.b16 %v5511
      %v6204 = vunpack.c.l.b16 %v5512
      %v6205 = vunpack.c.l.b16 %v5513
      %v6206 = vunpack.c.h.b16 %v5513
      %v6207 = vunpack.c.l.b16 %v5514
      %v6208 = vunpack.c.l.b16 %v5515
      %v6209 = vunpack.c.h.b16 %v5515
      %v6210 = vunpack.c.l.b16 %v5516
      %v6211 = vunpack.c.l.b16 %v5517
      %v6212 = vunpack.c.h.b16 %v5517
      %v6213 = vunpack.c.l.b16 %v5518
      %v6214 = vunpack.c.l.b16 %v5519
      %v6215 = vunpack.c.h.b16 %v5519
      %v6216 = vunpack.c.l.b16 %v5520
      %v6217 = vunpack.c.l.b16 %v5521
      %v6218 = vunpack.c.h.b16 %v5521
      %v6219 = vunpack.c.l.b16 %v5522
      %v6220 = vunpack.c.l.b16 %v5523
      %v6221 = vunpack.c.h.b16 %v5523
      %v6222 = vunpack.c.l.b16 %v5524
      %v6223 = vunpack.c.l.b16 %v5525
      %v6224 = vunpack.c.h.b16 %v5525
      %v6225 = vunpack.c.l.b16 %v5526
      %v6226 = vunpack.c.l.b16 %v5527
      %v6227 = vunpack.c.h.b16 %v5527
      %v6228 = vunpack.c.l.b16 %v5528
      %v6229 = vunpack.c.l.b16 %v5529
      %v6230 = vunpack.c.h.b16 %v5529
      %v6231 = vunpack.c.l.b16 %v5530
      %v6232 = vunpack.c.l.b16 %v5531
      %v6233 = vunpack.c.h.b16 %v5531
      %v6234 = vunpack.c.l.b16 %v5532
      %v6235 = vunpack.c.l.b16 %v5533
      %v6236 = vunpack.c.h.b16 %v5533
      %v6237 = vunpack.c.l.b16 %v5534
      %v6238 = vunpack.c.l.b16 %v5535
      %v6239 = vunpack.c.h.b16 %v5535
      %v6240 = vunpack.c.l.b16 %v5536
      %v6241 = vunpack.c.l.b16 %v5537
      %v6242 = vunpack.c.h.b16 %v5537
      %v6243 = vunpack.c.l.b16 %v5538
      %v6244 = vunpack.c.l.b16 %v5539
      %v6245 = vunpack.c.h.b16 %v5539
      %v6246 = vunpack.c.l.b16 %v5540
      %v6247 = vunpack.c.l.b16 %v5541
      %v6248 = vunpack.c.h.b16 %v5541
      %v6249 = vunpack.c.l.b16 %v5542
      %v6250 = vunpack.c.l.b16 %v5543
      %v6251 = vunpack.c.h.b16 %v5543
      %v6252 = vunpack.c.l.b16 %v5544
      %v6253 = vunpack.c.l.b16 %v5545
      %v6254 = vunpack.c.h.b16 %v5545
      %v6255 = vunpack.c.l.b16 %v5546
      %v6256 = vunpack.c.l.b16 %v5547
      %v6257 = vunpack.c.h.b16 %v5547
      %v6258 = vunpack.c.l.b16 %v5548
      %v6259 = vunpack.c.l.b16 %v5549
      %v6260 = vunpack.c.h.b16 %v5549
      %v6261 = vunpack.c.l.b16 %v5550
      %v6262 = vunpack.c.l.b16 %v5551
      %v6263 = vunpack.c.h.b16 %v5551
      %v6264 = vunpack.c.l.b16 %v5552
      %v6265 = vunpack.c.l.b16 %v5553
      %v6266 = vunpack.c.h.b16 %v5553
      %v6267 = vunpack.c.l.b16 %v5554
      %v6268 = vunpack.c.l.b16 %v5555
      %v6269 = vunpack.c.h.b16 %v5555
      %v6270 = vunpack.c.l.b16 %v5556
      %v6271 = vunpack.c.l.b16 %v5557
      %v6272 = vunpack.c.h.b16 %v5557
      %v6273 = vunpack.c.l.b16 %v5558
      %v6274 = vunpack.c.l.b16 %v5559
      %v6275 = vunpack.c.h.b16 %v5559
      %v6276 = vunpack.c.l.b16 %v5560
      %v6277 = vunpack.c.l.b16 %v5561
      %v6278 = vunpack.c.h.b16 %v5561
      %v6279 = vunpack.c.l.b16 %v5562
      %v6280 = vunpack.c.l.b16 %v5563
      %v6281 = vunpack.c.h.b16 %v5563
      %v6282 = vunpack.c.l.b16 %v5564
      %v6283 = vunpack.c.l.b16 %v5565
      %v6284 = vunpack.c.h.b16 %v5565
      %v6285 = vunpack.c.l.b16 %v5566
      %v6286 = vunpack.c.l.b16 %v5567
      %v6287 = vunpack.c.h.b16 %v5567
      %v6288 = vunpack.c.l.b16 %v5568
      %v6289 = vpack.c.b16 %v5860, %v5857
      %v6290 = vpack.c.b16 %v5861, %v5858
      %v6291 = vpack.c.b16 %v5862, %v5859
      %v6292 = vpack.c.b16 %v5866, %v5863
      %v6293 = vpack.c.b16 %v5867, %v5864
      %v6294 = vpack.c.b16 %v5868, %v5865
      %v6295 = vpack.c.b16 %v5872, %v5869
      %v6296 = vpack.c.b16 %v5873, %v5870
      %v6297 = vpack.c.b16 %v5874, %v5871
      %v6298 = vpack.c.b16 %v5878, %v5875
      %v6299 = vpack.c.b16 %v5879, %v5876
      %v6300 = vpack.c.b16 %v5880, %v5877
      %v6301 = vpack.c.b16 %v5884, %v5881
      %v6302 = vpack.c.b16 %v5885, %v5882
      %v6303 = vpack.c.b16 %v5886, %v5883
      %v6304 = vpack.c.b16 %v5890, %v5887
      %v6305 = vpack.c.b16 %v5891, %v5888
      %v6306 = vpack.c.b16 %v5892, %v5889
      %v6307 = vpack.c.b16 %v5896, %v5893
      %v6308 = vpack.c.b16 %v5897, %v5894
      %v6309 = vpack.c.b16 %v5898, %v5895
      %v6310 = vpack.c.b16 %v5902, %v5899
      %v6311 = vpack.c.b16 %v5903, %v5900
      %v6312 = vpack.c.b16 %v5904, %v5901
      %v6313 = vpack.c.b16 %v5908, %v5905
      %v6314 = vpack.c.b16 %v5909, %v5906
      %v6315 = vpack.c.b16 %v5910, %v5907
      %v6316 = vpack.c.b16 %v5914, %v5911
      %v6317 = vpack.c.b16 %v5915, %v5912
      %v6318 = vpack.c.b16 %v5916, %v5913
      %v6319 = vpack.c.b16 %v5920, %v5917
      %v6320 = vpack.c.b16 %v5921, %v5918
      %v6321 = vpack.c.b16 %v5922, %v5919
      %v6322 = vpack.c.b16 %v5926, %v5923
      %v6323 = vpack.c.b16 %v5927, %v5924
      %v6324 = vpack.c.b16 %v5928, %v5925
      %v6325 = vpack.c.b16 %v5932, %v5929
      %v6326 = vpack.c.b16 %v5933, %v5930
      %v6327 = vpack.c.b16 %v5934, %v5931
      %v6328 = vpack.c.b16 %v5938, %v5935
      %v6329 = vpack.c.b16 %v5939, %v5936
      %v6330 = vpack.c.b16 %v5940, %v5937
      %v6331 = vpack.c.b16 %v5944, %v5941
      %v6332 = vpack.c.b16 %v5945, %v5942
      %v6333 = vpack.c.b16 %v5946, %v5943
      %v6334 = vpack.c.b16 %v5950, %v5947
      %v6335 = vpack.c.b16 %v5951, %v5948
      %v6336 = vpack.c.b16 %v5952, %v5949
      %v6337 = vpack.c.b16 %v5956, %v5953
      %v6338 = vpack.c.b16 %v5957, %v5954
      %v6339 = vpack.c.b16 %v5958, %v5955
      %v6340 = vpack.c.b16 %v5962, %v5959
      %v6341 = vpack.c.b16 %v5963, %v5960
      %v6342 = vpack.c.b16 %v5964, %v5961
      %v6343 = vpack.c.b16 %v5968, %v5965
      %v6344 = vpack.c.b16 %v5969, %v5966
      %v6345 = vpack.c.b16 %v5970, %v5967
      %v6346 = vpack.c.b16 %v5974, %v5971
      %v6347 = vpack.c.b16 %v5975, %v5972
      %v6348 = vpack.c.b16 %v5976, %v5973
      %v6349 = vpack.c.b16 %v5980, %v5977
      %v6350 = vpack.c.b16 %v5981, %v5978
      %v6351 = vpack.c.b16 %v5982, %v5979
      %v6352 = vpack.c.b16 %v5986, %v5983
      %v6353 = vpack.c.b16 %v5987, %v5984
      %v6354 = vpack.c.b16 %v5988, %v5985
      %v6355 = vpack.c.b16 %v5992, %v5989
      %v6356 = vpack.c.b16 %v5993, %v5990
      %v6357 = vpack.c.b16 %v5994, %v5991
      %v6358 = vpack.c.b16 %v5998, %v5995
      %v6359 = vpack.c.b16 %v5999, %v5996
      %v6360 = vpack.c.b16 %v6000, %v5997
      %v6361 = vpack.c.b16 %v6004, %v6001
      %v6362 = vpack.c.b16 %v6005, %v6002
      %v6363 = vpack.c.b16 %v6006, %v6003
      %v6364 = vpack.c.b16 %v6010, %v6007
      %v6365 = vpack.c.b16 %v6011, %v6008
      %v6366 = vpack.c.b16 %v6012, %v6009
      %v6367 = vpack.c.b16 %v6016, %v6013
      %v6368 = vpack.c.b16 %v6017, %v6014
      %v6369 = vpack.c.b16 %v6018, %v6015
      %v6370 = vpack.c.b16 %v6022, %v6019
      %v6371 = vpack.c.b16 %v6023, %v6020
      %v6372 = vpack.c.b16 %v6024, %v6021
      %v6373 = vpack.c.b16 %v6028, %v6025
      %v6374 = vpack.c.b16 %v6029, %v6026
      %v6375 = vpack.c.b16 %v6030, %v6027
      %v6376 = vpack.c.b16 %v6034, %v6031
      %v6377 = vpack.c.b16 %v6035, %v6032
      %v6378 = vpack.c.b16 %v6036, %v6033
      %v6379 = vpack.c.b16 %v6040, %v6037
      %v6380 = vpack.c.b16 %v6041, %v6038
      %v6381 = vpack.c.b16 %v6042, %v6039
      %v6382 = vpack.c.b16 %v6046, %v6043
      %v6383 = vpack.c.b16 %v6047, %v6044
      %v6384 = vpack.c.b16 %v6048, %v6045
      %v6385 = vpack.c.b16 %v6052, %v6049
      %v6386 = vpack.c.b16 %v6053, %v6050
      %v6387 = vpack.c.b16 %v6054, %v6051
      %v6388 = vpack.c.b16 %v6058, %v6055
      %v6389 = vpack.c.b16 %v6059, %v6056
      %v6390 = vpack.c.b16 %v6060, %v6057
      %v6391 = vpack.c.b16 %v6064, %v6061
      %v6392 = vpack.c.b16 %v6065, %v6062
      %v6393 = vpack.c.b16 %v6066, %v6063
      %v6394 = vpack.c.b16 %v6070, %v6067
      %v6395 = vpack.c.b16 %v6071, %v6068
      %v6396 = vpack.c.b16 %v6072, %v6069
      %v6397 = vpack.c.b16 %v6076, %v6073
      %v6398 = vpack.c.b16 %v6077, %v6074
      %v6399 = vpack.c.b16 %v6078, %v6075
      %v6400 = vpack.c.b16 %v6082, %v6079
      %v6401 = vpack.c.b16 %v6083, %v6080
      %v6402 = vpack.c.b16 %v6084, %v6081
      %v6403 = vpack.c.b16 %v6088, %v6085
      %v6404 = vpack.c.b16 %v6089, %v6086
      %v6405 = vpack.c.b16 %v6090, %v6087
      %v6406 = vpack.c.b16 %v6094, %v6091
      %v6407 = vpack.c.b16 %v6095, %v6092
      %v6408 = vpack.c.b16 %v6096, %v6093
      %v6409 = vpack.c.b16 %v6100, %v6097
      %v6410 = vpack.c.b16 %v6101, %v6098
      %v6411 = vpack.c.b16 %v6102, %v6099
      %v6412 = vpack.c.b16 %v6106, %v6103
      %v6413 = vpack.c.b16 %v6107, %v6104
      %v6414 = vpack.c.b16 %v6108, %v6105
      %v6415 = vpack.c.b16 %v6112, %v6109
      %v6416 = vpack.c.b16 %v6113, %v6110
      %v6417 = vpack.c.b16 %v6114, %v6111
      %v6418 = vpack.c.b16 %v6118, %v6115
      %v6419 = vpack.c.b16 %v6119, %v6116
      %v6420 = vpack.c.b16 %v6120, %v6117
      %v6421 = vpack.c.b16 %v6124, %v6121
      %v6422 = vpack.c.b16 %v6125, %v6122
      %v6423 = vpack.c.b16 %v6126, %v6123
      %v6424 = vpack.c.b16 %v6130, %v6127
      %v6425 = vpack.c.b16 %v6131, %v6128
      %v6426 = vpack.c.b16 %v6132, %v6129
      %v6427 = vpack.c.b16 %v6136, %v6133
      %v6428 = vpack.c.b16 %v6137, %v6134
      %v6429 = vpack.c.b16 %v6138, %v6135
      %v6430 = vpack.c.b16 %v6142, %v6139
      %v6431 = vpack.c.b16 %v6143, %v6140
      %v6432 = vpack.c.b16 %v6144, %v6141
      %v6433 = vpack.c.b16 %v6148, %v6145
      %v6434 = vpack.c.b16 %v6149, %v6146
      %v6435 = vpack.c.b16 %v6150, %v6147
      %v6436 = vpack.c.b16 %v6154, %v6151
      %v6437 = vpack.c.b16 %v6155, %v6152
      %v6438 = vpack.c.b16 %v6156, %v6153
      %v6439 = vpack.c.b16 %v6160, %v6157
      %v6440 = vpack.c.b16 %v6161, %v6158
      %v6441 = vpack.c.b16 %v6162, %v6159
      %v6442 = vpack.c.b16 %v6166, %v6163
      %v6443 = vpack.c.b16 %v6167, %v6164
      %v6444 = vpack.c.b16 %v6168, %v6165
      %v6445 = vpack.c.b16 %v6172, %v6169
      %v6446 = vpack.c.b16 %v6173, %v6170
      %v6447 = vpack.c.b16 %v6174, %v6171
      %v6448 = vpack.c.b16 %v6178, %v6175
      %v6449 = vpack.c.b16 %v6179, %v6176
      %v6450 = vpack.c.b16 %v6180, %v6177
      %v6451 = vpack.c.b16 %v6184, %v6181
      %v6452 = vpack.c.b16 %v6185, %v6182
      %v6453 = vpack.c.b16 %v6186, %v6183
      %v6454 = vpack.c.b16 %v6190, %v6187
      %v6455 = vpack.c.b16 %v6191, %v6188
      %v6456 = vpack.c.b16 %v6192, %v6189
      %v6457 = vpack.c.b16 %v6196, %v6193
      %v6458 = vpack.c.b16 %v6197, %v6194
      %v6459 = vpack.c.b16 %v6198, %v6195
      %v6460 = vpack.c.b16 %v6202, %v6199
      %v6461 = vpack.c.b16 %v6203, %v6200
      %v6462 = vpack.c.b16 %v6204, %v6201
      %v6463 = vpack.c.b16 %v6208, %v6205
      %v6464 = vpack.c.b16 %v6209, %v6206
      %v6465 = vpack.c.b16 %v6210, %v6207
      %v6466 = vpack.c.b16 %v6214, %v6211
      %v6467 = vpack.c.b16 %v6215, %v6212
      %v6468 = vpack.c.b16 %v6216, %v6213
      %v6469 = vpack.c.b16 %v6220, %v6217
      %v6470 = vpack.c.b16 %v6221, %v6218
      %v6471 = vpack.c.b16 %v6222, %v6219
      %v6472 = vpack.c.b16 %v6226, %v6223
      %v6473 = vpack.c.b16 %v6227, %v6224
      %v6474 = vpack.c.b16 %v6228, %v6225
      %v6475 = vpack.c.b16 %v6232, %v6229
      %v6476 = vpack.c.b16 %v6233, %v6230
      %v6477 = vpack.c.b16 %v6234, %v6231
      %v6478 = vpack.c.b16 %v6238, %v6235
      %v6479 = vpack.c.b16 %v6239, %v6236
      %v6480 = vpack.c.b16 %v6240, %v6237
      %v6481 = vpack.c.b16 %v6244, %v6241
      %v6482 = vpack.c.b16 %v6245, %v6242
      %v6483 = vpack.c.b16 %v6246, %v6243
      %v6484 = vpack.c.b16 %v6250, %v6247
      %v6485 = vpack.c.b16 %v6251, %v6248
      %v6486 = vpack.c.b16 %v6252, %v6249
      %v6487 = vpack.c.b16 %v6256, %v6253
      %v6488 = vpack.c.b16 %v6257, %v6254
      %v6489 = vpack.c.b16 %v6258, %v6255
      %v6490 = vpack.c.b16 %v6262, %v6259
      %v6491 = vpack.c.b16 %v6263, %v6260
      %v6492 = vpack.c.b16 %v6264, %v6261
      %v6493 = vpack.c.b16 %v6268, %v6265
      %v6494 = vpack.c.b16 %v6269, %v6266
      %v6495 = vpack.c.b16 %v6270, %v6267
      %v6496 = vpack.c.b16 %v6274, %v6271
      %v6497 = vpack.c.b16 %v6275, %v6272
      %v6498 = vpack.c.b16 %v6276, %v6273
      %v6499 = vpack.c.b16 %v6280, %v6277
      %v6500 = vpack.c.b16 %v6281, %v6278
      %v6501 = vpack.c.b16 %v6282, %v6279
      %v6502 = vpack.c.b16 %v6286, %v6283
      %v6503 = vpack.c.b16 %v6287, %v6284
      %v6504 = vpack.c.b16 %v6288, %v6285
      %6721 = vmatprep.subr.bf16.mxu0 %v6290
      %6722 = vmatpush1.bf16.msra.mxu0 %v6289
      %6723 = vmatprep.subr.bf16.mxu0 %v6293
      %6724 = vmatpush1.bf16.msra.mxu0 %v6292
      %6725 = vmatprep.subr.bf16.mxu0 %v6296
      %6726 = vmatpush1.bf16.msra.mxu0 %v6295
      %6727 = vmatprep.subr.bf16.mxu0 %v6299
      %6728 = vmatpush1.bf16.msra.mxu0 %v6298
      %6729 = vmatprep.subr.bf16.mxu0 %v6302
      %6730 = vmatpush1.bf16.msra.mxu0 %v6301
      %6731 = vmatprep.subr.bf16.mxu0 %v6305
      %6732 = vmatpush1.bf16.msra.mxu0 %v6304
      %6733 = vmatprep.subr.bf16.mxu0 %v6308
      %6734 = vmatpush1.bf16.msra.mxu0 %v6307
      %6735 = vmatprep.subr.bf16.mxu0 %v6311
      %6736 = vmatpush1.bf16.msra.mxu0 %v6310
      %6737 = vmatprep.subr.bf16.mxu0 %v6314
      %6738 = vmatpush1.bf16.msra.mxu0 %v6313
      %6739 = vmatprep.subr.bf16.mxu0 %v6317
      %6740 = vmatpush1.bf16.msra.mxu0 %v6316
      %6741 = vmatprep.subr.bf16.mxu0 %v6320
      %6742 = vmatpush1.bf16.msra.mxu0 %v6319
      %6743 = vmatprep.subr.bf16.mxu0 %v6323
      %6744 = vmatpush1.bf16.msra.mxu0 %v6322
      %6745 = vmatprep.subr.bf16.mxu0 %v6326
      %6746 = vmatpush1.bf16.msra.mxu0 %v6325
      %6747 = vmatprep.subr.bf16.mxu0 %v6329
      %6748 = vmatpush1.bf16.msra.mxu0 %v6328
      %6749 = vmatprep.subr.bf16.mxu0 %v6332
      %6750 = vmatpush1.bf16.msra.mxu0 %v6331
      %6751 = vmatprep.subr.bf16.mxu0 %v6335
      %6752 = vmatpush1.bf16.msra.mxu0 %v6334
      %6753 = vmatprep.mubr.bf16.mxu0 %v5273
      %6754 = vmatmul.mubr.bf16.gmra.mrb[0].mxu0 %v5272
      %v6755 = vpop.f32.mrb[0].mxu0
      %v6756 = vadd.f32 0.0, %v6755
      %v6757 = vpop.f32.mrb[0].mxu0
      %v6758 = vadd.f32 0.0, %v6757
      %v6759 = vpop.f32.mrb[0].mxu0
      %v6760 = vadd.f32 0.0, %v6759
      %v6761 = vpop.f32.mrb[0].mxu0
      %v6762 = vadd.f32 0.0, %v6761
      %6763 = vdwg.mxu0
      %6764 = vmatprep.subr.bf16.mxu0 %v6338
      %6765 = vmatpush1.bf16.msra.mxu0 %v6337
      %6766 = vmatprep.subr.bf16.mxu0 %v6341
      %6767 = vmatpush1.bf16.msra.mxu0 %v6340
      %6768 = vmatprep.subr.bf16.mxu0 %v6344
      %6769 = vmatpush1.bf16.msra.mxu0 %v6343
      %6770 = vmatprep.subr.bf16.mxu0 %v6347
      %6771 = vmatpush1.bf16.msra.mxu0 %v6346
      %6772 = vmatprep.subr.bf16.mxu0 %v6350
      %6773 = vmatpush1.bf16.msra.mxu0 %v6349
      %6774 = vmatprep.subr.bf16.mxu0 %v6353
      %6775 = vmatpush1.bf16.msra.mxu0 %v6352
      %6776 = vmatprep.subr.bf16.mxu0 %v6356
      %6777 = vmatpush1.bf16.msra.mxu0 %v6355
      %6778 = vmatprep.subr.bf16.mxu0 %v6359
      %6779 = vmatpush1.bf16.msra.mxu0 %v6358
      %6780 = vmatprep.subr.bf16.mxu0 %v6362
      %6781 = vmatpush1.bf16.msra.mxu0 %v6361
      %6782 = vmatprep.subr.bf16.mxu0 %v6365
      %6783 = vmatpush1.bf16.msra.mxu0 %v6364
      %6784 = vmatprep.subr.bf16.mxu0 %v6368
      %6785 = vmatpush1.bf16.msra.mxu0 %v6367
      %6786 = vmatprep.subr.bf16.mxu0 %v6371
      %6787 = vmatpush1.bf16.msra.mxu0 %v6370
      %6788 = vmatprep.subr.bf16.mxu0 %v6374
      %6789 = vmatpush1.bf16.msra.mxu0 %v6373
      %6790 = vmatprep.subr.bf16.mxu0 %v6377
      %6791 = vmatpush1.bf16.msra.mxu0 %v6376
      %6792 = vmatprep.subr.bf16.mxu0 %v6380
      %6793 = vmatpush1.bf16.msra.mxu0 %v6379
      %6794 = vmatprep.subr.bf16.mxu0 %v6383
      %6795 = vmatpush1.bf16.msra.mxu0 %v6382
      %6796 = vmatprep.mubr.bf16.mxu0 %v5275
      %6797 = vmatmul.mubr.bf16.gmra.mrb[0].mxu0 %v5274
      %v6798 = vpop.f32.mrb[0].mxu0
      %v6799 = vadd.f32 %v6756, %v6798
      %v6800 = vpop.f32.mrb[0].mxu0
      %v6801 = vadd.f32 %v6758, %v6800
      %v6802 = vpop.f32.mrb[0].mxu0
      %v6803 = vadd.f32 %v6760, %v6802
      %v6804 = vpop.f32.mrb[0].mxu0
      %v6805 = vadd.f32 %v6762, %v6804
      %6806 = vdwg.mxu0
      %6807 = vmatprep.subr.bf16.mxu0 %v6386
      %6808 = vmatpush1.bf16.msra.mxu0 %v6385
      %6809 = vmatprep.subr.bf16.mxu0 %v6389
      %6810 = vmatpush1.bf16.msra.mxu0 %v6388
      %6811 = vmatprep.subr.bf16.mxu0 %v6392
      %6812 = vmatpush1.bf16.msra.mxu0 %v6391
      %6813 = vmatprep.subr.bf16.mxu0 %v6395
      %6814 = vmatpush1.bf16.msra.mxu0 %v6394
      %6815 = vmatprep.subr.bf16.mxu0 %v6398
      %6816 = vmatpush1.bf16.msra.mxu0 %v6397
      %6817 = vmatprep.subr.bf16.mxu0 %v6401
      %6818 = vmatpush1.bf16.msra.mxu0 %v6400
      %6819 = vmatprep.subr.bf16.mxu0 %v6404
      %6820 = vmatpush1.bf16.msra.mxu0 %v6403
      %6821 = vmatprep.subr.bf16.mxu0 %v6407
      %6822 = vmatpush1.bf16.msra.mxu0 %v6406
      %6823 = vmatprep.subr.bf16.mxu0 %v6410
      %6824 = vmatpush1.bf16.msra.mxu0 %v6409
      %6825 = vmatprep.subr.bf16.mxu0 %v6413
      %6826 = vmatpush1.bf16.msra.mxu0 %v6412
      %6827 = vmatprep.subr.bf16.mxu0 %v6416
      %6828 = vmatpush1.bf16.msra.mxu0 %v6415
      %6829 = vmatprep.subr.bf16.mxu0 %v6419
      %6830 = vmatpush1.bf16.msra.mxu0 %v6418
      %6831 = vmatprep.subr.bf16.mxu0 %v6422
      %6832 = vmatpush1.bf16.msra.mxu0 %v6421
      %6833 = vmatprep.subr.bf16.mxu0 %v6425
      %6834 = vmatpush1.bf16.msra.mxu0 %v6424
      %6835 = vmatprep.subr.bf16.mxu0 %v6428
      %6836 = vmatpush1.bf16.msra.mxu0 %v6427
      %6837 = vmatprep.subr.bf16.mxu0 %v6431
      %6838 = vmatpush1.bf16.msra.mxu0 %v6430
      %6839 = vmatprep.mubr.bf16.mxu0 %v5277
      %6840 = vmatmul.mubr.bf16.gmra.mrb[0].mxu0 %v5276
      %v6841 = vpop.f32.mrb[0].mxu0
      %v6842 = vadd.f32 %v6799, %v6841
      %v6843 = vpop.f32.mrb[0].mxu0
      %v6844 = vadd.f32 %v6801, %v6843
      %v6845 = vpop.f32.mrb[0].mxu0
      %v6846 = vadd.f32 %v6803, %v6845
      %v6847 = vpop.f32.mrb[0].mxu0
      %v6848 = vadd.f32 %v6805, %v6847
      %6849 = vdwg.mxu0
      %6850 = vmatprep.subr.bf16.mxu0 %v6434
      %6851 = vmatpush1.bf16.msra.mxu0 %v6433
      %6852 = vmatprep.subr.bf16.mxu0 %v6437
      %6853 = vmatpush1.bf16.msra.mxu0 %v6436
      %6854 = vmatprep.subr.bf16.mxu0 %v6440
      %6855 = vmatpush1.bf16.msra.mxu0 %v6439
      %6856 = vmatprep.subr.bf16.mxu0 %v6443
      %6857 = vmatpush1.bf16.msra.mxu0 %v6442
      %6858 = vmatprep.subr.bf16.mxu0 %v6446
      %6859 = vmatpush1.bf16.msra.mxu0 %v6445
      %6860 = vmatprep.subr.bf16.mxu0 %v6449
      %6861 = vmatpush1.bf16.msra.mxu0 %v6448
      %6862 = vmatprep.subr.bf16.mxu0 %v6452
      %6863 = vmatpush1.bf16.msra.mxu0 %v6451
      %6864 = vmatprep.subr.bf16.mxu0 %v6455
      %6865 = vmatpush1.bf16.msra.mxu0 %v6454
      %6866 = vmatprep.subr.bf16.mxu0 %v6458
      %6867 = vmatpush1.bf16.msra.mxu0 %v6457
      %6868 = vmatprep.subr.bf16.mxu0 %v6461
      %6869 = vmatpush1.bf16.msra.mxu0 %v6460
      %6870 = vmatprep.subr.bf16.mxu0 %v6464
      %6871 = vmatpush1.bf16.msra.mxu0 %v6463
      %6872 = vmatprep.subr.bf16.mxu0 %v6467
      %6873 = vmatpush1.bf16.msra.mxu0 %v6466
      %6874 = vmatprep.subr.bf16.mxu0 %v6470
      %6875 = vmatpush1.bf16.msra.mxu0 %v6469
      %6876 = vmatprep.subr.bf16.mxu0 %v6473
      %6877 = vmatpush1.bf16.msra.mxu0 %v6472
      %6878 = vmatprep.subr.bf16.mxu0 %v6476
      %6879 = vmatpush1.bf16.msra.mxu0 %v6475
      %6880 = vmatprep.subr.bf16.mxu0 %v6479
      %6881 = vmatpush1.bf16.msra.mxu0 %v6478
      %6882 = vmatprep.mubr.bf16.mxu0 %v5279
      %6883 = vmatmul.mubr.bf16.gmra.mrb[0].mxu0 %v5278
      %v6884 = vpop.f32.mrb[0].mxu0
      %v6885 = vadd.f32 %v6842, %v6884
      %v6886 = vpop.f32.mrb[0].mxu0
      %v6887 = vadd.f32 %v6844, %v6886
      %v6888 = vpop.f32.mrb[0].mxu0
      %v6889 = vadd.f32 %v6846, %v6888
      %v6890 = vpop.f32.mrb[0].mxu0
      %v6891 = vadd.f32 %v6848, %v6890
      %6892 = vdwg.mxu0
      %6893 = vmatprep.subr.bf16.mxu0 %v6482
      %6894 = vmatpush1.bf16.msra.mxu0 %v6481
      %6895 = vmatprep.subr.bf16.mxu0 %v6485
      %6896 = vmatpush1.bf16.msra.mxu0 %v6484
      %6897 = vmatprep.subr.bf16.mxu0 %v6488
      %6898 = vmatpush1.bf16.msra.mxu0 %v6487
      %6899 = vmatprep.subr.bf16.mxu0 %v6491
      %6900 = vmatpush1.bf16.msra.mxu0 %v6490
      %6901 = vmatprep.subr.bf16.mxu0 %v6494
      %6902 = vmatpush1.bf16.msra.mxu0 %v6493
      %6903 = vmatprep.subr.bf16.mxu0 %v6497
      %6904 = vmatpush1.bf16.msra.mxu0 %v6496
      %6905 = vmatprep.subr.bf16.mxu0 %v6500
      %6906 = vmatpush1.bf16.msra.mxu0 %v6499
      %6907 = vmatprep.subr.bf16.mxu0 %v6503
      %6908 = vmatpush1.bf16.msra.mxu0 %v6502
      %6909 = vmatprep.subr.bf16.mxu0 0
      %6910 = vmatpush1.bf16.msra.mxu0 0
      %6911 = vmatprep.subr.bf16.mxu0 0
      %6912 = vmatpush1.bf16.msra.mxu0 0
      %6913 = vmatprep.subr.bf16.mxu0 0
      %6914 = vmatpush1.bf16.msra.mxu0 0
      %6915 = vmatprep.subr.bf16.mxu0 0
      %6916 = vmatpush1.bf16.msra.mxu0 0
      %6917 = vmatprep.subr.bf16.mxu0 0
      %6918 = vmatpush1.bf16.msra.mxu0 0
      %6919 = vmatprep.subr.bf16.mxu0 0
      %6920 = vmatpush1.bf16.msra.mxu0 0
      %6921 = vmatprep.subr.bf16.mxu0 0
      %6922 = vmatpush1.bf16.msra.mxu0 0
      %6923 = vmatprep.subr.bf16.mxu0 0
      %6924 = vmatpush1.bf16.msra.mxu0 0
      %6925 = vmatprep.mubr.bf16.mxu0 0
      %6926 = vmatmul.mubr.bf16.gmra.mrb[0].mxu0 %v5280
      %v6927 = vpop.f32.mrb[0].mxu0
      %v6928 = vadd.f32 %v6885, %v6927
      %v6929 = vpop.f32.mrb[0].mxu0
      %v6930 = vadd.f32 %v6887, %v6929
      %v6931 = vpop.f32.mrb[0].mxu0
      %v6932 = vadd.f32 %v6889, %v6931
      %v6933 = vpop.f32.mrb[0].mxu0
      %v6934 = vadd.f32 %v6891, %v6933
      %6935 = vdwg.mxu0
      %6936 = vmatprep.subr.bf16.mxu0 0
      %6937 = vmatpush1.bf16.msra.mxu0 %v6291
      %6938 = vmatprep.subr.bf16.mxu0 0
      %6939 = vmatpush1.bf16.msra.mxu0 %v6294
      %6940 = vmatprep.subr.bf16.mxu0 0
      %6941 = vmatpush1.bf16.msra.mxu0 %v6297
      %6942 = vmatprep.subr.bf16.mxu0 0
      %6943 = vmatpush1.bf16.msra.mxu0 %v6300
      %6944 = vmatprep.subr.bf16.mxu0 0
      %6945 = vmatpush1.bf16.msra.mxu0 %v6303
      %6946 = vmatprep.subr.bf16.mxu0 0
      %6947 = vmatpush1.bf16.msra.mxu0 %v6306
      %6948 = vmatprep.subr.bf16.mxu0 0
      %6949 = vmatpush1.bf16.msra.mxu0 %v6309
      %6950 = vmatprep.subr.bf16.mxu0 0
      %6951 = vmatpush1.bf16.msra.mxu0 %v6312
      %6952 = vmatprep.subr.bf16.mxu0 0
      %6953 = vmatpush1.bf16.msra.mxu0 %v6315
      %6954 = vmatprep.subr.bf16.mxu0 0
      %6955 = vmatpush1.bf16.msra.mxu0 %v6318
      %6956 = vmatprep.subr.bf16.mxu0 0
      %6957 = vmatpush1.bf16.msra.mxu0 %v6321
      %6958 = vmatprep.subr.bf16.mxu0 0
      %6959 = vmatpush1.bf16.msra.mxu0 %v6324
      %6960 = vmatprep.subr.bf16.mxu0 0
      %6961 = vmatpush1.bf16.msra.mxu0 %v6327
      %6962 = vmatprep.subr.bf16.mxu0 0
      %6963 = vmatpush1.bf16.msra.mxu0 %v6330
      %6964 = vmatprep.subr.bf16.mxu0 0
      %6965 = vmatpush1.bf16.msra.mxu0 %v6333
      %6966 = vmatprep.subr.bf16.mxu0 0
      %6967 = vmatpush1.bf16.msra.mxu0 %v6336
      %6968 = vmatprep.mubr.bf16.mxu0 %v5273
      %6969 = vmatmul.mubr.bf16.gmra.mrb[0].mxu0 %v5272
      %v6970 = vpop.f32.mrb[0].mxu0
      %v6971 = vadd.f32 0.0, %v6970
      %v6972 = vpop.f32.mrb[0].mxu0
      %v6973 = vpop.f32.mrb[0].mxu0
      %v6974 = vadd.f32 0.0, %v6973
      %v6975 = vpop.f32.mrb[0].mxu0
      %6976 = vdwg.mxu0
      %6977 = vmatprep.subr.bf16.mxu0 0
      %6978 = vmatpush1.bf16.msra.mxu0 %v6339
      %6979 = vmatprep.subr.bf16.mxu0 0
      %6980 = vmatpush1.bf16.msra.mxu0 %v6342
      %6981 = vmatprep.subr.bf16.mxu0 0
      %6982 = vmatpush1.bf16.msra.mxu0 %v6345
      %6983 = vmatprep.subr.bf16.mxu0 0
      %6984 = vmatpush1.bf16.msra.mxu0 %v6348
      %6985 = vmatprep.subr.bf16.mxu0 0
      %6986 = vmatpush1.bf16.msra.mxu0 %v6351
      %6987 = vmatprep.subr.bf16.mxu0 0
      %6988 = vmatpush1.bf16.msra.mxu0 %v6354
      %6989 = vmatprep.subr.bf16.mxu0 0
      %6990 = vmatpush1.bf16.msra.mxu0 %v6357
      %6991 = vmatprep.subr.bf16.mxu0 0
      %6992 = vmatpush1.bf16.msra.mxu0 %v6360
      %6993 = vmatprep.subr.bf16.mxu0 0
      %6994 = vmatpush1.bf16.msra.mxu0 %v6363
      %6995 = vmatprep.subr.bf16.mxu0 0
      %6996 = vmatpush1.bf16.msra.mxu0 %v6366
      %6997 = vmatprep.subr.bf16.mxu0 0
      %6998 = vmatpush1.bf16.msra.mxu0 %v6369
      %6999 = vmatprep.subr.bf16.mxu0 0
      %7000 = vmatpush1.bf16.msra.mxu0 %v6372
      %7001 = vmatprep.subr.bf16.mxu0 0
      %7002 = vmatpush1.bf16.msra.mxu0 %v6375
      %7003 = vmatprep.subr.bf16.mxu0 0
      %7004 = vmatpush1.bf16.msra.mxu0 %v6378
      %7005 = vmatprep.subr.bf16.mxu0 0
      %7006 = vmatpush1.bf16.msra.mxu0 %v6381
      %7007 = vmatprep.subr.bf16.mxu0 0
      %7008 = vmatpush1.bf16.msra.mxu0 %v6384
      %7009 = vmatprep.mubr.bf16.mxu0 %v5275
      %7010 = vmatmul.mubr.bf16.gmra.mrb[0].mxu0 %v5274
      %v7011 = vpop.f32.mrb[0].mxu0
      %v7012 = vadd.f32 %v6971, %v7011
      %v7013 = vpop.f32.mrb[0].mxu0
      %v7014 = vpop.f32.mrb[0].mxu0
      %v7015 = vadd.f32 %v6974, %v7014
      %v7016 = vpop.f32.mrb[0].mxu0
      %7017 = vdwg.mxu0
      %7018 = vmatprep.subr.bf16.mxu0 0
      %7019 = vmatpush1.bf16.msra.mxu0 %v6387
      %7020 = vmatprep.subr.bf16.mxu0 0
      %7021 = vmatpush1.bf16.msra.mxu0 %v6390
      %7022 = vmatprep.subr.bf16.mxu0 0
      %7023 = vmatpush1.bf16.msra.mxu0 %v6393
      %7024 = vmatprep.subr.bf16.mxu0 0
      %7025 = vmatpush1.bf16.msra.mxu0 %v6396
      %7026 = vmatprep.subr.bf16.mxu0 0
      %7027 = vmatpush1.bf16.msra.mxu0 %v6399
      %7028 = vmatprep.subr.bf16.mxu0 0
      %7029 = vmatpush1.bf16.msra.mxu0 %v6402
      %7030 = vmatprep.subr.bf16.mxu0 0
      %7031 = vmatpush1.bf16.msra.mxu0 %v6405
      %7032 = vmatprep.subr.bf16.mxu0 0
      %7033 = vmatpush1.bf16.msra.mxu0 %v6408
      %7034 = vmatprep.subr.bf16.mxu0 0
      %7035 = vmatpush1.bf16.msra.mxu0 %v6411
      %7036 = vmatprep.subr.bf16.mxu0 0
      %7037 = vmatpush1.bf16.msra.mxu0 %v6414
      %7038 = vmatprep.subr.bf16.mxu0 0
      %7039 = vmatpush1.bf16.msra.mxu0 %v6417
      %7040 = vmatprep.subr.bf16.mxu0 0
      %7041 = vmatpush1.bf16.msra.mxu0 %v6420
      %7042 = vmatprep.subr.bf16.mxu0 0
      %7043 = vmatpush1.bf16.msra.mxu0 %v6423
      %7044 = vmatprep.subr.bf16.mxu0 0
      %7045 = vmatpush1.bf16.msra.mxu0 %v6426
      %7046 = vmatprep.subr.bf16.mxu0 0
      %7047 = vmatpush1.bf16.msra.mxu0 %v6429
      %7048 = vmatprep.subr.bf16.mxu0 0
      %7049 = vmatpush1.bf16.msra.mxu0 %v6432
      %7050 = vmatprep.mubr.bf16.mxu0 %v5277
      %7051 = vmatmul.mubr.bf16.gmra.mrb[0].mxu0 %v5276
      %v7052 = vpop.f32.mrb[0].mxu0
      %v7053 = vadd.f32 %v7012, %v7052
      %v7054 = vpop.f32.mrb[0].mxu0
      %v7055 = vpop.f32.mrb[0].mxu0
      %v7056 = vadd.f32 %v7015, %v7055
      %v7057 = vpop.f32.mrb[0].mxu0
      %7058 = vdwg.mxu0
      %7059 = vmatprep.subr.bf16.mxu0 0
      %7060 = vmatpush1.bf16.msra.mxu0 %v6435
      %7061 = vmatprep.subr.bf16.mxu0 0
      %7062 = vmatpush1.bf16.msra.mxu0 %v6438
      %7063 = vmatprep.subr.bf16.mxu0 0
      %7064 = vmatpush1.bf16.msra.mxu0 %v6441
      %7065 = vmatprep.subr.bf16.mxu0 0
      %7066 = vmatpush1.bf16.msra.mxu0 %v6444
      %7067 = vmatprep.subr.bf16.mxu0 0
      %7068 = vmatpush1.bf16.msra.mxu0 %v6447
      %7069 = vmatprep.subr.bf16.mxu0 0
      %7070 = vmatpush1.bf16.msra.mxu0 %v6450
      %7071 = vmatprep.subr.bf16.mxu0 0
      %7072 = vmatpush1.bf16.msra.mxu0 %v6453
      %7073 = vmatprep.subr.bf16.mxu0 0
      %7074 = vmatpush1.bf16.msra.mxu0 %v6456
      %7075 = vmatprep.subr.bf16.mxu0 0
      %7076 = vmatpush1.bf16.msra.mxu0 %v6459
      %7077 = vmatprep.subr.bf16.mxu0 0
      %7078 = vmatpush1.bf16.msra.mxu0 %v6462
      %7079 = vmatprep.subr.bf16.mxu0 0
      %7080 = vmatpush1.bf16.msra.mxu0 %v6465
      %7081 = vmatprep.subr.bf16.mxu0 0
      %7082 = vmatpush1.bf16.msra.mxu0 %v6468
      %7083 = vmatprep.subr.bf16.mxu0 0
      %7084 = vmatpush1.bf16.msra.mxu0 %v6471
      %7085 = vmatprep.subr.bf16.mxu0 0
      %7086 = vmatpush1.bf16.msra.mxu0 %v6474
      %7087 = vmatprep.subr.bf16.mxu0 0
      %7088 = vmatpush1.bf16.msra.mxu0 %v6477
      %7089 = vmatprep.subr.bf16.mxu0 0
      %7090 = vmatpush1.bf16.msra.mxu0 %v6480
      %7091 = vmatprep.mubr.bf16.mxu0 %v5279
      %7092 = vmatmul.mubr.bf16.gmra.mrb[0].mxu0 %v5278
      %v7093 = vpop.f32.mrb[0].mxu0
      %v7094 = vadd.f32 %v7053, %v7093
      %v7095 = vpop.f32.mrb[0].mxu0
      %v7096 = vpop.f32.mrb[0].mxu0
      %v7097 = vadd.f32 %v7056, %v7096
      %v7098 = vpop.f32.mrb[0].mxu0
      %7099 = vdwg.mxu0
      %7100 = vmatprep.subr.bf16.mxu0 0
      %7101 = vmatpush1.bf16.msra.mxu0 %v6483
      %7102 = vmatprep.subr.bf16.mxu0 0
      %7103 = vmatpush1.bf16.msra.mxu0 %v6486
      %7104 = vmatprep.subr.bf16.mxu0 0
      %7105 = vmatpush1.bf16.msra.mxu0 %v6489
      %7106 = vmatprep.subr.bf16.mxu0 0
      %7107 = vmatpush1.bf16.msra.mxu0 %v6492
      %7108 = vmatprep.subr.bf16.mxu0 0
      %7109 = vmatpush1.bf16.msra.mxu0 %v6495
      %7110 = vmatprep.subr.bf16.mxu0 0
      %7111 = vmatpush1.bf16.msra.mxu0 %v6498
      %7112 = vmatprep.subr.bf16.mxu0 0
      %7113 = vmatpush1.bf16.msra.mxu0 %v6501
      %7114 = vmatprep.subr.bf16.mxu0 0
      %7115 = vmatpush1.bf16.msra.mxu0 %v6504
      %7116 = vmatprep.subr.bf16.mxu0 0
      %7117 = vmatpush1.bf16.msra.mxu0 0
      %7118 = vmatprep.subr.bf16.mxu0 0
      %7119 = vmatpush1.bf16.msra.mxu0 0
      %7120 = vmatprep.subr.bf16.mxu0 0
      %7121 = vmatpush1.bf16.msra.mxu0 0
      %7122 = vmatprep.subr.bf16.mxu0 0
      %7123 = vmatpush1.bf16.msra.mxu0 0
      %7124 = vmatprep.subr.bf16.mxu0 0
      %7125 = vmatpush1.bf16.msra.mxu0 0
      %7126 = vmatprep.subr.bf16.mxu0 0
      %7127 = vmatpush1.bf16.msra.mxu0 0
      %7128 = vmatprep.subr.bf16.mxu0 0
      %7129 = vmatpush1.bf16.msra.mxu0 0
      %7130 = vmatprep.subr.bf16.mxu0 0
      %7131 = vmatpush1.bf16.msra.mxu0 0
      %7132 = vmatprep.mubr.bf16.mxu0 0
      %7133 = vmatmul.mubr.bf16.gmra.mrb[0].mxu0 %v5280
      %v7134 = vpop.f32.mrb[0].mxu0
      %v7135 = vadd.f32 %v7094, %v7134
      %v7136 = vpop.f32.mrb[0].mxu0
      %v7137 = vpop.f32.mrb[0].mxu0
      %v7138 = vadd.f32 %v7097, %v7137
      %v7139 = vpop.f32.mrb[0].mxu0
      %7140 = vdwg.mxu0
      %v7141 = vpack.c.bf16 %v6932, %v6928
      %v7142 = vpack.c.bf16 %v6934, %v6930
      %v7143 = vpack.c.bf16 %v7138, %v7135
      %7147 = vrot.lane.b32.xlu0 %v7141, 127
      %v7148 = vpop.permute.xlu0 %7147
      %7149 = vrot.lane.b32.xlu0 %v7142, 127
      %v7150 = vpop.permute.xlu0 %7149
      %7151 = vrot.lane.b32.xlu0 %v7143, 127
      %v7152 = vpop.permute.xlu0 %7151
      %v7153 = vsel %vm796, %v777, %v7148
      %v7154 = vsel %vm796, %v7148, %v7150
      %v7155 = vsel %vm796, %v7150, %v7152
      %7156 = vrot.lane.b32.xlu0 %v7141, 126
      %v7157 = vpop.permute.xlu0 %7156
      %7158 = vrot.lane.b32.xlu0 %v7142, 126
      %v7159 = vpop.permute.xlu0 %7158
      %7160 = vrot.lane.b32.xlu0 %v7143, 126
      %v7161 = vpop.permute.xlu0 %7160
      %v7162 = vsel %vm826, %v807, %v7157
      %v7163 = vsel %vm826, %v7157, %v7159
      %v7164 = vsel %vm826, %v7159, %v7161
      %7165 = vrot.lane.b32.xlu0 0, 110
      %v7166 = vpop.permute.xlu0 %7165
      %7167 = vrot.lane.b32.xlu0 %v7141, 110
      %v7168 = vpop.permute.xlu0 %7167
      %7169 = vrot.lane.b32.xlu0 %v7142, 110
      %v7170 = vpop.permute.xlu0 %7169
      %7171 = vrot.lane.b32.xlu0 %v7143, 110
      %v7172 = vpop.permute.xlu0 %7171
      %vm7173 = vcmask 900096
      %v7174 = vsel %vm7173, %v7166, %v7168
      %v7175 = vsel %vm7173, %v7168, %v7170
      %v7176 = vsel %vm7173, %v7170, %v7172
      %7177 = vrot.lane.b32.xlu0 %v7141, 109
      %v7178 = vpop.permute.xlu0 %7177
      %7179 = vrot.lane.b32.xlu0 %v7142, 109
      %v7180 = vpop.permute.xlu0 %7179
      %7181 = vrot.lane.b32.xlu0 %v7143, 109
      %v7182 = vpop.permute.xlu0 %7181
      %vm7183 = vcmask 891904
      %v7184 = vsel %vm7183, %v7178, %v7180
      %v7185 = vsel %vm7183, %v7180, %v7182
      %7186 = vrot.lane.b32.xlu0 %v7141, 108
      %v7187 = vpop.permute.xlu0 %7186
      %7188 = vrot.lane.b32.xlu0 %v7142, 108
      %v7189 = vpop.permute.xlu0 %7188
      %7190 = vrot.lane.b32.xlu0 %v7143, 108
      %v7191 = vpop.permute.xlu0 %7190
      %7192 = vrot.lane.b32.xlu0 0, 108
      %v7193 = vpop.permute.xlu0 %7192
      %vm7194 = vcmask 883712
      %v7195 = vsel %vm7194, %v7187, %v7189
      %v7196 = vsel %vm7194, %v7189, %v7191
      %v7197 = vsel %vm7194, %v7191, %v7193
      %7198 = vrot.lane.b32.xlu0 %v7141, 92
      %v7199 = vpop.permute.xlu0 %7198
      %7200 = vrot.lane.b32.xlu0 %v7142, 92
      %v7201 = vpop.permute.xlu0 %7200
      %7202 = vrot.lane.b32.xlu0 %v7143, 92
      %v7203 = vpop.permute.xlu0 %7202
      %v7204 = vsel %vm976, %v7199, %v7201
      %v7205 = vsel %vm976, %v7201, %v7203
      %v7206 = vsel %vm976, %v7203, %v957
      %7207 = vrot.lane.b32.xlu0 %v7141, 91
      %v7208 = vpop.permute.xlu0 %7207
      %7209 = vrot.lane.b32.xlu0 %v7142, 91
      %v7210 = vpop.permute.xlu0 %7209
      %7211 = vrot.lane.b32.xlu0 %v7143, 91
      %v7212 = vpop.permute.xlu0 %7211
      %v7213 = vsel %vm1006, %v7208, %v7210
      %v7214 = vsel %vm1006, %v7210, %v7212
      %v7215 = vsel %vm1006, %v7212, %v987
      %7216 = vrot.lane.b32.xlu0 %v7141, 90
      %v7217 = vpop.permute.xlu0 %7216
      %7218 = vrot.lane.b32.xlu0 %v7142, 90
      %v7219 = vpop.permute.xlu0 %7218
      %7220 = vrot.lane.b32.xlu0 %v7143, 90
      %v7221 = vpop.permute.xlu0 %7220
      %v7222 = vsel %vm1036, %v7217, %v7219
      %v7223 = vsel %vm1036, %v7219, %v7221
      %v7224 = vsel %vm1036, %v7221, %v1017
      %v7225 = vld [vmem:[%s9] sm:$0xff]
      %v7226 = vld [vmem:[%s9 + $0x8] sm:$0xff]
      %v7227 = vld [vmem:[%s9 + $0x10] sm:$0xff]
      %v7228 = vld [vmem:[%s9 + $0x18] sm:$0xff]
      %v7229 = vld [vmem:[%s10] sm:$0xff]
      %v7230 = vld [vmem:[%s10 + $0x8] sm:$0xff]
      %v7231 = vld [vmem:[%s10 + $0x10] sm:$0xff]
      %v7232 = vld [vmem:[%s10 + $0x18] sm:$0xff]
      %7234 = vset.pattern.permute.xlu0 0
      %7235 = vperm.xlu0 %7234, %v7229
      %v7236 = vpop.permute.xlu0 %7235
      %7239 = vset.pattern.permute.xlu0 0
      %7240 = vperm.xlu0 %7239, %v7230
      %v7241 = vpop.permute.xlu0 %7240
      %7244 = vset.pattern.permute.xlu0 0
      %7245 = vperm.xlu0 %7244, %v7231
      %v7246 = vpop.permute.xlu0 %7245
      %7249 = vset.pattern.permute.xlu0 0
      %7250 = vperm.xlu0 %7249, %v7232
      %v7251 = vpop.permute.xlu0 %7250
      %v7257 = vunpack.c.l.b16 %v7225
      %v7258 = vunpack.c.h.b16 %v7225
      %v7259 = vunpack.c.l.b16 %v7226
      %v7260 = vunpack.c.h.b16 %v7226
      %v7261 = vunpack.c.l.b16 %v7227
      %v7262 = vunpack.c.h.b16 %v7227
      %v7263 = vunpack.c.l.b16 %v7228
      %v7264 = vunpack.c.h.b16 %v7228
      %v7265 = vpack.c.b16 %v7259, %v7257
      %v7266 = vpack.c.b16 %v7260, %v7258
      %v7267 = vpack.c.b16 %v7263, %v7261
      %v7268 = vpack.c.b16 %v7264, %v7262
      %7271 = vrot.lane.b32.xlu0 0, 19
      %v7272 = vpop.permute.xlu0 %7271
      %7273 = vrot.lane.b32.xlu0 %v7141, 19
      %v7274 = vpop.permute.xlu0 %7273
      %7275 = vrot.lane.b32.xlu0 %v7142, 19
      %v7276 = vpop.permute.xlu0 %7275
      %7277 = vrot.lane.b32.xlu0 %v7143, 19
      %v7278 = vpop.permute.xlu0 %7277
      %7279 = vrot.lane.b32.xlu0 %v7153, 19
      %v7280 = vpop.permute.xlu0 %7279
      %7281 = vrot.lane.b32.xlu0 %v7154, 19
      %v7282 = vpop.permute.xlu0 %7281
      %7283 = vrot.lane.b32.xlu0 %v7155, 19
      %v7284 = vpop.permute.xlu0 %7283
      %7285 = vrot.lane.b32.xlu0 %v7152, 19
      %v7286 = vpop.permute.xlu0 %7285
      %7287 = vrot.lane.b32.xlu0 %v7162, 19
      %v7288 = vpop.permute.xlu0 %7287
      %7289 = vrot.lane.b32.xlu0 %v7163, 19
      %v7290 = vpop.permute.xlu0 %7289
      %7291 = vrot.lane.b32.xlu0 %v7164, 19
      %v7292 = vpop.permute.xlu0 %7291
      %7293 = vrot.lane.b32.xlu0 %v7161, 19
      %v7294 = vpop.permute.xlu0 %7293
      %7295 = vrot.lane.b32.xlu0 %v7174, 19
      %v7296 = vpop.permute.xlu0 %7295
      %7297 = vrot.lane.b32.xlu0 %v7175, 19
      %v7298 = vpop.permute.xlu0 %7297
      %7299 = vrot.lane.b32.xlu0 %v7176, 19
      %v7300 = vpop.permute.xlu0 %7299
      %7301 = vrot.lane.b32.xlu0 %v7172, 19
      %v7302 = vpop.permute.xlu0 %7301
      %7303 = vrot.lane.b32.xlu0 %v7178, 19
      %v7304 = vpop.permute.xlu0 %7303
      %7305 = vrot.lane.b32.xlu0 %v7184, 19
      %v7306 = vpop.permute.xlu0 %7305
      %7307 = vrot.lane.b32.xlu0 %v7185, 19
      %v7308 = vpop.permute.xlu0 %7307
      %7309 = vrot.lane.b32.xlu0 %v7182, 19
      %v7310 = vpop.permute.xlu0 %7309
      %7311 = vrot.lane.b32.xlu0 %v7187, 19
      %v7312 = vpop.permute.xlu0 %7311
      %7313 = vrot.lane.b32.xlu0 %v7195, 19
      %v7314 = vpop.permute.xlu0 %7313
      %7315 = vrot.lane.b32.xlu0 %v7196, 19
      %v7316 = vpop.permute.xlu0 %7315
      %7317 = vrot.lane.b32.xlu0 %v7197, 19
      %v7318 = vpop.permute.xlu0 %7317
      %7319 = vrot.lane.b32.xlu0 %v7199, 19
      %v7320 = vpop.permute.xlu0 %7319
      %7321 = vrot.lane.b32.xlu0 %v7204, 19
      %v7322 = vpop.permute.xlu0 %7321
      %7323 = vrot.lane.b32.xlu0 %v7205, 19
      %v7324 = vpop.permute.xlu0 %7323
      %7325 = vrot.lane.b32.xlu0 %v7206, 19
      %v7326 = vpop.permute.xlu0 %7325
      %7327 = vrot.lane.b32.xlu0 %v7208, 19
      %v7328 = vpop.permute.xlu0 %7327
      %7329 = vrot.lane.b32.xlu0 %v7213, 19
      %v7330 = vpop.permute.xlu0 %7329
      %7331 = vrot.lane.b32.xlu0 %v7214, 19
      %v7332 = vpop.permute.xlu0 %7331
      %7333 = vrot.lane.b32.xlu0 %v7215, 19
      %v7334 = vpop.permute.xlu0 %7333
      %7335 = vrot.lane.b32.xlu0 %v7217, 19
      %v7336 = vpop.permute.xlu0 %7335
      %7337 = vrot.lane.b32.xlu0 %v7222, 19
      %v7338 = vpop.permute.xlu0 %7337
      %7339 = vrot.lane.b32.xlu0 %v7223, 19
      %v7340 = vpop.permute.xlu0 %7339
      %7341 = vrot.lane.b32.xlu0 %v7224, 19
      %v7342 = vpop.permute.xlu0 %7341
      %vm7343 = vcmask 154624
      %v7344 = vsel %vm7343, %v7272, %v7274
      %v7345 = vsel %vm7343, %v7274, %v7276
      %v7346 = vsel %vm7343, %v7276, %v7278
      %v7347 = vsel %vm7343, %v7280, %v7282
      %v7348 = vsel %vm7343, %v7282, %v7284
      %v7349 = vsel %vm7343, %v7284, %v7286
      %v7350 = vsel %vm7343, %v7288, %v7290
      %v7351 = vsel %vm7343, %v7290, %v7292
      %v7352 = vsel %vm7343, %v7292, %v7294
      %v7353 = vsel %vm7343, %v7296, %v7298
      %v7354 = vsel %vm7343, %v7298, %v7300
      %v7355 = vsel %vm7343, %v7300, %v7302
      %v7356 = vsel %vm7343, %v7304, %v7306
      %v7357 = vsel %vm7343, %v7306, %v7308
      %v7358 = vsel %vm7343, %v7308, %v7310
      %v7359 = vsel %vm7343, %v7312, %v7314
      %v7360 = vsel %vm7343, %v7314, %v7316
      %v7361 = vsel %vm7343, %v7316, %v7318
      %v7362 = vsel %vm7343, %v7320, %v7322
      %v7363 = vsel %vm7343, %v7322, %v7324
      %v7364 = vsel %vm7343, %v7324, %v7326
      %v7365 = vsel %vm7343, %v7328, %v7330
      %v7366 = vsel %vm7343, %v7330, %v7332
      %v7367 = vsel %vm7343, %v7332, %v7334
      %v7368 = vsel %vm7343, %v7336, %v7338
      %v7369 = vsel %vm7343, %v7338, %v7340
      %v7370 = vsel %vm7343, %v7340, %v7342
      %v7399 = vsel %vm2508, %v7266, 0
      %v7402 = vsel %vm2508, %v7268, 0
      %7404 = vmatprep.subr.bf16.mxu0 %v7345
      %7405 = vmatpush1.bf16.msra.mxu0 %v7344
      %7406 = vmatprep.subr.bf16.mxu0 %v7348
      %7407 = vmatpush1.bf16.msra.mxu0 %v7347
      %7408 = vmatprep.subr.bf16.mxu0 %v7351
      %7409 = vmatpush1.bf16.msra.mxu0 %v7350
      %7410 = vmatprep.subr.bf16.mxu0 %v7354
      %7411 = vmatpush1.bf16.msra.mxu0 %v7353
      %7412 = vmatprep.subr.bf16.mxu0 %v7357
      %7413 = vmatpush1.bf16.msra.mxu0 %v7356
      %7414 = vmatprep.subr.bf16.mxu0 %v7360
      %7415 = vmatpush1.bf16.msra.mxu0 %v7359
      %7416 = vmatprep.subr.bf16.mxu0 %v7363
      %7417 = vmatpush1.bf16.msra.mxu0 %v7362
      %7418 = vmatprep.subr.bf16.mxu0 %v7366
      %7419 = vmatpush1.bf16.msra.mxu0 %v7365
      %7420 = vmatprep.subr.bf16.mxu0 %v7369
      %7421 = vmatpush1.bf16.msra.mxu0 %v7368
      %7422 = vmatprep.subr.bf16.mxu0 0
      %7423 = vmatpush1.bf16.msra.mxu0 0
      %7424 = vmatprep.subr.bf16.mxu0 0
      %7425 = vmatpush1.bf16.msra.mxu0 0
      %7426 = vmatprep.subr.bf16.mxu0 0
      %7427 = vmatpush1.bf16.msra.mxu0 0
      %7428 = vmatprep.subr.bf16.mxu0 0
      %7429 = vmatpush1.bf16.msra.mxu0 0
      %7430 = vmatprep.subr.bf16.mxu0 0
      %7431 = vmatpush1.bf16.msra.mxu0 0
      %7432 = vmatprep.subr.bf16.mxu0 0
      %7433 = vmatpush1.bf16.msra.mxu0 0
      %7434 = vmatprep.subr.bf16.mxu0 0
      %7435 = vmatpush1.bf16.msra.mxu0 0
      %7436 = vmatprep.mubr.bf16.mxu0 %v7399
      %7437 = vmatmul.mubr.bf16.gmra.mrb[0].mxu0 %v7265
      %v7438 = vpop.f32.mrb[0].mxu0
      %v7439 = vadd.f32 %v7236, %v7438
      %v7440 = vpop.f32.mrb[0].mxu0
      %v7441 = vadd.f32 %v7236, %v7440
      %v7442 = vpop.f32.mrb[0].mxu0
      %v7443 = vadd.f32 %v7241, %v7442
      %v7444 = vpop.f32.mrb[0].mxu0
      %v7445 = vadd.f32 %v7241, %v7444
      %7446 = vmatprep.mubr.bf16.mxu0 %v7402
      %7447 = vmatmul.mubr.bf16.gmra.mrb[0].mxu0 %v7267
      %v7448 = vpop.f32.mrb[0].mxu0
      %v7449 = vadd.f32 %v7246, %v7448
      %v7450 = vpop.f32.mrb[0].mxu0
      %v7451 = vadd.f32 %v7246, %v7450
      %v7452 = vpop.f32.mrb[0].mxu0
      %v7453 = vadd.f32 %v7251, %v7452
      %v7454 = vpop.f32.mrb[0].mxu0
      %v7455 = vadd.f32 %v7251, %v7454
      %7456 = vdwg.mxu0
      %7457 = vmatprep.subr.bf16.mxu0 0
      %7458 = vmatpush1.bf16.msra.mxu0 %v7346
      %7459 = vmatprep.subr.bf16.mxu0 0
      %7460 = vmatpush1.bf16.msra.mxu0 %v7349
      %7461 = vmatprep.subr.bf16.mxu0 0
      %7462 = vmatpush1.bf16.msra.mxu0 %v7352
      %7463 = vmatprep.subr.bf16.mxu0 0
      %7464 = vmatpush1.bf16.msra.mxu0 %v7355
      %7465 = vmatprep.subr.bf16.mxu0 0
      %7466 = vmatpush1.bf16.msra.mxu0 %v7358
      %7467 = vmatprep.subr.bf16.mxu0 0
      %7468 = vmatpush1.bf16.msra.mxu0 %v7361
      %7469 = vmatprep.subr.bf16.mxu0 0
      %7470 = vmatpush1.bf16.msra.mxu0 %v7364
      %7471 = vmatprep.subr.bf16.mxu0 0
      %7472 = vmatpush1.bf16.msra.mxu0 %v7367
      %7473 = vmatprep.subr.bf16.mxu0 0
      %7474 = vmatpush1.bf16.msra.mxu0 %v7370
      %7475 = vmatprep.subr.bf16.mxu0 0
      %7476 = vmatpush1.bf16.msra.mxu0 0
      %7477 = vmatprep.subr.bf16.mxu0 0
      %7478 = vmatpush1.bf16.msra.mxu0 0
      %7479 = vmatprep.subr.bf16.mxu0 0
      %7480 = vmatpush1.bf16.msra.mxu0 0
      %7481 = vmatprep.subr.bf16.mxu0 0
      %7482 = vmatpush1.bf16.msra.mxu0 0
      %7483 = vmatprep.subr.bf16.mxu0 0
      %7484 = vmatpush1.bf16.msra.mxu0 0
      %7485 = vmatprep.subr.bf16.mxu0 0
      %7486 = vmatpush1.bf16.msra.mxu0 0
      %7487 = vmatprep.subr.bf16.mxu0 0
      %7488 = vmatpush1.bf16.msra.mxu0 0
      %7489 = vmatprep.mubr.bf16.mxu0 %v7399
      %7490 = vmatmul.mubr.bf16.gmra.mrb[0].mxu0 %v7265
      %v7491 = vpop.f32.mrb[0].mxu0
      %v7492 = vadd.f32 %v7236, %v7491
      %v7493 = vpop.f32.mrb[0].mxu0
      %v7494 = vpop.f32.mrb[0].mxu0
      %v7495 = vadd.f32 %v7241, %v7494
      %v7496 = vpop.f32.mrb[0].mxu0
      %7497 = vmatprep.mubr.bf16.mxu0 %v7402
      %7498 = vmatmul.mubr.bf16.gmra.mrb[0].mxu0 %v7267
      %v7499 = vpop.f32.mrb[0].mxu0
      %v7500 = vadd.f32 %v7246, %v7499
      %v7501 = vpop.f32.mrb[0].mxu0
      %v7502 = vpop.f32.mrb[0].mxu0
      %v7503 = vadd.f32 %v7251, %v7502
      %v7504 = vpop.f32.mrb[0].mxu0
      %7505 = vdwg.mxu0
      %v7506 = vmax.f32 %v7439, 0.0
      %v7507 = vmax.f32 %v7441, 0.0
      %v7508 = vmax.f32 %v7492, 0.0
      %v7509 = vmax.f32 %v7443, 0.0
      %v7510 = vmax.f32 %v7445, 0.0
      %v7511 = vmax.f32 %v7495, 0.0
      %v7512 = vmax.f32 %v7449, 0.0
      %v7513 = vmax.f32 %v7451, 0.0
      %v7514 = vmax.f32 %v7500, 0.0
      %v7515 = vmax.f32 %v7453, 0.0
      %v7516 = vmax.f32 %v7455, 0.0
      %v7517 = vmax.f32 %v7503, 0.0
      %v7518 = vld [vmem:[%s11] sm:$0xff]
      %v7519 = vld [vmem:[%s11 + $0x8] sm:$0xff]
      %v7520 = vld [vmem:[%s11 + $0x10] sm:$0xff]
      %v7521 = vld [vmem:[%s11 + $0x18] sm:$0xff]
      %7523 = vset.pattern.permute.xlu0 0
      %7524 = vperm.xlu0 %7523, %v7518
      %v7525 = vpop.permute.xlu0 %7524
      %7528 = vset.pattern.permute.xlu0 0
      %7529 = vperm.xlu0 %7528, %v7519
      %v7530 = vpop.permute.xlu0 %7529
      %7533 = vset.pattern.permute.xlu0 0
      %7534 = vperm.xlu0 %7533, %v7520
      %v7535 = vpop.permute.xlu0 %7534
      %7538 = vset.pattern.permute.xlu0 0
      %7539 = vperm.xlu0 %7538, %v7521
      %v7540 = vpop.permute.xlu0 %7539
      %v7542 = vmul.f32 %v7506, %v7525
      %v7543 = vmul.f32 %v7507, %v7525
      %v7544 = vmul.f32 %v7508, %v7525
      %v7545 = vmul.f32 %v7509, %v7530
      %v7546 = vmul.f32 %v7510, %v7530
      %v7547 = vmul.f32 %v7511, %v7530
      %v7548 = vmul.f32 %v7512, %v7535
      %v7549 = vmul.f32 %v7513, %v7535
      %v7550 = vmul.f32 %v7514, %v7535
      %v7551 = vmul.f32 %v7515, %v7540
      %v7552 = vmul.f32 %v7516, %v7540
      %v7553 = vmul.f32 %v7517, %v7540
      %v7554 = vld [vmem:[%s12] sm:$0xff]
      %v7555 = vld [vmem:[%s12 + $0x8] sm:$0xff]
      %v7556 = vld [vmem:[%s12 + $0x10] sm:$0xff]
      %v7557 = vld [vmem:[%s12 + $0x18] sm:$0xff]
      %7559 = vset.pattern.permute.xlu0 0
      %7560 = vperm.xlu0 %7559, %v7554
      %v7561 = vpop.permute.xlu0 %7560
      %7564 = vset.pattern.permute.xlu0 0
      %7565 = vperm.xlu0 %7564, %v7555
      %v7566 = vpop.permute.xlu0 %7565
      %7569 = vset.pattern.permute.xlu0 0
      %7570 = vperm.xlu0 %7569, %v7556
      %v7571 = vpop.permute.xlu0 %7570
      %7574 = vset.pattern.permute.xlu0 0
      %7575 = vperm.xlu0 %7574, %v7557
      %v7576 = vpop.permute.xlu0 %7575
      %v7578 = vadd.f32 %v7542, %v7561
      %v7579 = vadd.f32 %v7543, %v7561
      %v7580 = vadd.f32 %v7544, %v7561
      %v7581 = vadd.f32 %v7545, %v7566
      %v7582 = vadd.f32 %v7546, %v7566
      %v7583 = vadd.f32 %v7547, %v7566
      %v7584 = vadd.f32 %v7548, %v7571
      %v7585 = vadd.f32 %v7549, %v7571
      %v7586 = vadd.f32 %v7550, %v7571
      %v7587 = vadd.f32 %v7551, %v7576
      %v7588 = vadd.f32 %v7552, %v7576
      %v7589 = vadd.f32 %v7553, %v7576
      %v7590 = vpack.c.bf16 %v7581, %v7578
      %v7591 = vpack.c.bf16 %v7582, %v7579
      %v7592 = vpack.c.bf16 %v7583, %v7580
      %v7593 = vpack.c.bf16 %v7587, %v7584
      %v7594 = vpack.c.bf16 %v7588, %v7585
      %v7595 = vpack.c.bf16 %v7589, %v7586
      %v7596 = vld [vmem:[%s20] sm:$0xf]
      %v7597 = vld [vmem:[%s20 + $0x4] sm:$0xf]
      %v7598 = vld [vmem:[%s20 + $0x8] sm:$0xf]
      %v7599 = vld [vmem:[%s20 + $0xc] sm:$0xf]
      %v7600 = vld [vmem:[%s20 + $0x10] sm:$0xf]
      %v7601 = vld [vmem:[%s20 + $0x14] sm:$0xf]
      %v7602 = vld [vmem:[%s20 + $0x18] sm:$0xf]
      %v7603 = vld [vmem:[%s20 + $0x1c] sm:$0xf]
      %v7604 = vld [vmem:[%s20 + $0x20] sm:$0xf]
      %v7605 = vld [vmem:[%s20 + $0x24] sm:$0xf]
      %v7606 = vld [vmem:[%s20 + $0x28] sm:$0xf]
      %v7607 = vld [vmem:[%s20 + $0x2c] sm:$0xf]
      %v7608 = vld [vmem:[%s20 + $0x30] sm:$0xf]
      %v7609 = vld [vmem:[%s20 + $0x34] sm:$0xf]
      %v7610 = vld [vmem:[%s20 + $0x38] sm:$0xf]
      %v7611 = vld [vmem:[%s20 + $0x3c] sm:$0xf]
      %v7612 = vld [vmem:[%s20 + $0x40] sm:$0xf]
      %v7613 = vld [vmem:[%s20 + $0x44] sm:$0xf]
      %v7614 = vld [vmem:[%s20 + $0x48] sm:$0xf]
      %v7615 = vld [vmem:[%s20 + $0x4c] sm:$0xf]
      %v7616 = vld [vmem:[%s20 + $0x50] sm:$0xf]
      %v7617 = vld [vmem:[%s20 + $0x54] sm:$0xf]
      %v7618 = vld [vmem:[%s20 + $0x58] sm:$0xf]
      %v7619 = vld [vmem:[%s20 + $0x5c] sm:$0xf]
      %v7620 = vld [vmem:[%s20 + $0x60] sm:$0xf]
      %v7621 = vld [vmem:[%s20 + $0x64] sm:$0xf]
      %v7622 = vld [vmem:[%s20 + $0x68] sm:$0xf]
      %v7623 = vld [vmem:[%s20 + $0x6c] sm:$0xf]
      %v7624 = vld [vmem:[%s20 + $0x70] sm:$0xf]
      %v7625 = vld [vmem:[%s20 + $0x74] sm:$0xf]
      %v7626 = vld [vmem:[%s20 + $0x78] sm:$0xf]
      %v7627 = vld [vmem:[%s20 + $0x7c] sm:$0xf]
      %v7628 = vld [vmem:[%s20 + $0x80] sm:$0xf]
      %v7629 = vld [vmem:[%s20 + $0x84] sm:$0xf]
      %v7630 = vld [vmem:[%s20 + $0x88] sm:$0xf]
      %v7631 = vld [vmem:[%s20 + $0x8c] sm:$0xf]
      %v7632 = vld [vmem:[%s20 + $0x90] sm:$0xf]
      %v7633 = vld [vmem:[%s20 + $0x94] sm:$0xf]
      %v7634 = vld [vmem:[%s20 + $0x98] sm:$0xf]
      %v7635 = vld [vmem:[%s20 + $0x9c] sm:$0xf]
      %v7636 = vld [vmem:[%s20 + $0xa0] sm:$0xf]
      %v7637 = vld [vmem:[%s20 + $0xa4] sm:$0xf]
      %v7638 = vld [vmem:[%s20 + $0xa8] sm:$0xf]
      %v7639 = vld [vmem:[%s20 + $0xac] sm:$0xf]
      %v7640 = vld [vmem:[%s20 + $0xb0] sm:$0xf]
      %v7641 = vld [vmem:[%s20 + $0xb4] sm:$0xf]
      %v7642 = vld [vmem:[%s20 + $0xb8] sm:$0xf]
      %v7643 = vld [vmem:[%s20 + $0xbc] sm:$0xf]
      %v7692 = vunpack.c.l.b16 %v7596
      %v7693 = vunpack.c.l.b16 %v7597
      %v7694 = vunpack.c.l.b16 %v7598
      %v7695 = vunpack.c.l.b16 %v7599
      %v7696 = vunpack.c.l.b16 %v7600
      %v7697 = vunpack.c.l.b16 %v7601
      %v7698 = vunpack.c.l.b16 %v7602
      %v7699 = vunpack.c.l.b16 %v7603
      %v7700 = vunpack.c.l.b16 %v7604
      %v7701 = vunpack.c.l.b16 %v7605
      %v7702 = vunpack.c.l.b16 %v7606
      %v7703 = vunpack.c.l.b16 %v7607
      %v7704 = vunpack.c.l.b16 %v7608
      %v7705 = vunpack.c.l.b16 %v7609
      %v7706 = vunpack.c.l.b16 %v7610
      %v7707 = vunpack.c.l.b16 %v7611
      %v7708 = vunpack.c.l.b16 %v7612
      %v7709 = vunpack.c.l.b16 %v7613
      %v7710 = vunpack.c.l.b16 %v7614
      %v7711 = vunpack.c.l.b16 %v7615
      %v7712 = vunpack.c.l.b16 %v7616
      %v7713 = vunpack.c.l.b16 %v7617
      %v7714 = vunpack.c.l.b16 %v7618
      %v7715 = vunpack.c.l.b16 %v7619
      %v7716 = vunpack.c.l.b16 %v7620
      %v7717 = vunpack.c.l.b16 %v7621
      %v7718 = vunpack.c.l.b16 %v7622
      %v7719 = vunpack.c.l.b16 %v7623
      %v7720 = vunpack.c.l.b16 %v7624
      %v7721 = vunpack.c.l.b16 %v7625
      %v7722 = vunpack.c.l.b16 %v7626
      %v7723 = vunpack.c.l.b16 %v7627
      %v7724 = vunpack.c.l.b16 %v7628
      %v7725 = vunpack.c.l.b16 %v7629
      %v7726 = vunpack.c.l.b16 %v7630
      %v7727 = vunpack.c.l.b16 %v7631
      %v7728 = vunpack.c.l.b16 %v7632
      %v7729 = vunpack.c.l.b16 %v7633
      %v7730 = vunpack.c.l.b16 %v7634
      %v7731 = vunpack.c.l.b16 %v7635
      %v7732 = vunpack.c.l.b16 %v7636
      %v7733 = vunpack.c.l.b16 %v7637
      %v7734 = vunpack.c.l.b16 %v7638
      %v7735 = vunpack.c.l.b16 %v7639
      %v7736 = vunpack.c.l.b16 %v7640
      %v7737 = vunpack.c.l.b16 %v7641
      %v7738 = vunpack.c.l.b16 %v7642
      %v7739 = vunpack.c.l.b16 %v7643
      %v7740 = vpack.c.b16 %v7693, %v7692
      %v7741 = vpack.c.b16 %v7695, %v7694
      %v7742 = vpack.c.b16 %v7697, %v7696
      %v7743 = vpack.c.b16 %v7699, %v7698
      %v7744 = vpack.c.b16 %v7701, %v7700
      %v7745 = vpack.c.b16 %v7703, %v7702
      %v7746 = vpack.c.b16 %v7705, %v7704
      %v7747 = vpack.c.b16 %v7707, %v7706
      %v7748 = vpack.c.b16 %v7709, %v7708
      %v7749 = vpack.c.b16 %v7711, %v7710
      %v7750 = vpack.c.b16 %v7713, %v7712
      %v7751 = vpack.c.b16 %v7715, %v7714
      %v7752 = vpack.c.b16 %v7717, %v7716
      %v7753 = vpack.c.b16 %v7719, %v7718
      %v7754 = vpack.c.b16 %v7721, %v7720
      %v7755 = vpack.c.b16 %v7723, %v7722
      %v7756 = vpack.c.b16 %v7725, %v7724
      %v7757 = vpack.c.b16 %v7727, %v7726
      %v7758 = vpack.c.b16 %v7729, %v7728
      %v7759 = vpack.c.b16 %v7731, %v7730
      %v7760 = vpack.c.b16 %v7733, %v7732
      %v7761 = vpack.c.b16 %v7735, %v7734
      %v7762 = vpack.c.b16 %v7737, %v7736
      %v7763 = vpack.c.b16 %v7739, %v7738
      %7788 = vmatprep.subr.bf16.mxu0 0
      %7789 = vmatpush1.bf16.msra.mxu0 %v7740
      %7790 = vmatprep.subr.bf16.mxu0 0
      %7791 = vmatpush1.bf16.msra.mxu0 %v7741
      %7792 = vmatprep.subr.bf16.mxu0 0
      %7793 = vmatpush1.bf16.msra.mxu0 %v7742
      %7794 = vmatprep.subr.bf16.mxu0 0
      %7795 = vmatpush1.bf16.msra.mxu0 %v7743
      %7796 = vmatprep.subr.bf16.mxu0 0
      %7797 = vmatpush1.bf16.msra.mxu0 %v7744
      %7798 = vmatprep.subr.bf16.mxu0 0
      %7799 = vmatpush1.bf16.msra.mxu0 %v7745
      %7800 = vmatprep.subr.bf16.mxu0 0
      %7801 = vmatpush1.bf16.msra.mxu0 %v7746
      %7802 = vmatprep.subr.bf16.mxu0 0
      %7803 = vmatpush1.bf16.msra.mxu0 %v7747
      %7804 = vmatprep.subr.bf16.mxu0 0
      %7805 = vmatpush1.bf16.msra.mxu0 %v7748
      %7806 = vmatprep.subr.bf16.mxu0 0
      %7807 = vmatpush1.bf16.msra.mxu0 %v7749
      %7808 = vmatprep.subr.bf16.mxu0 0
      %7809 = vmatpush1.bf16.msra.mxu0 %v7750
      %7810 = vmatprep.subr.bf16.mxu0 0
      %7811 = vmatpush1.bf16.msra.mxu0 %v7751
      %7812 = vmatprep.subr.bf16.mxu0 0
      %7813 = vmatpush1.bf16.msra.mxu0 %v7752
      %7814 = vmatprep.subr.bf16.mxu0 0
      %7815 = vmatpush1.bf16.msra.mxu0 %v7753
      %7816 = vmatprep.subr.bf16.mxu0 0
      %7817 = vmatpush1.bf16.msra.mxu0 %v7754
      %7818 = vmatprep.subr.bf16.mxu0 0
      %7819 = vmatpush1.bf16.msra.mxu0 %v7755
      %7820 = vmatprep.mubr.bf16.mxu0 %v7591
      %7821 = vmatmul.mubr.bf16.gmra.mrb[0].mxu0 %v7590
      %v7822 = vpop.f32.mrb[0].mxu0
      %v7823 = vadd.f32 0.0, %v7822
      %v7824 = vpop.f32.mrb[0].mxu0
      %v7825 = vpop.f32.mrb[0].mxu0
      %v7826 = vadd.f32 0.0, %v7825
      %v7827 = vpop.f32.mrb[0].mxu0
      %7828 = vmatprep.mubr.bf16.mxu0 %v7594
      %7829 = vmatmul.mubr.bf16.gmra.mrb[0].mxu0 %v7593
      %v7830 = vpop.f32.mrb[0].mxu0
      %v7831 = vadd.f32 0.0, %v7830
      %v7832 = vpop.f32.mrb[0].mxu0
      %v7833 = vpop.f32.mrb[0].mxu0
      %v7834 = vadd.f32 0.0, %v7833
      %v7835 = vpop.f32.mrb[0].mxu0
      %7836 = vdwg.mxu0
      %7837 = vmatprep.subr.bf16.mxu0 0
      %7838 = vmatpush1.bf16.msra.mxu0 %v7756
      %7839 = vmatprep.subr.bf16.mxu0 0
      %7840 = vmatpush1.bf16.msra.mxu0 %v7757
      %7841 = vmatprep.subr.bf16.mxu0 0
      %7842 = vmatpush1.bf16.msra.mxu0 %v7758
      %7843 = vmatprep.subr.bf16.mxu0 0
      %7844 = vmatpush1.bf16.msra.mxu0 %v7759
      %7845 = vmatprep.subr.bf16.mxu0 0
      %7846 = vmatpush1.bf16.msra.mxu0 %v7760
      %7847 = vmatprep.subr.bf16.mxu0 0
      %7848 = vmatpush1.bf16.msra.mxu0 %v7761
      %7849 = vmatprep.subr.bf16.mxu0 0
      %7850 = vmatpush1.bf16.msra.mxu0 %v7762
      %7851 = vmatprep.subr.bf16.mxu0 0
      %7852 = vmatpush1.bf16.msra.mxu0 %v7763
      %7853 = vmatprep.subr.bf16.mxu0 0
      %7854 = vmatpush1.bf16.msra.mxu0 0
      %7855 = vmatprep.subr.bf16.mxu0 0
      %7856 = vmatpush1.bf16.msra.mxu0 0
      %7857 = vmatprep.subr.bf16.mxu0 0
      %7858 = vmatpush1.bf16.msra.mxu0 0
      %7859 = vmatprep.subr.bf16.mxu0 0
      %7860 = vmatpush1.bf16.msra.mxu0 0
      %7861 = vmatprep.subr.bf16.mxu0 0
      %7862 = vmatpush1.bf16.msra.mxu0 0
      %7863 = vmatprep.subr.bf16.mxu0 0
      %7864 = vmatpush1.bf16.msra.mxu0 0
      %7865 = vmatprep.subr.bf16.mxu0 0
      %7866 = vmatpush1.bf16.msra.mxu0 0
      %7867 = vmatprep.subr.bf16.mxu0 0
      %7868 = vmatpush1.bf16.msra.mxu0 0
      %7869 = vmatprep.mubr.bf16.mxu0 0
      %7870 = vmatmul.mubr.bf16.gmra.mrb[0].mxu0 %v7592
      %v7871 = vpop.f32.mrb[0].mxu0
      %v7872 = vadd.f32 %v7823, %v7871
      %v7873 = vpop.f32.mrb[0].mxu0
      %v7874 = vpop.f32.mrb[0].mxu0
      %v7875 = vadd.f32 %v7826, %v7874
      %v7876 = vpop.f32.mrb[0].mxu0
      %7877 = vmatprep.mubr.bf16.mxu0 0
      %7878 = vmatmul.mubr.bf16.gmra.mrb[0].mxu0 %v7595
      %v7879 = vpop.f32.mrb[0].mxu0
      %v7880 = vadd.f32 %v7831, %v7879
      %v7881 = vpop.f32.mrb[0].mxu0
      %v7882 = vpop.f32.mrb[0].mxu0
      %v7883 = vadd.f32 %v7834, %v7882
      %v7884 = vpop.f32.mrb[0].mxu0
      %7885 = vdwg.mxu0
      %v7886 = vpack.c.bf16 %v7875, %v7872
      %v7887 = vpack.c.bf16 %v7883, %v7880
      %7890 = vrot.lane.b32.xlu0 %v7886, 127
      %v7891 = vpop.permute.xlu0 %7890
      %7892 = vrot.lane.b32.xlu0 %v7887, 127
      %v7893 = vpop.permute.xlu0 %7892
      %v7894 = vsel %vm796, %v777, %v7891
      %v7895 = vsel %vm796, %v777, %v7893
      %7896 = vrot.lane.b32.xlu0 %v7886, 126
      %v7897 = vpop.permute.xlu0 %7896
      %7898 = vrot.lane.b32.xlu0 %v7887, 126
      %v7899 = vpop.permute.xlu0 %7898
      %v7900 = vsel %vm826, %v807, %v7897
      %v7901 = vsel %vm826, %v807, %v7899
      %7902 = vrot.lane.b32.xlu0 %v7886, 125
      %v7903 = vpop.permute.xlu0 %7902
      %7904 = vrot.lane.b32.xlu0 %v7887, 125
      %v7905 = vpop.permute.xlu0 %7904
      %v7906 = vsel %vm856, %v837, %v7903
      %v7907 = vsel %vm856, %v837, %v7905
      %7908 = vrot.lane.b32.xlu0 0, 118
      %v7909 = vpop.permute.xlu0 %7908
      %7910 = vrot.lane.b32.xlu0 %v7886, 118
      %v7911 = vpop.permute.xlu0 %7910
      %7912 = vrot.lane.b32.xlu0 %v7887, 118
      %v7913 = vpop.permute.xlu0 %7912
      %vm7914 = vcmask 965632
      %v7915 = vsel %vm7914, %v7909, %v7911
      %v7916 = vsel %vm7914, %v7909, %v7913
      %7917 = vrot.lane.b32.xlu0 %v7886, 117
      %v7918 = vpop.permute.xlu0 %7917
      %7919 = vrot.lane.b32.xlu0 %v7887, 117
      %v7920 = vpop.permute.xlu0 %7919
      %7921 = vrot.lane.b32.xlu0 %v7886, 116
      %v7922 = vpop.permute.xlu0 %7921
      %7923 = vrot.lane.b32.xlu0 0, 116
      %v7924 = vpop.permute.xlu0 %7923
      %7925 = vrot.lane.b32.xlu0 %v7887, 116
      %v7926 = vpop.permute.xlu0 %7925
      %vm7927 = vcmask 949248
      %v7928 = vsel %vm7927, %v7922, %v7924
      %v7929 = vsel %vm7927, %v7926, %v7924
      %7930 = vrot.lane.b32.xlu0 %v7886, 115
      %v7931 = vpop.permute.xlu0 %7930
      %7932 = vrot.lane.b32.xlu0 0, 115
      %v7933 = vpop.permute.xlu0 %7932
      %7934 = vrot.lane.b32.xlu0 %v7887, 115
      %v7935 = vpop.permute.xlu0 %7934
      %vm7936 = vcmask 941056
      %v7937 = vsel %vm7936, %v7931, %v7933
      %v7938 = vsel %vm7936, %v7935, %v7933
      %7939 = vrot.lane.b32.xlu0 %v7886, 108
      %v7940 = vpop.permute.xlu0 %7939
      %7941 = vrot.lane.b32.xlu0 %v7887, 108
      %v7942 = vpop.permute.xlu0 %7941
      %v7943 = vsel %vm7194, %v7940, %v7193
      %v7944 = vsel %vm7194, %v7942, %v7193
      %7945 = vrot.lane.b32.xlu0 %v7886, 107
      %v7946 = vpop.permute.xlu0 %7945
      %7947 = vrot.lane.b32.xlu0 0, 107
      %v7948 = vpop.permute.xlu0 %7947
      %7949 = vrot.lane.b32.xlu0 %v7887, 107
      %v7950 = vpop.permute.xlu0 %7949
      %vm7951 = vcmask 875520
      %v7952 = vsel %vm7951, %v7946, %v7948
      %v7953 = vsel %vm7951, %v7950, %v7948
      %7954 = vrot.lane.b32.xlu0 %v7886, 106
      %v7955 = vpop.permute.xlu0 %7954
      %7956 = vrot.lane.b32.xlu0 0, 106
      %v7957 = vpop.permute.xlu0 %7956
      %7958 = vrot.lane.b32.xlu0 %v7887, 106
      %v7959 = vpop.permute.xlu0 %7958
      %vm7960 = vcmask 867328
      %v7961 = vsel %vm7960, %v7955, %v7957
      %v7962 = vsel %vm7960, %v7959, %v7957
      %7963 = vrot.lane.b32.xlu0 %v7886, 105
      %v7964 = vpop.permute.xlu0 %7963
      %7965 = vrot.lane.b32.xlu0 0, 105
      %v7966 = vpop.permute.xlu0 %7965
      %7967 = vrot.lane.b32.xlu0 %v7887, 105
      %v7968 = vpop.permute.xlu0 %7967
      %vm7969 = vcmask 859136
      %v7970 = vsel %vm7969, %v7964, %v7966
      %v7971 = vsel %vm7969, %v7968, %v7966
      %7972 = vrot.lane.b32.xlu0 %v7886, 98
      %v7973 = vpop.permute.xlu0 %7972
      %7974 = vrot.lane.b32.xlu0 0, 98
      %v7975 = vpop.permute.xlu0 %7974
      %7976 = vrot.lane.b32.xlu0 %v7887, 98
      %v7977 = vpop.permute.xlu0 %7976
      %vm7978 = vcmask 801792
      %v7979 = vsel %vm7978, %v7973, %v7975
      %v7980 = vsel %vm7978, %v7977, %v7975
      %7981 = vrot.lane.b32.xlu0 %v7886, 97
      %v7982 = vpop.permute.xlu0 %7981
      %7983 = vrot.lane.b32.xlu0 0, 97
      %v7984 = vpop.permute.xlu0 %7983
      %7985 = vrot.lane.b32.xlu0 %v7887, 97
      %v7986 = vpop.permute.xlu0 %7985
      %vm7987 = vcmask 793600
      %v7988 = vsel %vm7987, %v7982, %v7984
      %v7989 = vsel %vm7987, %v7986, %v7984
      %7990 = vrot.lane.b32.xlu0 %v7886, 96
      %v7991 = vpop.permute.xlu0 %7990
      %7992 = vrot.lane.b32.xlu0 0, 96
      %v7993 = vpop.permute.xlu0 %7992
      %7994 = vrot.lane.b32.xlu0 %v7887, 96
      %v7995 = vpop.permute.xlu0 %7994
      %vm7996 = vcmask 785408
      %v7997 = vsel %vm7996, %v7991, %v7993
      %v7998 = vsel %vm7996, %v7995, %v7993
      %7999 = vrot.lane.b32.xlu0 %v7886, 95
      %v8000 = vpop.permute.xlu0 %7999
      %8001 = vrot.lane.b32.xlu0 %v7887, 95
      %v8002 = vpop.permute.xlu0 %8001
      %v8003 = vsel %vm1246, %v8000, %v1245
      %v8004 = vsel %vm1246, %v8002, %v1245
      %v8005 = vld [vmem:[%s13] sm:$0xff]
      %v8006 = vld [vmem:[%s13 + $0x8] sm:$0xff]
      %v8007 = vld [vmem:[%s13 + $0x10] sm:$0xff]
      %v8008 = vld [vmem:[%s13 + $0x18] sm:$0xff]
      %v8009 = vld [vmem:[%s13 + $0x20] sm:$0xff]
      %v8010 = vld [vmem:[%s13 + $0x28] sm:$0xff]
      %v8011 = vld [vmem:[%s13 + $0x30] sm:$0xff]
      %v8012 = vld [vmem:[%s13 + $0x38] sm:$0xff]
      %v8013 = vld [vmem:[%s13 + $0x40] sm:$0xff]
      %v8014 = vld [vmem:[%s13 + $0x48] sm:$0xff]
      %v8015 = vld [vmem:[%s13 + $0x50] sm:$0xff]
      %v8016 = vld [vmem:[%s13 + $0x58] sm:$0xff]
      %v8017 = vld [vmem:[%s13 + $0x60] sm:$0xff]
      %v8018 = vld [vmem:[%s13 + $0x68] sm:$0xff]
      %v8019 = vld [vmem:[%s13 + $0x70] sm:$0xff]
      %v8020 = vld [vmem:[%s13 + $0x78] sm:$0xff]
      %v8021 = vld [vmem:[%s14] sm:$0xff]
      %v8022 = vld [vmem:[%s14 + $0x8] sm:$0xff]
      %v8023 = vld [vmem:[%s14 + $0x10] sm:$0xff]
      %v8024 = vld [vmem:[%s14 + $0x18] sm:$0xff]
      %v8025 = vld [vmem:[%s14 + $0x20] sm:$0xff]
      %v8026 = vld [vmem:[%s14 + $0x28] sm:$0xff]
      %v8027 = vld [vmem:[%s14 + $0x30] sm:$0xff]
      %v8028 = vld [vmem:[%s14 + $0x38] sm:$0xff]
      %8030 = vset.pattern.permute.xlu0 0
      %8031 = vperm.xlu0 %8030, %v8021
      %v8032 = vpop.permute.xlu0 %8031
      %8035 = vset.pattern.permute.xlu0 0
      %8036 = vperm.xlu0 %8035, %v8022
      %v8037 = vpop.permute.xlu0 %8036
      %8040 = vset.pattern.permute.xlu0 0
      %8041 = vperm.xlu0 %8040, %v8023
      %v8042 = vpop.permute.xlu0 %8041
      %8045 = vset.pattern.permute.xlu0 0
      %8046 = vperm.xlu0 %8045, %v8024
      %v8047 = vpop.permute.xlu0 %8046
      %8050 = vset.pattern.permute.xlu0 0
      %8051 = vperm.xlu0 %8050, %v8025
      %v8052 = vpop.permute.xlu0 %8051
      %8055 = vset.pattern.permute.xlu0 0
      %8056 = vperm.xlu0 %8055, %v8026
      %v8057 = vpop.permute.xlu0 %8056
      %8060 = vset.pattern.permute.xlu0 0
      %8061 = vperm.xlu0 %8060, %v8027
      %v8062 = vpop.permute.xlu0 %8061
      %8065 = vset.pattern.permute.xlu0 0
      %8066 = vperm.xlu0 %8065, %v8028
      %v8067 = vpop.permute.xlu0 %8066
      %v8085 = vunpack.c.l.b16 %v8005
      %v8086 = vunpack.c.h.b16 %v8005
      %v8087 = vunpack.c.l.b16 %v8006
      %v8088 = vunpack.c.h.b16 %v8006
      %v8089 = vunpack.c.l.b16 %v8007
      %v8090 = vunpack.c.h.b16 %v8007
      %v8091 = vunpack.c.l.b16 %v8008
      %v8092 = vunpack.c.h.b16 %v8008
      %v8093 = vunpack.c.l.b16 %v8009
      %v8094 = vunpack.c.h.b16 %v8009
      %v8095 = vunpack.c.l.b16 %v8010
      %v8096 = vunpack.c.h.b16 %v8010
      %v8097 = vunpack.c.l.b16 %v8011
      %v8098 = vunpack.c.h.b16 %v8011
      %v8099 = vunpack.c.l.b16 %v8012
      %v8100 = vunpack.c.h.b16 %v8012
      %v8101 = vunpack.c.l.b16 %v8013
      %v8102 = vunpack.c.h.b16 %v8013
      %v8103 = vunpack.c.l.b16 %v8014
      %v8104 = vunpack.c.h.b16 %v8014
      %v8105 = vunpack.c.l.b16 %v8015
      %v8106 = vunpack.c.h.b16 %v8015
      %v8107 = vunpack.c.l.b16 %v8016
      %v8108 = vunpack.c.h.b16 %v8016
      %v8109 = vunpack.c.l.b16 %v8017
      %v8110 = vunpack.c.h.b16 %v8017
      %v8111 = vunpack.c.l.b16 %v8018
      %v8112 = vunpack.c.h.b16 %v8018
      %v8113 = vunpack.c.l.b16 %v8019
      %v8114 = vunpack.c.h.b16 %v8019
      %v8115 = vunpack.c.l.b16 %v8020
      %v8116 = vunpack.c.h.b16 %v8020
      %v8117 = vpack.c.b16 %v8089, %v8085
      %v8118 = vpack.c.b16 %v8090, %v8086
      %v8119 = vpack.c.b16 %v8091, %v8087
      %v8120 = vpack.c.b16 %v8092, %v8088
      %v8121 = vpack.c.b16 %v8097, %v8093
      %v8122 = vpack.c.b16 %v8098, %v8094
      %v8123 = vpack.c.b16 %v8099, %v8095
      %v8124 = vpack.c.b16 %v8100, %v8096
      %v8125 = vpack.c.b16 %v8105, %v8101
      %v8126 = vpack.c.b16 %v8106, %v8102
      %v8127 = vpack.c.b16 %v8107, %v8103
      %v8128 = vpack.c.b16 %v8108, %v8104
      %v8129 = vpack.c.b16 %v8113, %v8109
      %v8130 = vpack.c.b16 %v8114, %v8110
      %v8131 = vpack.c.b16 %v8115, %v8111
      %v8132 = vpack.c.b16 %v8116, %v8112
      %8149 = vrot.lane.b32.xlu0 0, 11
      %v8150 = vpop.permute.xlu0 %8149
      %8151 = vrot.lane.b32.xlu0 %v7886, 11
      %v8152 = vpop.permute.xlu0 %8151
      %8153 = vrot.lane.b32.xlu0 %v7887, 11
      %v8154 = vpop.permute.xlu0 %8153
      %8155 = vrot.lane.b32.xlu0 %v7894, 11
      %v8156 = vpop.permute.xlu0 %8155
      %8157 = vrot.lane.b32.xlu0 %v7891, 11
      %v8158 = vpop.permute.xlu0 %8157
      %8159 = vrot.lane.b32.xlu0 %v7895, 11
      %v8160 = vpop.permute.xlu0 %8159
      %8161 = vrot.lane.b32.xlu0 %v7893, 11
      %v8162 = vpop.permute.xlu0 %8161
      %8163 = vrot.lane.b32.xlu0 %v7900, 11
      %v8164 = vpop.permute.xlu0 %8163
      %8165 = vrot.lane.b32.xlu0 %v7897, 11
      %v8166 = vpop.permute.xlu0 %8165
      %8167 = vrot.lane.b32.xlu0 %v7901, 11
      %v8168 = vpop.permute.xlu0 %8167
      %8169 = vrot.lane.b32.xlu0 %v7899, 11
      %v8170 = vpop.permute.xlu0 %8169
      %8171 = vrot.lane.b32.xlu0 %v7906, 11
      %v8172 = vpop.permute.xlu0 %8171
      %8173 = vrot.lane.b32.xlu0 %v7903, 11
      %v8174 = vpop.permute.xlu0 %8173
      %8175 = vrot.lane.b32.xlu0 %v7907, 11
      %v8176 = vpop.permute.xlu0 %8175
      %8177 = vrot.lane.b32.xlu0 %v7905, 11
      %v8178 = vpop.permute.xlu0 %8177
      %8179 = vrot.lane.b32.xlu0 %v7915, 11
      %v8180 = vpop.permute.xlu0 %8179
      %8181 = vrot.lane.b32.xlu0 %v7911, 11
      %v8182 = vpop.permute.xlu0 %8181
      %8183 = vrot.lane.b32.xlu0 %v7916, 11
      %v8184 = vpop.permute.xlu0 %8183
      %8185 = vrot.lane.b32.xlu0 %v7913, 11
      %v8186 = vpop.permute.xlu0 %8185
      %8187 = vrot.lane.b32.xlu0 %v7918, 11
      %v8188 = vpop.permute.xlu0 %8187
      %8189 = vrot.lane.b32.xlu0 %v7920, 11
      %v8190 = vpop.permute.xlu0 %8189
      %8191 = vrot.lane.b32.xlu0 %v7922, 11
      %v8192 = vpop.permute.xlu0 %8191
      %8193 = vrot.lane.b32.xlu0 %v7928, 11
      %v8194 = vpop.permute.xlu0 %8193
      %8195 = vrot.lane.b32.xlu0 %v7926, 11
      %v8196 = vpop.permute.xlu0 %8195
      %8197 = vrot.lane.b32.xlu0 %v7929, 11
      %v8198 = vpop.permute.xlu0 %8197
      %8199 = vrot.lane.b32.xlu0 %v7931, 11
      %v8200 = vpop.permute.xlu0 %8199
      %8201 = vrot.lane.b32.xlu0 %v7937, 11
      %v8202 = vpop.permute.xlu0 %8201
      %8203 = vrot.lane.b32.xlu0 %v7935, 11
      %v8204 = vpop.permute.xlu0 %8203
      %8205 = vrot.lane.b32.xlu0 %v7938, 11
      %v8206 = vpop.permute.xlu0 %8205
      %8207 = vrot.lane.b32.xlu0 %v7940, 11
      %v8208 = vpop.permute.xlu0 %8207
      %8209 = vrot.lane.b32.xlu0 %v7943, 11
      %v8210 = vpop.permute.xlu0 %8209
      %8211 = vrot.lane.b32.xlu0 %v7942, 11
      %v8212 = vpop.permute.xlu0 %8211
      %8213 = vrot.lane.b32.xlu0 %v7944, 11
      %v8214 = vpop.permute.xlu0 %8213
      %8215 = vrot.lane.b32.xlu0 %v7946, 11
      %v8216 = vpop.permute.xlu0 %8215
      %8217 = vrot.lane.b32.xlu0 %v7952, 11
      %v8218 = vpop.permute.xlu0 %8217
      %8219 = vrot.lane.b32.xlu0 %v7950, 11
      %v8220 = vpop.permute.xlu0 %8219
      %8221 = vrot.lane.b32.xlu0 %v7953, 11
      %v8222 = vpop.permute.xlu0 %8221
      %8223 = vrot.lane.b32.xlu0 %v7955, 11
      %v8224 = vpop.permute.xlu0 %8223
      %8225 = vrot.lane.b32.xlu0 %v7961, 11
      %v8226 = vpop.permute.xlu0 %8225
      %8227 = vrot.lane.b32.xlu0 %v7959, 11
      %v8228 = vpop.permute.xlu0 %8227
      %8229 = vrot.lane.b32.xlu0 %v7962, 11
      %v8230 = vpop.permute.xlu0 %8229
      %8231 = vrot.lane.b32.xlu0 %v7964, 11
      %v8232 = vpop.permute.xlu0 %8231
      %8233 = vrot.lane.b32.xlu0 %v7970, 11
      %v8234 = vpop.permute.xlu0 %8233
      %8235 = vrot.lane.b32.xlu0 %v7968, 11
      %v8236 = vpop.permute.xlu0 %8235
      %8237 = vrot.lane.b32.xlu0 %v7971, 11
      %v8238 = vpop.permute.xlu0 %8237
      %8239 = vrot.lane.b32.xlu0 %v7973, 11
      %v8240 = vpop.permute.xlu0 %8239
      %8241 = vrot.lane.b32.xlu0 %v7979, 11
      %v8242 = vpop.permute.xlu0 %8241
      %8243 = vrot.lane.b32.xlu0 %v7977, 11
      %v8244 = vpop.permute.xlu0 %8243
      %8245 = vrot.lane.b32.xlu0 %v7980, 11
      %v8246 = vpop.permute.xlu0 %8245
      %8247 = vrot.lane.b32.xlu0 %v7982, 11
      %v8248 = vpop.permute.xlu0 %8247
      %8249 = vrot.lane.b32.xlu0 %v7988, 11
      %v8250 = vpop.permute.xlu0 %8249
      %8251 = vrot.lane.b32.xlu0 %v7986, 11
      %v8252 = vpop.permute.xlu0 %8251
      %8253 = vrot.lane.b32.xlu0 %v7989, 11
      %v8254 = vpop.permute.xlu0 %8253
      %8255 = vrot.lane.b32.xlu0 %v7991, 11
      %v8256 = vpop.permute.xlu0 %8255
      %8257 = vrot.lane.b32.xlu0 %v7997, 11
      %v8258 = vpop.permute.xlu0 %8257
      %8259 = vrot.lane.b32.xlu0 %v7995, 11
      %v8260 = vpop.permute.xlu0 %8259
      %8261 = vrot.lane.b32.xlu0 %v7998, 11
      %v8262 = vpop.permute.xlu0 %8261
      %8263 = vrot.lane.b32.xlu0 %v8000, 11
      %v8264 = vpop.permute.xlu0 %8263
      %8265 = vrot.lane.b32.xlu0 %v8003, 11
      %v8266 = vpop.permute.xlu0 %8265
      %8267 = vrot.lane.b32.xlu0 %v8002, 11
      %v8268 = vpop.permute.xlu0 %8267
      %8269 = vrot.lane.b32.xlu0 %v8004, 11
      %v8270 = vpop.permute.xlu0 %8269
      %vm8271 = vcmask 89088
      %v8272 = vsel %vm8271, %v8150, %v8152
      %v8273 = vsel %vm8271, %v8150, %v8154
      %v8274 = vsel %vm8271, %v8156, %v8158
      %v8275 = vsel %vm8271, %v8160, %v8162
      %v8276 = vsel %vm8271, %v8164, %v8166
      %v8277 = vsel %vm8271, %v8168, %v8170
      %v8278 = vsel %vm8271, %v8172, %v8174
      %v8279 = vsel %vm8271, %v8176, %v8178
      %v8280 = vsel %vm8271, %v8180, %v8182
      %v8281 = vsel %vm8271, %v8184, %v8186
      %v8282 = vsel %vm8271, %v8192, %v8194
      %v8283 = vsel %vm8271, %v8196, %v8198
      %v8284 = vsel %vm8271, %v8200, %v8202
      %v8285 = vsel %vm8271, %v8204, %v8206
      %v8286 = vsel %vm8271, %v8208, %v8210
      %v8287 = vsel %vm8271, %v8212, %v8214
      %v8288 = vsel %vm8271, %v8216, %v8218
      %v8289 = vsel %vm8271, %v8220, %v8222
      %v8290 = vsel %vm8271, %v8224, %v8226
      %v8291 = vsel %vm8271, %v8228, %v8230
      %v8292 = vsel %vm8271, %v8232, %v8234
      %v8293 = vsel %vm8271, %v8236, %v8238
      %v8294 = vsel %vm8271, %v8240, %v8242
      %v8295 = vsel %vm8271, %v8244, %v8246
      %v8296 = vsel %vm8271, %v8248, %v8250
      %v8297 = vsel %vm8271, %v8252, %v8254
      %v8298 = vsel %vm8271, %v8256, %v8258
      %v8299 = vsel %vm8271, %v8260, %v8262
      %v8300 = vsel %vm8271, %v8264, %v8266
      %v8301 = vsel %vm8271, %v8268, %v8270
      %8334 = vmatprep.subr.bf16.mxu0 0
      %8335 = vmatpush1.bf16.msra.mxu0 %v8272
      %8336 = vmatprep.subr.bf16.mxu0 0
      %8337 = vmatpush1.bf16.msra.mxu0 %v8273
      %8338 = vmatprep.subr.bf16.mxu0 0
      %8339 = vmatpush1.bf16.msra.mxu0 %v8274
      %8340 = vmatprep.subr.bf16.mxu0 0
      %8341 = vmatpush1.bf16.msra.mxu0 %v8275
      %8342 = vmatprep.subr.bf16.mxu0 0
      %8343 = vmatpush1.bf16.msra.mxu0 %v8276
      %8344 = vmatprep.subr.bf16.mxu0 0
      %8345 = vmatpush1.bf16.msra.mxu0 %v8277
      %8346 = vmatprep.subr.bf16.mxu0 0
      %8347 = vmatpush1.bf16.msra.mxu0 %v8278
      %8348 = vmatprep.subr.bf16.mxu0 0
      %8349 = vmatpush1.bf16.msra.mxu0 %v8279
      %8350 = vmatprep.subr.bf16.mxu0 0
      %8351 = vmatpush1.bf16.msra.mxu0 %v8280
      %8352 = vmatprep.subr.bf16.mxu0 0
      %8353 = vmatpush1.bf16.msra.mxu0 %v8281
      %8354 = vmatprep.subr.bf16.mxu0 0
      %8355 = vmatpush1.bf16.msra.mxu0 %v8188
      %8356 = vmatprep.subr.bf16.mxu0 0
      %8357 = vmatpush1.bf16.msra.mxu0 %v8190
      %8358 = vmatprep.subr.bf16.mxu0 0
      %8359 = vmatpush1.bf16.msra.mxu0 %v8282
      %8360 = vmatprep.subr.bf16.mxu0 0
      %8361 = vmatpush1.bf16.msra.mxu0 %v8283
      %8362 = vmatprep.subr.bf16.mxu0 0
      %8363 = vmatpush1.bf16.msra.mxu0 %v8284
      %8364 = vmatprep.subr.bf16.mxu0 0
      %8365 = vmatpush1.bf16.msra.mxu0 %v8285
      %8366 = vmatprep.mubr.bf16.mxu0 %v8118
      %8367 = vmatmul.mubr.bf16.gmra.mrb[0].mxu0 %v8117
      %v8368 = vpop.f32.mrb[0].mxu0
      %v8369 = vadd.f32 %v8032, %v8368
      %v8370 = vpop.f32.mrb[0].mxu0
      %v8371 = vpop.f32.mrb[0].mxu0
      %v8372 = vadd.f32 %v8037, %v8371
      %v8373 = vpop.f32.mrb[0].mxu0
      %8374 = vmatprep.mubr.bf16.mxu0 %v8122
      %8375 = vmatmul.mubr.bf16.gmra.mrb[0].mxu0 %v8121
      %v8376 = vpop.f32.mrb[0].mxu0
      %v8377 = vadd.f32 %v8042, %v8376
      %v8378 = vpop.f32.mrb[0].mxu0
      %v8379 = vpop.f32.mrb[0].mxu0
      %v8380 = vadd.f32 %v8047, %v8379
      %v8381 = vpop.f32.mrb[0].mxu0
      %8382 = vmatprep.mubr.bf16.mxu0 %v8126
      %8383 = vmatmul.mubr.bf16.gmra.mrb[0].mxu0 %v8125
      %v8384 = vpop.f32.mrb[0].mxu0
      %v8385 = vadd.f32 %v8052, %v8384
      %v8386 = vpop.f32.mrb[0].mxu0
      %v8387 = vpop.f32.mrb[0].mxu0
      %v8388 = vadd.f32 %v8057, %v8387
      %v8389 = vpop.f32.mrb[0].mxu0
      %8390 = vmatprep.mubr.bf16.mxu0 %v8130
      %8391 = vmatmul.mubr.bf16.gmra.mrb[0].mxu0 %v8129
      %v8392 = vpop.f32.mrb[0].mxu0
      %v8393 = vadd.f32 %v8062, %v8392
      %v8394 = vpop.f32.mrb[0].mxu0
      %v8395 = vpop.f32.mrb[0].mxu0
      %v8396 = vadd.f32 %v8067, %v8395
      %v8397 = vpop.f32.mrb[0].mxu0
      %8398 = vdwg.mxu0
      %8399 = vmatprep.subr.bf16.mxu0 0
      %8400 = vmatpush1.bf16.msra.mxu0 %v8286
      %8401 = vmatprep.subr.bf16.mxu0 0
      %8402 = vmatpush1.bf16.msra.mxu0 %v8287
      %8403 = vmatprep.subr.bf16.mxu0 0
      %8404 = vmatpush1.bf16.msra.mxu0 %v8288
      %8405 = vmatprep.subr.bf16.mxu0 0
      %8406 = vmatpush1.bf16.msra.mxu0 %v8289
      %8407 = vmatprep.subr.bf16.mxu0 0
      %8408 = vmatpush1.bf16.msra.mxu0 %v8290
      %8409 = vmatprep.subr.bf16.mxu0 0
      %8410 = vmatpush1.bf16.msra.mxu0 %v8291
      %8411 = vmatprep.subr.bf16.mxu0 0
      %8412 = vmatpush1.bf16.msra.mxu0 %v8292
      %8413 = vmatprep.subr.bf16.mxu0 0
      %8414 = vmatpush1.bf16.msra.mxu0 %v8293
      %8415 = vmatprep.subr.bf16.mxu0 0
      %8416 = vmatpush1.bf16.msra.mxu0 %v8294
      %8417 = vmatprep.subr.bf16.mxu0 0
      %8418 = vmatpush1.bf16.msra.mxu0 %v8295
      %8419 = vmatprep.subr.bf16.mxu0 0
      %8420 = vmatpush1.bf16.msra.mxu0 %v8296
      %8421 = vmatprep.subr.bf16.mxu0 0
      %8422 = vmatpush1.bf16.msra.mxu0 %v8297
      %8423 = vmatprep.subr.bf16.mxu0 0
      %8424 = vmatpush1.bf16.msra.mxu0 %v8298
      %8425 = vmatprep.subr.bf16.mxu0 0
      %8426 = vmatpush1.bf16.msra.mxu0 %v8299
      %8427 = vmatprep.subr.bf16.mxu0 0
      %8428 = vmatpush1.bf16.msra.mxu0 %v8300
      %8429 = vmatprep.subr.bf16.mxu0 0
      %8430 = vmatpush1.bf16.msra.mxu0 %v8301
      %8431 = vmatprep.mubr.bf16.mxu0 %v8120
      %8432 = vmatmul.mubr.bf16.gmra.mrb[0].mxu0 %v8119
      %v8433 = vpop.f32.mrb[0].mxu0
      %v8434 = vadd.f32 %v8369, %v8433
      %v8435 = vpop.f32.mrb[0].mxu0
      %v8436 = vpop.f32.mrb[0].mxu0
      %v8437 = vadd.f32 %v8372, %v8436
      %v8438 = vpop.f32.mrb[0].mxu0
      %8439 = vmatprep.mubr.bf16.mxu0 %v8124
      %8440 = vmatmul.mubr.bf16.gmra.mrb[0].mxu0 %v8123
      %v8441 = vpop.f32.mrb[0].mxu0
      %v8442 = vadd.f32 %v8377, %v8441
      %v8443 = vpop.f32.mrb[0].mxu0
      %v8444 = vpop.f32.mrb[0].mxu0
      %v8445 = vadd.f32 %v8380, %v8444
      %v8446 = vpop.f32.mrb[0].mxu0
      %8447 = vmatprep.mubr.bf16.mxu0 %v8128
      %8448 = vmatmul.mubr.bf16.gmra.mrb[0].mxu0 %v8127
      %v8449 = vpop.f32.mrb[0].mxu0
      %v8450 = vadd.f32 %v8385, %v8449
      %v8451 = vpop.f32.mrb[0].mxu0
      %v8452 = vpop.f32.mrb[0].mxu0
      %v8453 = vadd.f32 %v8388, %v8452
      %v8454 = vpop.f32.mrb[0].mxu0
      %8455 = vmatprep.mubr.bf16.mxu0 %v8132
      %8456 = vmatmul.mubr.bf16.gmra.mrb[0].mxu0 %v8131
      %v8457 = vpop.f32.mrb[0].mxu0
      %v8458 = vadd.f32 %v8393, %v8457
      %v8459 = vpop.f32.mrb[0].mxu0
      %v8460 = vpop.f32.mrb[0].mxu0
      %v8461 = vadd.f32 %v8396, %v8460
      %v8462 = vpop.f32.mrb[0].mxu0
      %8463 = vdwg.mxu0
      %v8464 = vmax.f32 %v8434, 0.0
      %v8465 = vmax.f32 %v8437, 0.0
      %v8466 = vmax.f32 %v8442, 0.0
      %v8467 = vmax.f32 %v8445, 0.0
      %v8468 = vmax.f32 %v8450, 0.0
      %v8469 = vmax.f32 %v8453, 0.0
      %v8470 = vmax.f32 %v8458, 0.0
      %v8471 = vmax.f32 %v8461, 0.0
      %v8472 = vld [vmem:[%s15] sm:$0xff]
      %v8473 = vld [vmem:[%s15 + $0x8] sm:$0xff]
      %v8474 = vld [vmem:[%s15 + $0x10] sm:$0xff]
      %v8475 = vld [vmem:[%s15 + $0x18] sm:$0xff]
      %v8476 = vld [vmem:[%s15 + $0x20] sm:$0xff]
      %v8477 = vld [vmem:[%s15 + $0x28] sm:$0xff]
      %v8478 = vld [vmem:[%s15 + $0x30] sm:$0xff]
      %v8479 = vld [vmem:[%s15 + $0x38] sm:$0xff]
      %8481 = vset.pattern.permute.xlu0 0
      %8482 = vperm.xlu0 %8481, %v8472
      %v8483 = vpop.permute.xlu0 %8482
      %8486 = vset.pattern.permute.xlu0 0
      %8487 = vperm.xlu0 %8486, %v8473
      %v8488 = vpop.permute.xlu0 %8487
      %8491 = vset.pattern.permute.xlu0 0
      %8492 = vperm.xlu0 %8491, %v8474
      %v8493 = vpop.permute.xlu0 %8492
      %8496 = vset.pattern.permute.xlu0 0
      %8497 = vperm.xlu0 %8496, %v8475
      %v8498 = vpop.permute.xlu0 %8497
      %8501 = vset.pattern.permute.xlu0 0
      %8502 = vperm.xlu0 %8501, %v8476
      %v8503 = vpop.permute.xlu0 %8502
      %8506 = vset.pattern.permute.xlu0 0
      %8507 = vperm.xlu0 %8506, %v8477
      %v8508 = vpop.permute.xlu0 %8507
      %8511 = vset.pattern.permute.xlu0 0
      %8512 = vperm.xlu0 %8511, %v8478
      %v8513 = vpop.permute.xlu0 %8512
      %8516 = vset.pattern.permute.xlu0 0
      %8517 = vperm.xlu0 %8516, %v8479
      %v8518 = vpop.permute.xlu0 %8517
      %v8520 = vmul.f32 %v8464, %v8483
      %v8521 = vmul.f32 %v8465, %v8488
      %v8522 = vmul.f32 %v8466, %v8493
      %v8523 = vmul.f32 %v8467, %v8498
      %v8524 = vmul.f32 %v8468, %v8503
      %v8525 = vmul.f32 %v8469, %v8508
      %v8526 = vmul.f32 %v8470, %v8513
      %v8527 = vmul.f32 %v8471, %v8518
      %v8528 = vld [vmem:[%s16] sm:$0xff]
      %v8529 = vld [vmem:[%s16 + $0x8] sm:$0xff]
      %v8530 = vld [vmem:[%s16 + $0x10] sm:$0xff]
      %v8531 = vld [vmem:[%s16 + $0x18] sm:$0xff]
      %v8532 = vld [vmem:[%s16 + $0x20] sm:$0xff]
      %v8533 = vld [vmem:[%s16 + $0x28] sm:$0xff]
      %v8534 = vld [vmem:[%s16 + $0x30] sm:$0xff]
      %v8535 = vld [vmem:[%s16 + $0x38] sm:$0xff]
      %8537 = vset.pattern.permute.xlu0 0
      %8538 = vperm.xlu0 %8537, %v8528
      %v8539 = vpop.permute.xlu0 %8538
      %8542 = vset.pattern.permute.xlu0 0
      %8543 = vperm.xlu0 %8542, %v8529
      %v8544 = vpop.permute.xlu0 %8543
      %8547 = vset.pattern.permute.xlu0 0
      %8548 = vperm.xlu0 %8547, %v8530
      %v8549 = vpop.permute.xlu0 %8548
      %8552 = vset.pattern.permute.xlu0 0
      %8553 = vperm.xlu0 %8552, %v8531
      %v8554 = vpop.permute.xlu0 %8553
      %8557 = vset.pattern.permute.xlu0 0
      %8558 = vperm.xlu0 %8557, %v8532
      %v8559 = vpop.permute.xlu0 %8558
      %8562 = vset.pattern.permute.xlu0 0
      %8563 = vperm.xlu0 %8562, %v8533
      %v8564 = vpop.permute.xlu0 %8563
      %8567 = vset.pattern.permute.xlu0 0
      %8568 = vperm.xlu0 %8567, %v8534
      %v8569 = vpop.permute.xlu0 %8568
      %8572 = vset.pattern.permute.xlu0 0
      %8573 = vperm.xlu0 %8572, %v8535
      %v8574 = vpop.permute.xlu0 %8573
      %v8576 = vadd.f32 %v8520, %v8539
      %v8577 = vadd.f32 %v8521, %v8544
      %v8578 = vadd.f32 %v8522, %v8549
      %v8579 = vadd.f32 %v8523, %v8554
      %v8580 = vadd.f32 %v8524, %v8559
      %v8581 = vadd.f32 %v8525, %v8564
      %v8582 = vadd.f32 %v8526, %v8569
      %v8583 = vadd.f32 %v8527, %v8574
      %v8584 = vld [vmem:[%s18] sm:$0x1]
      %vm8585 = vcmp.gt.f32.partialorder %v8584, 0.0
      %v8586 = vsel %vm8585, 1, 0
      %v8587 = vlaneseq
      %v8588 = vshrl.u32 %v8587, 7
      %v8589 = vsub.s32 0, %v8588
      %v8590 = vrot.slane %v8586, %v8589
      %vm8591 = vcmp.eq.s32.totalorder %v8590, 1
      %v8592 = vsel %vm8591, %v8576, -1e+30
      %v8593 = vsel %vm8591, %v8577, -1e+30
      %v8594 = vsel %vm8591, %v8578, -1e+30
      %v8595 = vsel %vm8591, %v8579, -1e+30
      %v8596 = vsel %vm8591, %v8580, -1e+30
      %v8597 = vsel %vm8591, %v8581, -1e+30
      %v8598 = vsel %vm8591, %v8582, -1e+30
      %v8599 = vsel %vm8591, %v8583, -1e+30
      %8609 = vrot.lane.b32.xlu0 -1e+30, 127
      %v8610 = vpop.permute.xlu0 %8609
      %8611 = vrot.lane.b32.xlu0 %v8592, 127
      %v8612 = vpop.permute.xlu0 %8611
      %8613 = vrot.lane.b32.xlu0 %v8593, 127
      %v8614 = vpop.permute.xlu0 %8613
      %8615 = vrot.lane.b32.xlu0 %v8594, 127
      %v8616 = vpop.permute.xlu0 %8615
      %8617 = vrot.lane.b32.xlu0 %v8595, 127
      %v8618 = vpop.permute.xlu0 %8617
      %8619 = vrot.lane.b32.xlu0 %v8596, 127
      %v8620 = vpop.permute.xlu0 %8619
      %8621 = vrot.lane.b32.xlu0 %v8597, 127
      %v8622 = vpop.permute.xlu0 %8621
      %8623 = vrot.lane.b32.xlu0 %v8598, 127
      %v8624 = vpop.permute.xlu0 %8623
      %8625 = vrot.lane.b32.xlu0 %v8599, 127
      %v8626 = vpop.permute.xlu0 %8625
      %vm8627 = vcmask 1039360
      %v8628 = vsel %vm8627, %v8610, %v8612
      %v8629 = vsel %vm8627, %v8610, %v8614
      %v8630 = vsel %vm8627, %v8610, %v8616
      %v8631 = vsel %vm8627, %v8610, %v8618
      %v8632 = vsel %vm8627, %v8610, %v8620
      %v8633 = vsel %vm8627, %v8610, %v8622
      %v8634 = vsel %vm8627, %v8610, %v8624
      %v8635 = vsel %vm8627, %v8610, %v8626
      %v8652 = vmax.f32 %v8628, -1e+30
      %v8653 = vmax.f32 %v8592, %v8612
      %v8654 = vmax.f32 %v8629, -1e+30
      %v8655 = vmax.f32 %v8593, %v8614
      %v8656 = vmax.f32 %v8630, -1e+30
      %v8657 = vmax.f32 %v8594, %v8616
      %v8658 = vmax.f32 %v8631, -1e+30
      %v8659 = vmax.f32 %v8595, %v8618
      %v8660 = vmax.f32 %v8632, -1e+30
      %v8661 = vmax.f32 %v8596, %v8620
      %v8662 = vmax.f32 %v8633, -1e+30
      %v8663 = vmax.f32 %v8597, %v8622
      %v8664 = vmax.f32 %v8634, -1e+30
      %v8665 = vmax.f32 %v8598, %v8624
      %v8666 = vmax.f32 %v8635, -1e+30
      %v8667 = vmax.f32 %v8599, %v8626
      %8668 = vrot.lane.b32.xlu0 -1e+30, 126
      %v8669 = vpop.permute.xlu0 %8668
      %8670 = vrot.lane.b32.xlu0 %v8592, 126
      %v8671 = vpop.permute.xlu0 %8670
      %8672 = vrot.lane.b32.xlu0 %v8593, 126
      %v8673 = vpop.permute.xlu0 %8672
      %8674 = vrot.lane.b32.xlu0 %v8594, 126
      %v8675 = vpop.permute.xlu0 %8674
      %8676 = vrot.lane.b32.xlu0 %v8595, 126
      %v8677 = vpop.permute.xlu0 %8676
      %8678 = vrot.lane.b32.xlu0 %v8596, 126
      %v8679 = vpop.permute.xlu0 %8678
      %8680 = vrot.lane.b32.xlu0 %v8597, 126
      %v8681 = vpop.permute.xlu0 %8680
      %8682 = vrot.lane.b32.xlu0 %v8598, 126
      %v8683 = vpop.permute.xlu0 %8682
      %8684 = vrot.lane.b32.xlu0 %v8599, 126
      %v8685 = vpop.permute.xlu0 %8684
      %vm8686 = vcmask 1031168
      %v8687 = vsel %vm8686, %v8669, %v8671
      %v8688 = vsel %vm8686, %v8669, %v8673
      %v8689 = vsel %vm8686, %v8669, %v8675
      %v8690 = vsel %vm8686, %v8669, %v8677
      %v8691 = vsel %vm8686, %v8669, %v8679
      %v8692 = vsel %vm8686, %v8669, %v8681
      %v8693 = vsel %vm8686, %v8669, %v8683
      %v8694 = vsel %vm8686, %v8669, %v8685
      %v8711 = vmax.f32 %v8652, %v8687
      %v8712 = vmax.f32 %v8653, %v8671
      %v8713 = vmax.f32 %v8654, %v8688
      %v8714 = vmax.f32 %v8655, %v8673
      %v8715 = vmax.f32 %v8656, %v8689
      %v8716 = vmax.f32 %v8657, %v8675
      %v8717 = vmax.f32 %v8658, %v8690
      %v8718 = vmax.f32 %v8659, %v8677
      %v8719 = vmax.f32 %v8660, %v8691
      %v8720 = vmax.f32 %v8661, %v8679
      %v8721 = vmax.f32 %v8662, %v8692
      %v8722 = vmax.f32 %v8663, %v8681
      %v8723 = vmax.f32 %v8664, %v8693
      %v8724 = vmax.f32 %v8665, %v8683
      %v8725 = vmax.f32 %v8666, %v8694
      %v8726 = vmax.f32 %v8667, %v8685
      %8727 = vrot.lane.b32.xlu0 -1e+30, 125
      %v8728 = vpop.permute.xlu0 %8727
      %8729 = vrot.lane.b32.xlu0 %v8592, 125
      %v8730 = vpop.permute.xlu0 %8729
      %8731 = vrot.lane.b32.xlu0 %v8593, 125
      %v8732 = vpop.permute.xlu0 %8731
      %8733 = vrot.lane.b32.xlu0 %v8594, 125
      %v8734 = vpop.permute.xlu0 %8733
      %8735 = vrot.lane.b32.xlu0 %v8595, 125
      %v8736 = vpop.permute.xlu0 %8735
      %8737 = vrot.lane.b32.xlu0 %v8596, 125
      %v8738 = vpop.permute.xlu0 %8737
      %8739 = vrot.lane.b32.xlu0 %v8597, 125
      %v8740 = vpop.permute.xlu0 %8739
      %8741 = vrot.lane.b32.xlu0 %v8598, 125
      %v8742 = vpop.permute.xlu0 %8741
      %8743 = vrot.lane.b32.xlu0 %v8599, 125
      %v8744 = vpop.permute.xlu0 %8743
      %vm8745 = vcmask 1022976
      %v8746 = vsel %vm8745, %v8728, %v8730
      %v8747 = vsel %vm8745, %v8728, %v8732
      %v8748 = vsel %vm8745, %v8728, %v8734
      %v8749 = vsel %vm8745, %v8728, %v8736
      %v8750 = vsel %vm8745, %v8728, %v8738
      %v8751 = vsel %vm8745, %v8728, %v8740
      %v8752 = vsel %vm8745, %v8728, %v8742
      %v8753 = vsel %vm8745, %v8728, %v8744
      %v8770 = vmax.f32 %v8711, %v8746
      %v8771 = vmax.f32 %v8712, %v8730
      %v8772 = vmax.f32 %v8713, %v8747
      %v8773 = vmax.f32 %v8714, %v8732
      %v8774 = vmax.f32 %v8715, %v8748
      %v8775 = vmax.f32 %v8716, %v8734
      %v8776 = vmax.f32 %v8717, %v8749
      %v8777 = vmax.f32 %v8718, %v8736
      %v8778 = vmax.f32 %v8719, %v8750
      %v8779 = vmax.f32 %v8720, %v8738
      %v8780 = vmax.f32 %v8721, %v8751
      %v8781 = vmax.f32 %v8722, %v8740
      %v8782 = vmax.f32 %v8723, %v8752
      %v8783 = vmax.f32 %v8724, %v8742
      %v8784 = vmax.f32 %v8725, %v8753
      %v8785 = vmax.f32 %v8726, %v8744
      %8786 = vrot.lane.b32.xlu0 -1e+30, 118
      %v8787 = vpop.permute.xlu0 %8786
      %8788 = vrot.lane.b32.xlu0 %v8592, 118
      %v8789 = vpop.permute.xlu0 %8788
      %8790 = vrot.lane.b32.xlu0 %v8593, 118
      %v8791 = vpop.permute.xlu0 %8790
      %8792 = vrot.lane.b32.xlu0 %v8594, 118
      %v8793 = vpop.permute.xlu0 %8792
      %8794 = vrot.lane.b32.xlu0 %v8595, 118
      %v8795 = vpop.permute.xlu0 %8794
      %8796 = vrot.lane.b32.xlu0 %v8596, 118
      %v8797 = vpop.permute.xlu0 %8796
      %8798 = vrot.lane.b32.xlu0 %v8597, 118
      %v8799 = vpop.permute.xlu0 %8798
      %8800 = vrot.lane.b32.xlu0 %v8598, 118
      %v8801 = vpop.permute.xlu0 %8800
      %8802 = vrot.lane.b32.xlu0 %v8599, 118
      %v8803 = vpop.permute.xlu0 %8802
      %vm8804 = vcmask 965632
      %v8805 = vsel %vm8804, %v8787, %v8789
      %v8806 = vsel %vm8804, %v8787, %v8791
      %v8807 = vsel %vm8804, %v8787, %v8793
      %v8808 = vsel %vm8804, %v8787, %v8795
      %v8809 = vsel %vm8804, %v8787, %v8797
      %v8810 = vsel %vm8804, %v8787, %v8799
      %v8811 = vsel %vm8804, %v8787, %v8801
      %v8812 = vsel %vm8804, %v8787, %v8803
      %v8829 = vmax.f32 %v8770, %v8805
      %v8830 = vmax.f32 %v8771, %v8789
      %v8831 = vmax.f32 %v8772, %v8806
      %v8832 = vmax.f32 %v8773, %v8791
      %v8833 = vmax.f32 %v8774, %v8807
      %v8834 = vmax.f32 %v8775, %v8793
      %v8835 = vmax.f32 %v8776, %v8808
      %v8836 = vmax.f32 %v8777, %v8795
      %v8837 = vmax.f32 %v8778, %v8809
      %v8838 = vmax.f32 %v8779, %v8797
      %v8839 = vmax.f32 %v8780, %v8810
      %v8840 = vmax.f32 %v8781, %v8799
      %v8841 = vmax.f32 %v8782, %v8811
      %v8842 = vmax.f32 %v8783, %v8801
      %v8843 = vmax.f32 %v8784, %v8812
      %v8844 = vmax.f32 %v8785, %v8803
      %8845 = vrot.lane.b32.xlu0 -1e+30, 117
      %v8846 = vpop.permute.xlu0 %8845
      %8847 = vrot.lane.b32.xlu0 %v8592, 117
      %v8848 = vpop.permute.xlu0 %8847
      %8849 = vrot.lane.b32.xlu0 %v8593, 117
      %v8850 = vpop.permute.xlu0 %8849
      %8851 = vrot.lane.b32.xlu0 %v8594, 117
      %v8852 = vpop.permute.xlu0 %8851
      %8853 = vrot.lane.b32.xlu0 %v8595, 117
      %v8854 = vpop.permute.xlu0 %8853
      %8855 = vrot.lane.b32.xlu0 %v8596, 117
      %v8856 = vpop.permute.xlu0 %8855
      %8857 = vrot.lane.b32.xlu0 %v8597, 117
      %v8858 = vpop.permute.xlu0 %8857
      %8859 = vrot.lane.b32.xlu0 %v8598, 117
      %v8860 = vpop.permute.xlu0 %8859
      %8861 = vrot.lane.b32.xlu0 %v8599, 117
      %v8862 = vpop.permute.xlu0 %8861
      %vm8863 = vcmask 957440
      %v8864 = vsel %vm8863, %v8846, %v8848
      %v8865 = vsel %vm8863, %v8846, %v8850
      %v8866 = vsel %vm8863, %v8846, %v8852
      %v8867 = vsel %vm8863, %v8846, %v8854
      %v8868 = vsel %vm8863, %v8846, %v8856
      %v8869 = vsel %vm8863, %v8846, %v8858
      %v8870 = vsel %vm8863, %v8846, %v8860
      %v8871 = vsel %vm8863, %v8846, %v8862
      %v8888 = vmax.f32 %v8829, %v8864
      %v8889 = vmax.f32 %v8830, %v8848
      %v8890 = vmax.f32 %v8831, %v8865
      %v8891 = vmax.f32 %v8832, %v8850
      %v8892 = vmax.f32 %v8833, %v8866
      %v8893 = vmax.f32 %v8834, %v8852
      %v8894 = vmax.f32 %v8835, %v8867
      %v8895 = vmax.f32 %v8836, %v8854
      %v8896 = vmax.f32 %v8837, %v8868
      %v8897 = vmax.f32 %v8838, %v8856
      %v8898 = vmax.f32 %v8839, %v8869
      %v8899 = vmax.f32 %v8840, %v8858
      %v8900 = vmax.f32 %v8841, %v8870
      %v8901 = vmax.f32 %v8842, %v8860
      %v8902 = vmax.f32 %v8843, %v8871
      %v8903 = vmax.f32 %v8844, %v8862
      %8904 = vrot.lane.b32.xlu0 -1e+30, 116
      %v8905 = vpop.permute.xlu0 %8904
      %8906 = vrot.lane.b32.xlu0 %v8592, 116
      %v8907 = vpop.permute.xlu0 %8906
      %8908 = vrot.lane.b32.xlu0 %v8593, 116
      %v8909 = vpop.permute.xlu0 %8908
      %8910 = vrot.lane.b32.xlu0 %v8594, 116
      %v8911 = vpop.permute.xlu0 %8910
      %8912 = vrot.lane.b32.xlu0 %v8595, 116
      %v8913 = vpop.permute.xlu0 %8912
      %8914 = vrot.lane.b32.xlu0 %v8596, 116
      %v8915 = vpop.permute.xlu0 %8914
      %8916 = vrot.lane.b32.xlu0 %v8597, 116
      %v8917 = vpop.permute.xlu0 %8916
      %8918 = vrot.lane.b32.xlu0 %v8598, 116
      %v8919 = vpop.permute.xlu0 %8918
      %8920 = vrot.lane.b32.xlu0 %v8599, 116
      %v8921 = vpop.permute.xlu0 %8920
      %vm8922 = vcmask 949248
      %v8923 = vsel %vm8922, %v8905, %v8907
      %v8924 = vsel %vm8922, %v8905, %v8909
      %v8925 = vsel %vm8922, %v8905, %v8911
      %v8926 = vsel %vm8922, %v8905, %v8913
      %v8927 = vsel %vm8922, %v8905, %v8915
      %v8928 = vsel %vm8922, %v8905, %v8917
      %v8929 = vsel %vm8922, %v8905, %v8919
      %v8930 = vsel %vm8922, %v8905, %v8921
      %v8947 = vmax.f32 %v8888, %v8923
      %v8948 = vmax.f32 %v8889, %v8907
      %v8949 = vmax.f32 %v8890, %v8924
      %v8950 = vmax.f32 %v8891, %v8909
      %v8951 = vmax.f32 %v8892, %v8925
      %v8952 = vmax.f32 %v8893, %v8911
      %v8953 = vmax.f32 %v8894, %v8926
      %v8954 = vmax.f32 %v8895, %v8913
      %v8955 = vmax.f32 %v8896, %v8927
      %v8956 = vmax.f32 %v8897, %v8915
      %v8957 = vmax.f32 %v8898, %v8928
      %v8958 = vmax.f32 %v8899, %v8917
      %v8959 = vmax.f32 %v8900, %v8929
      %v8960 = vmax.f32 %v8901, %v8919
      %v8961 = vmax.f32 %v8902, %v8930
      %v8962 = vmax.f32 %v8903, %v8921
      %8963 = vrot.lane.b32.xlu0 -1e+30, 115
      %v8964 = vpop.permute.xlu0 %8963
      %8965 = vrot.lane.b32.xlu0 %v8592, 115
      %v8966 = vpop.permute.xlu0 %8965
      %8967 = vrot.lane.b32.xlu0 %v8593, 115
      %v8968 = vpop.permute.xlu0 %8967
      %8969 = vrot.lane.b32.xlu0 %v8594, 115
      %v8970 = vpop.permute.xlu0 %8969
      %8971 = vrot.lane.b32.xlu0 %v8595, 115
      %v8972 = vpop.permute.xlu0 %8971
      %8973 = vrot.lane.b32.xlu0 %v8596, 115
      %v8974 = vpop.permute.xlu0 %8973
      %8975 = vrot.lane.b32.xlu0 %v8597, 115
      %v8976 = vpop.permute.xlu0 %8975
      %8977 = vrot.lane.b32.xlu0 %v8598, 115
      %v8978 = vpop.permute.xlu0 %8977
      %8979 = vrot.lane.b32.xlu0 %v8599, 115
      %v8980 = vpop.permute.xlu0 %8979
      %vm8981 = vcmask 941056
      %v8982 = vsel %vm8981, %v8964, %v8966
      %v8983 = vsel %vm8981, %v8964, %v8968
      %v8984 = vsel %vm8981, %v8964, %v8970
      %v8985 = vsel %vm8981, %v8964, %v8972
      %v8986 = vsel %vm8981, %v8964, %v8974
      %v8987 = vsel %vm8981, %v8964, %v8976
      %v8988 = vsel %vm8981, %v8964, %v8978
      %v8989 = vsel %vm8981, %v8964, %v8980
      %v9006 = vmax.f32 %v8947, %v8982
      %v9007 = vmax.f32 %v8948, %v8966
      %v9008 = vmax.f32 %v8949, %v8983
      %v9009 = vmax.f32 %v8950, %v8968
      %v9010 = vmax.f32 %v8951, %v8984
      %v9011 = vmax.f32 %v8952, %v8970
      %v9012 = vmax.f32 %v8953, %v8985
      %v9013 = vmax.f32 %v8954, %v8972
      %v9014 = vmax.f32 %v8955, %v8986
      %v9015 = vmax.f32 %v8956, %v8974
      %v9016 = vmax.f32 %v8957, %v8987
      %v9017 = vmax.f32 %v8958, %v8976
      %v9018 = vmax.f32 %v8959, %v8988
      %v9019 = vmax.f32 %v8960, %v8978
      %v9020 = vmax.f32 %v8961, %v8989
      %v9021 = vmax.f32 %v8962, %v8980
      %9022 = vrot.lane.b32.xlu0 -1e+30, 108
      %v9023 = vpop.permute.xlu0 %9022
      %9024 = vrot.lane.b32.xlu0 %v8592, 108
      %v9025 = vpop.permute.xlu0 %9024
      %9026 = vrot.lane.b32.xlu0 %v8593, 108
      %v9027 = vpop.permute.xlu0 %9026
      %9028 = vrot.lane.b32.xlu0 %v8594, 108
      %v9029 = vpop.permute.xlu0 %9028
      %9030 = vrot.lane.b32.xlu0 %v8595, 108
      %v9031 = vpop.permute.xlu0 %9030
      %9032 = vrot.lane.b32.xlu0 %v8596, 108
      %v9033 = vpop.permute.xlu0 %9032
      %9034 = vrot.lane.b32.xlu0 %v8597, 108
      %v9035 = vpop.permute.xlu0 %9034
      %9036 = vrot.lane.b32.xlu0 %v8598, 108
      %v9037 = vpop.permute.xlu0 %9036
      %9038 = vrot.lane.b32.xlu0 %v8599, 108
      %v9039 = vpop.permute.xlu0 %9038
      %vm9040 = vcmask 883712
      %v9041 = vsel %vm9040, %v9023, %v9025
      %v9042 = vsel %vm9040, %v9023, %v9027
      %v9043 = vsel %vm9040, %v9023, %v9029
      %v9044 = vsel %vm9040, %v9023, %v9031
      %v9045 = vsel %vm9040, %v9023, %v9033
      %v9046 = vsel %vm9040, %v9023, %v9035
      %v9047 = vsel %vm9040, %v9023, %v9037
      %v9048 = vsel %vm9040, %v9023, %v9039
      %v9065 = vmax.f32 %v9006, %v9041
      %v9066 = vmax.f32 %v9007, %v9025
      %v9067 = vmax.f32 %v9008, %v9042
      %v9068 = vmax.f32 %v9009, %v9027
      %v9069 = vmax.f32 %v9010, %v9043
      %v9070 = vmax.f32 %v9011, %v9029
      %v9071 = vmax.f32 %v9012, %v9044
      %v9072 = vmax.f32 %v9013, %v9031
      %v9073 = vmax.f32 %v9014, %v9045
      %v9074 = vmax.f32 %v9015, %v9033
      %v9075 = vmax.f32 %v9016, %v9046
      %v9076 = vmax.f32 %v9017, %v9035
      %v9077 = vmax.f32 %v9018, %v9047
      %v9078 = vmax.f32 %v9019, %v9037
      %v9079 = vmax.f32 %v9020, %v9048
      %v9080 = vmax.f32 %v9021, %v9039
      %9081 = vrot.lane.b32.xlu0 -1e+30, 107
      %v9082 = vpop.permute.xlu0 %9081
      %9083 = vrot.lane.b32.xlu0 %v8592, 107
      %v9084 = vpop.permute.xlu0 %9083
      %9085 = vrot.lane.b32.xlu0 %v8593, 107
      %v9086 = vpop.permute.xlu0 %9085
      %9087 = vrot.lane.b32.xlu0 %v8594, 107
      %v9088 = vpop.permute.xlu0 %9087
      %9089 = vrot.lane.b32.xlu0 %v8595, 107
      %v9090 = vpop.permute.xlu0 %9089
      %9091 = vrot.lane.b32.xlu0 %v8596, 107
      %v9092 = vpop.permute.xlu0 %9091
      %9093 = vrot.lane.b32.xlu0 %v8597, 107
      %v9094 = vpop.permute.xlu0 %9093
      %9095 = vrot.lane.b32.xlu0 %v8598, 107
      %v9096 = vpop.permute.xlu0 %9095
      %9097 = vrot.lane.b32.xlu0 %v8599, 107
      %v9098 = vpop.permute.xlu0 %9097
      %vm9099 = vcmask 875520
      %v9100 = vsel %vm9099, %v9082, %v9084
      %v9101 = vsel %vm9099, %v9082, %v9086
      %v9102 = vsel %vm9099, %v9082, %v9088
      %v9103 = vsel %vm9099, %v9082, %v9090
      %v9104 = vsel %vm9099, %v9082, %v9092
      %v9105 = vsel %vm9099, %v9082, %v9094
      %v9106 = vsel %vm9099, %v9082, %v9096
      %v9107 = vsel %vm9099, %v9082, %v9098
      %v9124 = vmax.f32 %v9065, %v9100
      %v9125 = vmax.f32 %v9066, %v9084
      %v9126 = vmax.f32 %v9067, %v9101
      %v9127 = vmax.f32 %v9068, %v9086
      %v9128 = vmax.f32 %v9069, %v9102
      %v9129 = vmax.f32 %v9070, %v9088
      %v9130 = vmax.f32 %v9071, %v9103
      %v9131 = vmax.f32 %v9072, %v9090
      %v9132 = vmax.f32 %v9073, %v9104
      %v9133 = vmax.f32 %v9074, %v9092
      %v9134 = vmax.f32 %v9075, %v9105
      %v9135 = vmax.f32 %v9076, %v9094
      %v9136 = vmax.f32 %v9077, %v9106
      %v9137 = vmax.f32 %v9078, %v9096
      %v9138 = vmax.f32 %v9079, %v9107
      %v9139 = vmax.f32 %v9080, %v9098
      %9140 = vrot.lane.b32.xlu0 %v8592, 106
      %v9141 = vpop.permute.xlu0 %9140
      %9142 = vrot.lane.b32.xlu0 %v8593, 106
      %v9143 = vpop.permute.xlu0 %9142
      %9144 = vrot.lane.b32.xlu0 %v8594, 106
      %v9145 = vpop.permute.xlu0 %9144
      %9146 = vrot.lane.b32.xlu0 %v8595, 106
      %v9147 = vpop.permute.xlu0 %9146
      %9148 = vrot.lane.b32.xlu0 %v8596, 106
      %v9149 = vpop.permute.xlu0 %9148
      %9150 = vrot.lane.b32.xlu0 %v8597, 106
      %v9151 = vpop.permute.xlu0 %9150
      %9152 = vrot.lane.b32.xlu0 %v8598, 106
      %v9153 = vpop.permute.xlu0 %9152
      %9154 = vrot.lane.b32.xlu0 %v8599, 106
      %v9155 = vpop.permute.xlu0 %9154
      %v9164 = vmax.f32 %v9124, %v9141
      %v9165 = vmax.f32 %v9125, %v9141
      %v9166 = vmax.f32 %v9126, %v9143
      %v9167 = vmax.f32 %v9127, %v9143
      %v9168 = vmax.f32 %v9128, %v9145
      %v9169 = vmax.f32 %v9129, %v9145
      %v9170 = vmax.f32 %v9130, %v9147
      %v9171 = vmax.f32 %v9131, %v9147
      %v9172 = vmax.f32 %v9132, %v9149
      %v9173 = vmax.f32 %v9133, %v9149
      %v9174 = vmax.f32 %v9134, %v9151
      %v9175 = vmax.f32 %v9135, %v9151
      %v9176 = vmax.f32 %v9136, %v9153
      %v9177 = vmax.f32 %v9137, %v9153
      %v9178 = vmax.f32 %v9138, %v9155
      %v9179 = vmax.f32 %v9139, %v9155
      %9180 = vrot.lane.b32.xlu0 %v8592, 105
      %v9181 = vpop.permute.xlu0 %9180
      %9182 = vrot.lane.b32.xlu0 -1e+30, 105
      %v9183 = vpop.permute.xlu0 %9182
      %9184 = vrot.lane.b32.xlu0 %v8593, 105
      %v9185 = vpop.permute.xlu0 %9184
      %9186 = vrot.lane.b32.xlu0 %v8594, 105
      %v9187 = vpop.permute.xlu0 %9186
      %9188 = vrot.lane.b32.xlu0 %v8595, 105
      %v9189 = vpop.permute.xlu0 %9188
      %9190 = vrot.lane.b32.xlu0 %v8596, 105
      %v9191 = vpop.permute.xlu0 %9190
      %9192 = vrot.lane.b32.xlu0 %v8597, 105
      %v9193 = vpop.permute.xlu0 %9192
      %9194 = vrot.lane.b32.xlu0 %v8598, 105
      %v9195 = vpop.permute.xlu0 %9194
      %9196 = vrot.lane.b32.xlu0 %v8599, 105
      %v9197 = vpop.permute.xlu0 %9196
      %vm9198 = vcmask 859136
      %v9199 = vsel %vm9198, %v9181, %v9183
      %v9200 = vsel %vm9198, %v9185, %v9183
      %v9201 = vsel %vm9198, %v9187, %v9183
      %v9202 = vsel %vm9198, %v9189, %v9183
      %v9203 = vsel %vm9198, %v9191, %v9183
      %v9204 = vsel %vm9198, %v9193, %v9183
      %v9205 = vsel %vm9198, %v9195, %v9183
      %v9206 = vsel %vm9198, %v9197, %v9183
      %v9223 = vmax.f32 %v9164, %v9181
      %v9224 = vmax.f32 %v9165, %v9199
      %v9225 = vmax.f32 %v9166, %v9185
      %v9226 = vmax.f32 %v9167, %v9200
      %v9227 = vmax.f32 %v9168, %v9187
      %v9228 = vmax.f32 %v9169, %v9201
      %v9229 = vmax.f32 %v9170, %v9189
      %v9230 = vmax.f32 %v9171, %v9202
      %v9231 = vmax.f32 %v9172, %v9191
      %v9232 = vmax.f32 %v9173, %v9203
      %v9233 = vmax.f32 %v9174, %v9193
      %v9234 = vmax.f32 %v9175, %v9204
      %v9235 = vmax.f32 %v9176, %v9195
      %v9236 = vmax.f32 %v9177, %v9205
      %v9237 = vmax.f32 %v9178, %v9197
      %v9238 = vmax.f32 %v9179, %v9206
      %9239 = vrot.lane.b32.xlu0 %v8592, 98
      %v9240 = vpop.permute.xlu0 %9239
      %9241 = vrot.lane.b32.xlu0 -1e+30, 98
      %v9242 = vpop.permute.xlu0 %9241
      %9243 = vrot.lane.b32.xlu0 %v8593, 98
      %v9244 = vpop.permute.xlu0 %9243
      %9245 = vrot.lane.b32.xlu0 %v8594, 98
      %v9246 = vpop.permute.xlu0 %9245
      %9247 = vrot.lane.b32.xlu0 %v8595, 98
      %v9248 = vpop.permute.xlu0 %9247
      %9249 = vrot.lane.b32.xlu0 %v8596, 98
      %v9250 = vpop.permute.xlu0 %9249
      %9251 = vrot.lane.b32.xlu0 %v8597, 98
      %v9252 = vpop.permute.xlu0 %9251
      %9253 = vrot.lane.b32.xlu0 %v8598, 98
      %v9254 = vpop.permute.xlu0 %9253
      %9255 = vrot.lane.b32.xlu0 %v8599, 98
      %v9256 = vpop.permute.xlu0 %9255
      %vm9257 = vcmask 801792
      %v9258 = vsel %vm9257, %v9240, %v9242
      %v9259 = vsel %vm9257, %v9244, %v9242
      %v9260 = vsel %vm9257, %v9246, %v9242
      %v9261 = vsel %vm9257, %v9248, %v9242
      %v9262 = vsel %vm9257, %v9250, %v9242
      %v9263 = vsel %vm9257, %v9252, %v9242
      %v9264 = vsel %vm9257, %v9254, %v9242
      %v9265 = vsel %vm9257, %v9256, %v9242
      %v9282 = vmax.f32 %v9223, %v9240
      %v9283 = vmax.f32 %v9224, %v9258
      %v9284 = vmax.f32 %v9225, %v9244
      %v9285 = vmax.f32 %v9226, %v9259
      %v9286 = vmax.f32 %v9227, %v9246
      %v9287 = vmax.f32 %v9228, %v9260
      %v9288 = vmax.f32 %v9229, %v9248
      %v9289 = vmax.f32 %v9230, %v9261
      %v9290 = vmax.f32 %v9231, %v9250
      %v9291 = vmax.f32 %v9232, %v9262
      %v9292 = vmax.f32 %v9233, %v9252
      %v9293 = vmax.f32 %v9234, %v9263
      %v9294 = vmax.f32 %v9235, %v9254
      %v9295 = vmax.f32 %v9236, %v9264
      %v9296 = vmax.f32 %v9237, %v9256
      %v9297 = vmax.f32 %v9238, %v9265
      %9298 = vrot.lane.b32.xlu0 %v8592, 97
      %v9299 = vpop.permute.xlu0 %9298
      %9300 = vrot.lane.b32.xlu0 -1e+30, 97
      %v9301 = vpop.permute.xlu0 %9300
      %9302 = vrot.lane.b32.xlu0 %v8593, 97
      %v9303 = vpop.permute.xlu0 %9302
      %9304 = vrot.lane.b32.xlu0 %v8594, 97
      %v9305 = vpop.permute.xlu0 %9304
      %9306 = vrot.lane.b32.xlu0 %v8595, 97
      %v9307 = vpop.permute.xlu0 %9306
      %9308 = vrot.lane.b32.xlu0 %v8596, 97
      %v9309 = vpop.permute.xlu0 %9308
      %9310 = vrot.lane.b32.xlu0 %v8597, 97
      %v9311 = vpop.permute.xlu0 %9310
      %9312 = vrot.lane.b32.xlu0 %v8598, 97
      %v9313 = vpop.permute.xlu0 %9312
      %9314 = vrot.lane.b32.xlu0 %v8599, 97
      %v9315 = vpop.permute.xlu0 %9314
      %vm9316 = vcmask 793600
      %v9317 = vsel %vm9316, %v9299, %v9301
      %v9318 = vsel %vm9316, %v9303, %v9301
      %v9319 = vsel %vm9316, %v9305, %v9301
      %v9320 = vsel %vm9316, %v9307, %v9301
      %v9321 = vsel %vm9316, %v9309, %v9301
      %v9322 = vsel %vm9316, %v9311, %v9301
      %v9323 = vsel %vm9316, %v9313, %v9301
      %v9324 = vsel %vm9316, %v9315, %v9301
      %v9341 = vmax.f32 %v9282, %v9299
      %v9342 = vmax.f32 %v9283, %v9317
      %v9343 = vmax.f32 %v9284, %v9303
      %v9344 = vmax.f32 %v9285, %v9318
      %v9345 = vmax.f32 %v9286, %v9305
      %v9346 = vmax.f32 %v9287, %v9319
      %v9347 = vmax.f32 %v9288, %v9307
      %v9348 = vmax.f32 %v9289, %v9320
      %v9349 = vmax.f32 %v9290, %v9309
      %v9350 = vmax.f32 %v9291, %v9321
      %v9351 = vmax.f32 %v9292, %v9311
      %v9352 = vmax.f32 %v9293, %v9322
      %v9353 = vmax.f32 %v9294, %v9313
      %v9354 = vmax.f32 %v9295, %v9323
      %v9355 = vmax.f32 %v9296, %v9315
      %v9356 = vmax.f32 %v9297, %v9324
      %9357 = vrot.lane.b32.xlu0 %v8592, 96
      %v9358 = vpop.permute.xlu0 %9357
      %9359 = vrot.lane.b32.xlu0 -1e+30, 96
      %v9360 = vpop.permute.xlu0 %9359
      %9361 = vrot.lane.b32.xlu0 %v8593, 96
      %v9362 = vpop.permute.xlu0 %9361
      %9363 = vrot.lane.b32.xlu0 %v8594, 96
      %v9364 = vpop.permute.xlu0 %9363
      %9365 = vrot.lane.b32.xlu0 %v8595, 96
      %v9366 = vpop.permute.xlu0 %9365
      %9367 = vrot.lane.b32.xlu0 %v8596, 96
      %v9368 = vpop.permute.xlu0 %9367
      %9369 = vrot.lane.b32.xlu0 %v8597, 96
      %v9370 = vpop.permute.xlu0 %9369
      %9371 = vrot.lane.b32.xlu0 %v8598, 96
      %v9372 = vpop.permute.xlu0 %9371
      %9373 = vrot.lane.b32.xlu0 %v8599, 96
      %v9374 = vpop.permute.xlu0 %9373
      %vm9375 = vcmask 785408
      %v9376 = vsel %vm9375, %v9358, %v9360
      %v9377 = vsel %vm9375, %v9362, %v9360
      %v9378 = vsel %vm9375, %v9364, %v9360
      %v9379 = vsel %vm9375, %v9366, %v9360
      %v9380 = vsel %vm9375, %v9368, %v9360
      %v9381 = vsel %vm9375, %v9370, %v9360
      %v9382 = vsel %vm9375, %v9372, %v9360
      %v9383 = vsel %vm9375, %v9374, %v9360
      %v9400 = vmax.f32 %v9341, %v9358
      %v9401 = vmax.f32 %v9342, %v9376
      %v9402 = vmax.f32 %v9343, %v9362
      %v9403 = vmax.f32 %v9344, %v9377
      %v9404 = vmax.f32 %v9345, %v9364
      %v9405 = vmax.f32 %v9346, %v9378
      %v9406 = vmax.f32 %v9347, %v9366
      %v9407 = vmax.f32 %v9348, %v9379
      %v9408 = vmax.f32 %v9349, %v9368
      %v9409 = vmax.f32 %v9350, %v9380
      %v9410 = vmax.f32 %v9351, %v9370
      %v9411 = vmax.f32 %v9352, %v9381
      %v9412 = vmax.f32 %v9353, %v9372
      %v9413 = vmax.f32 %v9354, %v9382
      %v9414 = vmax.f32 %v9355, %v9374
      %v9415 = vmax.f32 %v9356, %v9383
      %9416 = vrot.lane.b32.xlu0 %v8592, 95
      %v9417 = vpop.permute.xlu0 %9416
      %9418 = vrot.lane.b32.xlu0 -1e+30, 95
      %v9419 = vpop.permute.xlu0 %9418
      %9420 = vrot.lane.b32.xlu0 %v8593, 95
      %v9421 = vpop.permute.xlu0 %9420
      %9422 = vrot.lane.b32.xlu0 %v8594, 95
      %v9423 = vpop.permute.xlu0 %9422
      %9424 = vrot.lane.b32.xlu0 %v8595, 95
      %v9425 = vpop.permute.xlu0 %9424
      %9426 = vrot.lane.b32.xlu0 %v8596, 95
      %v9427 = vpop.permute.xlu0 %9426
      %9428 = vrot.lane.b32.xlu0 %v8597, 95
      %v9429 = vpop.permute.xlu0 %9428
      %9430 = vrot.lane.b32.xlu0 %v8598, 95
      %v9431 = vpop.permute.xlu0 %9430
      %9432 = vrot.lane.b32.xlu0 %v8599, 95
      %v9433 = vpop.permute.xlu0 %9432
      %vm9434 = vcmask 777216
      %v9435 = vsel %vm9434, %v9417, %v9419
      %v9436 = vsel %vm9434, %v9421, %v9419
      %v9437 = vsel %vm9434, %v9423, %v9419
      %v9438 = vsel %vm9434, %v9425, %v9419
      %v9439 = vsel %vm9434, %v9427, %v9419
      %v9440 = vsel %vm9434, %v9429, %v9419
      %v9441 = vsel %vm9434, %v9431, %v9419
      %v9442 = vsel %vm9434, %v9433, %v9419
      %v9459 = vmax.f32 %v9400, %v9417
      %v9460 = vmax.f32 %v9401, %v9435
      %v9461 = vmax.f32 %v9402, %v9421
      %v9462 = vmax.f32 %v9403, %v9436
      %v9463 = vmax.f32 %v9404, %v9423
      %v9464 = vmax.f32 %v9405, %v9437
      %v9465 = vmax.f32 %v9406, %v9425
      %v9466 = vmax.f32 %v9407, %v9438
      %v9467 = vmax.f32 %v9408, %v9427
      %v9468 = vmax.f32 %v9409, %v9439
      %v9469 = vmax.f32 %v9410, %v9429
      %v9470 = vmax.f32 %v9411, %v9440
      %v9471 = vmax.f32 %v9412, %v9431
      %v9472 = vmax.f32 %v9413, %v9441
      %v9473 = vmax.f32 %v9414, %v9433
      %v9474 = vmax.f32 %v9415, %v9442
      %vm9475 = vcmp.lt.f32.partialorder %v9459, -1e+29
      %vm9476 = vcmp.lt.f32.partialorder %v9460, -1e+29
      %vm9477 = vcmp.lt.f32.partialorder %v9461, -1e+29
      %vm9478 = vcmp.lt.f32.partialorder %v9462, -1e+29
      %vm9479 = vcmp.lt.f32.partialorder %v9463, -1e+29
      %vm9480 = vcmp.lt.f32.partialorder %v9464, -1e+29
      %vm9481 = vcmp.lt.f32.partialorder %v9465, -1e+29
      %vm9482 = vcmp.lt.f32.partialorder %v9466, -1e+29
      %vm9483 = vcmp.lt.f32.partialorder %v9467, -1e+29
      %vm9484 = vcmp.lt.f32.partialorder %v9468, -1e+29
      %vm9485 = vcmp.lt.f32.partialorder %v9469, -1e+29
      %vm9486 = vcmp.lt.f32.partialorder %v9470, -1e+29
      %vm9487 = vcmp.lt.f32.partialorder %v9471, -1e+29
      %vm9488 = vcmp.lt.f32.partialorder %v9472, -1e+29
      %vm9489 = vcmp.lt.f32.partialorder %v9473, -1e+29
      %vm9490 = vcmp.lt.f32.partialorder %v9474, -1e+29
      %v9491 = vsel %vm9475, 0.0, %v9459
      %v9492 = vsel %vm9476, 0.0, %v9460
      %v9493 = vsel %vm9477, 0.0, %v9461
      %v9494 = vsel %vm9478, 0.0, %v9462
      %v9495 = vsel %vm9479, 0.0, %v9463
      %v9496 = vsel %vm9480, 0.0, %v9464
      %v9497 = vsel %vm9481, 0.0, %v9465
      %v9498 = vsel %vm9482, 0.0, %v9466
      %v9499 = vsel %vm9483, 0.0, %v9467
      %v9500 = vsel %vm9484, 0.0, %v9468
      %v9501 = vsel %vm9485, 0.0, %v9469
      %v9502 = vsel %vm9486, 0.0, %v9470
      %v9503 = vsel %vm9487, 0.0, %v9471
      %v9504 = vsel %vm9488, 0.0, %v9472
      %v9505 = vsel %vm9489, 0.0, %v9473
      %v9506 = vsel %vm9490, 0.0, %v9474
      %v9507 = vld [vmem:[%s21] sm:$0xff]
      %v9508 = vld [vmem:[%s21 + $0x8] sm:$0xff]
      %v9509 = vld [vmem:[%s21 + $0x10] sm:$0xff]
      %v9510 = vld [vmem:[%s21 + $0x18] sm:$0xff]
      %v9511 = vld [vmem:[%s21 + $0x20] sm:$0xff]
      %v9512 = vld [vmem:[%s21 + $0x28] sm:$0xff]
      %v9513 = vld [vmem:[%s21 + $0x30] sm:$0xff]
      %v9514 = vld [vmem:[%s21 + $0x38] sm:$0xff]
      %v9515 = vld [vmem:[%s21 + $0x40] sm:$0xff]
      %v9516 = vld [vmem:[%s21 + $0x48] sm:$0xff]
      %v9517 = vld [vmem:[%s21 + $0x50] sm:$0xff]
      %v9518 = vld [vmem:[%s21 + $0x58] sm:$0xff]
      %v9519 = vld [vmem:[%s21 + $0x60] sm:$0xff]
      %v9520 = vld [vmem:[%s21 + $0x68] sm:$0xff]
      %v9521 = vld [vmem:[%s21 + $0x70] sm:$0xff]
      %v9522 = vld [vmem:[%s21 + $0x78] sm:$0xff]
      %9539 = vrot.lane.b32.xlu0 %v9491, 22
      %v9540 = vpop.permute.xlu0 %9539
      %9541 = vrot.lane.b32.xlu0 %v9492, 22
      %v9542 = vpop.permute.xlu0 %9541
      %9543 = vrot.lane.b32.xlu0 %v9493, 22
      %v9544 = vpop.permute.xlu0 %9543
      %9545 = vrot.lane.b32.xlu0 %v9494, 22
      %v9546 = vpop.permute.xlu0 %9545
      %9547 = vrot.lane.b32.xlu0 %v9495, 22
      %v9548 = vpop.permute.xlu0 %9547
      %9549 = vrot.lane.b32.xlu0 %v9496, 22
      %v9550 = vpop.permute.xlu0 %9549
      %9551 = vrot.lane.b32.xlu0 %v9497, 22
      %v9552 = vpop.permute.xlu0 %9551
      %9553 = vrot.lane.b32.xlu0 %v9498, 22
      %v9554 = vpop.permute.xlu0 %9553
      %9555 = vrot.lane.b32.xlu0 %v9499, 22
      %v9556 = vpop.permute.xlu0 %9555
      %9557 = vrot.lane.b32.xlu0 %v9500, 22
      %v9558 = vpop.permute.xlu0 %9557
      %9559 = vrot.lane.b32.xlu0 %v9501, 22
      %v9560 = vpop.permute.xlu0 %9559
      %9561 = vrot.lane.b32.xlu0 %v9502, 22
      %v9562 = vpop.permute.xlu0 %9561
      %9563 = vrot.lane.b32.xlu0 %v9503, 22
      %v9564 = vpop.permute.xlu0 %9563
      %9565 = vrot.lane.b32.xlu0 %v9504, 22
      %v9566 = vpop.permute.xlu0 %9565
      %9567 = vrot.lane.b32.xlu0 %v9505, 22
      %v9568 = vpop.permute.xlu0 %9567
      %9569 = vrot.lane.b32.xlu0 %v9506, 22
      %v9570 = vpop.permute.xlu0 %9569
      %vm9571 = vcmask 179200
      %v9572 = vsel %vm9571, %v9540, %v9542
      %v9573 = vsel %vm9571, %v9544, %v9546
      %v9574 = vsel %vm9571, %v9548, %v9550
      %v9575 = vsel %vm9571, %v9552, %v9554
      %v9576 = vsel %vm9571, %v9556, %v9558
      %v9577 = vsel %vm9571, %v9560, %v9562
      %v9578 = vsel %vm9571, %v9564, %v9566
      %v9579 = vsel %vm9571, %v9568, %v9570
      %9588 = vmatprep.subr.mxu0 0.0
      %9589 = vmatpush1.msra.mxu0 %v9507
      %9590 = vmatprep.subr.mxu0 0.0
      %9591 = vmatpush1.msra.mxu0 %v9508
      %9592 = vmatprep.subr.mxu0 0.0
      %9593 = vmatpush1.msra.mxu0 %v9509
      %9594 = vmatprep.subr.mxu0 0.0
      %9595 = vmatpush1.msra.mxu0 %v9510
      %9596 = vmatprep.subr.mxu0 0.0
      %9597 = vmatpush1.msra.mxu0 %v9511
      %9598 = vmatprep.subr.mxu0 0.0
      %9599 = vmatpush1.msra.mxu0 %v9512
      %9600 = vmatprep.subr.mxu0 0.0
      %9601 = vmatpush1.msra.mxu0 %v9513
      %9602 = vmatprep.subr.mxu0 0.0
      %9603 = vmatpush1.msra.mxu0 %v9514
      %9604 = vmatprep.subr.mxu0 0.0
      %9605 = vmatpush1.msra.mxu0 %v9515
      %9606 = vmatprep.subr.mxu0 0.0
      %9607 = vmatpush1.msra.mxu0 %v9516
      %9608 = vmatprep.subr.mxu0 0.0
      %9609 = vmatpush1.msra.mxu0 %v9517
      %9610 = vmatprep.subr.mxu0 0.0
      %9611 = vmatpush1.msra.mxu0 %v9518
      %9612 = vmatprep.subr.mxu0 0.0
      %9613 = vmatpush1.msra.mxu0 %v9519
      %9614 = vmatprep.subr.mxu0 0.0
      %9615 = vmatpush1.msra.mxu0 %v9520
      %9616 = vmatprep.subr.mxu0 0.0
      %9617 = vmatpush1.msra.mxu0 %v9521
      %9618 = vmatprep.subr.mxu0 0.0
      %9619 = vmatpush1.msra.mxu0 %v9522
      %9620 = vmatprep.subr.mxu0 0.0
      %9621 = vmatpush1.msra.mxu0 0.0
      %9622 = vmatprep.subr.mxu0 0.0
      %9623 = vmatpush1.msra.mxu0 0.0
      %9624 = vmatprep.subr.mxu0 0.0
      %9625 = vmatpush1.msra.mxu0 0.0
      %9626 = vmatprep.subr.mxu0 0.0
      %9627 = vmatpush1.msra.mxu0 0.0
      %9628 = vmatprep.subr.mxu0 0.0
      %9629 = vmatpush1.msra.mxu0 0.0
      %9630 = vmatprep.subr.mxu0 0.0
      %9631 = vmatpush1.msra.mxu0 0.0
      %9632 = vmatprep.subr.mxu0 0.0
      %9633 = vmatpush1.msra.mxu0 0.0
      %9634 = vmatprep.subr.mxu0 0.0
      %9635 = vmatpush1.msra.mxu0 0.0
      %9636 = vmatprep.subr.mxu0 0.0
      %9637 = vmatpush1.msra.mxu0 0.0
      %9638 = vmatprep.subr.mxu0 0.0
      %9639 = vmatpush1.msra.mxu0 0.0
      %9640 = vmatprep.subr.mxu0 0.0
      %9641 = vmatpush1.msra.mxu0 0.0
      %9642 = vmatprep.subr.mxu0 0.0
      %9643 = vmatpush1.msra.mxu0 0.0
      %9644 = vmatprep.subr.mxu0 0.0
      %9645 = vmatpush1.msra.mxu0 0.0
      %9646 = vmatprep.subr.mxu0 0.0
      %9647 = vmatpush1.msra.mxu0 0.0
      %9648 = vmatprep.subr.mxu0 0.0
      %9649 = vmatpush1.msra.mxu0 0.0
      %9650 = vmatprep.subr.mxu0 0.0
      %9651 = vmatpush1.msra.mxu0 0.0
      %9652 = vmatprep.mubr.f32.mxu0 0.0
      %9653 = vmatmul.mubr.f32.gmra.mrb[0].mxu0 %v9572
      %v9654 = vpop.f32.mrb[0].mxu0
      %v9655 = vadd.f32 0.0, %v9654
      %v9656 = vpop.f32.mrb[0].mxu0
      %9657 = vmatprep.mubr.f32.mxu0 0.0
      %9658 = vmatmul.mubr.f32.gmra.mrb[0].mxu0 %v9573
      %v9659 = vpop.f32.mrb[0].mxu0
      %v9660 = vadd.f32 0.0, %v9659
      %v9661 = vpop.f32.mrb[0].mxu0
      %9662 = vmatprep.mubr.f32.mxu0 0.0
      %9663 = vmatmul.mubr.f32.gmra.mrb[0].mxu0 %v9574
      %v9664 = vpop.f32.mrb[0].mxu0
      %v9665 = vadd.f32 0.0, %v9664
      %v9666 = vpop.f32.mrb[0].mxu0
      %9667 = vmatprep.mubr.f32.mxu0 0.0
      %9668 = vmatmul.mubr.f32.gmra.mrb[0].mxu0 %v9575
      %v9669 = vpop.f32.mrb[0].mxu0
      %v9670 = vadd.f32 0.0, %v9669
      %v9671 = vpop.f32.mrb[0].mxu0
      %9672 = vmatprep.mubr.f32.mxu0 0.0
      %9673 = vmatmul.mubr.f32.gmra.mrb[0].mxu0 %v9576
      %v9674 = vpop.f32.mrb[0].mxu0
      %v9675 = vadd.f32 0.0, %v9674
      %v9676 = vpop.f32.mrb[0].mxu0
      %9677 = vmatprep.mubr.f32.mxu0 0.0
      %9678 = vmatmul.mubr.f32.gmra.mrb[0].mxu0 %v9577
      %v9679 = vpop.f32.mrb[0].mxu0
      %v9680 = vadd.f32 0.0, %v9679
      %v9681 = vpop.f32.mrb[0].mxu0
      %9682 = vmatprep.mubr.f32.mxu0 0.0
      %9683 = vmatmul.mubr.f32.gmra.mrb[0].mxu0 %v9578
      %v9684 = vpop.f32.mrb[0].mxu0
      %v9685 = vadd.f32 0.0, %v9684
      %v9686 = vpop.f32.mrb[0].mxu0
      %9687 = vmatprep.mubr.f32.mxu0 0.0
      %9688 = vmatmul.mubr.f32.gmra.mrb[0].mxu0 %v9579
      %v9689 = vpop.f32.mrb[0].mxu0
      %v9690 = vadd.f32 0.0, %v9689
      %v9691 = vpop.f32.mrb[0].mxu0
      %9692 = vdwg.mxu0
      %v9693 = vld [vmem:[%s22] sm:$0xff]
      %v9694 = vld [vmem:[%s22 + $0x8] sm:$0xff]
      %v9695 = vld [vmem:[%s22 + $0x10] sm:$0xff]
      %v9696 = vld [vmem:[%s22 + $0x18] sm:$0xff]
      %v9697 = vld [vmem:[%s22 + $0x20] sm:$0xff]
      %v9698 = vld [vmem:[%s22 + $0x28] sm:$0xff]
      %v9699 = vld [vmem:[%s22 + $0x30] sm:$0xff]
      %v9700 = vld [vmem:[%s22 + $0x38] sm:$0xff]
      %v9701 = vld [vmem:[%s22 + $0x40] sm:$0xff]
      %v9702 = vld [vmem:[%s22 + $0x48] sm:$0xff]
      %v9703 = vld [vmem:[%s22 + $0x50] sm:$0xff]
      %v9704 = vld [vmem:[%s22 + $0x58] sm:$0xff]
      %v9705 = vld [vmem:[%s22 + $0x60] sm:$0xff]
      %v9706 = vld [vmem:[%s22 + $0x68] sm:$0xff]
      %v9707 = vld [vmem:[%s22 + $0x70] sm:$0xff]
      %v9708 = vld [vmem:[%s22 + $0x78] sm:$0xff]
      %v9709 = vld [vmem:[%s22 + $0x80] sm:$0xff]
      %v9710 = vld [vmem:[%s22 + $0x88] sm:$0xff]
      %v9711 = vld [vmem:[%s22 + $0x90] sm:$0xff]
      %v9712 = vld [vmem:[%s22 + $0x98] sm:$0xff]
      %v9713 = vld [vmem:[%s22 + $0xa0] sm:$0xff]
      %v9714 = vld [vmem:[%s22 + $0xa8] sm:$0xff]
      %v9715 = vld [vmem:[%s22 + $0xb0] sm:$0xff]
      %v9716 = vld [vmem:[%s22 + $0xb8] sm:$0xff]
      %v9717 = vld [vmem:[%s22 + $0xc0] sm:$0xff]
      %v9718 = vld [vmem:[%s22 + $0xc8] sm:$0xff]
      %v9719 = vld [vmem:[%s22 + $0xd0] sm:$0xff]
      %v9720 = vld [vmem:[%s22 + $0xd8] sm:$0xff]
      %v9721 = vld [vmem:[%s22 + $0xe0] sm:$0xff]
      %v9722 = vld [vmem:[%s22 + $0xe8] sm:$0xff]
      %v9723 = vld [vmem:[%s22 + $0xf0] sm:$0xff]
      %v9724 = vld [vmem:[%s22 + $0xf8] sm:$0xff]
      %v9725 = vld [vmem:[%s22 + $0x100] sm:$0xff]
      %v9726 = vld [vmem:[%s22 + $0x108] sm:$0xff]
      %v9727 = vld [vmem:[%s22 + $0x110] sm:$0xff]
      %v9728 = vld [vmem:[%s22 + $0x118] sm:$0xff]
      %v9729 = vld [vmem:[%s22 + $0x120] sm:$0xff]
      %v9730 = vld [vmem:[%s22 + $0x128] sm:$0xff]
      %v9731 = vld [vmem:[%s22 + $0x130] sm:$0xff]
      %v9732 = vld [vmem:[%s22 + $0x138] sm:$0xff]
      %v9733 = vld [vmem:[%s22 + $0x140] sm:$0xff]
      %v9734 = vld [vmem:[%s22 + $0x148] sm:$0xff]
      %v9735 = vld [vmem:[%s22 + $0x150] sm:$0xff]
      %v9736 = vld [vmem:[%s22 + $0x158] sm:$0xff]
      %v9737 = vld [vmem:[%s22 + $0x160] sm:$0xff]
      %v9738 = vld [vmem:[%s22 + $0x168] sm:$0xff]
      %v9739 = vld [vmem:[%s22 + $0x170] sm:$0xff]
      %v9740 = vld [vmem:[%s22 + $0x178] sm:$0xff]
      %v9741 = vld [vmem:[%s22 + $0x180] sm:$0xff]
      %v9742 = vld [vmem:[%s22 + $0x188] sm:$0xff]
      %v9743 = vld [vmem:[%s22 + $0x190] sm:$0xff]
      %v9744 = vld [vmem:[%s22 + $0x198] sm:$0xff]
      %v9745 = vld [vmem:[%s22 + $0x1a0] sm:$0xff]
      %v9746 = vld [vmem:[%s22 + $0x1a8] sm:$0xff]
      %v9747 = vld [vmem:[%s22 + $0x1b0] sm:$0xff]
      %v9748 = vld [vmem:[%s22 + $0x1b8] sm:$0xff]
      %v9749 = vld [vmem:[%s22 + $0x1c0] sm:$0xff]
      %v9750 = vld [vmem:[%s22 + $0x1c8] sm:$0xff]
      %v9751 = vld [vmem:[%s22 + $0x1d0] sm:$0xff]
      %v9752 = vld [vmem:[%s22 + $0x1d8] sm:$0xff]
      %v9753 = vld [vmem:[%s22 + $0x1e0] sm:$0xff]
      %v9754 = vld [vmem:[%s22 + $0x1e8] sm:$0xff]
      %v9755 = vld [vmem:[%s22 + $0x1f0] sm:$0xff]
      %v9756 = vld [vmem:[%s22 + $0x1f8] sm:$0xff]
      %v9757 = vld [vmem:[%s22 + $0x200] sm:$0xff]
      %v9758 = vld [vmem:[%s22 + $0x208] sm:$0xff]
      %v9759 = vld [vmem:[%s22 + $0x210] sm:$0xff]
      %v9760 = vld [vmem:[%s22 + $0x218] sm:$0xff]
      %v9761 = vld [vmem:[%s22 + $0x220] sm:$0xff]
      %v9762 = vld [vmem:[%s22 + $0x228] sm:$0xff]
      %v9763 = vld [vmem:[%s22 + $0x230] sm:$0xff]
      %v9764 = vld [vmem:[%s22 + $0x238] sm:$0xff]
      %v9765 = vld [vmem:[%s22 + $0x240] sm:$0xff]
      %v9766 = vld [vmem:[%s22 + $0x248] sm:$0xff]
      %v9767 = vld [vmem:[%s22 + $0x250] sm:$0xff]
      %v9768 = vld [vmem:[%s22 + $0x258] sm:$0xff]
      %v9769 = vld [vmem:[%s22 + $0x260] sm:$0xff]
      %v9770 = vld [vmem:[%s22 + $0x268] sm:$0xff]
      %v9771 = vld [vmem:[%s22 + $0x270] sm:$0xff]
      %v9772 = vld [vmem:[%s22 + $0x278] sm:$0xff]
      %v9773 = vmul.f32 %v9693, %v9655
      %v9774 = vmul.f32 %v9694, %v9660
      %v9775 = vmul.f32 %v9695, %v9665
      %v9776 = vmul.f32 %v9696, %v9670
      %v9777 = vmul.f32 %v9697, %v9675
      %v9778 = vmul.f32 %v9698, %v9680
      %v9779 = vmul.f32 %v9699, %v9685
      %v9780 = vmul.f32 %v9700, %v9690
      %v9781 = vmul.f32 %v9701, %v9655
      %v9782 = vmul.f32 %v9702, %v9660
      %v9783 = vmul.f32 %v9703, %v9665
      %v9784 = vmul.f32 %v9704, %v9670
      %v9785 = vmul.f32 %v9705, %v9675
      %v9786 = vmul.f32 %v9706, %v9680
      %v9787 = vmul.f32 %v9707, %v9685
      %v9788 = vmul.f32 %v9708, %v9690
      %v9789 = vmul.f32 %v9709, %v9655
      %v9790 = vmul.f32 %v9710, %v9660
      %v9791 = vmul.f32 %v9711, %v9665
      %v9792 = vmul.f32 %v9712, %v9670
      %v9793 = vmul.f32 %v9713, %v9675
      %v9794 = vmul.f32 %v9714, %v9680
      %v9795 = vmul.f32 %v9715, %v9685
      %v9796 = vmul.f32 %v9716, %v9690
      %v9797 = vmul.f32 %v9717, %v9655
      %v9798 = vmul.f32 %v9718, %v9660
      %v9799 = vmul.f32 %v9719, %v9665
      %v9800 = vmul.f32 %v9720, %v9670
      %v9801 = vmul.f32 %v9721, %v9675
      %v9802 = vmul.f32 %v9722, %v9680
      %v9803 = vmul.f32 %v9723, %v9685
      %v9804 = vmul.f32 %v9724, %v9690
      %v9805 = vmul.f32 %v9725, %v9655
      %v9806 = vmul.f32 %v9726, %v9660
      %v9807 = vmul.f32 %v9727, %v9665
      %v9808 = vmul.f32 %v9728, %v9670
      %v9809 = vmul.f32 %v9729, %v9675
      %v9810 = vmul.f32 %v9730, %v9680
      %v9811 = vmul.f32 %v9731, %v9685
      %v9812 = vmul.f32 %v9732, %v9690
      %v9813 = vmul.f32 %v9733, %v9655
      %v9814 = vmul.f32 %v9734, %v9660
      %v9815 = vmul.f32 %v9735, %v9665
      %v9816 = vmul.f32 %v9736, %v9670
      %v9817 = vmul.f32 %v9737, %v9675
      %v9818 = vmul.f32 %v9738, %v9680
      %v9819 = vmul.f32 %v9739, %v9685
      %v9820 = vmul.f32 %v9740, %v9690
      %v9821 = vmul.f32 %v9741, %v9655
      %v9822 = vmul.f32 %v9742, %v9660
      %v9823 = vmul.f32 %v9743, %v9665
      %v9824 = vmul.f32 %v9744, %v9670
      %v9825 = vmul.f32 %v9745, %v9675
      %v9826 = vmul.f32 %v9746, %v9680
      %v9827 = vmul.f32 %v9747, %v9685
      %v9828 = vmul.f32 %v9748, %v9690
      %v9829 = vmul.f32 %v9749, %v9655
      %v9830 = vmul.f32 %v9750, %v9660
      %v9831 = vmul.f32 %v9751, %v9665
      %v9832 = vmul.f32 %v9752, %v9670
      %v9833 = vmul.f32 %v9753, %v9675
      %v9834 = vmul.f32 %v9754, %v9680
      %v9835 = vmul.f32 %v9755, %v9685
      %v9836 = vmul.f32 %v9756, %v9690
      %v9837 = vmul.f32 %v9757, %v9655
      %v9838 = vmul.f32 %v9758, %v9660
      %v9839 = vmul.f32 %v9759, %v9665
      %v9840 = vmul.f32 %v9760, %v9670
      %v9841 = vmul.f32 %v9761, %v9675
      %v9842 = vmul.f32 %v9762, %v9680
      %v9843 = vmul.f32 %v9763, %v9685
      %v9844 = vmul.f32 %v9764, %v9690
      %v9845 = vmul.f32 %v9765, %v9655
      %v9846 = vmul.f32 %v9766, %v9660
      %v9847 = vmul.f32 %v9767, %v9665
      %v9848 = vmul.f32 %v9768, %v9670
      %v9849 = vmul.f32 %v9769, %v9675
      %v9850 = vmul.f32 %v9770, %v9680
      %v9851 = vmul.f32 %v9771, %v9685
      %v9852 = vmul.f32 %v9772, %v9690
      %vm9853 = vcmask 72704
      %v9854 = vsel %vm9853, %v9773, 0.0
      %9855 = vadd.xlane.f32.xlu0 %v9854
      %v9856 = vpop.xlane.xlu0 %9855
      %v9857 = vsel %vm9853, %v9774, 0.0
      %9858 = vadd.xlane.f32.xlu0 %v9857
      %v9859 = vpop.xlane.xlu0 %9858
      %v9860 = vsel %vm9853, %v9775, 0.0
      %9861 = vadd.xlane.f32.xlu0 %v9860
      %v9862 = vpop.xlane.xlu0 %9861
      %v9863 = vsel %vm9853, %v9776, 0.0
      %9864 = vadd.xlane.f32.xlu0 %v9863
      %v9865 = vpop.xlane.xlu0 %9864
      %v9866 = vsel %vm9853, %v9777, 0.0
      %9867 = vadd.xlane.f32.xlu0 %v9866
      %v9868 = vpop.xlane.xlu0 %9867
      %v9869 = vsel %vm9853, %v9778, 0.0
      %9870 = vadd.xlane.f32.xlu0 %v9869
      %v9871 = vpop.xlane.xlu0 %9870
      %v9872 = vsel %vm9853, %v9779, 0.0
      %9873 = vadd.xlane.f32.xlu0 %v9872
      %v9874 = vpop.xlane.xlu0 %9873
      %v9875 = vsel %vm9853, %v9780, 0.0
      %9876 = vadd.xlane.f32.xlu0 %v9875
      %v9877 = vpop.xlane.xlu0 %9876
      %v9878 = vsel %vm9853, %v9781, 0.0
      %9879 = vadd.xlane.f32.xlu0 %v9878
      %v9880 = vpop.xlane.xlu0 %9879
      %v9881 = vsel %vm9853, %v9782, 0.0
      %9882 = vadd.xlane.f32.xlu0 %v9881
      %v9883 = vpop.xlane.xlu0 %9882
      %v9884 = vsel %vm9853, %v9783, 0.0
      %9885 = vadd.xlane.f32.xlu0 %v9884
      %v9886 = vpop.xlane.xlu0 %9885
      %v9887 = vsel %vm9853, %v9784, 0.0
      %9888 = vadd.xlane.f32.xlu0 %v9887
      %v9889 = vpop.xlane.xlu0 %9888
      %v9890 = vsel %vm9853, %v9785, 0.0
      %9891 = vadd.xlane.f32.xlu0 %v9890
      %v9892 = vpop.xlane.xlu0 %9891
      %v9893 = vsel %vm9853, %v9786, 0.0
      %9894 = vadd.xlane.f32.xlu0 %v9893
      %v9895 = vpop.xlane.xlu0 %9894
      %v9896 = vsel %vm9853, %v9787, 0.0
      %9897 = vadd.xlane.f32.xlu0 %v9896
      %v9898 = vpop.xlane.xlu0 %9897
      %v9899 = vsel %vm9853, %v9788, 0.0
      %9900 = vadd.xlane.f32.xlu0 %v9899
      %v9901 = vpop.xlane.xlu0 %9900
      %v9902 = vsel %vm9853, %v9789, 0.0
      %9903 = vadd.xlane.f32.xlu0 %v9902
      %v9904 = vpop.xlane.xlu0 %9903
      %v9905 = vsel %vm9853, %v9790, 0.0
      %9906 = vadd.xlane.f32.xlu0 %v9905
      %v9907 = vpop.xlane.xlu0 %9906
      %v9908 = vsel %vm9853, %v9791, 0.0
      %9909 = vadd.xlane.f32.xlu0 %v9908
      %v9910 = vpop.xlane.xlu0 %9909
      %v9911 = vsel %vm9853, %v9792, 0.0
      %9912 = vadd.xlane.f32.xlu0 %v9911
      %v9913 = vpop.xlane.xlu0 %9912
      %v9914 = vsel %vm9853, %v9793, 0.0
      %9915 = vadd.xlane.f32.xlu0 %v9914
      %v9916 = vpop.xlane.xlu0 %9915
      %v9917 = vsel %vm9853, %v9794, 0.0
      %9918 = vadd.xlane.f32.xlu0 %v9917
      %v9919 = vpop.xlane.xlu0 %9918
      %v9920 = vsel %vm9853, %v9795, 0.0
      %9921 = vadd.xlane.f32.xlu0 %v9920
      %v9922 = vpop.xlane.xlu0 %9921
      %v9923 = vsel %vm9853, %v9796, 0.0
      %9924 = vadd.xlane.f32.xlu0 %v9923
      %v9925 = vpop.xlane.xlu0 %9924
      %v9926 = vsel %vm9853, %v9797, 0.0
      %9927 = vadd.xlane.f32.xlu0 %v9926
      %v9928 = vpop.xlane.xlu0 %9927
      %v9929 = vsel %vm9853, %v9798, 0.0
      %9930 = vadd.xlane.f32.xlu0 %v9929
      %v9931 = vpop.xlane.xlu0 %9930
      %v9932 = vsel %vm9853, %v9799, 0.0
      %9933 = vadd.xlane.f32.xlu0 %v9932
      %v9934 = vpop.xlane.xlu0 %9933
      %v9935 = vsel %vm9853, %v9800, 0.0
      %9936 = vadd.xlane.f32.xlu0 %v9935
      %v9937 = vpop.xlane.xlu0 %9936
      %v9938 = vsel %vm9853, %v9801, 0.0
      %9939 = vadd.xlane.f32.xlu0 %v9938
      %v9940 = vpop.xlane.xlu0 %9939
      %v9941 = vsel %vm9853, %v9802, 0.0
      %9942 = vadd.xlane.f32.xlu0 %v9941
      %v9943 = vpop.xlane.xlu0 %9942
      %v9944 = vsel %vm9853, %v9803, 0.0
      %9945 = vadd.xlane.f32.xlu0 %v9944
      %v9946 = vpop.xlane.xlu0 %9945
      %v9947 = vsel %vm9853, %v9804, 0.0
      %9948 = vadd.xlane.f32.xlu0 %v9947
      %v9949 = vpop.xlane.xlu0 %9948
      %v9950 = vsel %vm9853, %v9805, 0.0
      %9951 = vadd.xlane.f32.xlu0 %v9950
      %v9952 = vpop.xlane.xlu0 %9951
      %v9953 = vsel %vm9853, %v9806, 0.0
      %9954 = vadd.xlane.f32.xlu0 %v9953
      %v9955 = vpop.xlane.xlu0 %9954
      %v9956 = vsel %vm9853, %v9807, 0.0
      %9957 = vadd.xlane.f32.xlu0 %v9956
      %v9958 = vpop.xlane.xlu0 %9957
      %v9959 = vsel %vm9853, %v9808, 0.0
      %9960 = vadd.xlane.f32.xlu0 %v9959
      %v9961 = vpop.xlane.xlu0 %9960
      %v9962 = vsel %vm9853, %v9809, 0.0
      %9963 = vadd.xlane.f32.xlu0 %v9962
      %v9964 = vpop.xlane.xlu0 %9963
      %v9965 = vsel %vm9853, %v9810, 0.0
      %9966 = vadd.xlane.f32.xlu0 %v9965
      %v9967 = vpop.xlane.xlu0 %9966
      %v9968 = vsel %vm9853, %v9811, 0.0
      %9969 = vadd.xlane.f32.xlu0 %v9968
      %v9970 = vpop.xlane.xlu0 %9969
      %v9971 = vsel %vm9853, %v9812, 0.0
      %9972 = vadd.xlane.f32.xlu0 %v9971
      %v9973 = vpop.xlane.xlu0 %9972
      %v9974 = vsel %vm9853, %v9813, 0.0
      %9975 = vadd.xlane.f32.xlu0 %v9974
      %v9976 = vpop.xlane.xlu0 %9975
      %v9977 = vsel %vm9853, %v9814, 0.0
      %9978 = vadd.xlane.f32.xlu0 %v9977
      %v9979 = vpop.xlane.xlu0 %9978
      %v9980 = vsel %vm9853, %v9815, 0.0
      %9981 = vadd.xlane.f32.xlu0 %v9980
      %v9982 = vpop.xlane.xlu0 %9981
      %v9983 = vsel %vm9853, %v9816, 0.0
      %9984 = vadd.xlane.f32.xlu0 %v9983
      %v9985 = vpop.xlane.xlu0 %9984
      %v9986 = vsel %vm9853, %v9817, 0.0
      %9987 = vadd.xlane.f32.xlu0 %v9986
      %v9988 = vpop.xlane.xlu0 %9987
      %v9989 = vsel %vm9853, %v9818, 0.0
      %9990 = vadd.xlane.f32.xlu0 %v9989
      %v9991 = vpop.xlane.xlu0 %9990
      %v9992 = vsel %vm9853, %v9819, 0.0
      %9993 = vadd.xlane.f32.xlu0 %v9992
      %v9994 = vpop.xlane.xlu0 %9993
      %v9995 = vsel %vm9853, %v9820, 0.0
      %9996 = vadd.xlane.f32.xlu0 %v9995
      %v9997 = vpop.xlane.xlu0 %9996
      %v9998 = vsel %vm9853, %v9821, 0.0
      %9999 = vadd.xlane.f32.xlu0 %v9998
      %v10000 = vpop.xlane.xlu0 %9999
      %v10001 = vsel %vm9853, %v9822, 0.0
      %10002 = vadd.xlane.f32.xlu0 %v10001
      %v10003 = vpop.xlane.xlu0 %10002
      %v10004 = vsel %vm9853, %v9823, 0.0
      %10005 = vadd.xlane.f32.xlu0 %v10004
      %v10006 = vpop.xlane.xlu0 %10005
      %v10007 = vsel %vm9853, %v9824, 0.0
      %10008 = vadd.xlane.f32.xlu0 %v10007
      %v10009 = vpop.xlane.xlu0 %10008
      %v10010 = vsel %vm9853, %v9825, 0.0
      %10011 = vadd.xlane.f32.xlu0 %v10010
      %v10012 = vpop.xlane.xlu0 %10011
      %v10013 = vsel %vm9853, %v9826, 0.0
      %10014 = vadd.xlane.f32.xlu0 %v10013
      %v10015 = vpop.xlane.xlu0 %10014
      %v10016 = vsel %vm9853, %v9827, 0.0
      %10017 = vadd.xlane.f32.xlu0 %v10016
      %v10018 = vpop.xlane.xlu0 %10017
      %v10019 = vsel %vm9853, %v9828, 0.0
      %10020 = vadd.xlane.f32.xlu0 %v10019
      %v10021 = vpop.xlane.xlu0 %10020
      %v10022 = vsel %vm9853, %v9829, 0.0
      %10023 = vadd.xlane.f32.xlu0 %v10022
      %v10024 = vpop.xlane.xlu0 %10023
      %v10025 = vsel %vm9853, %v9830, 0.0
      %10026 = vadd.xlane.f32.xlu0 %v10025
      %v10027 = vpop.xlane.xlu0 %10026
      %v10028 = vsel %vm9853, %v9831, 0.0
      %10029 = vadd.xlane.f32.xlu0 %v10028
      %v10030 = vpop.xlane.xlu0 %10029
      %v10031 = vsel %vm9853, %v9832, 0.0
      %10032 = vadd.xlane.f32.xlu0 %v10031
      %v10033 = vpop.xlane.xlu0 %10032
      %v10034 = vsel %vm9853, %v9833, 0.0
      %10035 = vadd.xlane.f32.xlu0 %v10034
      %v10036 = vpop.xlane.xlu0 %10035
      %v10037 = vsel %vm9853, %v9834, 0.0
      %10038 = vadd.xlane.f32.xlu0 %v10037
      %v10039 = vpop.xlane.xlu0 %10038
      %v10040 = vsel %vm9853, %v9835, 0.0
      %10041 = vadd.xlane.f32.xlu0 %v10040
      %v10042 = vpop.xlane.xlu0 %10041
      %v10043 = vsel %vm9853, %v9836, 0.0
      %10044 = vadd.xlane.f32.xlu0 %v10043
      %v10045 = vpop.xlane.xlu0 %10044
      %v10046 = vsel %vm9853, %v9837, 0.0
      %10047 = vadd.xlane.f32.xlu0 %v10046
      %v10048 = vpop.xlane.xlu0 %10047
      %v10049 = vsel %vm9853, %v9838, 0.0
      %10050 = vadd.xlane.f32.xlu0 %v10049
      %v10051 = vpop.xlane.xlu0 %10050
      %v10052 = vsel %vm9853, %v9839, 0.0
      %10053 = vadd.xlane.f32.xlu0 %v10052
      %v10054 = vpop.xlane.xlu0 %10053
      %v10055 = vsel %vm9853, %v9840, 0.0
      %10056 = vadd.xlane.f32.xlu0 %v10055
      %v10057 = vpop.xlane.xlu0 %10056
      %v10058 = vsel %vm9853, %v9841, 0.0
      %10059 = vadd.xlane.f32.xlu0 %v10058
      %v10060 = vpop.xlane.xlu0 %10059
      %v10061 = vsel %vm9853, %v9842, 0.0
      %10062 = vadd.xlane.f32.xlu0 %v10061
      %v10063 = vpop.xlane.xlu0 %10062
      %v10064 = vsel %vm9853, %v9843, 0.0
      %10065 = vadd.xlane.f32.xlu0 %v10064
      %v10066 = vpop.xlane.xlu0 %10065
      %v10067 = vsel %vm9853, %v9844, 0.0
      %10068 = vadd.xlane.f32.xlu0 %v10067
      %v10069 = vpop.xlane.xlu0 %10068
      %v10070 = vsel %vm9853, %v9845, 0.0
      %10071 = vadd.xlane.f32.xlu0 %v10070
      %v10072 = vpop.xlane.xlu0 %10071
      %v10073 = vsel %vm9853, %v9846, 0.0
      %10074 = vadd.xlane.f32.xlu0 %v10073
      %v10075 = vpop.xlane.xlu0 %10074
      %v10076 = vsel %vm9853, %v9847, 0.0
      %10077 = vadd.xlane.f32.xlu0 %v10076
      %v10078 = vpop.xlane.xlu0 %10077
      %v10079 = vsel %vm9853, %v9848, 0.0
      %10080 = vadd.xlane.f32.xlu0 %v10079
      %v10081 = vpop.xlane.xlu0 %10080
      %v10082 = vsel %vm9853, %v9849, 0.0
      %10083 = vadd.xlane.f32.xlu0 %v10082
      %v10084 = vpop.xlane.xlu0 %10083
      %v10085 = vsel %vm9853, %v9850, 0.0
      %10086 = vadd.xlane.f32.xlu0 %v10085
      %v10087 = vpop.xlane.xlu0 %10086
      %v10088 = vsel %vm9853, %v9851, 0.0
      %10089 = vadd.xlane.f32.xlu0 %v10088
      %v10090 = vpop.xlane.xlu0 %10089
      %v10091 = vsel %vm9853, %v9852, 0.0
      %10092 = vadd.xlane.f32.xlu0 %v10091
      %v10093 = vpop.xlane.xlu0 %10092
      %v10174 = vlaneseq
      %v10175 = vand.u32 %v10174, 127
      %v10176 = vlaneseq
      %v10177 = vshrl.u32 %v10176, 7
      %v10178 = vsub.s32 %v10175, %v10177
      %v10179 = vrot.slane %v9856, %v10178
      %v10180 = vadd.s32 %v10175, 4294967288
      %v10181 = vlaneseq
      %v10182 = vshrl.u32 %v10181, 7
      %v10183 = vsub.s32 %v10180, %v10182
      %v10184 = vrot.slane %v9859, %v10183
      %vm10185 = vcmask 130112
      %v10186 = vsel %vm10185, %v10184, %v10179
      %v10187 = vadd.s32 %v10175, 4294967280
      %v10188 = vlaneseq
      %v10189 = vshrl.u32 %v10188, 7
      %v10190 = vsub.s32 %v10187, %v10189
      %v10191 = vrot.slane %v9862, %v10190
      %vm10192 = vcmask 195712
      %v10193 = vsel %vm10192, %v10191, %v10186
      %v10194 = vadd.s32 %v10175, 4294967272
      %v10195 = vlaneseq
      %v10196 = vshrl.u32 %v10195, 7
      %v10197 = vsub.s32 %v10194, %v10196
      %v10198 = vrot.slane %v9865, %v10197
      %vm10199 = vcmask 261312
      %v10200 = vsel %vm10199, %v10198, %v10193
      %v10201 = vadd.s32 %v10175, 4294967264
      %v10202 = vlaneseq
      %v10203 = vshrl.u32 %v10202, 7
      %v10204 = vsub.s32 %v10201, %v10203
      %v10205 = vrot.slane %v9868, %v10204
      %vm10206 = vcmask 326912
      %v10207 = vsel %vm10206, %v10205, %v10200
      %v10208 = vadd.s32 %v10175, 4294967256
      %v10209 = vlaneseq
      %v10210 = vshrl.u32 %v10209, 7
      %v10211 = vsub.s32 %v10208, %v10210
      %v10212 = vrot.slane %v9871, %v10211
      %vm10213 = vcmask 392512
      %v10214 = vsel %vm10213, %v10212, %v10207
      %v10215 = vadd.s32 %v10175, 4294967248
      %v10216 = vlaneseq
      %v10217 = vshrl.u32 %v10216, 7
      %v10218 = vsub.s32 %v10215, %v10217
      %v10219 = vrot.slane %v9874, %v10218
      %vm10220 = vcmask 458112
      %v10221 = vsel %vm10220, %v10219, %v10214
      %v10222 = vadd.s32 %v10175, 4294967240
      %v10223 = vlaneseq
      %v10224 = vshrl.u32 %v10223, 7
      %v10225 = vsub.s32 %v10222, %v10224
      %v10226 = vrot.slane %v9877, %v10225
      %vm10227 = vcmask 523712
      %v10228 = vsel %vm10227, %v10226, %v10221
      %v10229 = vlaneseq
      %v10230 = vshrl.u32 %v10229, 7
      %v10231 = vsub.s32 %v10175, %v10230
      %v10232 = vrot.slane %v9880, %v10231
      %v10233 = vlaneseq
      %v10234 = vshrl.u32 %v10233, 7
      %v10235 = vsub.s32 %v10180, %v10234
      %v10236 = vrot.slane %v9883, %v10235
      %v10237 = vsel %vm10185, %v10236, %v10232
      %v10238 = vlaneseq
      %v10239 = vshrl.u32 %v10238, 7
      %v10240 = vsub.s32 %v10187, %v10239
      %v10241 = vrot.slane %v9886, %v10240
      %v10242 = vsel %vm10192, %v10241, %v10237
      %v10243 = vlaneseq
      %v10244 = vshrl.u32 %v10243, 7
      %v10245 = vsub.s32 %v10194, %v10244
      %v10246 = vrot.slane %v9889, %v10245
      %v10247 = vsel %vm10199, %v10246, %v10242
      %v10248 = vlaneseq
      %v10249 = vshrl.u32 %v10248, 7
      %v10250 = vsub.s32 %v10201, %v10249
      %v10251 = vrot.slane %v9892, %v10250
      %v10252 = vsel %vm10206, %v10251, %v10247
      %v10253 = vlaneseq
      %v10254 = vshrl.u32 %v10253, 7
      %v10255 = vsub.s32 %v10208, %v10254
      %v10256 = vrot.slane %v9895, %v10255
      %v10257 = vsel %vm10213, %v10256, %v10252
      %v10258 = vlaneseq
      %v10259 = vshrl.u32 %v10258, 7
      %v10260 = vsub.s32 %v10215, %v10259
      %v10261 = vrot.slane %v9898, %v10260
      %v10262 = vsel %vm10220, %v10261, %v10257
      %v10263 = vlaneseq
      %v10264 = vshrl.u32 %v10263, 7
      %v10265 = vsub.s32 %v10222, %v10264
      %v10266 = vrot.slane %v9901, %v10265
      %v10267 = vsel %vm10227, %v10266, %v10262
      %v10268 = vlaneseq
      %v10269 = vshrl.u32 %v10268, 7
      %v10270 = vsub.s32 %v10175, %v10269
      %v10271 = vrot.slane %v9904, %v10270
      %v10272 = vlaneseq
      %v10273 = vshrl.u32 %v10272, 7
      %v10274 = vsub.s32 %v10180, %v10273
      %v10275 = vrot.slane %v9907, %v10274
      %v10276 = vsel %vm10185, %v10275, %v10271
      %v10277 = vlaneseq
      %v10278 = vshrl.u32 %v10277, 7
      %v10279 = vsub.s32 %v10187, %v10278
      %v10280 = vrot.slane %v9910, %v10279
      %v10281 = vsel %vm10192, %v10280, %v10276
      %v10282 = vlaneseq
      %v10283 = vshrl.u32 %v10282, 7
      %v10284 = vsub.s32 %v10194, %v10283
      %v10285 = vrot.slane %v9913, %v10284
      %v10286 = vsel %vm10199, %v10285, %v10281
      %v10287 = vlaneseq
      %v10288 = vshrl.u32 %v10287, 7
      %v10289 = vsub.s32 %v10201, %v10288
      %v10290 = vrot.slane %v9916, %v10289
      %v10291 = vsel %vm10206, %v10290, %v10286
      %v10292 = vlaneseq
      %v10293 = vshrl.u32 %v10292, 7
      %v10294 = vsub.s32 %v10208, %v10293
      %v10295 = vrot.slane %v9919, %v10294
      %v10296 = vsel %vm10213, %v10295, %v10291
      %v10297 = vlaneseq
      %v10298 = vshrl.u32 %v10297, 7
      %v10299 = vsub.s32 %v10215, %v10298
      %v10300 = vrot.slane %v9922, %v10299
      %v10301 = vsel %vm10220, %v10300, %v10296
      %v10302 = vlaneseq
      %v10303 = vshrl.u32 %v10302, 7
      %v10304 = vsub.s32 %v10222, %v10303
      %v10305 = vrot.slane %v9925, %v10304
      %v10306 = vsel %vm10227, %v10305, %v10301
      %v10307 = vlaneseq
      %v10308 = vshrl.u32 %v10307, 7
      %v10309 = vsub.s32 %v10175, %v10308
      %v10310 = vrot.slane %v9928, %v10309
      %v10311 = vlaneseq
      %v10312 = vshrl.u32 %v10311, 7
      %v10313 = vsub.s32 %v10180, %v10312
      %v10314 = vrot.slane %v9931, %v10313
      %v10315 = vsel %vm10185, %v10314, %v10310
      %v10316 = vlaneseq
      %v10317 = vshrl.u32 %v10316, 7
      %v10318 = vsub.s32 %v10187, %v10317
      %v10319 = vrot.slane %v9934, %v10318
      %v10320 = vsel %vm10192, %v10319, %v10315
      %v10321 = vlaneseq
      %v10322 = vshrl.u32 %v10321, 7
      %v10323 = vsub.s32 %v10194, %v10322
      %v10324 = vrot.slane %v9937, %v10323
      %v10325 = vsel %vm10199, %v10324, %v10320
      %v10326 = vlaneseq
      %v10327 = vshrl.u32 %v10326, 7
      %v10328 = vsub.s32 %v10201, %v10327
      %v10329 = vrot.slane %v9940, %v10328
      %v10330 = vsel %vm10206, %v10329, %v10325
      %v10331 = vlaneseq
      %v10332 = vshrl.u32 %v10331, 7
      %v10333 = vsub.s32 %v10208, %v10332
      %v10334 = vrot.slane %v9943, %v10333
      %v10335 = vsel %vm10213, %v10334, %v10330
      %v10336 = vlaneseq
      %v10337 = vshrl.u32 %v10336, 7
      %v10338 = vsub.s32 %v10215, %v10337
      %v10339 = vrot.slane %v9946, %v10338
      %v10340 = vsel %vm10220, %v10339, %v10335
      %v10341 = vlaneseq
      %v10342 = vshrl.u32 %v10341, 7
      %v10343 = vsub.s32 %v10222, %v10342
      %v10344 = vrot.slane %v9949, %v10343
      %v10345 = vsel %vm10227, %v10344, %v10340
      %v10346 = vlaneseq
      %v10347 = vshrl.u32 %v10346, 7
      %v10348 = vsub.s32 %v10175, %v10347
      %v10349 = vrot.slane %v9952, %v10348
      %v10350 = vlaneseq
      %v10351 = vshrl.u32 %v10350, 7
      %v10352 = vsub.s32 %v10180, %v10351
      %v10353 = vrot.slane %v9955, %v10352
      %v10354 = vsel %vm10185, %v10353, %v10349
      %v10355 = vlaneseq
      %v10356 = vshrl.u32 %v10355, 7
      %v10357 = vsub.s32 %v10187, %v10356
      %v10358 = vrot.slane %v9958, %v10357
      %v10359 = vsel %vm10192, %v10358, %v10354
      %v10360 = vlaneseq
      %v10361 = vshrl.u32 %v10360, 7
      %v10362 = vsub.s32 %v10194, %v10361
      %v10363 = vrot.slane %v9961, %v10362
      %v10364 = vsel %vm10199, %v10363, %v10359
      %v10365 = vlaneseq
      %v10366 = vshrl.u32 %v10365, 7
      %v10367 = vsub.s32 %v10201, %v10366
      %v10368 = vrot.slane %v9964, %v10367
      %v10369 = vsel %vm10206, %v10368, %v10364
      %v10370 = vlaneseq
      %v10371 = vshrl.u32 %v10370, 7
      %v10372 = vsub.s32 %v10208, %v10371
      %v10373 = vrot.slane %v9967, %v10372
      %v10374 = vsel %vm10213, %v10373, %v10369
      %v10375 = vlaneseq
      %v10376 = vshrl.u32 %v10375, 7
      %v10377 = vsub.s32 %v10215, %v10376
      %v10378 = vrot.slane %v9970, %v10377
      %v10379 = vsel %vm10220, %v10378, %v10374
      %v10380 = vlaneseq
      %v10381 = vshrl.u32 %v10380, 7
      %v10382 = vsub.s32 %v10222, %v10381
      %v10383 = vrot.slane %v9973, %v10382
      %v10384 = vsel %vm10227, %v10383, %v10379
      %v10385 = vlaneseq
      %v10386 = vshrl.u32 %v10385, 7
      %v10387 = vsub.s32 %v10175, %v10386
      %v10388 = vrot.slane %v9976, %v10387
      %v10389 = vlaneseq
      %v10390 = vshrl.u32 %v10389, 7
      %v10391 = vsub.s32 %v10180, %v10390
      %v10392 = vrot.slane %v9979, %v10391
      %v10393 = vsel %vm10185, %v10392, %v10388
      %v10394 = vlaneseq
      %v10395 = vshrl.u32 %v10394, 7
      %v10396 = vsub.s32 %v10187, %v10395
      %v10397 = vrot.slane %v9982, %v10396
      %v10398 = vsel %vm10192, %v10397, %v10393
      %v10399 = vlaneseq
      %v10400 = vshrl.u32 %v10399, 7
      %v10401 = vsub.s32 %v10194, %v10400
      %v10402 = vrot.slane %v9985, %v10401
      %v10403 = vsel %vm10199, %v10402, %v10398
      %v10404 = vlaneseq
      %v10405 = vshrl.u32 %v10404, 7
      %v10406 = vsub.s32 %v10201, %v10405
      %v10407 = vrot.slane %v9988, %v10406
      %v10408 = vsel %vm10206, %v10407, %v10403
      %v10409 = vlaneseq
      %v10410 = vshrl.u32 %v10409, 7
      %v10411 = vsub.s32 %v10208, %v10410
      %v10412 = vrot.slane %v9991, %v10411
      %v10413 = vsel %vm10213, %v10412, %v10408
      %v10414 = vlaneseq
      %v10415 = vshrl.u32 %v10414, 7
      %v10416 = vsub.s32 %v10215, %v10415
      %v10417 = vrot.slane %v9994, %v10416
      %v10418 = vsel %vm10220, %v10417, %v10413
      %v10419 = vlaneseq
      %v10420 = vshrl.u32 %v10419, 7
      %v10421 = vsub.s32 %v10222, %v10420
      %v10422 = vrot.slane %v9997, %v10421
      %v10423 = vsel %vm10227, %v10422, %v10418
      %v10424 = vlaneseq
      %v10425 = vshrl.u32 %v10424, 7
      %v10426 = vsub.s32 %v10175, %v10425
      %v10427 = vrot.slane %v10000, %v10426
      %v10428 = vlaneseq
      %v10429 = vshrl.u32 %v10428, 7
      %v10430 = vsub.s32 %v10180, %v10429
      %v10431 = vrot.slane %v10003, %v10430
      %v10432 = vsel %vm10185, %v10431, %v10427
      %v10433 = vlaneseq
      %v10434 = vshrl.u32 %v10433, 7
      %v10435 = vsub.s32 %v10187, %v10434
      %v10436 = vrot.slane %v10006, %v10435
      %v10437 = vsel %vm10192, %v10436, %v10432
      %v10438 = vlaneseq
      %v10439 = vshrl.u32 %v10438, 7
      %v10440 = vsub.s32 %v10194, %v10439
      %v10441 = vrot.slane %v10009, %v10440
      %v10442 = vsel %vm10199, %v10441, %v10437
      %v10443 = vlaneseq
      %v10444 = vshrl.u32 %v10443, 7
      %v10445 = vsub.s32 %v10201, %v10444
      %v10446 = vrot.slane %v10012, %v10445
      %v10447 = vsel %vm10206, %v10446, %v10442
      %v10448 = vlaneseq
      %v10449 = vshrl.u32 %v10448, 7
      %v10450 = vsub.s32 %v10208, %v10449
      %v10451 = vrot.slane %v10015, %v10450
      %v10452 = vsel %vm10213, %v10451, %v10447
      %v10453 = vlaneseq
      %v10454 = vshrl.u32 %v10453, 7
      %v10455 = vsub.s32 %v10215, %v10454
      %v10456 = vrot.slane %v10018, %v10455
      %v10457 = vsel %vm10220, %v10456, %v10452
      %v10458 = vlaneseq
      %v10459 = vshrl.u32 %v10458, 7
      %v10460 = vsub.s32 %v10222, %v10459
      %v10461 = vrot.slane %v10021, %v10460
      %v10462 = vsel %vm10227, %v10461, %v10457
      %v10463 = vlaneseq
      %v10464 = vshrl.u32 %v10463, 7
      %v10465 = vsub.s32 %v10175, %v10464
      %v10466 = vrot.slane %v10024, %v10465
      %v10467 = vlaneseq
      %v10468 = vshrl.u32 %v10467, 7
      %v10469 = vsub.s32 %v10180, %v10468
      %v10470 = vrot.slane %v10027, %v10469
      %v10471 = vsel %vm10185, %v10470, %v10466
      %v10472 = vlaneseq
      %v10473 = vshrl.u32 %v10472, 7
      %v10474 = vsub.s32 %v10187, %v10473
      %v10475 = vrot.slane %v10030, %v10474
      %v10476 = vsel %vm10192, %v10475, %v10471
      %v10477 = vlaneseq
      %v10478 = vshrl.u32 %v10477, 7
      %v10479 = vsub.s32 %v10194, %v10478
      %v10480 = vrot.slane %v10033, %v10479
      %v10481 = vsel %vm10199, %v10480, %v10476
      %v10482 = vlaneseq
      %v10483 = vshrl.u32 %v10482, 7
      %v10484 = vsub.s32 %v10201, %v10483
      %v10485 = vrot.slane %v10036, %v10484
      %v10486 = vsel %vm10206, %v10485, %v10481
      %v10487 = vlaneseq
      %v10488 = vshrl.u32 %v10487, 7
      %v10489 = vsub.s32 %v10208, %v10488
      %v10490 = vrot.slane %v10039, %v10489
      %v10491 = vsel %vm10213, %v10490, %v10486
      %v10492 = vlaneseq
      %v10493 = vshrl.u32 %v10492, 7
      %v10494 = vsub.s32 %v10215, %v10493
      %v10495 = vrot.slane %v10042, %v10494
      %v10496 = vsel %vm10220, %v10495, %v10491
      %v10497 = vlaneseq
      %v10498 = vshrl.u32 %v10497, 7
      %v10499 = vsub.s32 %v10222, %v10498
      %v10500 = vrot.slane %v10045, %v10499
      %v10501 = vsel %vm10227, %v10500, %v10496
      %v10502 = vlaneseq
      %v10503 = vshrl.u32 %v10502, 7
      %v10504 = vsub.s32 %v10175, %v10503
      %v10505 = vrot.slane %v10048, %v10504
      %v10506 = vlaneseq
      %v10507 = vshrl.u32 %v10506, 7
      %v10508 = vsub.s32 %v10180, %v10507
      %v10509 = vrot.slane %v10051, %v10508
      %v10510 = vsel %vm10185, %v10509, %v10505
      %v10511 = vlaneseq
      %v10512 = vshrl.u32 %v10511, 7
      %v10513 = vsub.s32 %v10187, %v10512
      %v10514 = vrot.slane %v10054, %v10513
      %v10515 = vsel %vm10192, %v10514, %v10510
      %v10516 = vlaneseq
      %v10517 = vshrl.u32 %v10516, 7
      %v10518 = vsub.s32 %v10194, %v10517
      %v10519 = vrot.slane %v10057, %v10518
      %v10520 = vsel %vm10199, %v10519, %v10515
      %v10521 = vlaneseq
      %v10522 = vshrl.u32 %v10521, 7
      %v10523 = vsub.s32 %v10201, %v10522
      %v10524 = vrot.slane %v10060, %v10523
      %v10525 = vsel %vm10206, %v10524, %v10520
      %v10526 = vlaneseq
      %v10527 = vshrl.u32 %v10526, 7
      %v10528 = vsub.s32 %v10208, %v10527
      %v10529 = vrot.slane %v10063, %v10528
      %v10530 = vsel %vm10213, %v10529, %v10525
      %v10531 = vlaneseq
      %v10532 = vshrl.u32 %v10531, 7
      %v10533 = vsub.s32 %v10215, %v10532
      %v10534 = vrot.slane %v10066, %v10533
      %v10535 = vsel %vm10220, %v10534, %v10530
      %v10536 = vlaneseq
      %v10537 = vshrl.u32 %v10536, 7
      %v10538 = vsub.s32 %v10222, %v10537
      %v10539 = vrot.slane %v10069, %v10538
      %v10540 = vsel %vm10227, %v10539, %v10535
      %v10541 = vlaneseq
      %v10542 = vshrl.u32 %v10541, 7
      %v10543 = vsub.s32 %v10175, %v10542
      %v10544 = vrot.slane %v10072, %v10543
      %v10545 = vlaneseq
      %v10546 = vshrl.u32 %v10545, 7
      %v10547 = vsub.s32 %v10180, %v10546
      %v10548 = vrot.slane %v10075, %v10547
      %v10549 = vsel %vm10185, %v10548, %v10544
      %v10550 = vlaneseq
      %v10551 = vshrl.u32 %v10550, 7
      %v10552 = vsub.s32 %v10187, %v10551
      %v10553 = vrot.slane %v10078, %v10552
      %v10554 = vsel %vm10192, %v10553, %v10549
      %v10555 = vlaneseq
      %v10556 = vshrl.u32 %v10555, 7
      %v10557 = vsub.s32 %v10194, %v10556
      %v10558 = vrot.slane %v10081, %v10557
      %v10559 = vsel %vm10199, %v10558, %v10554
      %v10560 = vlaneseq
      %v10561 = vshrl.u32 %v10560, 7
      %v10562 = vsub.s32 %v10201, %v10561
      %v10563 = vrot.slane %v10084, %v10562
      %v10564 = vsel %vm10206, %v10563, %v10559
      %v10565 = vlaneseq
      %v10566 = vshrl.u32 %v10565, 7
      %v10567 = vsub.s32 %v10208, %v10566
      %v10568 = vrot.slane %v10087, %v10567
      %v10569 = vsel %vm10213, %v10568, %v10564
      %v10570 = vlaneseq
      %v10571 = vshrl.u32 %v10570, 7
      %v10572 = vsub.s32 %v10215, %v10571
      %v10573 = vrot.slane %v10090, %v10572
      %v10574 = vsel %vm10220, %v10573, %v10569
      %v10575 = vlaneseq
      %v10576 = vshrl.u32 %v10575, 7
      %v10577 = vsub.s32 %v10222, %v10576
      %v10578 = vrot.slane %v10093, %v10577
      %v10579 = vsel %vm10227, %v10578, %v10574
      %vm10580 = vcmask 1041409
      %v10581 = vsel %vm10580, %v10267, %v10228
      %vm10582 = vcmask 1042434
      %v10583 = vsel %vm10582, %v10306, %v10581
      %vm10584 = vcmask 1043459
      %v10585 = vsel %vm10584, %v10345, %v10583
      %vm10586 = vcmask 1044484
      %v10587 = vsel %vm10586, %v10384, %v10585
      %vm10588 = vcmask 1045509
      %v10589 = vsel %vm10588, %v10423, %v10587
      %vm10590 = vcmask 1046534
      %v10591 = vsel %vm10590, %v10462, %v10589
      %vm10592 = vcmask 1047559
      %v10593 = vsel %vm10592, %v10501, %v10591
      %v10594 = vsel %vm10580, %v10579, %v10540
      %vm10597 = vcmask 523264
      %v10598 = vsel %vm10597, %v10593, 0.0
      %10599 = vadd.xlane.f32.xlu0 %v10598
      %v10600 = vpop.xlane.xlu0 %10599
      %vm10601 = vcmask 517120
      %v10602 = vsel %vm10601, %v10594, 0.0
      %10603 = vadd.xlane.f32.xlu0 %v10602
      %v10604 = vpop.xlane.xlu0 %10603
      %v10605 = vld [vmem:[%s23] sm:$0xff]
      %v10606 = vld [vmem:[%s23 + $0x8] sm:$0x3]
      %v10607 = vadd.f32 %v10600, %v10605
      %v10608 = vadd.f32 %v10604, %v10606
      %vm10609 = vcmask 7168
      %v10610 = vsel %vm10609, %v10607, -inf
      %vm10611 = vcmask 1024
      %v10612 = vsel %vm10611, %v10608, -inf
      %v10613 = vmax.f32 %v10610, %v10612
      %v10614 = vrot.slane %v10613, 4
      %v10615 = vmax.f32 %v10613, %v10614
      %v10616 = vrot.slane %v10615, 2
      %v10617 = vmax.f32 %v10615, %v10616
      %v10618 = vrot.slane %v10617, 1
      %v10619 = vmax.f32 %v10617, %v10618
      %v10620 = vsub.f32 %v10607, %v10619
      %v10621 = vsub.f32 %v10608, %v10619
      %v10622 = vmul.f32 %v10620, 1.442695
      %v10623 = vpow.pop %v10622
      %v10624 = vmul.f32 %v10621, 1.442695
      %v10625 = vpow.pop %v10624
      %v10626 = vsel %vm10609, %v10623, 0.0
      %v10627 = vsel %vm10611, %v10625, 0.0
      %v10628 = vadd.f32 %v10626, %v10627
      %v10629 = vrot.slane %v10628, 4
      %v10630 = vadd.f32 %v10628, %v10629
      %v10631 = vrot.slane %v10630, 2
      %v10632 = vadd.f32 %v10630, %v10631
      %v10633 = vrot.slane %v10632, 1
      %v10634 = vadd.f32 %v10632, %v10633
      %v10635 = vlog2.pop %v10634
      %v10636 = vmul.f32 %v10635, 0.6931472
      %v10637 = vsub.f32 %v10620, %v10636
      %v10638 = vsub.f32 %v10621, %v10636
      %10640 = vset.pattern.permute.xlu0 0
      %10641 = vperm.xlu0 %10640, %v10637
      %v10642 = vpop.permute.xlu0 %10641
      %10645 = vset.pattern.permute.xlu0 0
      %10646 = vperm.xlu0 %10645, %v10638
      %v10647 = vpop.permute.xlu0 %10646
      %10649 = vst [vmem:[%s737] sm:$0xff] %v10642
      %10650 = vst [vmem:[%s737 + $0x8] sm:$0x3] %v10647
      %p10651 = scmp.lt.s32.totalorder %s35, 1
      %s10652 = scalar_select %p10651, %s35, 1
      %s10653 = smul.addr %s10652, 2
      %s10654 = smul.addr %s10653, 8
      %s10655 = scalar_lea.vmem %s24, %s10654
      // Predicated region
      $region117: #{cnn_forward.1} parent=115 // pred_check
        %p10656 = pneg %p562
      $region118: #{cnn_forward.1} parent=115 // pred_check_branch
        %10658 = sbr.rel (%p10656) target = $region120
      $region119: #{cnn_forward.1} parent=115 // pred_region
        _
      $region120: #{cnn_forward.1} parent=115 // pred_fallthru
        _
    $region116: #{cnn_forward.1} parent=5 // pred_fallthru
      _
    %p10659 = scmp.le.s32.totalorder 2, %s30
    // Predicated region
    $region121: #{cnn_forward.1} parent=5 // pred_check
      %p10660 = pneg %p10659
    $region122: #{cnn_forward.1} parent=5 // pred_check_branch
      %10662 = sbr.rel (%p10660) target = $region124
    $region123: #{cnn_forward.1} parent=5 // pred_region
      %s10663 = ssub.s32 %s30, 2
      // Predicated region
      $region125: #{cnn_forward.1} parent=123 // pred_check
        %p10664 = pneg %p568
      $region126: #{cnn_forward.1} parent=123 // pred_check_branch
        %10666 = sbr.rel (%p10664) target = $region128
      $region127: #{cnn_forward.1} parent=123 // pred_region
        %p10667 = scmp.lt.s32.totalorder %s36, 1
        %s10668 = scalar_select %p10667, %s36, 1
        %s10669 = smul.addr %s10668, 2
        %s10670 = smul.addr %s10669, 8
        %s10671 = scalar_lea.vmem %s24, %s10670
      $region128: #{cnn_forward.1} parent=123 // pred_fallthru
        _
    $region124: #{cnn_forward.1} parent=5 // pred_fallthru
      _
  $region6: #{cnn_forward.1} parent=0 // loop_footer
    %s34 = sadd.s32 1, %s30
  $region7: #{cnn_forward.1} parent=0 // loop_footer_branch
    %29 = sbr.rel target = $region3
  $region8: #{cnn_forward.1} parent=0 // loop_exit
    _

</llo_original>
